<compile_context>
chip_gen: v6e
topology: v6e:2x2x1
jax: 0.10.0
libtpu: 0.0.40
codegen_flags: <defaults>
</compile_context>

<pallas_src>
import functools

import jax
import jax.numpy as jnp
from jax import lax
from jax.experimental import pallas as pl
from jax.experimental.pallas import tpu as pltpu


def _bilstm_layer_kernel(lens_ref, x_ref, wih_ref, whh_f_ref, whh_r_ref, b_ref,
                         y_ref, gx_ref, hf_ref, cf_ref, hr_ref, cr_ref,
                         *, hidden, t_chunk, unroll):
    """One fused bidirectional LSTM layer over the whole (padded) sequence.

    lens_ref  : (B, 1) int32   per-sequence valid length
    x_ref     : (T, B, Din)    time-major layer input (bf16)
    wih_ref   : (Din, 8H)      fused input->gate weights (bf16), direction-major
                               columns [fwd: i,f,o,g | rev: i,f,o,g]
    whh_f_ref : (H, 4H)        dense forward hidden->gate weights (bf16)
    whh_r_ref : (H, 4H)        dense reverse hidden->gate weights (bf16)
    b_ref     : (1, 8H)        fused bias b_ih + b_hh (f32), direction-major
    y_ref     : (T, B, 2H)     output; [:, :, :H] forward, [:, :, H:] backward
    gx_ref    : (T, B, 8H)     VMEM scratch: hoisted input projection (bf16)
    hf/cf/hr/cr : (B, H) f32   per-direction recurrent state scratch
    """
    T, B, Din = x_ref.shape
    H = hidden
    H2, H3, H4, H8 = 2 * H, 3 * H, 4 * H, 8 * H
    Tc = t_chunk
    cdt = wih_ref.dtype                                  # bf16 MXU feed

    # ---- hoisted input projection, computed in time-chunks into bf16 scratch ----
    bias = b_ref[...]                                    # (1, 8H) f32 (hoisted)

    def proj_chunk(ci, carry):
        t0 = pl.multiple_of(ci * Tc, Tc)
        xc = x_ref[pl.ds(t0, Tc)]                        # (Tc, B, Din) bf16
        g = jnp.dot(xc.reshape(Tc * B, Din), wih_ref[...],
                    preferred_element_type=jnp.float32) + bias
        gx_ref[pl.ds(t0, Tc)] = g.reshape(Tc, B, H8).astype(gx_ref.dtype)
        return carry

    lax.fori_loop(0, T // Tc, proj_chunk, 0)

    # ---- init recurrent state ----
    hf_ref[...] = jnp.zeros_like(hf_ref)
    cf_ref[...] = jnp.zeros_like(cf_ref)
    hr_ref[...] = jnp.zeros_like(hr_ref)
    cr_ref[...] = jnp.zeros_like(cr_ref)

    lens = lens_ref[...]                                 # (B, 1) int32

    def step(i, carry):
        tf = i                  # forward direction time index: 0 .. T-1
        tr = T - 1 - i          # backward direction time index: T-1 .. 0

        # Each direction loads only its own 4H-wide half of its own gx row.
        gx_f = gx_ref[tf, :, pl.ds(0, H4)]               # (B, 4H) bf16
        gx_r = gx_ref[tr, :, pl.ds(H4, H4)]              # (B, 4H) bf16

        h_f = hf_ref[...]
        c_f = cf_ref[...]
        h_r = hr_ref[...]
        c_r = cr_ref[...]

        # Two dense per-direction recurrent matmuls (pipeline through the MXU).
        gates_f = gx_f + jnp.dot(h_f.astype(cdt), whh_f_ref[...],
                                 preferred_element_type=jnp.float32)   # (B, 4H)
        gates_r = gx_r + jnp.dot(h_r.astype(cdt), whh_r_ref[...],
                                 preferred_element_type=jnp.float32)   # (B, 4H)

        def cell_tail(gates, c_prev):
            sig = jax.nn.sigmoid(gates[:, :H3])          # i | f | o  (contiguous)
            g_g = jnp.tanh(gates[:, H3:])                # g
            c_new = sig[:, H:H2] * c_prev + sig[:, :H] * g_g
            h_new = sig[:, H2:H3] * jnp.tanh(c_new)
            return h_new, c_new

        hf_new, cf_new = cell_tail(gates_f, c_f)
        hr_new, cr_new = cell_tail(gates_r, c_r)

        # Packed-sequence masking: only advance state on valid timesteps.
        valid_f = lens > tf                              # (B, 1) bool
        valid_r = lens > tr

        hf_ref[...] = jnp.where(valid_f, hf_new, h_f)
        cf_ref[...] = jnp.where(valid_f, cf_new, c_f)
        hr_ref[...] = jnp.where(valid_r, hr_new, h_r)
        cr_ref[...] = jnp.where(valid_r, cr_new, c_r)

        # pad_packed_sequence semantics: zero output at padded positions.
        # Direct half-slice stores (no read-modify-write of the output row).
        y_ref[tf, :, pl.ds(0, H)] = jnp.where(valid_f, hf_new, 0.0).astype(y_ref.dtype)
        y_ref[tr, :, pl.ds(H, H)] = jnp.where(valid_r, hr_new, 0.0).astype(y_ref.dtype)
        return carry

    lax.fori_loop(0, T, step, 0, unroll=unroll)


def _pack_bidir_weights(dir_params, H, compute_dtype=jnp.bfloat16):
    """Pack PyTorch-layout per-direction weights into the fused kernel layout.

    Direction-major column layout (width 8H):
      [fwd: i,f,o,g (4H) | rev: i,f,o,g (4H)]
    W_hh stays dense per direction: whh_f (H,4H), whh_r (H,4H).
    """
    (wih_f, whh_f, bih_f, bhh_f), (wih_r, whh_r, bih_r, bhh_r) = dir_params
    gate_order = (0, 1, 3, 2)   # PyTorch rows are (i, f, g, o) -> take i, f, o, g

    def pack_dir(w_ih, w_hh, b_ih, b_hh):
        wih_cols = [w_ih[g * H:(g + 1) * H].T for g in gate_order]   # (Din, H) each
        whh_cols = [w_hh[g * H:(g + 1) * H].T for g in gate_order]   # (H, H) each
        b_cols = [b_ih[g * H:(g + 1) * H] + b_hh[g * H:(g + 1) * H] for g in gate_order]
        return (jnp.concatenate(wih_cols, axis=1),
                jnp.concatenate(whh_cols, axis=1),
                jnp.concatenate(b_cols))

    wih_fc, whh_fc, b_fc = pack_dir(wih_f, whh_f, bih_f, bhh_f)
    wih_rc, whh_rc, b_rc = pack_dir(wih_r, whh_r, bih_r, bhh_r)

    wih_c = jnp.concatenate([wih_fc, wih_rc], axis=1).astype(compute_dtype)   # (Din, 8H)
    whh_f_c = whh_fc.astype(compute_dtype)                                     # (H, 4H)
    whh_r_c = whh_rc.astype(compute_dtype)                                     # (H, 4H)
    b_c = jnp.concatenate([b_fc, b_rc])[None, :].astype(jnp.float32)           # (1, 8H)
    return wih_c, whh_f_c, whh_r_c, b_c


def _pick_time_chunk(T, B, gate_width, max_f32_bytes=4 << 20, cap_steps=32):
    """Largest divisor of T (<= cap_steps) whose f32 projection temporary fits."""
    row_bytes = B * gate_width * 4
    best = 1
    for c in range(1, min(T, cap_steps) + 1):
        if T % c == 0 and c * row_bytes <= max(max_f32_bytes, row_bytes):
            best = c
    return best


def _run_bilstm_layer(x_tm, lens_col, wih_c, whh_f_c, whh_r_c, b_c, hidden,
                      out_dtype):
    T, B, Din = x_tm.shape
    H = hidden
    unroll = 8 if T % 8 == 0 else (4 if T % 4 == 0 else (2 if T % 2 == 0 else 1))
    t_chunk = _pick_time_chunk(T, B, 8 * H)
    kernel = functools.partial(_bilstm_layer_kernel, hidden=H,
                               t_chunk=t_chunk, unroll=unroll)

    out_itemsize = jnp.dtype(out_dtype).itemsize
    # Useful FLOPs only (dense per-direction recurrent matmuls).
    flops = 2 * T * B * Din * 8 * H + 2 * (2 * T * B * H * 4 * H)
    bytes_accessed = (x_tm.size * x_tm.dtype.itemsize
                      + wih_c.size * wih_c.dtype.itemsize
                      + whh_f_c.size * whh_f_c.dtype.itemsize
                      + whh_r_c.size * whh_r_c.dtype.itemsize
                      + T * B * 2 * H * out_itemsize)
    cost = pl.CostEstimate(flops=int(flops),
                           transcendentals=int(10 * T * B * H),
                           bytes_accessed=int(bytes_accessed))

    # VMEM limit derived from the actual buffers of this call (x/y/weights are
    # conservatively counted double-buffered), capped below physical capacity.
    io_bytes = 2 * (x_tm.size * x_tm.dtype.itemsize
                    + wih_c.size * wih_c.dtype.itemsize
                    + whh_f_c.size * whh_f_c.dtype.itemsize
                    + whh_r_c.size * whh_r_c.dtype.itemsize
                    + b_c.size * b_c.dtype.itemsize
                    + lens_col.size * lens_col.dtype.itemsize
                    + T * B * 2 * H * out_itemsize)
    scratch_bytes = T * B * 8 * H * 2 + 4 * B * H * 4
    need = int((io_bytes + scratch_bytes) * 1.2) + (2 << 20)
    try:
        cap = int(pltpu.get_tpu_info().vmem_capacity_bytes)
    except Exception:
        cap = 64 << 20   # conservative fallback (v7x per-core VMEM)
    vmem_limit = max(16 << 20, min(need, int(cap * 0.9)))

    return pl.pallas_call(
        kernel,
        out_shape=jax.ShapeDtypeStruct((T, B, 2 * H), out_dtype),
        grid=(1,),
        in_specs=[
            pl.BlockSpec((B, 1), lambda i: (0, 0)),             # lengths (int32)
            pl.BlockSpec((T, B, Din), lambda i: (0, 0, 0)),     # x (bf16)
            pl.BlockSpec((Din, 8 * H), lambda i: (0, 0)),       # fused W_ih (bf16)
            pl.BlockSpec((H, 4 * H), lambda i: (0, 0)),         # W_hh fwd (bf16)
            pl.BlockSpec((H, 4 * H), lambda i: (0, 0)),         # W_hh rev (bf16)
            pl.BlockSpec((1, 8 * H), lambda i: (0, 0)),         # fused bias (f32)
        ],
        out_specs=pl.BlockSpec((T, B, 2 * H), lambda i: (0, 0, 0)),
        scratch_shapes=[
            pltpu.VMEM((T, B, 8 * H), jnp.bfloat16),            # hoisted projection
            pltpu.VMEM((B, H), jnp.float32),                    # h fwd
            pltpu.VMEM((B, H), jnp.float32),                    # c fwd
            pltpu.VMEM((B, H), jnp.float32),                    # h rev
            pltpu.VMEM((B, H), jnp.float32),                    # c rev
        ],
        compiler_params=pltpu.CompilerParams(
            dimension_semantics=("arbitrary",),
            vmem_limit_bytes=vmem_limit),
        cost_estimate=cost,
    )(lens_col, x_tm, wih_c, whh_f_c, whh_r_c, b_c)


def init_lstm_params(key, input_dim, hidden_dim, num_layers=2, bidirectional=True):
    """Synthetic init matching nn.LSTM parameter shapes (uniform(+-1/sqrt(H)),
    gate order i,f,g,o)."""
    num_dirs = 2 if bidirectional else 1
    bound = 1.0 / float(hidden_dim) ** 0.5
    params = []
    for layer in range(num_layers):
        layer_in = input_dim if layer == 0 else hidden_dim * num_dirs
        dirs = []
        for _ in range(num_dirs):
            key, k1, k2, k3, k4 = jax.random.split(key, 5)
            w_ih = jax.random.uniform(k1, (4 * hidden_dim, layer_in),
                                      jnp.float32, -bound, bound)
            w_hh = jax.random.uniform(k2, (4 * hidden_dim, hidden_dim),
                                      jnp.float32, -bound, bound)
            b_ih = jax.random.uniform(k3, (4 * hidden_dim,),
                                      jnp.float32, -bound, bound)
            b_hh = jax.random.uniform(k4, (4 * hidden_dim,),
                                      jnp.float32, -bound, bound)
            dirs.append((w_ih, w_hh, b_ih, b_hh))
        params.append(dirs)
    return params


def lstm_forward(batch_x, padding_masks, params):
    """Forward pass of the PyTorch LSTM module (batch_first, bidirectional).

    batch_x       : (B, T, input_dim)
    padding_masks : (B, T) bool or None
    returns       : (B, T, 2*hidden_dim) float32, zeros past each sequence length.
    Note: a row whose mask is all-False gets length 0 and an all-zero output
    (PyTorch's pack_padded_sequence would raise in that case).
    """
    B, T, _ = batch_x.shape

    if padding_masks is None:
        lengths = jnp.full((B,), T, dtype=jnp.int32)
    else:
        idx = jnp.arange(T, dtype=jnp.int32)
        # last True index + 1 (same as torch.where(mask)[0][-1] + 1)
        lengths = jnp.max(jnp.where(padding_masks, idx[None, :] + 1, 0),
                          axis=1).astype(jnp.int32)

    # Pad batch to a sublane multiple (8). For throughput-bound workloads,
    # stack independent micro-batches toward the MXU row count (128/256)
    # instead — real extra rows are essentially free per recurrent step.
    B_pad = ((B + 7) // 8) * 8
    pad_b = B_pad - B

    x_tm = jnp.transpose(batch_x, (1, 0, 2)).astype(jnp.bfloat16)     # (T, B, Din)
    if pad_b:
        x_tm = jnp.pad(x_tm, ((0, 0), (0, pad_b), (0, 0)))
        lengths = jnp.pad(lengths, (0, pad_b))                        # pad rows: len 0
    lens_col = lengths[:, None]                                       # (B_pad, 1)

    num_layers = len(params)
    y = None
    layer_in = x_tm
    for li, dir_params in enumerate(params):
        assert len(dir_params) == 2, "kernel implements the bidirectional module"
        H = dir_params[0][1].shape[1]                                 # w_hh: (4H, H)
        wih_c, whh_f_c, whh_r_c, b_c = _pack_bidir_weights(dir_params, H)
        # Intermediate layers emit bf16 directly (no XLA convert); last layer f32.
        out_dtype = jnp.float32 if li == num_layers - 1 else jnp.bfloat16
        y = _run_bilstm_layer(layer_in, lens_col, wih_c, whh_f_c, whh_r_c, b_c,
                              H, out_dtype)
        layer_in = y
    return jnp.transpose(y, (1, 0, 2))[:B]                            # (B, T, 2H) f32


def _lstm_reference(batch_x, lengths, params):
    """Pure-JAX f32 reference with packed-sequence semantics (for verification)."""
    B, T, _ = batch_x.shape

    def cell(x_t, h, c, w_ih, w_hh, b_ih, b_hh):
        H = h.shape[1]
        gates = x_t @ w_ih.T + h @ w_hh.T + b_ih + b_hh
        i = jax.nn.sigmoid(gates[:, 0 * H:1 * H])
        f = jax.nn.sigmoid(gates[:, 1 * H:2 * H])
        g = jnp.tanh(gates[:, 2 * H:3 * H])
        o = jax.nn.sigmoid(gates[:, 3 * H:4 * H])
        c_new = f * c + i * g
        return o * jnp.tanh(c_new), c_new

    layer_in = batch_x.astype(jnp.float32)
    for dirs in params:
        outs = []
        for d, (w_ih, w_hh, b_ih, b_hh) in enumerate(dirs):
            H = w_hh.shape[1]
            h = jnp.zeros((B, H), jnp.float32)
            c = jnp.zeros((B, H), jnp.float32)
            ys = [None] * T
            t_order = range(T) if d == 0 else range(T - 1, -1, -1)
            for t in t_order:
                valid = (t < lengths)[:, None]
                h_new, c_new = cell(layer_in[:, t], h, c, w_ih, w_hh, b_ih, b_hh)
                h = jnp.where(valid, h_new, h)
                c = jnp.where(valid, c_new, c)
                ys[t] = jnp.where(valid, h, 0.0)
            outs.append(jnp.stack(ys, axis=1))                        # (B, T, H)
        layer_in = jnp.concatenate(outs, axis=-1)
    return layer_in


if __name__ == "__main__":
    B, T = 2, 8
    input_dim, hidden_dim = 4, 32
    num_layers, bidirectional = 2, True

    key = jax.random.PRNGKey(0)
    key, kx = jax.random.split(key)
    batch_x = jax.random.normal(kx, (B, T, input_dim), jnp.float32)

    # Variable lengths: seq 0 full length 8, seq 1 length 5.
    lengths = jnp.array([8, 5], dtype=jnp.int32)
    padding_masks = jnp.arange(T)[None, :] < lengths[:, None]         # (B, T) bool

    params = init_lstm_params(key, input_dim, hidden_dim,
                              num_layers=num_layers, bidirectional=bidirectional)

    fwd = jax.jit(lstm_forward)
    out = jax.block_until_ready(fwd(batch_x, padding_masks, params))

    assert out.shape == (B, T, 2 * hidden_dim), out.shape
    # Padded timesteps of the shorter sequence must be exactly zero.
    assert float(jnp.max(jnp.abs(out[1, 5:, :]))) == 0.0

    # Verify against a pure-JAX f32 reference (tolerance covers bf16 MXU feeds
    # and the bf16 gx scratch).
    ref = _lstm_reference(batch_x, lengths, params)
    err = float(jnp.max(jnp.abs(out - ref)))
    assert err < 1e-1, f"max abs err vs reference: {err}"

    print("KERNEL_OK")
</pallas_src>

<mosaic_0001>
module attributes {stable_mosaic.version = 11 : i64} {
  func.func @_bilstm_layer_kernel(%arg0: i32, %arg1: memref<8x1xi32, #tpu.memory_space<vmem>>, %arg2: memref<8x8x4xbf16, #tpu.memory_space<vmem>>, %arg3: memref<4x256xbf16, #tpu.memory_space<vmem>>, %arg4: memref<32x128xbf16, #tpu.memory_space<vmem>>, %arg5: memref<32x128xbf16, #tpu.memory_space<vmem>>, %arg6: memref<1x256xf32, #tpu.memory_space<vmem>>, %arg7: memref<8x8x64xbf16, #tpu.memory_space<vmem>>, %arg8: memref<8x8x256xbf16, #tpu.memory_space<vmem>>, %arg9: memref<8x32xf32, #tpu.memory_space<vmem>>, %arg10: memref<8x32xf32, #tpu.memory_space<vmem>>, %arg11: memref<8x32xf32, #tpu.memory_space<vmem>>, %arg12: memref<8x32xf32, #tpu.memory_space<vmem>>) attributes {dimension_semantics = [#tpu.dimension_semantics<arbitrary>], iteration_bounds = array<i64: 1>, scalar_prefetch = 0 : i64, scratch_operands = 5 : i64, tpu.core_type = #tpu.core_type<tc>, window_params = [{pipeline_mode = #tpu.pipeline_mode<synchronous>, transform_indices = @transform_0, window_bounds = array<i64: 8, 1>}, {pipeline_mode = #tpu.pipeline_mode<synchronous>, transform_indices = @transform_1, window_bounds = array<i64: 8, 8, 4>}, {pipeline_mode = #tpu.pipeline_mode<synchronous>, transform_indices = @transform_2, window_bounds = array<i64: 4, 256>}, {pipeline_mode = #tpu.pipeline_mode<synchronous>, transform_indices = @transform_3, window_bounds = array<i64: 32, 128>}, {pipeline_mode = #tpu.pipeline_mode<synchronous>, transform_indices = @transform_4, window_bounds = array<i64: 32, 128>}, {pipeline_mode = #tpu.pipeline_mode<synchronous>, transform_indices = @transform_5, window_bounds = array<i64: 1, 256>}, {pipeline_mode = #tpu.pipeline_mode<synchronous>, transform_indices = @transform_6, window_bounds = array<i64: 8, 8, 64>}]} {
    %c0 = arith.constant 0 : index
    %c0_0 = arith.constant 0 : index
    %0 = vector.load %arg6[%c0, %c0_0] : memref<1x256xf32, #tpu.memory_space<vmem>>, vector<1x256xf32>
    %c0_i32 = arith.constant 0 : i32
    %c8_i32 = arith.constant 8 : i32
    %1 = arith.muli %c0_i32, %c8_i32 : i32
    %2 = tpu.assume_multiple %1, 8 : i32
    %3 = arith.index_cast %2 : i32 to index
    %c0_1 = arith.constant 0 : index
    %c0_2 = arith.constant 0 : index
    %4 = vector.load %arg2[%3, %c0_1, %c0_2] : memref<8x8x4xbf16, #tpu.memory_space<vmem>>, vector<8x8x4xbf16>
    %5 = vector.shape_cast %4 : vector<8x8x4xbf16> to vector<64x4xbf16>
    %c0_3 = arith.constant 0 : index
    %c0_4 = arith.constant 0 : index
    %6 = vector.load %arg3[%c0_3, %c0_4] : memref<4x256xbf16, #tpu.memory_space<vmem>>, vector<4x256xbf16>
    %cst = arith.constant dense<0.000000e+00> : vector<64x256xf32>
    %7 = tpu.matmul %5, %6, %cst {dimension_numbers = #tpu.dot_dimension_numbers<[1], [0], [0], [1], [0, 0, 1, 1], [], []>} : vector<64x4xbf16>, vector<4x256xbf16>, vector<64x256xf32> -> vector<64x256xf32>
    %8 = vector.broadcast %0 : vector<1x256xf32> to vector<64x256xf32>
    %9 = arith.addf %7, %8 : vector<64x256xf32>
    %10 = vector.shape_cast %9 : vector<64x256xf32> to vector<8x8x256xf32>
    %11 = arith.truncf %10 : vector<8x8x256xf32> to vector<8x8x256xbf16>
    %12 = arith.index_cast %2 : i32 to index
    %c0_5 = arith.constant 0 : index
    %c0_6 = arith.constant 0 : index
    %13 = vector.load %arg8[%12, %c0_5, %c0_6] : memref<8x8x256xbf16, #tpu.memory_space<vmem>>, vector<8x8x256xbf16>
    tpu.vector_store %arg8[%12, %c0_5, %c0_6], %11 {strides = array<i32>} : memref<8x8x256xbf16, #tpu.memory_space<vmem>>, vector<8x8x256xbf16>,
    %c1_i32 = arith.constant 1 : i32
    %cst_7 = arith.constant 0.000000e+00 : f32
    %14 = vector.broadcast %cst_7 : f32 to vector<8x32xf32>
    %c0_8 = arith.constant 0 : index
    %c0_9 = arith.constant 0 : index
    %15 = vector.load %arg9[%c0_8, %c0_9] : memref<8x32xf32, #tpu.memory_space<vmem>>, vector<8x32xf32>
    tpu.vector_store %arg9[%c0_8, %c0_9], %14 {strides = array<i32>} : memref<8x32xf32, #tpu.memory_space<vmem>>, vector<8x32xf32>,
    %cst_10 = arith.constant 0.000000e+00 : f32
    %16 = vector.broadcast %cst_10 : f32 to vector<8x32xf32>
    %c0_11 = arith.constant 0 : index
    %c0_12 = arith.constant 0 : index
    %17 = vector.load %arg10[%c0_11, %c0_12] : memref<8x32xf32, #tpu.memory_space<vmem>>, vector<8x32xf32>
    tpu.vector_store %arg10[%c0_11, %c0_12], %16 {strides = array<i32>} : memref<8x32xf32, #tpu.memory_space<vmem>>, vector<8x32xf32>,
    %cst_13 = arith.constant 0.000000e+00 : f32
    %18 = vector.broadcast %cst_13 : f32 to vector<8x32xf32>
    %c0_14 = arith.constant 0 : index
    %c0_15 = arith.constant 0 : index
    %19 = vector.load %arg11[%c0_14, %c0_15] : memref<8x32xf32, #tpu.memory_space<vmem>>, vector<8x32xf32>
    tpu.vector_store %arg11[%c0_14, %c0_15], %18 {strides = array<i32>} : memref<8x32xf32, #tpu.memory_space<vmem>>, vector<8x32xf32>,
    %cst_16 = arith.constant 0.000000e+00 : f32
    %20 = vector.broadcast %cst_16 : f32 to vector<8x32xf32>
    %c0_17 = arith.constant 0 : index
    %c0_18 = arith.constant 0 : index
    %21 = vector.load %arg12[%c0_17, %c0_18] : memref<8x32xf32, #tpu.memory_space<vmem>>, vector<8x32xf32>
    tpu.vector_store %arg12[%c0_17, %c0_18], %20 {strides = array<i32>} : memref<8x32xf32, #tpu.memory_space<vmem>>, vector<8x32xf32>,
    %c0_19 = arith.constant 0 : index
    %c0_20 = arith.constant 0 : index
    %22 = vector.load %arg1[%c0_19, %c0_20] : memref<8x1xi32, #tpu.memory_space<vmem>>, vector<8x1xi32>
    %c0_i32_21 = arith.constant 0 : i32
    %c7_i32 = arith.constant 7 : i32
    %23 = arith.subi %c7_i32, %c0_i32_21 : i32
    %24 = arith.index_cast %c0_i32_21 : i32 to index
    %c0_22 = arith.constant 0 : index
    %c0_23 = arith.constant 0 : index
    %25 = vector.load %arg8[%24, %c0_22, %c0_23] : memref<8x8x256xbf16, #tpu.memory_space<vmem>>, vector<1x8x128xbf16>
    %26 = vector.shape_cast %25 : vector<1x8x128xbf16> to vector<8x128xbf16>
    %27 = arith.index_cast %23 : i32 to index
    %c0_24 = arith.constant 0 : index
    %c128 = arith.constant 128 : index
    %28 = vector.load %arg8[%27, %c0_24, %c128] : memref<8x8x256xbf16, #tpu.memory_space<vmem>>, vector<1x8x128xbf16>
    %29 = vector.shape_cast %28 : vector<1x8x128xbf16> to vector<8x128xbf16>
    %c0_25 = arith.constant 0 : index
    %c0_26 = arith.constant 0 : index
    %30 = vector.load %arg9[%c0_25, %c0_26] : memref<8x32xf32, #tpu.memory_space<vmem>>, vector<8x32xf32>
    %c0_27 = arith.constant 0 : index
    %c0_28 = arith.constant 0 : index
    %31 = vector.load %arg10[%c0_27, %c0_28] : memref<8x32xf32, #tpu.memory_space<vmem>>, vector<8x32xf32>
    %c0_29 = arith.constant 0 : index
    %c0_30 = arith.constant 0 : index
    %32 = vector.load %arg11[%c0_29, %c0_30] : memref<8x32xf32, #tpu.memory_space<vmem>>, vector<8x32xf32>
    %c0_31 = arith.constant 0 : index
    %c0_32 = arith.constant 0 : index
    %33 = vector.load %arg12[%c0_31, %c0_32] : memref<8x32xf32, #tpu.memory_space<vmem>>, vector<8x32xf32>
    %34 = arith.truncf %30 : vector<8x32xf32> to vector<8x32xbf16>
    %c0_33 = arith.constant 0 : index
    %c0_34 = arith.constant 0 : index
    %35 = vector.load %arg4[%c0_33, %c0_34] : memref<32x128xbf16, #tpu.memory_space<vmem>>, vector<32x128xbf16>
    %cst_35 = arith.constant dense<0.000000e+00> : vector<8x128xf32>
    %36 = tpu.matmul %34, %35, %cst_35 {dimension_numbers = #tpu.dot_dimension_numbers<[1], [0], [0], [1], [0, 0, 1, 1], [], []>} : vector<8x32xbf16>, vector<32x128xbf16>, vector<8x128xf32> -> vector<8x128xf32>
    %37 = arith.extf %26 : vector<8x128xbf16> to vector<8x128xf32>
    %38 = arith.addf %37, %36 : vector<8x128xf32>
    %39 = arith.truncf %32 : vector<8x32xf32> to vector<8x32xbf16>
    %c0_36 = arith.constant 0 : index
    %c0_37 = arith.constant 0 : index
    %40 = vector.load %arg5[%c0_36, %c0_37] : memref<32x128xbf16, #tpu.memory_space<vmem>>, vector<32x128xbf16>
    %cst_38 = arith.constant dense<0.000000e+00> : vector<8x128xf32>
    %41 = tpu.matmul %39, %40, %cst_38 {dimension_numbers = #tpu.dot_dimension_numbers<[1], [0], [0], [1], [0, 0, 1, 1], [], []>} : vector<8x32xbf16>, vector<32x128xbf16>, vector<8x128xf32> -> vector<8x128xf32>
    %42 = arith.extf %29 : vector<8x128xbf16> to vector<8x128xf32>
    %43 = arith.addf %42, %41 : vector<8x128xf32>
    %44 = vector.extract_strided_slice %38 {offsets = [0, 0], sizes = [8, 96], strides = [1, 1]} : vector<8x128xf32> to vector<8x96xf32>
    %45 = arith.negf %44 : vector<8x96xf32>
    %46 = math.exp %45 : vector<8x96xf32>
    %cst_39 = arith.constant 1.000000e+00 : f32
    %47 = vector.broadcast %cst_39 : f32 to vector<8x96xf32>
    %48 = arith.addf %47, %46 : vector<8x96xf32>
    %49 = arith.divf %47, %48 : vector<8x96xf32>
    %50 = vector.extract_strided_slice %38 {offsets = [0, 96], sizes = [8, 32], strides = [1, 1]} : vector<8x128xf32> to vector<8x32xf32>
    %51 = math.tanh %50 : vector<8x32xf32>
    %52 = vector.extract_strided_slice %49 {offsets = [0, 32], sizes = [8, 32], strides = [1, 1]} : vector<8x96xf32> to vector<8x32xf32>
    %53 = arith.mulf %52, %31 : vector<8x32xf32>
    %54 = vector.extract_strided_slice %49 {offsets = [0, 0], sizes = [8, 32], strides = [1, 1]} : vector<8x96xf32> to vector<8x32xf32>
    %55 = arith.mulf %54, %51 : vector<8x32xf32>
    %56 = arith.addf %53, %55 : vector<8x32xf32>
    %57 = vector.extract_strided_slice %49 {offsets = [0, 64], sizes = [8, 32], strides = [1, 1]} : vector<8x96xf32> to vector<8x32xf32>
    %58 = math.tanh %56 : vector<8x32xf32>
    %59 = arith.mulf %57, %58 : vector<8x32xf32>
    %60 = vector.extract_strided_slice %43 {offsets = [0, 0], sizes = [8, 96], strides = [1, 1]} : vector<8x128xf32> to vector<8x96xf32>
    %61 = arith.negf %60 : vector<8x96xf32>
    %62 = math.exp %61 : vector<8x96xf32>
    %cst_40 = arith.constant 1.000000e+00 : f32
    %63 = vector.broadcast %cst_40 : f32 to vector<8x96xf32>
    %64 = arith.addf %63, %62 : vector<8x96xf32>
    %65 = arith.divf %63, %64 : vector<8x96xf32>
    %66 = vector.extract_strided_slice %43 {offsets = [0, 96], sizes = [8, 32], strides = [1, 1]} : vector<8x128xf32> to vector<8x32xf32>
    %67 = math.tanh %66 : vector<8x32xf32>
    %68 = vector.extract_strided_slice %65 {offsets = [0, 32], sizes = [8, 32], strides = [1, 1]} : vector<8x96xf32> to vector<8x32xf32>
    %69 = arith.mulf %68, %33 : vector<8x32xf32>
    %70 = vector.extract_strided_slice %65 {offsets = [0, 0], sizes = [8, 32], strides = [1, 1]} : vector<8x96xf32> to vector<8x32xf32>
    %71 = arith.mulf %70, %67 : vector<8x32xf32>
    %72 = arith.addf %69, %71 : vector<8x32xf32>
    %73 = vector.extract_strided_slice %65 {offsets = [0, 64], sizes = [8, 32], strides = [1, 1]} : vector<8x96xf32> to vector<8x32xf32>
    %74 = math.tanh %72 : vector<8x32xf32>
    %75 = arith.mulf %73, %74 : vector<8x32xf32>
    %76 = vector.broadcast %c0_i32_21 : i32 to vector<8x1xi32>
    %77 = arith.cmpi sgt, %22, %76 : vector<8x1xi32>
    %78 = vector.broadcast %23 : i32 to vector<8x1xi32>
    %79 = arith.cmpi sgt, %22, %78 : vector<8x1xi32>
    %80 = vector.shape_cast %77 : vector<8x1xi1> to vector<8x1xi1>
    %81 = vector.broadcast %80 : vector<8x1xi1> to vector<8x32xi1>
    %82 = arith.select %81, %59, %30 : vector<8x32xi1>, vector<8x32xf32>
    %c0_41 = arith.constant 0 : index
    %c0_42 = arith.constant 0 : index
    %83 = vector.load %arg9[%c0_41, %c0_42] : memref<8x32xf32, #tpu.memory_space<vmem>>, vector<8x32xf32>
    tpu.vector_store %arg9[%c0_41, %c0_42], %82 {strides = array<i32>} : memref<8x32xf32, #tpu.memory_space<vmem>>, vector<8x32xf32>,
    %84 = vector.shape_cast %77 : vector<8x1xi1> to vector<8x1xi1>
    %85 = vector.broadcast %84 : vector<8x1xi1> to vector<8x32xi1>
    %86 = arith.select %85, %56, %31 : vector<8x32xi1>, vector<8x32xf32>
    %c0_43 = arith.constant 0 : index
    %c0_44 = arith.constant 0 : index
    %87 = vector.load %arg10[%c0_43, %c0_44] : memref<8x32xf32, #tpu.memory_space<vmem>>, vector<8x32xf32>
    tpu.vector_store %arg10[%c0_43, %c0_44], %86 {strides = array<i32>} : memref<8x32xf32, #tpu.memory_space<vmem>>, vector<8x32xf32>,
    %88 = vector.shape_cast %79 : vector<8x1xi1> to vector<8x1xi1>
    %89 = vector.broadcast %88 : vector<8x1xi1> to vector<8x32xi1>
    %90 = arith.select %89, %75, %32 : vector<8x32xi1>, vector<8x32xf32>
    %c0_45 = arith.constant 0 : index
    %c0_46 = arith.constant 0 : index
    %91 = vector.load %arg11[%c0_45, %c0_46] : memref<8x32xf32, #tpu.memory_space<vmem>>, vector<8x32xf32>
    tpu.vector_store %arg11[%c0_45, %c0_46], %90 {strides = array<i32>} : memref<8x32xf32, #tpu.memory_space<vmem>>, vector<8x32xf32>,
    %92 = vector.shape_cast %79 : vector<8x1xi1> to vector<8x1xi1>
    %93 = vector.broadcast %92 : vector<8x1xi1> to vector<8x32xi1>
    %94 = arith.select %93, %72, %33 : vector<8x32xi1>, vector<8x32xf32>
    %c0_47 = arith.constant 0 : index
    %c0_48 = arith.constant 0 : index
    %95 = vector.load %arg12[%c0_47, %c0_48] : memref<8x32xf32, #tpu.memory_space<vmem>>, vector<8x32xf32>
    tpu.vector_store %arg12[%c0_47, %c0_48], %94 {strides = array<i32>} : memref<8x32xf32, #tpu.memory_space<vmem>>, vector<8x32xf32>,
    %cst_49 = arith.constant 0.000000e+00 : f32
    %96 = vector.shape_cast %77 : vector<8x1xi1> to vector<8x1xi1>
    %97 = vector.broadcast %96 : vector<8x1xi1> to vector<8x32xi1>
    %98 = vector.broadcast %cst_49 : f32 to vector<8x32xf32>
    %99 = arith.select %97, %59, %98 : vector<8x32xi1>, vector<8x32xf32>
    %100 = arith.truncf %99 : vector<8x32xf32> to vector<8x32xbf16>
    %101 = arith.index_cast %c0_i32_21 : i32 to index
    %c0_50 = arith.constant 0 : index
    %c0_51 = arith.constant 0 : index
    %102 = vector.load %arg7[%101, %c0_50, %c0_51] : memref<8x8x64xbf16, #tpu.memory_space<vmem>>, vector<1x8x32xbf16>
    %103 = vector.shape_cast %102 : vector<1x8x32xbf16> to vector<8x32xbf16>
    %104 = vector.shape_cast %100 : vector<8x32xbf16> to vector<1x8x32xbf16>
    tpu.vector_store %arg7[%101, %c0_50, %c0_51], %104 {strides = array<i32>} : memref<8x8x64xbf16, #tpu.memory_space<vmem>>, vector<1x8x32xbf16>,
    %cst_52 = arith.constant 0.000000e+00 : f32
    %105 = vector.shape_cast %79 : vector<8x1xi1> to vector<8x1xi1>
    %106 = vector.broadcast %105 : vector<8x1xi1> to vector<8x32xi1>
    %107 = vector.broadcast %cst_52 : f32 to vector<8x32xf32>
    %108 = arith.select %106, %75, %107 : vector<8x32xi1>, vector<8x32xf32>
    %109 = arith.truncf %108 : vector<8x32xf32> to vector<8x32xbf16>
    %110 = arith.index_cast %23 : i32 to index
    %c0_53 = arith.constant 0 : index
    %c32 = arith.constant 32 : index
    %111 = vector.load %arg7[%110, %c0_53, %c32] : memref<8x8x64xbf16, #tpu.memory_space<vmem>>, vector<1x8x32xbf16>
    %112 = vector.shape_cast %111 : vector<1x8x32xbf16> to vector<8x32xbf16>
    %113 = vector.shape_cast %109 : vector<8x32xbf16> to vector<1x8x32xbf16>
    tpu.vector_store %arg7[%110, %c0_53, %c32], %113 {strides = array<i32>} : memref<8x8x64xbf16, #tpu.memory_space<vmem>>, vector<1x8x32xbf16>,
    %c1_i32_54 = arith.constant 1 : i32
    %c7_i32_55 = arith.constant 7 : i32
    %114 = arith.subi %c7_i32_55, %c1_i32_54 : i32
    %115 = arith.index_cast %c1_i32_54 : i32 to index
    %c0_56 = arith.constant 0 : index
    %c0_57 = arith.constant 0 : index
    %116 = vector.load %arg8[%115, %c0_56, %c0_57] : memref<8x8x256xbf16, #tpu.memory_space<vmem>>, vector<1x8x128xbf16>
    %117 = vector.shape_cast %116 : vector<1x8x128xbf16> to vector<8x128xbf16>
    %118 = arith.index_cast %114 : i32 to index
    %c0_58 = arith.constant 0 : index
    %c128_59 = arith.constant 128 : index
    %119 = vector.load %arg8[%118, %c0_58, %c128_59] : memref<8x8x256xbf16, #tpu.memory_space<vmem>>, vector<1x8x128xbf16>
    %120 = vector.shape_cast %119 : vector<1x8x128xbf16> to vector<8x128xbf16>
    %c0_60 = arith.constant 0 : index
    %c0_61 = arith.constant 0 : index
    %121 = vector.load %arg9[%c0_60, %c0_61] : memref<8x32xf32, #tpu.memory_space<vmem>>, vector<8x32xf32>
    %c0_62 = arith.constant 0 : index
    %c0_63 = arith.constant 0 : index
    %122 = vector.load %arg10[%c0_62, %c0_63] : memref<8x32xf32, #tpu.memory_space<vmem>>, vector<8x32xf32>
    %c0_64 = arith.constant 0 : index
    %c0_65 = arith.constant 0 : index
    %123 = vector.load %arg11[%c0_64, %c0_65] : memref<8x32xf32, #tpu.memory_space<vmem>>, vector<8x32xf32>
    %c0_66 = arith.constant 0 : index
    %c0_67 = arith.constant 0 : index
    %124 = vector.load %arg12[%c0_66, %c0_67] : memref<8x32xf32, #tpu.memory_space<vmem>>, vector<8x32xf32>
    %125 = arith.truncf %121 : vector<8x32xf32> to vector<8x32xbf16>
    %c0_68 = arith.constant 0 : index
    %c0_69 = arith.constant 0 : index
    %126 = vector.load %arg4[%c0_68, %c0_69] : memref<32x128xbf16, #tpu.memory_space<vmem>>, vector<32x128xbf16>
    %cst_70 = arith.constant dense<0.000000e+00> : vector<8x128xf32>
    %127 = tpu.matmul %125, %126, %cst_70 {dimension_numbers = #tpu.dot_dimension_numbers<[1], [0], [0], [1], [0, 0, 1, 1], [], []>} : vector<8x32xbf16>, vector<32x128xbf16>, vector<8x128xf32> -> vector<8x128xf32>
    %128 = arith.extf %117 : vector<8x128xbf16> to vector<8x128xf32>
    %129 = arith.addf %128, %127 : vector<8x128xf32>
    %130 = arith.truncf %123 : vector<8x32xf32> to vector<8x32xbf16>
    %c0_71 = arith.constant 0 : index
    %c0_72 = arith.constant 0 : index
    %131 = vector.load %arg5[%c0_71, %c0_72] : memref<32x128xbf16, #tpu.memory_space<vmem>>, vector<32x128xbf16>
    %cst_73 = arith.constant dense<0.000000e+00> : vector<8x128xf32>
    %132 = tpu.matmul %130, %131, %cst_73 {dimension_numbers = #tpu.dot_dimension_numbers<[1], [0], [0], [1], [0, 0, 1, 1], [], []>} : vector<8x32xbf16>, vector<32x128xbf16>, vector<8x128xf32> -> vector<8x128xf32>
    %133 = arith.extf %120 : vector<8x128xbf16> to vector<8x128xf32>
    %134 = arith.addf %133, %132 : vector<8x128xf32>
    %135 = vector.extract_strided_slice %129 {offsets = [0, 0], sizes = [8, 96], strides = [1, 1]} : vector<8x128xf32> to vector<8x96xf32>
    %136 = arith.negf %135 : vector<8x96xf32>
    %137 = math.exp %136 : vector<8x96xf32>
    %cst_74 = arith.constant 1.000000e+00 : f32
    %138 = vector.broadcast %cst_74 : f32 to vector<8x96xf32>
    %139 = arith.addf %138, %137 : vector<8x96xf32>
    %140 = arith.divf %138, %139 : vector<8x96xf32>
    %141 = vector.extract_strided_slice %129 {offsets = [0, 96], sizes = [8, 32], strides = [1, 1]} : vector<8x128xf32> to vector<8x32xf32>
    %142 = math.tanh %141 : vector<8x32xf32>
    %143 = vector.extract_strided_slice %140 {offsets = [0, 32], sizes = [8, 32], strides = [1, 1]} : vector<8x96xf32> to vector<8x32xf32>
    %144 = arith.mulf %143, %122 : vector<8x32xf32>
    %145 = vector.extract_strided_slice %140 {offsets = [0, 0], sizes = [8, 32], strides = [1, 1]} : vector<8x96xf32> to vector<8x32xf32>
    %146 = arith.mulf %145, %142 : vector<8x32xf32>
    %147 = arith.addf %144, %146 : vector<8x32xf32>
    %148 = vector.extract_strided_slice %140 {offsets = [0, 64], sizes = [8, 32], strides = [1, 1]} : vector<8x96xf32> to vector<8x32xf32>
    %149 = math.tanh %147 : vector<8x32xf32>
    %150 = arith.mulf %148, %149 : vector<8x32xf32>
    %151 = vector.extract_strided_slice %134 {offsets = [0, 0], sizes = [8, 96], strides = [1, 1]} : vector<8x128xf32> to vector<8x96xf32>
    %152 = arith.negf %151 : vector<8x96xf32>
    %153 = math.exp %152 : vector<8x96xf32>
    %cst_75 = arith.constant 1.000000e+00 : f32
    %154 = vector.broadcast %cst_75 : f32 to vector<8x96xf32>
    %155 = arith.addf %154, %153 : vector<8x96xf32>
    %156 = arith.divf %154, %155 : vector<8x96xf32>
    %157 = vector.extract_strided_slice %134 {offsets = [0, 96], sizes = [8, 32], strides = [1, 1]} : vector<8x128xf32> to vector<8x32xf32>
    %158 = math.tanh %157 : vector<8x32xf32>
    %159 = vector.extract_strided_slice %156 {offsets = [0, 32], sizes = [8, 32], strides = [1, 1]} : vector<8x96xf32> to vector<8x32xf32>
    %160 = arith.mulf %159, %124 : vector<8x32xf32>
    %161 = vector.extract_strided_slice %156 {offsets = [0, 0], sizes = [8, 32], strides = [1, 1]} : vector<8x96xf32> to vector<8x32xf32>
    %162 = arith.mulf %161, %158 : vector<8x32xf32>
    %163 = arith.addf %160, %162 : vector<8x32xf32>
    %164 = vector.extract_strided_slice %156 {offsets = [0, 64], sizes = [8, 32], strides = [1, 1]} : vector<8x96xf32> to vector<8x32xf32>
    %165 = math.tanh %163 : vector<8x32xf32>
    %166 = arith.mulf %164, %165 : vector<8x32xf32>
    %167 = vector.broadcast %c1_i32_54 : i32 to vector<8x1xi32>
    %168 = arith.cmpi sgt, %22, %167 : vector<8x1xi32>
    %169 = vector.broadcast %114 : i32 to vector<8x1xi32>
    %170 = arith.cmpi sgt, %22, %169 : vector<8x1xi32>
    %171 = vector.shape_cast %168 : vector<8x1xi1> to vector<8x1xi1>
    %172 = vector.broadcast %171 : vector<8x1xi1> to vector<8x32xi1>
    %173 = arith.select %172, %150, %121 : vector<8x32xi1>, vector<8x32xf32>
    %c0_76 = arith.constant 0 : index
    %c0_77 = arith.constant 0 : index
    %174 = vector.load %arg9[%c0_76, %c0_77] : memref<8x32xf32, #tpu.memory_space<vmem>>, vector<8x32xf32>
    tpu.vector_store %arg9[%c0_76, %c0_77], %173 {strides = array<i32>} : memref<8x32xf32, #tpu.memory_space<vmem>>, vector<8x32xf32>,
    %175 = vector.shape_cast %168 : vector<8x1xi1> to vector<8x1xi1>
    %176 = vector.broadcast %175 : vector<8x1xi1> to vector<8x32xi1>
    %177 = arith.select %176, %147, %122 : vector<8x32xi1>, vector<8x32xf32>
    %c0_78 = arith.constant 0 : index
    %c0_79 = arith.constant 0 : index
    %178 = vector.load %arg10[%c0_78, %c0_79] : memref<8x32xf32, #tpu.memory_space<vmem>>, vector<8x32xf32>
    tpu.vector_store %arg10[%c0_78, %c0_79], %177 {strides = array<i32>} : memref<8x32xf32, #tpu.memory_space<vmem>>, vector<8x32xf32>,
    %179 = vector.shape_cast %170 : vector<8x1xi1> to vector<8x1xi1>
    %180 = vector.broadcast %179 : vector<8x1xi1> to vector<8x32xi1>
    %181 = arith.select %180, %166, %123 : vector<8x32xi1>, vector<8x32xf32>
    %c0_80 = arith.constant 0 : index
    %c0_81 = arith.constant 0 : index
    %182 = vector.load %arg11[%c0_80, %c0_81] : memref<8x32xf32, #tpu.memory_space<vmem>>, vector<8x32xf32>
    tpu.vector_store %arg11[%c0_80, %c0_81], %181 {strides = array<i32>} : memref<8x32xf32, #tpu.memory_space<vmem>>, vector<8x32xf32>,
    %183 = vector.shape_cast %170 : vector<8x1xi1> to vector<8x1xi1>
    %184 = vector.broadcast %183 : vector<8x1xi1> to vector<8x32xi1>
    %185 = arith.select %184, %163, %124 : vector<8x32xi1>, vector<8x32xf32>
    %c0_82 = arith.constant 0 : index
    %c0_83 = arith.constant 0 : index
    %186 = vector.load %arg12[%c0_82, %c0_83] : memref<8x32xf32, #tpu.memory_space<vmem>>, vector<8x32xf32>
    tpu.vector_store %arg12[%c0_82, %c0_83], %185 {strides = array<i32>} : memref<8x32xf32, #tpu.memory_space<vmem>>, vector<8x32xf32>,
    %cst_84 = arith.constant 0.000000e+00 : f32
    %187 = vector.shape_cast %168 : vector<8x1xi1> to vector<8x1xi1>
    %188 = vector.broadcast %187 : vector<8x1xi1> to vector<8x32xi1>
    %189 = vector.broadcast %cst_84 : f32 to vector<8x32xf32>
    %190 = arith.select %188, %150, %189 : vector<8x32xi1>, vector<8x32xf32>
    %191 = arith.truncf %190 : vector<8x32xf32> to vector<8x32xbf16>
    %192 = arith.index_cast %c1_i32_54 : i32 to index
    %c0_85 = arith.constant 0 : index
    %c0_86 = arith.constant 0 : index
    %193 = vector.load %arg7[%192, %c0_85, %c0_86] : memref<8x8x64xbf16, #tpu.memory_space<vmem>>, vector<1x8x32xbf16>
    %194 = vector.shape_cast %193 : vector<1x8x32xbf16> to vector<8x32xbf16>
    %195 = vector.shape_cast %191 : vector<8x32xbf16> to vector<1x8x32xbf16>
    tpu.vector_store %arg7[%192, %c0_85, %c0_86], %195 {strides = array<i32>} : memref<8x8x64xbf16, #tpu.memory_space<vmem>>, vector<1x8x32xbf16>,
    %cst_87 = arith.constant 0.000000e+00 : f32
    %196 = vector.shape_cast %170 : vector<8x1xi1> to vector<8x1xi1>
    %197 = vector.broadcast %196 : vector<8x1xi1> to vector<8x32xi1>
    %198 = vector.broadcast %cst_87 : f32 to vector<8x32xf32>
    %199 = arith.select %197, %166, %198 : vector<8x32xi1>, vector<8x32xf32>
    %200 = arith.truncf %199 : vector<8x32xf32> to vector<8x32xbf16>
    %201 = arith.index_cast %114 : i32 to index
    %c0_88 = arith.constant 0 : index
    %c32_89 = arith.constant 32 : index
    %202 = vector.load %arg7[%201, %c0_88, %c32_89] : memref<8x8x64xbf16, #tpu.memory_space<vmem>>, vector<1x8x32xbf16>
    %203 = vector.shape_cast %202 : vector<1x8x32xbf16> to vector<8x32xbf16>
    %204 = vector.shape_cast %200 : vector<8x32xbf16> to vector<1x8x32xbf16>
    tpu.vector_store %arg7[%201, %c0_88, %c32_89], %204 {strides = array<i32>} : memref<8x8x64xbf16, #tpu.memory_space<vmem>>, vector<1x8x32xbf16>,
    %c2_i32 = arith.constant 2 : i32
    %c7_i32_90 = arith.constant 7 : i32
    %205 = arith.subi %c7_i32_90, %c2_i32 : i32
    %206 = arith.index_cast %c2_i32 : i32 to index
    %c0_91 = arith.constant 0 : index
    %c0_92 = arith.constant 0 : index
    %207 = vector.load %arg8[%206, %c0_91, %c0_92] : memref<8x8x256xbf16, #tpu.memory_space<vmem>>, vector<1x8x128xbf16>
    %208 = vector.shape_cast %207 : vector<1x8x128xbf16> to vector<8x128xbf16>
    %209 = arith.index_cast %205 : i32 to index
    %c0_93 = arith.constant 0 : index
    %c128_94 = arith.constant 128 : index
    %210 = vector.load %arg8[%209, %c0_93, %c128_94] : memref<8x8x256xbf16, #tpu.memory_space<vmem>>, vector<1x8x128xbf16>
    %211 = vector.shape_cast %210 : vector<1x8x128xbf16> to vector<8x128xbf16>
    %c0_95 = arith.constant 0 : index
    %c0_96 = arith.constant 0 : index
    %212 = vector.load %arg9[%c0_95, %c0_96] : memref<8x32xf32, #tpu.memory_space<vmem>>, vector<8x32xf32>
    %c0_97 = arith.constant 0 : index
    %c0_98 = arith.constant 0 : index
    %213 = vector.load %arg10[%c0_97, %c0_98] : memref<8x32xf32, #tpu.memory_space<vmem>>, vector<8x32xf32>
    %c0_99 = arith.constant 0 : index
    %c0_100 = arith.constant 0 : index
    %214 = vector.load %arg11[%c0_99, %c0_100] : memref<8x32xf32, #tpu.memory_space<vmem>>, vector<8x32xf32>
    %c0_101 = arith.constant 0 : index
    %c0_102 = arith.constant 0 : index
    %215 = vector.load %arg12[%c0_101, %c0_102] : memref<8x32xf32, #tpu.memory_space<vmem>>, vector<8x32xf32>
    %216 = arith.truncf %212 : vector<8x32xf32> to vector<8x32xbf16>
    %c0_103 = arith.constant 0 : index
    %c0_104 = arith.constant 0 : index
    %217 = vector.load %arg4[%c0_103, %c0_104] : memref<32x128xbf16, #tpu.memory_space<vmem>>, vector<32x128xbf16>
    %cst_105 = arith.constant dense<0.000000e+00> : vector<8x128xf32>
    %218 = tpu.matmul %216, %217, %cst_105 {dimension_numbers = #tpu.dot_dimension_numbers<[1], [0], [0], [1], [0, 0, 1, 1], [], []>} : vector<8x32xbf16>, vector<32x128xbf16>, vector<8x128xf32> -> vector<8x128xf32>
    %219 = arith.extf %208 : vector<8x128xbf16> to vector<8x128xf32>
    %220 = arith.addf %219, %218 : vector<8x128xf32>
    %221 = arith.truncf %214 : vector<8x32xf32> to vector<8x32xbf16>
    %c0_106 = arith.constant 0 : index
    %c0_107 = arith.constant 0 : index
    %222 = vector.load %arg5[%c0_106, %c0_107] : memref<32x128xbf16, #tpu.memory_space<vmem>>, vector<32x128xbf16>
    %cst_108 = arith.constant dense<0.000000e+00> : vector<8x128xf32>
    %223 = tpu.matmul %221, %222, %cst_108 {dimension_numbers = #tpu.dot_dimension_numbers<[1], [0], [0], [1], [0, 0, 1, 1], [], []>} : vector<8x32xbf16>, vector<32x128xbf16>, vector<8x128xf32> -> vector<8x128xf32>
    %224 = arith.extf %211 : vector<8x128xbf16> to vector<8x128xf32>
    %225 = arith.addf %224, %223 : vector<8x128xf32>
    %226 = vector.extract_strided_slice %220 {offsets = [0, 0], sizes = [8, 96], strides = [1, 1]} : vector<8x128xf32> to vector<8x96xf32>
    %227 = arith.negf %226 : vector<8x96xf32>
    %228 = math.exp %227 : vector<8x96xf32>
    %cst_109 = arith.constant 1.000000e+00 : f32
    %229 = vector.broadcast %cst_109 : f32 to vector<8x96xf32>
    %230 = arith.addf %229, %228 : vector<8x96xf32>
    %231 = arith.divf %229, %230 : vector<8x96xf32>
    %232 = vector.extract_strided_slice %220 {offsets = [0, 96], sizes = [8, 32], strides = [1, 1]} : vector<8x128xf32> to vector<8x32xf32>
    %233 = math.tanh %232 : vector<8x32xf32>
    %234 = vector.extract_strided_slice %231 {offsets = [0, 32], sizes = [8, 32], strides = [1, 1]} : vector<8x96xf32> to vector<8x32xf32>
    %235 = arith.mulf %234, %213 : vector<8x32xf32>
    %236 = vector.extract_strided_slice %231 {offsets = [0, 0], sizes = [8, 32], strides = [1, 1]} : vector<8x96xf32> to vector<8x32xf32>
    %237 = arith.mulf %236, %233 : vector<8x32xf32>
    %238 = arith.addf %235, %237 : vector<8x32xf32>
    %239 = vector.extract_strided_slice %231 {offsets = [0, 64], sizes = [8, 32], strides = [1, 1]} : vector<8x96xf32> to vector<8x32xf32>
    %240 = math.tanh %238 : vector<8x32xf32>
    %241 = arith.mulf %239, %240 : vector<8x32xf32>
    %242 = vector.extract_strided_slice %225 {offsets = [0, 0], sizes = [8, 96], strides = [1, 1]} : vector<8x128xf32> to vector<8x96xf32>
    %243 = arith.negf %242 : vector<8x96xf32>
    %244 = math.exp %243 : vector<8x96xf32>
    %cst_110 = arith.constant 1.000000e+00 : f32
    %245 = vector.broadcast %cst_110 : f32 to vector<8x96xf32>
    %246 = arith.addf %245, %244 : vector<8x96xf32>
    %247 = arith.divf %245, %246 : vector<8x96xf32>
    %248 = vector.extract_strided_slice %225 {offsets = [0, 96], sizes = [8, 32], strides = [1, 1]} : vector<8x128xf32> to vector<8x32xf32>
    %249 = math.tanh %248 : vector<8x32xf32>
    %250 = vector.extract_strided_slice %247 {offsets = [0, 32], sizes = [8, 32], strides = [1, 1]} : vector<8x96xf32> to vector<8x32xf32>
    %251 = arith.mulf %250, %215 : vector<8x32xf32>
    %252 = vector.extract_strided_slice %247 {offsets = [0, 0], sizes = [8, 32], strides = [1, 1]} : vector<8x96xf32> to vector<8x32xf32>
    %253 = arith.mulf %252, %249 : vector<8x32xf32>
    %254 = arith.addf %251, %253 : vector<8x32xf32>
    %255 = vector.extract_strided_slice %247 {offsets = [0, 64], sizes = [8, 32], strides = [1, 1]} : vector<8x96xf32> to vector<8x32xf32>
    %256 = math.tanh %254 : vector<8x32xf32>
    %257 = arith.mulf %255, %256 : vector<8x32xf32>
    %258 = vector.broadcast %c2_i32 : i32 to vector<8x1xi32>
    %259 = arith.cmpi sgt, %22, %258 : vector<8x1xi32>
    %260 = vector.broadcast %205 : i32 to vector<8x1xi32>
    %261 = arith.cmpi sgt, %22, %260 : vector<8x1xi32>
    %262 = vector.shape_cast %259 : vector<8x1xi1> to vector<8x1xi1>
    %263 = vector.broadcast %262 : vector<8x1xi1> to vector<8x32xi1>
    %264 = arith.select %263, %241, %212 : vector<8x32xi1>, vector<8x32xf32>
    %c0_111 = arith.constant 0 : index
    %c0_112 = arith.constant 0 : index
    %265 = vector.load %arg9[%c0_111, %c0_112] : memref<8x32xf32, #tpu.memory_space<vmem>>, vector<8x32xf32>
    tpu.vector_store %arg9[%c0_111, %c0_112], %264 {strides = array<i32>} : memref<8x32xf32, #tpu.memory_space<vmem>>, vector<8x32xf32>,
    %266 = vector.shape_cast %259 : vector<8x1xi1> to vector<8x1xi1>
    %267 = vector.broadcast %266 : vector<8x1xi1> to vector<8x32xi1>
    %268 = arith.select %267, %238, %213 : vector<8x32xi1>, vector<8x32xf32>
    %c0_113 = arith.constant 0 : index
    %c0_114 = arith.constant 0 : index
    %269 = vector.load %arg10[%c0_113, %c0_114] : memref<8x32xf32, #tpu.memory_space<vmem>>, vector<8x32xf32>
    tpu.vector_store %arg10[%c0_113, %c0_114], %268 {strides = array<i32>} : memref<8x32xf32, #tpu.memory_space<vmem>>, vector<8x32xf32>,
    %270 = vector.shape_cast %261 : vector<8x1xi1> to vector<8x1xi1>
    %271 = vector.broadcast %270 : vector<8x1xi1> to vector<8x32xi1>
    %272 = arith.select %271, %257, %214 : vector<8x32xi1>, vector<8x32xf32>
    %c0_115 = arith.constant 0 : index
    %c0_116 = arith.constant 0 : index
    %273 = vector.load %arg11[%c0_115, %c0_116] : memref<8x32xf32, #tpu.memory_space<vmem>>, vector<8x32xf32>
    tpu.vector_store %arg11[%c0_115, %c0_116], %272 {strides = array<i32>} : memref<8x32xf32, #tpu.memory_space<vmem>>, vector<8x32xf32>,
    %274 = vector.shape_cast %261 : vector<8x1xi1> to vector<8x1xi1>
    %275 = vector.broadcast %274 : vector<8x1xi1> to vector<8x32xi1>
    %276 = arith.select %275, %254, %215 : vector<8x32xi1>, vector<8x32xf32>
    %c0_117 = arith.constant 0 : index
    %c0_118 = arith.constant 0 : index
    %277 = vector.load %arg12[%c0_117, %c0_118] : memref<8x32xf32, #tpu.memory_space<vmem>>, vector<8x32xf32>
    tpu.vector_store %arg12[%c0_117, %c0_118], %276 {strides = array<i32>} : memref<8x32xf32, #tpu.memory_space<vmem>>, vector<8x32xf32>,
    %cst_119 = arith.constant 0.000000e+00 : f32
    %278 = vector.shape_cast %259 : vector<8x1xi1> to vector<8x1xi1>
    %279 = vector.broadcast %278 : vector<8x1xi1> to vector<8x32xi1>
    %280 = vector.broadcast %cst_119 : f32 to vector<8x32xf32>
    %281 = arith.select %279, %241, %280 : vector<8x32xi1>, vector<8x32xf32>
    %282 = arith.truncf %281 : vector<8x32xf32> to vector<8x32xbf16>
    %283 = arith.index_cast %c2_i32 : i32 to index
    %c0_120 = arith.constant 0 : index
    %c0_121 = arith.constant 0 : index
    %284 = vector.load %arg7[%283, %c0_120, %c0_121] : memref<8x8x64xbf16, #tpu.memory_space<vmem>>, vector<1x8x32xbf16>
    %285 = vector.shape_cast %284 : vector<1x8x32xbf16> to vector<8x32xbf16>
    %286 = vector.shape_cast %282 : vector<8x32xbf16> to vector<1x8x32xbf16>
    tpu.vector_store %arg7[%283, %c0_120, %c0_121], %286 {strides = array<i32>} : memref<8x8x64xbf16, #tpu.memory_space<vmem>>, vector<1x8x32xbf16>,
    %cst_122 = arith.constant 0.000000e+00 : f32
    %287 = vector.shape_cast %261 : vector<8x1xi1> to vector<8x1xi1>
    %288 = vector.broadcast %287 : vector<8x1xi1> to vector<8x32xi1>
    %289 = vector.broadcast %cst_122 : f32 to vector<8x32xf32>
    %290 = arith.select %288, %257, %289 : vector<8x32xi1>, vector<8x32xf32>
    %291 = arith.truncf %290 : vector<8x32xf32> to vector<8x32xbf16>
    %292 = arith.index_cast %205 : i32 to index
    %c0_123 = arith.constant 0 : index
    %c32_124 = arith.constant 32 : index
    %293 = vector.load %arg7[%292, %c0_123, %c32_124] : memref<8x8x64xbf16, #tpu.memory_space<vmem>>, vector<1x8x32xbf16>
    %294 = vector.shape_cast %293 : vector<1x8x32xbf16> to vector<8x32xbf16>
    %295 = vector.shape_cast %291 : vector<8x32xbf16> to vector<1x8x32xbf16>
    tpu.vector_store %arg7[%292, %c0_123, %c32_124], %295 {strides = array<i32>} : memref<8x8x64xbf16, #tpu.memory_space<vmem>>, vector<1x8x32xbf16>,
    %c3_i32 = arith.constant 3 : i32
    %c7_i32_125 = arith.constant 7 : i32
    %296 = arith.subi %c7_i32_125, %c3_i32 : i32
    %297 = arith.index_cast %c3_i32 : i32 to index
    %c0_126 = arith.constant 0 : index
    %c0_127 = arith.constant 0 : index
    %298 = vector.load %arg8[%297, %c0_126, %c0_127] : memref<8x8x256xbf16, #tpu.memory_space<vmem>>, vector<1x8x128xbf16>
    %299 = vector.shape_cast %298 : vector<1x8x128xbf16> to vector<8x128xbf16>
    %300 = arith.index_cast %296 : i32 to index
    %c0_128 = arith.constant 0 : index
    %c128_129 = arith.constant 128 : index
    %301 = vector.load %arg8[%300, %c0_128, %c128_129] : memref<8x8x256xbf16, #tpu.memory_space<vmem>>, vector<1x8x128xbf16>
    %302 = vector.shape_cast %301 : vector<1x8x128xbf16> to vector<8x128xbf16>
    %c0_130 = arith.constant 0 : index
    %c0_131 = arith.constant 0 : index
    %303 = vector.load %arg9[%c0_130, %c0_131] : memref<8x32xf32, #tpu.memory_space<vmem>>, vector<8x32xf32>
    %c0_132 = arith.constant 0 : index
    %c0_133 = arith.constant 0 : index
    %304 = vector.load %arg10[%c0_132, %c0_133] : memref<8x32xf32, #tpu.memory_space<vmem>>, vector<8x32xf32>
    %c0_134 = arith.constant 0 : index
    %c0_135 = arith.constant 0 : index
    %305 = vector.load %arg11[%c0_134, %c0_135] : memref<8x32xf32, #tpu.memory_space<vmem>>, vector<8x32xf32>
    %c0_136 = arith.constant 0 : index
    %c0_137 = arith.constant 0 : index
    %306 = vector.load %arg12[%c0_136, %c0_137] : memref<8x32xf32, #tpu.memory_space<vmem>>, vector<8x32xf32>
    %307 = arith.truncf %303 : vector<8x32xf32> to vector<8x32xbf16>
    %c0_138 = arith.constant 0 : index
    %c0_139 = arith.constant 0 : index
    %308 = vector.load %arg4[%c0_138, %c0_139] : memref<32x128xbf16, #tpu.memory_space<vmem>>, vector<32x128xbf16>
    %cst_140 = arith.constant dense<0.000000e+00> : vector<8x128xf32>
    %309 = tpu.matmul %307, %308, %cst_140 {dimension_numbers = #tpu.dot_dimension_numbers<[1], [0], [0], [1], [0, 0, 1, 1], [], []>} : vector<8x32xbf16>, vector<32x128xbf16>, vector<8x128xf32> -> vector<8x128xf32>
    %310 = arith.extf %299 : vector<8x128xbf16> to vector<8x128xf32>
    %311 = arith.addf %310, %309 : vector<8x128xf32>
    %312 = arith.truncf %305 : vector<8x32xf32> to vector<8x32xbf16>
    %c0_141 = arith.constant 0 : index
    %c0_142 = arith.constant 0 : index
    %313 = vector.load %arg5[%c0_141, %c0_142] : memref<32x128xbf16, #tpu.memory_space<vmem>>, vector<32x128xbf16>
    %cst_143 = arith.constant dense<0.000000e+00> : vector<8x128xf32>
    %314 = tpu.matmul %312, %313, %cst_143 {dimension_numbers = #tpu.dot_dimension_numbers<[1], [0], [0], [1], [0, 0, 1, 1], [], []>} : vector<8x32xbf16>, vector<32x128xbf16>, vector<8x128xf32> -> vector<8x128xf32>
    %315 = arith.extf %302 : vector<8x128xbf16> to vector<8x128xf32>
    %316 = arith.addf %315, %314 : vector<8x128xf32>
    %317 = vector.extract_strided_slice %311 {offsets = [0, 0], sizes = [8, 96], strides = [1, 1]} : vector<8x128xf32> to vector<8x96xf32>
    %318 = arith.negf %317 : vector<8x96xf32>
    %319 = math.exp %318 : vector<8x96xf32>
    %cst_144 = arith.constant 1.000000e+00 : f32
    %320 = vector.broadcast %cst_144 : f32 to vector<8x96xf32>
    %321 = arith.addf %320, %319 : vector<8x96xf32>
    %322 = arith.divf %320, %321 : vector<8x96xf32>
    %323 = vector.extract_strided_slice %311 {offsets = [0, 96], sizes = [8, 32], strides = [1, 1]} : vector<8x128xf32> to vector<8x32xf32>
    %324 = math.tanh %323 : vector<8x32xf32>
    %325 = vector.extract_strided_slice %322 {offsets = [0, 32], sizes = [8, 32], strides = [1, 1]} : vector<8x96xf32> to vector<8x32xf32>
    %326 = arith.mulf %325, %304 : vector<8x32xf32>
    %327 = vector.extract_strided_slice %322 {offsets = [0, 0], sizes = [8, 32], strides = [1, 1]} : vector<8x96xf32> to vector<8x32xf32>
    %328 = arith.mulf %327, %324 : vector<8x32xf32>
    %329 = arith.addf %326, %328 : vector<8x32xf32>
    %330 = vector.extract_strided_slice %322 {offsets = [0, 64], sizes = [8, 32], strides = [1, 1]} : vector<8x96xf32> to vector<8x32xf32>
    %331 = math.tanh %329 : vector<8x32xf32>
    %332 = arith.mulf %330, %331 : vector<8x32xf32>
    %333 = vector.extract_strided_slice %316 {offsets = [0, 0], sizes = [8, 96], strides = [1, 1]} : vector<8x128xf32> to vector<8x96xf32>
    %334 = arith.negf %333 : vector<8x96xf32>
    %335 = math.exp %334 : vector<8x96xf32>
    %cst_145 = arith.constant 1.000000e+00 : f32
    %336 = vector.broadcast %cst_145 : f32 to vector<8x96xf32>
    %337 = arith.addf %336, %335 : vector<8x96xf32>
    %338 = arith.divf %336, %337 : vector<8x96xf32>
    %339 = vector.extract_strided_slice %316 {offsets = [0, 96], sizes = [8, 32], strides = [1, 1]} : vector<8x128xf32> to vector<8x32xf32>
    %340 = math.tanh %339 : vector<8x32xf32>
    %341 = vector.extract_strided_slice %338 {offsets = [0, 32], sizes = [8, 32], strides = [1, 1]} : vector<8x96xf32> to vector<8x32xf32>
    %342 = arith.mulf %341, %306 : vector<8x32xf32>
    %343 = vector.extract_strided_slice %338 {offsets = [0, 0], sizes = [8, 32], strides = [1, 1]} : vector<8x96xf32> to vector<8x32xf32>
    %344 = arith.mulf %343, %340 : vector<8x32xf32>
    %345 = arith.addf %342, %344 : vector<8x32xf32>
    %346 = vector.extract_strided_slice %338 {offsets = [0, 64], sizes = [8, 32], strides = [1, 1]} : vector<8x96xf32> to vector<8x32xf32>
    %347 = math.tanh %345 : vector<8x32xf32>
    %348 = arith.mulf %346, %347 : vector<8x32xf32>
    %349 = vector.broadcast %c3_i32 : i32 to vector<8x1xi32>
    %350 = arith.cmpi sgt, %22, %349 : vector<8x1xi32>
    %351 = vector.broadcast %296 : i32 to vector<8x1xi32>
    %352 = arith.cmpi sgt, %22, %351 : vector<8x1xi32>
    %353 = vector.shape_cast %350 : vector<8x1xi1> to vector<8x1xi1>
    %354 = vector.broadcast %353 : vector<8x1xi1> to vector<8x32xi1>
    %355 = arith.select %354, %332, %303 : vector<8x32xi1>, vector<8x32xf32>
    %c0_146 = arith.constant 0 : index
    %c0_147 = arith.constant 0 : index
    %356 = vector.load %arg9[%c0_146, %c0_147] : memref<8x32xf32, #tpu.memory_space<vmem>>, vector<8x32xf32>
    tpu.vector_store %arg9[%c0_146, %c0_147], %355 {strides = array<i32>} : memref<8x32xf32, #tpu.memory_space<vmem>>, vector<8x32xf32>,
    %357 = vector.shape_cast %350 : vector<8x1xi1> to vector<8x1xi1>
    %358 = vector.broadcast %357 : vector<8x1xi1> to vector<8x32xi1>
    %359 = arith.select %358, %329, %304 : vector<8x32xi1>, vector<8x32xf32>
    %c0_148 = arith.constant 0 : index
    %c0_149 = arith.constant 0 : index
    %360 = vector.load %arg10[%c0_148, %c0_149] : memref<8x32xf32, #tpu.memory_space<vmem>>, vector<8x32xf32>
    tpu.vector_store %arg10[%c0_148, %c0_149], %359 {strides = array<i32>} : memref<8x32xf32, #tpu.memory_space<vmem>>, vector<8x32xf32>,
    %361 = vector.shape_cast %352 : vector<8x1xi1> to vector<8x1xi1>
    %362 = vector.broadcast %361 : vector<8x1xi1> to vector<8x32xi1>
    %363 = arith.select %362, %348, %305 : vector<8x32xi1>, vector<8x32xf32>
    %c0_150 = arith.constant 0 : index
    %c0_151 = arith.constant 0 : index
    %364 = vector.load %arg11[%c0_150, %c0_151] : memref<8x32xf32, #tpu.memory_space<vmem>>, vector<8x32xf32>
    tpu.vector_store %arg11[%c0_150, %c0_151], %363 {strides = array<i32>} : memref<8x32xf32, #tpu.memory_space<vmem>>, vector<8x32xf32>,
    %365 = vector.shape_cast %352 : vector<8x1xi1> to vector<8x1xi1>
    %366 = vector.broadcast %365 : vector<8x1xi1> to vector<8x32xi1>
    %367 = arith.select %366, %345, %306 : vector<8x32xi1>, vector<8x32xf32>
    %c0_152 = arith.constant 0 : index
    %c0_153 = arith.constant 0 : index
    %368 = vector.load %arg12[%c0_152, %c0_153] : memref<8x32xf32, #tpu.memory_space<vmem>>, vector<8x32xf32>
    tpu.vector_store %arg12[%c0_152, %c0_153], %367 {strides = array<i32>} : memref<8x32xf32, #tpu.memory_space<vmem>>, vector<8x32xf32>,
    %cst_154 = arith.constant 0.000000e+00 : f32
    %369 = vector.shape_cast %350 : vector<8x1xi1> to vector<8x1xi1>
    %370 = vector.broadcast %369 : vector<8x1xi1> to vector<8x32xi1>
    %371 = vector.broadcast %cst_154 : f32 to vector<8x32xf32>
    %372 = arith.select %370, %332, %371 : vector<8x32xi1>, vector<8x32xf32>
    %373 = arith.truncf %372 : vector<8x32xf32> to vector<8x32xbf16>
    %374 = arith.index_cast %c3_i32 : i32 to index
    %c0_155 = arith.constant 0 : index
    %c0_156 = arith.constant 0 : index
    %375 = vector.load %arg7[%374, %c0_155, %c0_156] : memref<8x8x64xbf16, #tpu.memory_space<vmem>>, vector<1x8x32xbf16>
    %376 = vector.shape_cast %375 : vector<1x8x32xbf16> to vector<8x32xbf16>
    %377 = vector.shape_cast %373 : vector<8x32xbf16> to vector<1x8x32xbf16>
    tpu.vector_store %arg7[%374, %c0_155, %c0_156], %377 {strides = array<i32>} : memref<8x8x64xbf16, #tpu.memory_space<vmem>>, vector<1x8x32xbf16>,
    %cst_157 = arith.constant 0.000000e+00 : f32
    %378 = vector.shape_cast %352 : vector<8x1xi1> to vector<8x1xi1>
    %379 = vector.broadcast %378 : vector<8x1xi1> to vector<8x32xi1>
    %380 = vector.broadcast %cst_157 : f32 to vector<8x32xf32>
    %381 = arith.select %379, %348, %380 : vector<8x32xi1>, vector<8x32xf32>
    %382 = arith.truncf %381 : vector<8x32xf32> to vector<8x32xbf16>
    %383 = arith.index_cast %296 : i32 to index
    %c0_158 = arith.constant 0 : index
    %c32_159 = arith.constant 32 : index
    %384 = vector.load %arg7[%383, %c0_158, %c32_159] : memref<8x8x64xbf16, #tpu.memory_space<vmem>>, vector<1x8x32xbf16>
    %385 = vector.shape_cast %384 : vector<1x8x32xbf16> to vector<8x32xbf16>
    %386 = vector.shape_cast %382 : vector<8x32xbf16> to vector<1x8x32xbf16>
    tpu.vector_store %arg7[%383, %c0_158, %c32_159], %386 {strides = array<i32>} : memref<8x8x64xbf16, #tpu.memory_space<vmem>>, vector<1x8x32xbf16>,
    %c4_i32 = arith.constant 4 : i32
    %c7_i32_160 = arith.constant 7 : i32
    %387 = arith.subi %c7_i32_160, %c4_i32 : i32
    %388 = arith.index_cast %c4_i32 : i32 to index
    %c0_161 = arith.constant 0 : index
    %c0_162 = arith.constant 0 : index
    %389 = vector.load %arg8[%388, %c0_161, %c0_162] : memref<8x8x256xbf16, #tpu.memory_space<vmem>>, vector<1x8x128xbf16>
    %390 = vector.shape_cast %389 : vector<1x8x128xbf16> to vector<8x128xbf16>
    %391 = arith.index_cast %387 : i32 to index
    %c0_163 = arith.constant 0 : index
    %c128_164 = arith.constant 128 : index
    %392 = vector.load %arg8[%391, %c0_163, %c128_164] : memref<8x8x256xbf16, #tpu.memory_space<vmem>>, vector<1x8x128xbf16>
    %393 = vector.shape_cast %392 : vector<1x8x128xbf16> to vector<8x128xbf16>
    %c0_165 = arith.constant 0 : index
    %c0_166 = arith.constant 0 : index
    %394 = vector.load %arg9[%c0_165, %c0_166] : memref<8x32xf32, #tpu.memory_space<vmem>>, vector<8x32xf32>
    %c0_167 = arith.constant 0 : index
    %c0_168 = arith.constant 0 : index
    %395 = vector.load %arg10[%c0_167, %c0_168] : memref<8x32xf32, #tpu.memory_space<vmem>>, vector<8x32xf32>
    %c0_169 = arith.constant 0 : index
    %c0_170 = arith.constant 0 : index
    %396 = vector.load %arg11[%c0_169, %c0_170] : memref<8x32xf32, #tpu.memory_space<vmem>>, vector<8x32xf32>
    %c0_171 = arith.constant 0 : index
    %c0_172 = arith.constant 0 : index
    %397 = vector.load %arg12[%c0_171, %c0_172] : memref<8x32xf32, #tpu.memory_space<vmem>>, vector<8x32xf32>
    %398 = arith.truncf %394 : vector<8x32xf32> to vector<8x32xbf16>
    %c0_173 = arith.constant 0 : index
    %c0_174 = arith.constant 0 : index
    %399 = vector.load %arg4[%c0_173, %c0_174] : memref<32x128xbf16, #tpu.memory_space<vmem>>, vector<32x128xbf16>
    %cst_175 = arith.constant dense<0.000000e+00> : vector<8x128xf32>
    %400 = tpu.matmul %398, %399, %cst_175 {dimension_numbers = #tpu.dot_dimension_numbers<[1], [0], [0], [1], [0, 0, 1, 1], [], []>} : vector<8x32xbf16>, vector<32x128xbf16>, vector<8x128xf32> -> vector<8x128xf32>
    %401 = arith.extf %390 : vector<8x128xbf16> to vector<8x128xf32>
    %402 = arith.addf %401, %400 : vector<8x128xf32>
    %403 = arith.truncf %396 : vector<8x32xf32> to vector<8x32xbf16>
    %c0_176 = arith.constant 0 : index
    %c0_177 = arith.constant 0 : index
    %404 = vector.load %arg5[%c0_176, %c0_177] : memref<32x128xbf16, #tpu.memory_space<vmem>>, vector<32x128xbf16>
    %cst_178 = arith.constant dense<0.000000e+00> : vector<8x128xf32>
    %405 = tpu.matmul %403, %404, %cst_178 {dimension_numbers = #tpu.dot_dimension_numbers<[1], [0], [0], [1], [0, 0, 1, 1], [], []>} : vector<8x32xbf16>, vector<32x128xbf16>, vector<8x128xf32> -> vector<8x128xf32>
    %406 = arith.extf %393 : vector<8x128xbf16> to vector<8x128xf32>
    %407 = arith.addf %406, %405 : vector<8x128xf32>
    %408 = vector.extract_strided_slice %402 {offsets = [0, 0], sizes = [8, 96], strides = [1, 1]} : vector<8x128xf32> to vector<8x96xf32>
    %409 = arith.negf %408 : vector<8x96xf32>
    %410 = math.exp %409 : vector<8x96xf32>
    %cst_179 = arith.constant 1.000000e+00 : f32
    %411 = vector.broadcast %cst_179 : f32 to vector<8x96xf32>
    %412 = arith.addf %411, %410 : vector<8x96xf32>
    %413 = arith.divf %411, %412 : vector<8x96xf32>
    %414 = vector.extract_strided_slice %402 {offsets = [0, 96], sizes = [8, 32], strides = [1, 1]} : vector<8x128xf32> to vector<8x32xf32>
    %415 = math.tanh %414 : vector<8x32xf32>
    %416 = vector.extract_strided_slice %413 {offsets = [0, 32], sizes = [8, 32], strides = [1, 1]} : vector<8x96xf32> to vector<8x32xf32>
    %417 = arith.mulf %416, %395 : vector<8x32xf32>
    %418 = vector.extract_strided_slice %413 {offsets = [0, 0], sizes = [8, 32], strides = [1, 1]} : vector<8x96xf32> to vector<8x32xf32>
    %419 = arith.mulf %418, %415 : vector<8x32xf32>
    %420 = arith.addf %417, %419 : vector<8x32xf32>
    %421 = vector.extract_strided_slice %413 {offsets = [0, 64], sizes = [8, 32], strides = [1, 1]} : vector<8x96xf32> to vector<8x32xf32>
    %422 = math.tanh %420 : vector<8x32xf32>
    %423 = arith.mulf %421, %422 : vector<8x32xf32>
    %424 = vector.extract_strided_slice %407 {offsets = [0, 0], sizes = [8, 96], strides = [1, 1]} : vector<8x128xf32> to vector<8x96xf32>
    %425 = arith.negf %424 : vector<8x96xf32>
    %426 = math.exp %425 : vector<8x96xf32>
    %cst_180 = arith.constant 1.000000e+00 : f32
    %427 = vector.broadcast %cst_180 : f32 to vector<8x96xf32>
    %428 = arith.addf %427, %426 : vector<8x96xf32>
    %429 = arith.divf %427, %428 : vector<8x96xf32>
    %430 = vector.extract_strided_slice %407 {offsets = [0, 96], sizes = [8, 32], strides = [1, 1]} : vector<8x128xf32> to vector<8x32xf32>
    %431 = math.tanh %430 : vector<8x32xf32>
    %432 = vector.extract_strided_slice %429 {offsets = [0, 32], sizes = [8, 32], strides = [1, 1]} : vector<8x96xf32> to vector<8x32xf32>
    %433 = arith.mulf %432, %397 : vector<8x32xf32>
    %434 = vector.extract_strided_slice %429 {offsets = [0, 0], sizes = [8, 32], strides = [1, 1]} : vector<8x96xf32> to vector<8x32xf32>
    %435 = arith.mulf %434, %431 : vector<8x32xf32>
    %436 = arith.addf %433, %435 : vector<8x32xf32>
    %437 = vector.extract_strided_slice %429 {offsets = [0, 64], sizes = [8, 32], strides = [1, 1]} : vector<8x96xf32> to vector<8x32xf32>
    %438 = math.tanh %436 : vector<8x32xf32>
    %439 = arith.mulf %437, %438 : vector<8x32xf32>
    %440 = vector.broadcast %c4_i32 : i32 to vector<8x1xi32>
    %441 = arith.cmpi sgt, %22, %440 : vector<8x1xi32>
    %442 = vector.broadcast %387 : i32 to vector<8x1xi32>
    %443 = arith.cmpi sgt, %22, %442 : vector<8x1xi32>
    %444 = vector.shape_cast %441 : vector<8x1xi1> to vector<8x1xi1>
    %445 = vector.broadcast %444 : vector<8x1xi1> to vector<8x32xi1>
    %446 = arith.select %445, %423, %394 : vector<8x32xi1>, vector<8x32xf32>
    %c0_181 = arith.constant 0 : index
    %c0_182 = arith.constant 0 : index
    %447 = vector.load %arg9[%c0_181, %c0_182] : memref<8x32xf32, #tpu.memory_space<vmem>>, vector<8x32xf32>
    tpu.vector_store %arg9[%c0_181, %c0_182], %446 {strides = array<i32>} : memref<8x32xf32, #tpu.memory_space<vmem>>, vector<8x32xf32>,
    %448 = vector.shape_cast %441 : vector<8x1xi1> to vector<8x1xi1>
    %449 = vector.broadcast %448 : vector<8x1xi1> to vector<8x32xi1>
    %450 = arith.select %449, %420, %395 : vector<8x32xi1>, vector<8x32xf32>
    %c0_183 = arith.constant 0 : index
    %c0_184 = arith.constant 0 : index
    %451 = vector.load %arg10[%c0_183, %c0_184] : memref<8x32xf32, #tpu.memory_space<vmem>>, vector<8x32xf32>
    tpu.vector_store %arg10[%c0_183, %c0_184], %450 {strides = array<i32>} : memref<8x32xf32, #tpu.memory_space<vmem>>, vector<8x32xf32>,
    %452 = vector.shape_cast %443 : vector<8x1xi1> to vector<8x1xi1>
    %453 = vector.broadcast %452 : vector<8x1xi1> to vector<8x32xi1>
    %454 = arith.select %453, %439, %396 : vector<8x32xi1>, vector<8x32xf32>
    %c0_185 = arith.constant 0 : index
    %c0_186 = arith.constant 0 : index
    %455 = vector.load %arg11[%c0_185, %c0_186] : memref<8x32xf32, #tpu.memory_space<vmem>>, vector<8x32xf32>
    tpu.vector_store %arg11[%c0_185, %c0_186], %454 {strides = array<i32>} : memref<8x32xf32, #tpu.memory_space<vmem>>, vector<8x32xf32>,
    %456 = vector.shape_cast %443 : vector<8x1xi1> to vector<8x1xi1>
    %457 = vector.broadcast %456 : vector<8x1xi1> to vector<8x32xi1>
    %458 = arith.select %457, %436, %397 : vector<8x32xi1>, vector<8x32xf32>
    %c0_187 = arith.constant 0 : index
    %c0_188 = arith.constant 0 : index
    %459 = vector.load %arg12[%c0_187, %c0_188] : memref<8x32xf32, #tpu.memory_space<vmem>>, vector<8x32xf32>
    tpu.vector_store %arg12[%c0_187, %c0_188], %458 {strides = array<i32>} : memref<8x32xf32, #tpu.memory_space<vmem>>, vector<8x32xf32>,
    %cst_189 = arith.constant 0.000000e+00 : f32
    %460 = vector.shape_cast %441 : vector<8x1xi1> to vector<8x1xi1>
    %461 = vector.broadcast %460 : vector<8x1xi1> to vector<8x32xi1>
    %462 = vector.broadcast %cst_189 : f32 to vector<8x32xf32>
    %463 = arith.select %461, %423, %462 : vector<8x32xi1>, vector<8x32xf32>
    %464 = arith.truncf %463 : vector<8x32xf32> to vector<8x32xbf16>
    %465 = arith.index_cast %c4_i32 : i32 to index
    %c0_190 = arith.constant 0 : index
    %c0_191 = arith.constant 0 : index
    %466 = vector.load %arg7[%465, %c0_190, %c0_191] : memref<8x8x64xbf16, #tpu.memory_space<vmem>>, vector<1x8x32xbf16>
    %467 = vector.shape_cast %466 : vector<1x8x32xbf16> to vector<8x32xbf16>
    %468 = vector.shape_cast %464 : vector<8x32xbf16> to vector<1x8x32xbf16>
    tpu.vector_store %arg7[%465, %c0_190, %c0_191], %468 {strides = array<i32>} : memref<8x8x64xbf16, #tpu.memory_space<vmem>>, vector<1x8x32xbf16>,
    %cst_192 = arith.constant 0.000000e+00 : f32
    %469 = vector.shape_cast %443 : vector<8x1xi1> to vector<8x1xi1>
    %470 = vector.broadcast %469 : vector<8x1xi1> to vector<8x32xi1>
    %471 = vector.broadcast %cst_192 : f32 to vector<8x32xf32>
    %472 = arith.select %470, %439, %471 : vector<8x32xi1>, vector<8x32xf32>
    %473 = arith.truncf %472 : vector<8x32xf32> to vector<8x32xbf16>
    %474 = arith.index_cast %387 : i32 to index
    %c0_193 = arith.constant 0 : index
    %c32_194 = arith.constant 32 : index
    %475 = vector.load %arg7[%474, %c0_193, %c32_194] : memref<8x8x64xbf16, #tpu.memory_space<vmem>>, vector<1x8x32xbf16>
    %476 = vector.shape_cast %475 : vector<1x8x32xbf16> to vector<8x32xbf16>
    %477 = vector.shape_cast %473 : vector<8x32xbf16> to vector<1x8x32xbf16>
    tpu.vector_store %arg7[%474, %c0_193, %c32_194], %477 {strides = array<i32>} : memref<8x8x64xbf16, #tpu.memory_space<vmem>>, vector<1x8x32xbf16>,
    %c5_i32 = arith.constant 5 : i32
    %c7_i32_195 = arith.constant 7 : i32
    %478 = arith.subi %c7_i32_195, %c5_i32 : i32
    %479 = arith.index_cast %c5_i32 : i32 to index
    %c0_196 = arith.constant 0 : index
    %c0_197 = arith.constant 0 : index
    %480 = vector.load %arg8[%479, %c0_196, %c0_197] : memref<8x8x256xbf16, #tpu.memory_space<vmem>>, vector<1x8x128xbf16>
    %481 = vector.shape_cast %480 : vector<1x8x128xbf16> to vector<8x128xbf16>
    %482 = arith.index_cast %478 : i32 to index
    %c0_198 = arith.constant 0 : index
    %c128_199 = arith.constant 128 : index
    %483 = vector.load %arg8[%482, %c0_198, %c128_199] : memref<8x8x256xbf16, #tpu.memory_space<vmem>>, vector<1x8x128xbf16>
    %484 = vector.shape_cast %483 : vector<1x8x128xbf16> to vector<8x128xbf16>
    %c0_200 = arith.constant 0 : index
    %c0_201 = arith.constant 0 : index
    %485 = vector.load %arg9[%c0_200, %c0_201] : memref<8x32xf32, #tpu.memory_space<vmem>>, vector<8x32xf32>
    %c0_202 = arith.constant 0 : index
    %c0_203 = arith.constant 0 : index
    %486 = vector.load %arg10[%c0_202, %c0_203] : memref<8x32xf32, #tpu.memory_space<vmem>>, vector<8x32xf32>
    %c0_204 = arith.constant 0 : index
    %c0_205 = arith.constant 0 : index
    %487 = vector.load %arg11[%c0_204, %c0_205] : memref<8x32xf32, #tpu.memory_space<vmem>>, vector<8x32xf32>
    %c0_206 = arith.constant 0 : index
    %c0_207 = arith.constant 0 : index
    %488 = vector.load %arg12[%c0_206, %c0_207] : memref<8x32xf32, #tpu.memory_space<vmem>>, vector<8x32xf32>
    %489 = arith.truncf %485 : vector<8x32xf32> to vector<8x32xbf16>
    %c0_208 = arith.constant 0 : index
    %c0_209 = arith.constant 0 : index
    %490 = vector.load %arg4[%c0_208, %c0_209] : memref<32x128xbf16, #tpu.memory_space<vmem>>, vector<32x128xbf16>
    %cst_210 = arith.constant dense<0.000000e+00> : vector<8x128xf32>
    %491 = tpu.matmul %489, %490, %cst_210 {dimension_numbers = #tpu.dot_dimension_numbers<[1], [0], [0], [1], [0, 0, 1, 1], [], []>} : vector<8x32xbf16>, vector<32x128xbf16>, vector<8x128xf32> -> vector<8x128xf32>
    %492 = arith.extf %481 : vector<8x128xbf16> to vector<8x128xf32>
    %493 = arith.addf %492, %491 : vector<8x128xf32>
    %494 = arith.truncf %487 : vector<8x32xf32> to vector<8x32xbf16>
    %c0_211 = arith.constant 0 : index
    %c0_212 = arith.constant 0 : index
    %495 = vector.load %arg5[%c0_211, %c0_212] : memref<32x128xbf16, #tpu.memory_space<vmem>>, vector<32x128xbf16>
    %cst_213 = arith.constant dense<0.000000e+00> : vector<8x128xf32>
    %496 = tpu.matmul %494, %495, %cst_213 {dimension_numbers = #tpu.dot_dimension_numbers<[1], [0], [0], [1], [0, 0, 1, 1], [], []>} : vector<8x32xbf16>, vector<32x128xbf16>, vector<8x128xf32> -> vector<8x128xf32>
    %497 = arith.extf %484 : vector<8x128xbf16> to vector<8x128xf32>
    %498 = arith.addf %497, %496 : vector<8x128xf32>
    %499 = vector.extract_strided_slice %493 {offsets = [0, 0], sizes = [8, 96], strides = [1, 1]} : vector<8x128xf32> to vector<8x96xf32>
    %500 = arith.negf %499 : vector<8x96xf32>
    %501 = math.exp %500 : vector<8x96xf32>
    %cst_214 = arith.constant 1.000000e+00 : f32
    %502 = vector.broadcast %cst_214 : f32 to vector<8x96xf32>
    %503 = arith.addf %502, %501 : vector<8x96xf32>
    %504 = arith.divf %502, %503 : vector<8x96xf32>
    %505 = vector.extract_strided_slice %493 {offsets = [0, 96], sizes = [8, 32], strides = [1, 1]} : vector<8x128xf32> to vector<8x32xf32>
    %506 = math.tanh %505 : vector<8x32xf32>
    %507 = vector.extract_strided_slice %504 {offsets = [0, 32], sizes = [8, 32], strides = [1, 1]} : vector<8x96xf32> to vector<8x32xf32>
    %508 = arith.mulf %507, %486 : vector<8x32xf32>
    %509 = vector.extract_strided_slice %504 {offsets = [0, 0], sizes = [8, 32], strides = [1, 1]} : vector<8x96xf32> to vector<8x32xf32>
    %510 = arith.mulf %509, %506 : vector<8x32xf32>
    %511 = arith.addf %508, %510 : vector<8x32xf32>
    %512 = vector.extract_strided_slice %504 {offsets = [0, 64], sizes = [8, 32], strides = [1, 1]} : vector<8x96xf32> to vector<8x32xf32>
    %513 = math.tanh %511 : vector<8x32xf32>
    %514 = arith.mulf %512, %513 : vector<8x32xf32>
    %515 = vector.extract_strided_slice %498 {offsets = [0, 0], sizes = [8, 96], strides = [1, 1]} : vector<8x128xf32> to vector<8x96xf32>
    %516 = arith.negf %515 : vector<8x96xf32>
    %517 = math.exp %516 : vector<8x96xf32>
    %cst_215 = arith.constant 1.000000e+00 : f32
    %518 = vector.broadcast %cst_215 : f32 to vector<8x96xf32>
    %519 = arith.addf %518, %517 : vector<8x96xf32>
    %520 = arith.divf %518, %519 : vector<8x96xf32>
    %521 = vector.extract_strided_slice %498 {offsets = [0, 96], sizes = [8, 32], strides = [1, 1]} : vector<8x128xf32> to vector<8x32xf32>
    %522 = math.tanh %521 : vector<8x32xf32>
    %523 = vector.extract_strided_slice %520 {offsets = [0, 32], sizes = [8, 32], strides = [1, 1]} : vector<8x96xf32> to vector<8x32xf32>
    %524 = arith.mulf %523, %488 : vector<8x32xf32>
    %525 = vector.extract_strided_slice %520 {offsets = [0, 0], sizes = [8, 32], strides = [1, 1]} : vector<8x96xf32> to vector<8x32xf32>
    %526 = arith.mulf %525, %522 : vector<8x32xf32>
    %527 = arith.addf %524, %526 : vector<8x32xf32>
    %528 = vector.extract_strided_slice %520 {offsets = [0, 64], sizes = [8, 32], strides = [1, 1]} : vector<8x96xf32> to vector<8x32xf32>
    %529 = math.tanh %527 : vector<8x32xf32>
    %530 = arith.mulf %528, %529 : vector<8x32xf32>
    %531 = vector.broadcast %c5_i32 : i32 to vector<8x1xi32>
    %532 = arith.cmpi sgt, %22, %531 : vector<8x1xi32>
    %533 = vector.broadcast %478 : i32 to vector<8x1xi32>
    %534 = arith.cmpi sgt, %22, %533 : vector<8x1xi32>
    %535 = vector.shape_cast %532 : vector<8x1xi1> to vector<8x1xi1>
    %536 = vector.broadcast %535 : vector<8x1xi1> to vector<8x32xi1>
    %537 = arith.select %536, %514, %485 : vector<8x32xi1>, vector<8x32xf32>
    %c0_216 = arith.constant 0 : index
    %c0_217 = arith.constant 0 : index
    %538 = vector.load %arg9[%c0_216, %c0_217] : memref<8x32xf32, #tpu.memory_space<vmem>>, vector<8x32xf32>
    tpu.vector_store %arg9[%c0_216, %c0_217], %537 {strides = array<i32>} : memref<8x32xf32, #tpu.memory_space<vmem>>, vector<8x32xf32>,
    %539 = vector.shape_cast %532 : vector<8x1xi1> to vector<8x1xi1>
    %540 = vector.broadcast %539 : vector<8x1xi1> to vector<8x32xi1>
    %541 = arith.select %540, %511, %486 : vector<8x32xi1>, vector<8x32xf32>
    %c0_218 = arith.constant 0 : index
    %c0_219 = arith.constant 0 : index
    %542 = vector.load %arg10[%c0_218, %c0_219] : memref<8x32xf32, #tpu.memory_space<vmem>>, vector<8x32xf32>
    tpu.vector_store %arg10[%c0_218, %c0_219], %541 {strides = array<i32>} : memref<8x32xf32, #tpu.memory_space<vmem>>, vector<8x32xf32>,
    %543 = vector.shape_cast %534 : vector<8x1xi1> to vector<8x1xi1>
    %544 = vector.broadcast %543 : vector<8x1xi1> to vector<8x32xi1>
    %545 = arith.select %544, %530, %487 : vector<8x32xi1>, vector<8x32xf32>
    %c0_220 = arith.constant 0 : index
    %c0_221 = arith.constant 0 : index
    %546 = vector.load %arg11[%c0_220, %c0_221] : memref<8x32xf32, #tpu.memory_space<vmem>>, vector<8x32xf32>
    tpu.vector_store %arg11[%c0_220, %c0_221], %545 {strides = array<i32>} : memref<8x32xf32, #tpu.memory_space<vmem>>, vector<8x32xf32>,
    %547 = vector.shape_cast %534 : vector<8x1xi1> to vector<8x1xi1>
    %548 = vector.broadcast %547 : vector<8x1xi1> to vector<8x32xi1>
    %549 = arith.select %548, %527, %488 : vector<8x32xi1>, vector<8x32xf32>
    %c0_222 = arith.constant 0 : index
    %c0_223 = arith.constant 0 : index
    %550 = vector.load %arg12[%c0_222, %c0_223] : memref<8x32xf32, #tpu.memory_space<vmem>>, vector<8x32xf32>
    tpu.vector_store %arg12[%c0_222, %c0_223], %549 {strides = array<i32>} : memref<8x32xf32, #tpu.memory_space<vmem>>, vector<8x32xf32>,
    %cst_224 = arith.constant 0.000000e+00 : f32
    %551 = vector.shape_cast %532 : vector<8x1xi1> to vector<8x1xi1>
    %552 = vector.broadcast %551 : vector<8x1xi1> to vector<8x32xi1>
    %553 = vector.broadcast %cst_224 : f32 to vector<8x32xf32>
    %554 = arith.select %552, %514, %553 : vector<8x32xi1>, vector<8x32xf32>
    %555 = arith.truncf %554 : vector<8x32xf32> to vector<8x32xbf16>
    %556 = arith.index_cast %c5_i32 : i32 to index
    %c0_225 = arith.constant 0 : index
    %c0_226 = arith.constant 0 : index
    %557 = vector.load %arg7[%556, %c0_225, %c0_226] : memref<8x8x64xbf16, #tpu.memory_space<vmem>>, vector<1x8x32xbf16>
    %558 = vector.shape_cast %557 : vector<1x8x32xbf16> to vector<8x32xbf16>
    %559 = vector.shape_cast %555 : vector<8x32xbf16> to vector<1x8x32xbf16>
    tpu.vector_store %arg7[%556, %c0_225, %c0_226], %559 {strides = array<i32>} : memref<8x8x64xbf16, #tpu.memory_space<vmem>>, vector<1x8x32xbf16>,
    %cst_227 = arith.constant 0.000000e+00 : f32
    %560 = vector.shape_cast %534 : vector<8x1xi1> to vector<8x1xi1>
    %561 = vector.broadcast %560 : vector<8x1xi1> to vector<8x32xi1>
    %562 = vector.broadcast %cst_227 : f32 to vector<8x32xf32>
    %563 = arith.select %561, %530, %562 : vector<8x32xi1>, vector<8x32xf32>
    %564 = arith.truncf %563 : vector<8x32xf32> to vector<8x32xbf16>
    %565 = arith.index_cast %478 : i32 to index
    %c0_228 = arith.constant 0 : index
    %c32_229 = arith.constant 32 : index
    %566 = vector.load %arg7[%565, %c0_228, %c32_229] : memref<8x8x64xbf16, #tpu.memory_space<vmem>>, vector<1x8x32xbf16>
    %567 = vector.shape_cast %566 : vector<1x8x32xbf16> to vector<8x32xbf16>
    %568 = vector.shape_cast %564 : vector<8x32xbf16> to vector<1x8x32xbf16>
    tpu.vector_store %arg7[%565, %c0_228, %c32_229], %568 {strides = array<i32>} : memref<8x8x64xbf16, #tpu.memory_space<vmem>>, vector<1x8x32xbf16>,
    %c6_i32 = arith.constant 6 : i32
    %c7_i32_230 = arith.constant 7 : i32
    %569 = arith.subi %c7_i32_230, %c6_i32 : i32
    %570 = arith.index_cast %c6_i32 : i32 to index
    %c0_231 = arith.constant 0 : index
    %c0_232 = arith.constant 0 : index
    %571 = vector.load %arg8[%570, %c0_231, %c0_232] : memref<8x8x256xbf16, #tpu.memory_space<vmem>>, vector<1x8x128xbf16>
    %572 = vector.shape_cast %571 : vector<1x8x128xbf16> to vector<8x128xbf16>
    %573 = arith.index_cast %569 : i32 to index
    %c0_233 = arith.constant 0 : index
    %c128_234 = arith.constant 128 : index
    %574 = vector.load %arg8[%573, %c0_233, %c128_234] : memref<8x8x256xbf16, #tpu.memory_space<vmem>>, vector<1x8x128xbf16>
    %575 = vector.shape_cast %574 : vector<1x8x128xbf16> to vector<8x128xbf16>
    %c0_235 = arith.constant 0 : index
    %c0_236 = arith.constant 0 : index
    %576 = vector.load %arg9[%c0_235, %c0_236] : memref<8x32xf32, #tpu.memory_space<vmem>>, vector<8x32xf32>
    %c0_237 = arith.constant 0 : index
    %c0_238 = arith.constant 0 : index
    %577 = vector.load %arg10[%c0_237, %c0_238] : memref<8x32xf32, #tpu.memory_space<vmem>>, vector<8x32xf32>
    %c0_239 = arith.constant 0 : index
    %c0_240 = arith.constant 0 : index
    %578 = vector.load %arg11[%c0_239, %c0_240] : memref<8x32xf32, #tpu.memory_space<vmem>>, vector<8x32xf32>
    %c0_241 = arith.constant 0 : index
    %c0_242 = arith.constant 0 : index
    %579 = vector.load %arg12[%c0_241, %c0_242] : memref<8x32xf32, #tpu.memory_space<vmem>>, vector<8x32xf32>
    %580 = arith.truncf %576 : vector<8x32xf32> to vector<8x32xbf16>
    %c0_243 = arith.constant 0 : index
    %c0_244 = arith.constant 0 : index
    %581 = vector.load %arg4[%c0_243, %c0_244] : memref<32x128xbf16, #tpu.memory_space<vmem>>, vector<32x128xbf16>
    %cst_245 = arith.constant dense<0.000000e+00> : vector<8x128xf32>
    %582 = tpu.matmul %580, %581, %cst_245 {dimension_numbers = #tpu.dot_dimension_numbers<[1], [0], [0], [1], [0, 0, 1, 1], [], []>} : vector<8x32xbf16>, vector<32x128xbf16>, vector<8x128xf32> -> vector<8x128xf32>
    %583 = arith.extf %572 : vector<8x128xbf16> to vector<8x128xf32>
    %584 = arith.addf %583, %582 : vector<8x128xf32>
    %585 = arith.truncf %578 : vector<8x32xf32> to vector<8x32xbf16>
    %c0_246 = arith.constant 0 : index
    %c0_247 = arith.constant 0 : index
    %586 = vector.load %arg5[%c0_246, %c0_247] : memref<32x128xbf16, #tpu.memory_space<vmem>>, vector<32x128xbf16>
    %cst_248 = arith.constant dense<0.000000e+00> : vector<8x128xf32>
    %587 = tpu.matmul %585, %586, %cst_248 {dimension_numbers = #tpu.dot_dimension_numbers<[1], [0], [0], [1], [0, 0, 1, 1], [], []>} : vector<8x32xbf16>, vector<32x128xbf16>, vector<8x128xf32> -> vector<8x128xf32>
    %588 = arith.extf %575 : vector<8x128xbf16> to vector<8x128xf32>
    %589 = arith.addf %588, %587 : vector<8x128xf32>
    %590 = vector.extract_strided_slice %584 {offsets = [0, 0], sizes = [8, 96], strides = [1, 1]} : vector<8x128xf32> to vector<8x96xf32>
    %591 = arith.negf %590 : vector<8x96xf32>
    %592 = math.exp %591 : vector<8x96xf32>
    %cst_249 = arith.constant 1.000000e+00 : f32
    %593 = vector.broadcast %cst_249 : f32 to vector<8x96xf32>
    %594 = arith.addf %593, %592 : vector<8x96xf32>
    %595 = arith.divf %593, %594 : vector<8x96xf32>
    %596 = vector.extract_strided_slice %584 {offsets = [0, 96], sizes = [8, 32], strides = [1, 1]} : vector<8x128xf32> to vector<8x32xf32>
    %597 = math.tanh %596 : vector<8x32xf32>
    %598 = vector.extract_strided_slice %595 {offsets = [0, 32], sizes = [8, 32], strides = [1, 1]} : vector<8x96xf32> to vector<8x32xf32>
    %599 = arith.mulf %598, %577 : vector<8x32xf32>
    %600 = vector.extract_strided_slice %595 {offsets = [0, 0], sizes = [8, 32], strides = [1, 1]} : vector<8x96xf32> to vector<8x32xf32>
    %601 = arith.mulf %600, %597 : vector<8x32xf32>
    %602 = arith.addf %599, %601 : vector<8x32xf32>
    %603 = vector.extract_strided_slice %595 {offsets = [0, 64], sizes = [8, 32], strides = [1, 1]} : vector<8x96xf32> to vector<8x32xf32>
    %604 = math.tanh %602 : vector<8x32xf32>
    %605 = arith.mulf %603, %604 : vector<8x32xf32>
    %606 = vector.extract_strided_slice %589 {offsets = [0, 0], sizes = [8, 96], strides = [1, 1]} : vector<8x128xf32> to vector<8x96xf32>
    %607 = arith.negf %606 : vector<8x96xf32>
    %608 = math.exp %607 : vector<8x96xf32>
    %cst_250 = arith.constant 1.000000e+00 : f32
    %609 = vector.broadcast %cst_250 : f32 to vector<8x96xf32>
    %610 = arith.addf %609, %608 : vector<8x96xf32>
    %611 = arith.divf %609, %610 : vector<8x96xf32>
    %612 = vector.extract_strided_slice %589 {offsets = [0, 96], sizes = [8, 32], strides = [1, 1]} : vector<8x128xf32> to vector<8x32xf32>
    %613 = math.tanh %612 : vector<8x32xf32>
    %614 = vector.extract_strided_slice %611 {offsets = [0, 32], sizes = [8, 32], strides = [1, 1]} : vector<8x96xf32> to vector<8x32xf32>
    %615 = arith.mulf %614, %579 : vector<8x32xf32>
    %616 = vector.extract_strided_slice %611 {offsets = [0, 0], sizes = [8, 32], strides = [1, 1]} : vector<8x96xf32> to vector<8x32xf32>
    %617 = arith.mulf %616, %613 : vector<8x32xf32>
    %618 = arith.addf %615, %617 : vector<8x32xf32>
    %619 = vector.extract_strided_slice %611 {offsets = [0, 64], sizes = [8, 32], strides = [1, 1]} : vector<8x96xf32> to vector<8x32xf32>
    %620 = math.tanh %618 : vector<8x32xf32>
    %621 = arith.mulf %619, %620 : vector<8x32xf32>
    %622 = vector.broadcast %c6_i32 : i32 to vector<8x1xi32>
    %623 = arith.cmpi sgt, %22, %622 : vector<8x1xi32>
    %624 = vector.broadcast %569 : i32 to vector<8x1xi32>
    %625 = arith.cmpi sgt, %22, %624 : vector<8x1xi32>
    %626 = vector.shape_cast %623 : vector<8x1xi1> to vector<8x1xi1>
    %627 = vector.broadcast %626 : vector<8x1xi1> to vector<8x32xi1>
    %628 = arith.select %627, %605, %576 : vector<8x32xi1>, vector<8x32xf32>
    %c0_251 = arith.constant 0 : index
    %c0_252 = arith.constant 0 : index
    %629 = vector.load %arg9[%c0_251, %c0_252] : memref<8x32xf32, #tpu.memory_space<vmem>>, vector<8x32xf32>
    tpu.vector_store %arg9[%c0_251, %c0_252], %628 {strides = array<i32>} : memref<8x32xf32, #tpu.memory_space<vmem>>, vector<8x32xf32>,
    %630 = vector.shape_cast %623 : vector<8x1xi1> to vector<8x1xi1>
    %631 = vector.broadcast %630 : vector<8x1xi1> to vector<8x32xi1>
    %632 = arith.select %631, %602, %577 : vector<8x32xi1>, vector<8x32xf32>
    %c0_253 = arith.constant 0 : index
    %c0_254 = arith.constant 0 : index
    %633 = vector.load %arg10[%c0_253, %c0_254] : memref<8x32xf32, #tpu.memory_space<vmem>>, vector<8x32xf32>
    tpu.vector_store %arg10[%c0_253, %c0_254], %632 {strides = array<i32>} : memref<8x32xf32, #tpu.memory_space<vmem>>, vector<8x32xf32>,
    %634 = vector.shape_cast %625 : vector<8x1xi1> to vector<8x1xi1>
    %635 = vector.broadcast %634 : vector<8x1xi1> to vector<8x32xi1>
    %636 = arith.select %635, %621, %578 : vector<8x32xi1>, vector<8x32xf32>
    %c0_255 = arith.constant 0 : index
    %c0_256 = arith.constant 0 : index
    %637 = vector.load %arg11[%c0_255, %c0_256] : memref<8x32xf32, #tpu.memory_space<vmem>>, vector<8x32xf32>
    tpu.vector_store %arg11[%c0_255, %c0_256], %636 {strides = array<i32>} : memref<8x32xf32, #tpu.memory_space<vmem>>, vector<8x32xf32>,
    %638 = vector.shape_cast %625 : vector<8x1xi1> to vector<8x1xi1>
    %639 = vector.broadcast %638 : vector<8x1xi1> to vector<8x32xi1>
    %640 = arith.select %639, %618, %579 : vector<8x32xi1>, vector<8x32xf32>
    %c0_257 = arith.constant 0 : index
    %c0_258 = arith.constant 0 : index
    %641 = vector.load %arg12[%c0_257, %c0_258] : memref<8x32xf32, #tpu.memory_space<vmem>>, vector<8x32xf32>
    tpu.vector_store %arg12[%c0_257, %c0_258], %640 {strides = array<i32>} : memref<8x32xf32, #tpu.memory_space<vmem>>, vector<8x32xf32>,
    %cst_259 = arith.constant 0.000000e+00 : f32
    %642 = vector.shape_cast %623 : vector<8x1xi1> to vector<8x1xi1>
    %643 = vector.broadcast %642 : vector<8x1xi1> to vector<8x32xi1>
    %644 = vector.broadcast %cst_259 : f32 to vector<8x32xf32>
    %645 = arith.select %643, %605, %644 : vector<8x32xi1>, vector<8x32xf32>
    %646 = arith.truncf %645 : vector<8x32xf32> to vector<8x32xbf16>
    %647 = arith.index_cast %c6_i32 : i32 to index
    %c0_260 = arith.constant 0 : index
    %c0_261 = arith.constant 0 : index
    %648 = vector.load %arg7[%647, %c0_260, %c0_261] : memref<8x8x64xbf16, #tpu.memory_space<vmem>>, vector<1x8x32xbf16>
    %649 = vector.shape_cast %648 : vector<1x8x32xbf16> to vector<8x32xbf16>
    %650 = vector.shape_cast %646 : vector<8x32xbf16> to vector<1x8x32xbf16>
    tpu.vector_store %arg7[%647, %c0_260, %c0_261], %650 {strides = array<i32>} : memref<8x8x64xbf16, #tpu.memory_space<vmem>>, vector<1x8x32xbf16>,
    %cst_262 = arith.constant 0.000000e+00 : f32
    %651 = vector.shape_cast %625 : vector<8x1xi1> to vector<8x1xi1>
    %652 = vector.broadcast %651 : vector<8x1xi1> to vector<8x32xi1>
    %653 = vector.broadcast %cst_262 : f32 to vector<8x32xf32>
    %654 = arith.select %652, %621, %653 : vector<8x32xi1>, vector<8x32xf32>
    %655 = arith.truncf %654 : vector<8x32xf32> to vector<8x32xbf16>
    %656 = arith.index_cast %569 : i32 to index
    %c0_263 = arith.constant 0 : index
    %c32_264 = arith.constant 32 : index
    %657 = vector.load %arg7[%656, %c0_263, %c32_264] : memref<8x8x64xbf16, #tpu.memory_space<vmem>>, vector<1x8x32xbf16>
    %658 = vector.shape_cast %657 : vector<1x8x32xbf16> to vector<8x32xbf16>
    %659 = vector.shape_cast %655 : vector<8x32xbf16> to vector<1x8x32xbf16>
    tpu.vector_store %arg7[%656, %c0_263, %c32_264], %659 {strides = array<i32>} : memref<8x8x64xbf16, #tpu.memory_space<vmem>>, vector<1x8x32xbf16>,
    %c7_i32_265 = arith.constant 7 : i32
    %c7_i32_266 = arith.constant 7 : i32
    %660 = arith.subi %c7_i32_266, %c7_i32_265 : i32
    %661 = arith.index_cast %c7_i32_265 : i32 to index
    %c0_267 = arith.constant 0 : index
    %c0_268 = arith.constant 0 : index
    %662 = vector.load %arg8[%661, %c0_267, %c0_268] : memref<8x8x256xbf16, #tpu.memory_space<vmem>>, vector<1x8x128xbf16>
    %663 = vector.shape_cast %662 : vector<1x8x128xbf16> to vector<8x128xbf16>
    %664 = arith.index_cast %660 : i32 to index
    %c0_269 = arith.constant 0 : index
    %c128_270 = arith.constant 128 : index
    %665 = vector.load %arg8[%664, %c0_269, %c128_270] : memref<8x8x256xbf16, #tpu.memory_space<vmem>>, vector<1x8x128xbf16>
    %666 = vector.shape_cast %665 : vector<1x8x128xbf16> to vector<8x128xbf16>
    %c0_271 = arith.constant 0 : index
    %c0_272 = arith.constant 0 : index
    %667 = vector.load %arg9[%c0_271, %c0_272] : memref<8x32xf32, #tpu.memory_space<vmem>>, vector<8x32xf32>
    %c0_273 = arith.constant 0 : index
    %c0_274 = arith.constant 0 : index
    %668 = vector.load %arg10[%c0_273, %c0_274] : memref<8x32xf32, #tpu.memory_space<vmem>>, vector<8x32xf32>
    %c0_275 = arith.constant 0 : index
    %c0_276 = arith.constant 0 : index
    %669 = vector.load %arg11[%c0_275, %c0_276] : memref<8x32xf32, #tpu.memory_space<vmem>>, vector<8x32xf32>
    %c0_277 = arith.constant 0 : index
    %c0_278 = arith.constant 0 : index
    %670 = vector.load %arg12[%c0_277, %c0_278] : memref<8x32xf32, #tpu.memory_space<vmem>>, vector<8x32xf32>
    %671 = arith.truncf %667 : vector<8x32xf32> to vector<8x32xbf16>
    %c0_279 = arith.constant 0 : index
    %c0_280 = arith.constant 0 : index
    %672 = vector.load %arg4[%c0_279, %c0_280] : memref<32x128xbf16, #tpu.memory_space<vmem>>, vector<32x128xbf16>
    %cst_281 = arith.constant dense<0.000000e+00> : vector<8x128xf32>
    %673 = tpu.matmul %671, %672, %cst_281 {dimension_numbers = #tpu.dot_dimension_numbers<[1], [0], [0], [1], [0, 0, 1, 1], [], []>} : vector<8x32xbf16>, vector<32x128xbf16>, vector<8x128xf32> -> vector<8x128xf32>
    %674 = arith.extf %663 : vector<8x128xbf16> to vector<8x128xf32>
    %675 = arith.addf %674, %673 : vector<8x128xf32>
    %676 = arith.truncf %669 : vector<8x32xf32> to vector<8x32xbf16>
    %c0_282 = arith.constant 0 : index
    %c0_283 = arith.constant 0 : index
    %677 = vector.load %arg5[%c0_282, %c0_283] : memref<32x128xbf16, #tpu.memory_space<vmem>>, vector<32x128xbf16>
    %cst_284 = arith.constant dense<0.000000e+00> : vector<8x128xf32>
    %678 = tpu.matmul %676, %677, %cst_284 {dimension_numbers = #tpu.dot_dimension_numbers<[1], [0], [0], [1], [0, 0, 1, 1], [], []>} : vector<8x32xbf16>, vector<32x128xbf16>, vector<8x128xf32> -> vector<8x128xf32>
    %679 = arith.extf %666 : vector<8x128xbf16> to vector<8x128xf32>
    %680 = arith.addf %679, %678 : vector<8x128xf32>
    %681 = vector.extract_strided_slice %675 {offsets = [0, 0], sizes = [8, 96], strides = [1, 1]} : vector<8x128xf32> to vector<8x96xf32>
    %682 = arith.negf %681 : vector<8x96xf32>
    %683 = math.exp %682 : vector<8x96xf32>
    %cst_285 = arith.constant 1.000000e+00 : f32
    %684 = vector.broadcast %cst_285 : f32 to vector<8x96xf32>
    %685 = arith.addf %684, %683 : vector<8x96xf32>
    %686 = arith.divf %684, %685 : vector<8x96xf32>
    %687 = vector.extract_strided_slice %675 {offsets = [0, 96], sizes = [8, 32], strides = [1, 1]} : vector<8x128xf32> to vector<8x32xf32>
    %688 = math.tanh %687 : vector<8x32xf32>
    %689 = vector.extract_strided_slice %686 {offsets = [0, 32], sizes = [8, 32], strides = [1, 1]} : vector<8x96xf32> to vector<8x32xf32>
    %690 = arith.mulf %689, %668 : vector<8x32xf32>
    %691 = vector.extract_strided_slice %686 {offsets = [0, 0], sizes = [8, 32], strides = [1, 1]} : vector<8x96xf32> to vector<8x32xf32>
    %692 = arith.mulf %691, %688 : vector<8x32xf32>
    %693 = arith.addf %690, %692 : vector<8x32xf32>
    %694 = vector.extract_strided_slice %686 {offsets = [0, 64], sizes = [8, 32], strides = [1, 1]} : vector<8x96xf32> to vector<8x32xf32>
    %695 = math.tanh %693 : vector<8x32xf32>
    %696 = arith.mulf %694, %695 : vector<8x32xf32>
    %697 = vector.extract_strided_slice %680 {offsets = [0, 0], sizes = [8, 96], strides = [1, 1]} : vector<8x128xf32> to vector<8x96xf32>
    %698 = arith.negf %697 : vector<8x96xf32>
    %699 = math.exp %698 : vector<8x96xf32>
    %cst_286 = arith.constant 1.000000e+00 : f32
    %700 = vector.broadcast %cst_286 : f32 to vector<8x96xf32>
    %701 = arith.addf %700, %699 : vector<8x96xf32>
    %702 = arith.divf %700, %701 : vector<8x96xf32>
    %703 = vector.extract_strided_slice %680 {offsets = [0, 96], sizes = [8, 32], strides = [1, 1]} : vector<8x128xf32> to vector<8x32xf32>
    %704 = math.tanh %703 : vector<8x32xf32>
    %705 = vector.extract_strided_slice %702 {offsets = [0, 32], sizes = [8, 32], strides = [1, 1]} : vector<8x96xf32> to vector<8x32xf32>
    %706 = arith.mulf %705, %670 : vector<8x32xf32>
    %707 = vector.extract_strided_slice %702 {offsets = [0, 0], sizes = [8, 32], strides = [1, 1]} : vector<8x96xf32> to vector<8x32xf32>
    %708 = arith.mulf %707, %704 : vector<8x32xf32>
    %709 = arith.addf %706, %708 : vector<8x32xf32>
    %710 = vector.extract_strided_slice %702 {offsets = [0, 64], sizes = [8, 32], strides = [1, 1]} : vector<8x96xf32> to vector<8x32xf32>
    %711 = math.tanh %709 : vector<8x32xf32>
    %712 = arith.mulf %710, %711 : vector<8x32xf32>
    %713 = vector.broadcast %c7_i32_265 : i32 to vector<8x1xi32>
    %714 = arith.cmpi sgt, %22, %713 : vector<8x1xi32>
    %715 = vector.broadcast %660 : i32 to vector<8x1xi32>
    %716 = arith.cmpi sgt, %22, %715 : vector<8x1xi32>
    %717 = vector.shape_cast %714 : vector<8x1xi1> to vector<8x1xi1>
    %718 = vector.broadcast %717 : vector<8x1xi1> to vector<8x32xi1>
    %719 = arith.select %718, %696, %667 : vector<8x32xi1>, vector<8x32xf32>
    %c0_287 = arith.constant 0 : index
    %c0_288 = arith.constant 0 : index
    %720 = vector.load %arg9[%c0_287, %c0_288] : memref<8x32xf32, #tpu.memory_space<vmem>>, vector<8x32xf32>
    tpu.vector_store %arg9[%c0_287, %c0_288], %719 {strides = array<i32>} : memref<8x32xf32, #tpu.memory_space<vmem>>, vector<8x32xf32>,
    %721 = vector.shape_cast %714 : vector<8x1xi1> to vector<8x1xi1>
    %722 = vector.broadcast %721 : vector<8x1xi1> to vector<8x32xi1>
    %723 = arith.select %722, %693, %668 : vector<8x32xi1>, vector<8x32xf32>
    %c0_289 = arith.constant 0 : index
    %c0_290 = arith.constant 0 : index
    %724 = vector.load %arg10[%c0_289, %c0_290] : memref<8x32xf32, #tpu.memory_space<vmem>>, vector<8x32xf32>
    tpu.vector_store %arg10[%c0_289, %c0_290], %723 {strides = array<i32>} : memref<8x32xf32, #tpu.memory_space<vmem>>, vector<8x32xf32>,
    %725 = vector.shape_cast %716 : vector<8x1xi1> to vector<8x1xi1>
    %726 = vector.broadcast %725 : vector<8x1xi1> to vector<8x32xi1>
    %727 = arith.select %726, %712, %669 : vector<8x32xi1>, vector<8x32xf32>
    %c0_291 = arith.constant 0 : index
    %c0_292 = arith.constant 0 : index
    %728 = vector.load %arg11[%c0_291, %c0_292] : memref<8x32xf32, #tpu.memory_space<vmem>>, vector<8x32xf32>
    tpu.vector_store %arg11[%c0_291, %c0_292], %727 {strides = array<i32>} : memref<8x32xf32, #tpu.memory_space<vmem>>, vector<8x32xf32>,
    %729 = vector.shape_cast %716 : vector<8x1xi1> to vector<8x1xi1>
    %730 = vector.broadcast %729 : vector<8x1xi1> to vector<8x32xi1>
    %731 = arith.select %730, %709, %670 : vector<8x32xi1>, vector<8x32xf32>
    %c0_293 = arith.constant 0 : index
    %c0_294 = arith.constant 0 : index
    %732 = vector.load %arg12[%c0_293, %c0_294] : memref<8x32xf32, #tpu.memory_space<vmem>>, vector<8x32xf32>
    tpu.vector_store %arg12[%c0_293, %c0_294], %731 {strides = array<i32>} : memref<8x32xf32, #tpu.memory_space<vmem>>, vector<8x32xf32>,
    %cst_295 = arith.constant 0.000000e+00 : f32
    %733 = vector.shape_cast %714 : vector<8x1xi1> to vector<8x1xi1>
    %734 = vector.broadcast %733 : vector<8x1xi1> to vector<8x32xi1>
    %735 = vector.broadcast %cst_295 : f32 to vector<8x32xf32>
    %736 = arith.select %734, %696, %735 : vector<8x32xi1>, vector<8x32xf32>
    %737 = arith.truncf %736 : vector<8x32xf32> to vector<8x32xbf16>
    %738 = arith.index_cast %c7_i32_265 : i32 to index
    %c0_296 = arith.constant 0 : index
    %c0_297 = arith.constant 0 : index
    %739 = vector.load %arg7[%738, %c0_296, %c0_297] : memref<8x8x64xbf16, #tpu.memory_space<vmem>>, vector<1x8x32xbf16>
    %740 = vector.shape_cast %739 : vector<1x8x32xbf16> to vector<8x32xbf16>
    %741 = vector.shape_cast %737 : vector<8x32xbf16> to vector<1x8x32xbf16>
    tpu.vector_store %arg7[%738, %c0_296, %c0_297], %741 {strides = array<i32>} : memref<8x8x64xbf16, #tpu.memory_space<vmem>>, vector<1x8x32xbf16>,
    %cst_298 = arith.constant 0.000000e+00 : f32
    %742 = vector.shape_cast %716 : vector<8x1xi1> to vector<8x1xi1>
    %743 = vector.broadcast %742 : vector<8x1xi1> to vector<8x32xi1>
    %744 = vector.broadcast %cst_298 : f32 to vector<8x32xf32>
    %745 = arith.select %743, %712, %744 : vector<8x32xi1>, vector<8x32xf32>
    %746 = arith.truncf %745 : vector<8x32xf32> to vector<8x32xbf16>
    %747 = arith.index_cast %660 : i32 to index
    %c0_299 = arith.constant 0 : index
    %c32_300 = arith.constant 32 : index
    %748 = vector.load %arg7[%747, %c0_299, %c32_300] : memref<8x8x64xbf16, #tpu.memory_space<vmem>>, vector<1x8x32xbf16>
    %749 = vector.shape_cast %748 : vector<1x8x32xbf16> to vector<8x32xbf16>
    %750 = vector.shape_cast %746 : vector<8x32xbf16> to vector<1x8x32xbf16>
    tpu.vector_store %arg7[%747, %c0_299, %c32_300], %750 {strides = array<i32>} : memref<8x8x64xbf16, #tpu.memory_space<vmem>>, vector<1x8x32xbf16>,
    %c8_i32_301 = arith.constant 8 : i32
    return
  }
  func.func @transform_0(%arg0: i32) -> (i32, i32) {
    %c0_i32 = arith.constant 0 : i32
    %c0_i32_0 = arith.constant 0 : i32
    %c0_i32_1 = arith.constant 0 : i32
    return %c0_i32, %c0_i32_0 : i32, i32
  }
  func.func @transform_1(%arg0: i32) -> (i32, i32, i32) {
    %c0_i32 = arith.constant 0 : i32
    %c0_i32_0 = arith.constant 0 : i32
    %c0_i32_1 = arith.constant 0 : i32
    %c0_i32_2 = arith.constant 0 : i32
    return %c0_i32, %c0_i32_0, %c0_i32_1 : i32, i32, i32
  }
  func.func @transform_2(%arg0: i32) -> (i32, i32) {
    %c0_i32 = arith.constant 0 : i32
    %c0_i32_0 = arith.constant 0 : i32
    %c0_i32_1 = arith.constant 0 : i32
    return %c0_i32, %c0_i32_0 : i32, i32
  }
  func.func @transform_3(%arg0: i32) -> (i32, i32) {
    %c0_i32 = arith.constant 0 : i32
    %c0_i32_0 = arith.constant 0 : i32
    %c0_i32_1 = arith.constant 0 : i32
    return %c0_i32, %c0_i32_0 : i32, i32
  }
  func.func @transform_4(%arg0: i32) -> (i32, i32) {
    %c0_i32 = arith.constant 0 : i32
    %c0_i32_0 = arith.constant 0 : i32
    %c0_i32_1 = arith.constant 0 : i32
    return %c0_i32, %c0_i32_0 : i32, i32
  }
  func.func @transform_5(%arg0: i32) -> (i32, i32) {
    %c0_i32 = arith.constant 0 : i32
    %c0_i32_0 = arith.constant 0 : i32
    %c0_i32_1 = arith.constant 0 : i32
    return %c0_i32, %c0_i32_0 : i32, i32
  }
  func.func @transform_6(%arg0: i32) -> (i32, i32, i32) {
    %c0_i32 = arith.constant 0 : i32
    %c0_i32_0 = arith.constant 0 : i32
    %c0_i32_1 = arith.constant 0 : i32
    %c0_i32_2 = arith.constant 0 : i32
    return %c0_i32, %c0_i32_0, %c0_i32_1 : i32, i32, i32
  }
}

module attributes {stable_mosaic.version = 11 : i64} {
  func.func @_bilstm_layer_kernel(%arg0: i32, %arg1: memref<8x1xi32, #tpu.memory_space<vmem>>, %arg2: memref<8x8x64xbf16, #tpu.memory_space<vmem>>, %arg3: memref<64x256xbf16, #tpu.memory_space<vmem>>, %arg4: memref<32x128xbf16, #tpu.memory_space<vmem>>, %arg5: memref<32x128xbf16, #tpu.memory_space<vmem>>, %arg6: memref<1x256xf32, #tpu.memory_space<vmem>>, %arg7: memref<8x8x64xf32, #tpu.memory_space<vmem>>, %arg8: memref<8x8x256xbf16, #tpu.memory_space<vmem>>, %arg9: memref<8x32xf32, #tpu.memory_space<vmem>>, %arg10: memref<8x32xf32, #tpu.memory_space<vmem>>, %arg11: memref<8x32xf32, #tpu.memory_space<vmem>>, %arg12: memref<8x32xf32, #tpu.memory_space<vmem>>) attributes {dimension_semantics = [#tpu.dimension_semantics<arbitrary>], iteration_bounds = array<i64: 1>, scalar_prefetch = 0 : i64, scratch_operands = 5 : i64, tpu.core_type = #tpu.core_type<tc>, window_params = [{pipeline_mode = #tpu.pipeline_mode<synchronous>, transform_indices = @transform_0, window_bounds = array<i64: 8, 1>}, {pipeline_mode = #tpu.pipeline_mode<synchronous>, transform_indices = @transform_1, window_bounds = array<i64: 8, 8, 64>}, {pipeline_mode = #tpu.pipeline_mode<synchronous>, transform_indices = @transform_2, window_bounds = array<i64: 64, 256>}, {pipeline_mode = #tpu.pipeline_mode<synchronous>, transform_indices = @transform_3, window_bounds = array<i64: 32, 128>}, {pipeline_mode = #tpu.pipeline_mode<synchronous>, transform_indices = @transform_4, window_bounds = array<i64: 32, 128>}, {pipeline_mode = #tpu.pipeline_mode<synchronous>, transform_indices = @transform_5, window_bounds = array<i64: 1, 256>}, {pipeline_mode = #tpu.pipeline_mode<synchronous>, transform_indices = @transform_6, window_bounds = array<i64: 8, 8, 64>}]} {
    %c0 = arith.constant 0 : index
    %c0_0 = arith.constant 0 : index
    %0 = vector.load %arg6[%c0, %c0_0] : memref<1x256xf32, #tpu.memory_space<vmem>>, vector<1x256xf32>
    %c0_i32 = arith.constant 0 : i32
    %c8_i32 = arith.constant 8 : i32
    %1 = arith.muli %c0_i32, %c8_i32 : i32
    %2 = tpu.assume_multiple %1, 8 : i32
    %3 = arith.index_cast %2 : i32 to index
    %c0_1 = arith.constant 0 : index
    %c0_2 = arith.constant 0 : index
    %4 = vector.load %arg2[%3, %c0_1, %c0_2] : memref<8x8x64xbf16, #tpu.memory_space<vmem>>, vector<8x8x64xbf16>
    %5 = vector.shape_cast %4 : vector<8x8x64xbf16> to vector<64x64xbf16>
    %c0_3 = arith.constant 0 : index
    %c0_4 = arith.constant 0 : index
    %6 = vector.load %arg3[%c0_3, %c0_4] : memref<64x256xbf16, #tpu.memory_space<vmem>>, vector<64x256xbf16>
    %cst = arith.constant dense<0.000000e+00> : vector<64x256xf32>
    %7 = tpu.matmul %5, %6, %cst {dimension_numbers = #tpu.dot_dimension_numbers<[1], [0], [0], [1], [0, 0, 1, 1], [], []>} : vector<64x64xbf16>, vector<64x256xbf16>, vector<64x256xf32> -> vector<64x256xf32>
    %8 = vector.broadcast %0 : vector<1x256xf32> to vector<64x256xf32>
    %9 = arith.addf %7, %8 : vector<64x256xf32>
    %10 = vector.shape_cast %9 : vector<64x256xf32> to vector<8x8x256xf32>
    %11 = arith.truncf %10 : vector<8x8x256xf32> to vector<8x8x256xbf16>
    %12 = arith.index_cast %2 : i32 to index
    %c0_5 = arith.constant 0 : index
    %c0_6 = arith.constant 0 : index
    %13 = vector.load %arg8[%12, %c0_5, %c0_6] : memref<8x8x256xbf16, #tpu.memory_space<vmem>>, vector<8x8x256xbf16>
    tpu.vector_store %arg8[%12, %c0_5, %c0_6], %11 {strides = array<i32>} : memref<8x8x256xbf16, #tpu.memory_space<vmem>>, vector<8x8x256xbf16>,
    %c1_i32 = arith.constant 1 : i32
    %cst_7 = arith.constant 0.000000e+00 : f32
    %14 = vector.broadcast %cst_7 : f32 to vector<8x32xf32>
    %c0_8 = arith.constant 0 : index
    %c0_9 = arith.constant 0 : index
    %15 = vector.load %arg9[%c0_8, %c0_9] : memref<8x32xf32, #tpu.memory_space<vmem>>, vector<8x32xf32>
    tpu.vector_store %arg9[%c0_8, %c0_9], %14 {strides = array<i32>} : memref<8x32xf32, #tpu.memory_space<vmem>>, vector<8x32xf32>,
    %cst_10 = arith.constant 0.000000e+00 : f32
    %16 = vector.broadcast %cst_10 : f32 to vector<8x32xf32>
    %c0_11 = arith.constant 0 : index
    %c0_12 = arith.constant 0 : index
    %17 = vector.load %arg10[%c0_11, %c0_12] : memref<8x32xf32, #tpu.memory_space<vmem>>, vector<8x32xf32>
    tpu.vector_store %arg10[%c0_11, %c0_12], %16 {strides = array<i32>} : memref<8x32xf32, #tpu.memory_space<vmem>>, vector<8x32xf32>,
    %cst_13 = arith.constant 0.000000e+00 : f32
    %18 = vector.broadcast %cst_13 : f32 to vector<8x32xf32>
    %c0_14 = arith.constant 0 : index
    %c0_15 = arith.constant 0 : index
    %19 = vector.load %arg11[%c0_14, %c0_15] : memref<8x32xf32, #tpu.memory_space<vmem>>, vector<8x32xf32>
    tpu.vector_store %arg11[%c0_14, %c0_15], %18 {strides = array<i32>} : memref<8x32xf32, #tpu.memory_space<vmem>>, vector<8x32xf32>,
    %cst_16 = arith.constant 0.000000e+00 : f32
    %20 = vector.broadcast %cst_16 : f32 to vector<8x32xf32>
    %c0_17 = arith.constant 0 : index
    %c0_18 = arith.constant 0 : index
    %21 = vector.load %arg12[%c0_17, %c0_18] : memref<8x32xf32, #tpu.memory_space<vmem>>, vector<8x32xf32>
    tpu.vector_store %arg12[%c0_17, %c0_18], %20 {strides = array<i32>} : memref<8x32xf32, #tpu.memory_space<vmem>>, vector<8x32xf32>,
    %c0_19 = arith.constant 0 : index
    %c0_20 = arith.constant 0 : index
    %22 = vector.load %arg1[%c0_19, %c0_20] : memref<8x1xi32, #tpu.memory_space<vmem>>, vector<8x1xi32>
    %c0_i32_21 = arith.constant 0 : i32
    %c7_i32 = arith.constant 7 : i32
    %23 = arith.subi %c7_i32, %c0_i32_21 : i32
    %24 = arith.index_cast %c0_i32_21 : i32 to index
    %c0_22 = arith.constant 0 : index
    %c0_23 = arith.constant 0 : index
    %25 = vector.load %arg8[%24, %c0_22, %c0_23] : memref<8x8x256xbf16, #tpu.memory_space<vmem>>, vector<1x8x128xbf16>
    %26 = vector.shape_cast %25 : vector<1x8x128xbf16> to vector<8x128xbf16>
    %27 = arith.index_cast %23 : i32 to index
    %c0_24 = arith.constant 0 : index
    %c128 = arith.constant 128 : index
    %28 = vector.load %arg8[%27, %c0_24, %c128] : memref<8x8x256xbf16, #tpu.memory_space<vmem>>, vector<1x8x128xbf16>
    %29 = vector.shape_cast %28 : vector<1x8x128xbf16> to vector<8x128xbf16>
    %c0_25 = arith.constant 0 : index
    %c0_26 = arith.constant 0 : index
    %30 = vector.load %arg9[%c0_25, %c0_26] : memref<8x32xf32, #tpu.memory_space<vmem>>, vector<8x32xf32>
    %c0_27 = arith.constant 0 : index
    %c0_28 = arith.constant 0 : index
    %31 = vector.load %arg10[%c0_27, %c0_28] : memref<8x32xf32, #tpu.memory_space<vmem>>, vector<8x32xf32>
    %c0_29 = arith.constant 0 : index
    %c0_30 = arith.constant 0 : index
    %32 = vector.load %arg11[%c0_29, %c0_30] : memref<8x32xf32, #tpu.memory_space<vmem>>, vector<8x32xf32>
    %c0_31 = arith.constant 0 : index
    %c0_32 = arith.constant 0 : index
    %33 = vector.load %arg12[%c0_31, %c0_32] : memref<8x32xf32, #tpu.memory_space<vmem>>, vector<8x32xf32>
    %34 = arith.truncf %30 : vector<8x32xf32> to vector<8x32xbf16>
    %c0_33 = arith.constant 0 : index
    %c0_34 = arith.constant 0 : index
    %35 = vector.load %arg4[%c0_33, %c0_34] : memref<32x128xbf16, #tpu.memory_space<vmem>>, vector<32x128xbf16>
    %cst_35 = arith.constant dense<0.000000e+00> : vector<8x128xf32>
    %36 = tpu.matmul %34, %35, %cst_35 {dimension_numbers = #tpu.dot_dimension_numbers<[1], [0], [0], [1], [0, 0, 1, 1], [], []>} : vector<8x32xbf16>, vector<32x128xbf16>, vector<8x128xf32> -> vector<8x128xf32>
    %37 = arith.extf %26 : vector<8x128xbf16> to vector<8x128xf32>
    %38 = arith.addf %37, %36 : vector<8x128xf32>
    %39 = arith.truncf %32 : vector<8x32xf32> to vector<8x32xbf16>
    %c0_36 = arith.constant 0 : index
    %c0_37 = arith.constant 0 : index
    %40 = vector.load %arg5[%c0_36, %c0_37] : memref<32x128xbf16, #tpu.memory_space<vmem>>, vector<32x128xbf16>
    %cst_38 = arith.constant dense<0.000000e+00> : vector<8x128xf32>
    %41 = tpu.matmul %39, %40, %cst_38 {dimension_numbers = #tpu.dot_dimension_numbers<[1], [0], [0], [1], [0, 0, 1, 1], [], []>} : vector<8x32xbf16>, vector<32x128xbf16>, vector<8x128xf32> -> vector<8x128xf32>
    %42 = arith.extf %29 : vector<8x128xbf16> to vector<8x128xf32>
    %43 = arith.addf %42, %41 : vector<8x128xf32>
    %44 = vector.extract_strided_slice %38 {offsets = [0, 0], sizes = [8, 96], strides = [1, 1]} : vector<8x128xf32> to vector<8x96xf32>
    %45 = arith.negf %44 : vector<8x96xf32>
    %46 = math.exp %45 : vector<8x96xf32>
    %cst_39 = arith.constant 1.000000e+00 : f32
    %47 = vector.broadcast %cst_39 : f32 to vector<8x96xf32>
    %48 = arith.addf %47, %46 : vector<8x96xf32>
    %49 = arith.divf %47, %48 : vector<8x96xf32>
    %50 = vector.extract_strided_slice %38 {offsets = [0, 96], sizes = [8, 32], strides = [1, 1]} : vector<8x128xf32> to vector<8x32xf32>
    %51 = math.tanh %50 : vector<8x32xf32>
    %52 = vector.extract_strided_slice %49 {offsets = [0, 32], sizes = [8, 32], strides = [1, 1]} : vector<8x96xf32> to vector<8x32xf32>
    %53 = arith.mulf %52, %31 : vector<8x32xf32>
    %54 = vector.extract_strided_slice %49 {offsets = [0, 0], sizes = [8, 32], strides = [1, 1]} : vector<8x96xf32> to vector<8x32xf32>
    %55 = arith.mulf %54, %51 : vector<8x32xf32>
    %56 = arith.addf %53, %55 : vector<8x32xf32>
    %57 = vector.extract_strided_slice %49 {offsets = [0, 64], sizes = [8, 32], strides = [1, 1]} : vector<8x96xf32> to vector<8x32xf32>
    %58 = math.tanh %56 : vector<8x32xf32>
    %59 = arith.mulf %57, %58 : vector<8x32xf32>
    %60 = vector.extract_strided_slice %43 {offsets = [0, 0], sizes = [8, 96], strides = [1, 1]} : vector<8x128xf32> to vector<8x96xf32>
    %61 = arith.negf %60 : vector<8x96xf32>
    %62 = math.exp %61 : vector<8x96xf32>
    %cst_40 = arith.constant 1.000000e+00 : f32
    %63 = vector.broadcast %cst_40 : f32 to vector<8x96xf32>
    %64 = arith.addf %63, %62 : vector<8x96xf32>
    %65 = arith.divf %63, %64 : vector<8x96xf32>
    %66 = vector.extract_strided_slice %43 {offsets = [0, 96], sizes = [8, 32], strides = [1, 1]} : vector<8x128xf32> to vector<8x32xf32>
    %67 = math.tanh %66 : vector<8x32xf32>
    %68 = vector.extract_strided_slice %65 {offsets = [0, 32], sizes = [8, 32], strides = [1, 1]} : vector<8x96xf32> to vector<8x32xf32>
    %69 = arith.mulf %68, %33 : vector<8x32xf32>
    %70 = vector.extract_strided_slice %65 {offsets = [0, 0], sizes = [8, 32], strides = [1, 1]} : vector<8x96xf32> to vector<8x32xf32>
    %71 = arith.mulf %70, %67 : vector<8x32xf32>
    %72 = arith.addf %69, %71 : vector<8x32xf32>
    %73 = vector.extract_strided_slice %65 {offsets = [0, 64], sizes = [8, 32], strides = [1, 1]} : vector<8x96xf32> to vector<8x32xf32>
    %74 = math.tanh %72 : vector<8x32xf32>
    %75 = arith.mulf %73, %74 : vector<8x32xf32>
    %76 = vector.broadcast %c0_i32_21 : i32 to vector<8x1xi32>
    %77 = arith.cmpi sgt, %22, %76 : vector<8x1xi32>
    %78 = vector.broadcast %23 : i32 to vector<8x1xi32>
    %79 = arith.cmpi sgt, %22, %78 : vector<8x1xi32>
    %80 = vector.shape_cast %77 : vector<8x1xi1> to vector<8x1xi1>
    %81 = vector.broadcast %80 : vector<8x1xi1> to vector<8x32xi1>
    %82 = arith.select %81, %59, %30 : vector<8x32xi1>, vector<8x32xf32>
    %c0_41 = arith.constant 0 : index
    %c0_42 = arith.constant 0 : index
    %83 = vector.load %arg9[%c0_41, %c0_42] : memref<8x32xf32, #tpu.memory_space<vmem>>, vector<8x32xf32>
    tpu.vector_store %arg9[%c0_41, %c0_42], %82 {strides = array<i32>} : memref<8x32xf32, #tpu.memory_space<vmem>>, vector<8x32xf32>,
    %84 = vector.shape_cast %77 : vector<8x1xi1> to vector<8x1xi1>
    %85 = vector.broadcast %84 : vector<8x1xi1> to vector<8x32xi1>
    %86 = arith.select %85, %56, %31 : vector<8x32xi1>, vector<8x32xf32>
    %c0_43 = arith.constant 0 : index
    %c0_44 = arith.constant 0 : index
    %87 = vector.load %arg10[%c0_43, %c0_44] : memref<8x32xf32, #tpu.memory_space<vmem>>, vector<8x32xf32>
    tpu.vector_store %arg10[%c0_43, %c0_44], %86 {strides = array<i32>} : memref<8x32xf32, #tpu.memory_space<vmem>>, vector<8x32xf32>,
    %88 = vector.shape_cast %79 : vector<8x1xi1> to vector<8x1xi1>
    %89 = vector.broadcast %88 : vector<8x1xi1> to vector<8x32xi1>
    %90 = arith.select %89, %75, %32 : vector<8x32xi1>, vector<8x32xf32>
    %c0_45 = arith.constant 0 : index
    %c0_46 = arith.constant 0 : index
    %91 = vector.load %arg11[%c0_45, %c0_46] : memref<8x32xf32, #tpu.memory_space<vmem>>, vector<8x32xf32>
    tpu.vector_store %arg11[%c0_45, %c0_46], %90 {strides = array<i32>} : memref<8x32xf32, #tpu.memory_space<vmem>>, vector<8x32xf32>,
    %92 = vector.shape_cast %79 : vector<8x1xi1> to vector<8x1xi1>
    %93 = vector.broadcast %92 : vector<8x1xi1> to vector<8x32xi1>
    %94 = arith.select %93, %72, %33 : vector<8x32xi1>, vector<8x32xf32>
    %c0_47 = arith.constant 0 : index
    %c0_48 = arith.constant 0 : index
    %95 = vector.load %arg12[%c0_47, %c0_48] : memref<8x32xf32, #tpu.memory_space<vmem>>, vector<8x32xf32>
    tpu.vector_store %arg12[%c0_47, %c0_48], %94 {strides = array<i32>} : memref<8x32xf32, #tpu.memory_space<vmem>>, vector<8x32xf32>,
    %cst_49 = arith.constant 0.000000e+00 : f32
    %96 = vector.shape_cast %77 : vector<8x1xi1> to vector<8x1xi1>
    %97 = vector.broadcast %96 : vector<8x1xi1> to vector<8x32xi1>
    %98 = vector.broadcast %cst_49 : f32 to vector<8x32xf32>
    %99 = arith.select %97, %59, %98 : vector<8x32xi1>, vector<8x32xf32>
    %100 = arith.index_cast %c0_i32_21 : i32 to index
    %c0_50 = arith.constant 0 : index
    %c0_51 = arith.constant 0 : index
    %101 = vector.load %arg7[%100, %c0_50, %c0_51] : memref<8x8x64xf32, #tpu.memory_space<vmem>>, vector<1x8x32xf32>
    %102 = vector.shape_cast %101 : vector<1x8x32xf32> to vector<8x32xf32>
    %103 = vector.shape_cast %99 : vector<8x32xf32> to vector<1x8x32xf32>
    tpu.vector_store %arg7[%100, %c0_50, %c0_51], %103 {strides = array<i32>} : memref<8x8x64xf32, #tpu.memory_space<vmem>>, vector<1x8x32xf32>,
    %cst_52 = arith.constant 0.000000e+00 : f32
    %104 = vector.shape_cast %79 : vector<8x1xi1> to vector<8x1xi1>
    %105 = vector.broadcast %104 : vector<8x1xi1> to vector<8x32xi1>
    %106 = vector.broadcast %cst_52 : f32 to vector<8x32xf32>
    %107 = arith.select %105, %75, %106 : vector<8x32xi1>, vector<8x32xf32>
    %108 = arith.index_cast %23 : i32 to index
    %c0_53 = arith.constant 0 : index
    %c32 = arith.constant 32 : index
    %109 = vector.load %arg7[%108, %c0_53, %c32] : memref<8x8x64xf32, #tpu.memory_space<vmem>>, vector<1x8x32xf32>
    %110 = vector.shape_cast %109 : vector<1x8x32xf32> to vector<8x32xf32>
    %111 = vector.shape_cast %107 : vector<8x32xf32> to vector<1x8x32xf32>
    tpu.vector_store %arg7[%108, %c0_53, %c32], %111 {strides = array<i32>} : memref<8x8x64xf32, #tpu.memory_space<vmem>>, vector<1x8x32xf32>,
    %c1_i32_54 = arith.constant 1 : i32
    %c7_i32_55 = arith.constant 7 : i32
    %112 = arith.subi %c7_i32_55, %c1_i32_54 : i32
    %113 = arith.index_cast %c1_i32_54 : i32 to index
    %c0_56 = arith.constant 0 : index
    %c0_57 = arith.constant 0 : index
    %114 = vector.load %arg8[%113, %c0_56, %c0_57] : memref<8x8x256xbf16, #tpu.memory_space<vmem>>, vector<1x8x128xbf16>
    %115 = vector.shape_cast %114 : vector<1x8x128xbf16> to vector<8x128xbf16>
    %116 = arith.index_cast %112 : i32 to index
    %c0_58 = arith.constant 0 : index
    %c128_59 = arith.constant 128 : index
    %117 = vector.load %arg8[%116, %c0_58, %c128_59] : memref<8x8x256xbf16, #tpu.memory_space<vmem>>, vector<1x8x128xbf16>
    %118 = vector.shape_cast %117 : vector<1x8x128xbf16> to vector<8x128xbf16>
    %c0_60 = arith.constant 0 : index
    %c0_61 = arith.constant 0 : index
    %119 = vector.load %arg9[%c0_60, %c0_61] : memref<8x32xf32, #tpu.memory_space<vmem>>, vector<8x32xf32>
    %c0_62 = arith.constant 0 : index
    %c0_63 = arith.constant 0 : index
    %120 = vector.load %arg10[%c0_62, %c0_63] : memref<8x32xf32, #tpu.memory_space<vmem>>, vector<8x32xf32>
    %c0_64 = arith.constant 0 : index
    %c0_65 = arith.constant 0 : index
    %121 = vector.load %arg11[%c0_64, %c0_65] : memref<8x32xf32, #tpu.memory_space<vmem>>, vector<8x32xf32>
    %c0_66 = arith.constant 0 : index
    %c0_67 = arith.constant 0 : index
    %122 = vector.load %arg12[%c0_66, %c0_67] : memref<8x32xf32, #tpu.memory_space<vmem>>, vector<8x32xf32>
    %123 = arith.truncf %119 : vector<8x32xf32> to vector<8x32xbf16>
    %c0_68 = arith.constant 0 : index
    %c0_69 = arith.constant 0 : index
    %124 = vector.load %arg4[%c0_68, %c0_69] : memref<32x128xbf16, #tpu.memory_space<vmem>>, vector<32x128xbf16>
    %cst_70 = arith.constant dense<0.000000e+00> : vector<8x128xf32>
    %125 = tpu.matmul %123, %124, %cst_70 {dimension_numbers = #tpu.dot_dimension_numbers<[1], [0], [0], [1], [0, 0, 1, 1], [], []>} : vector<8x32xbf16>, vector<32x128xbf16>, vector<8x128xf32> -> vector<8x128xf32>
    %126 = arith.extf %115 : vector<8x128xbf16> to vector<8x128xf32>
    %127 = arith.addf %126, %125 : vector<8x128xf32>
    %128 = arith.truncf %121 : vector<8x32xf32> to vector<8x32xbf16>
    %c0_71 = arith.constant 0 : index
    %c0_72 = arith.constant 0 : index
    %129 = vector.load %arg5[%c0_71, %c0_72] : memref<32x128xbf16, #tpu.memory_space<vmem>>, vector<32x128xbf16>
    %cst_73 = arith.constant dense<0.000000e+00> : vector<8x128xf32>
    %130 = tpu.matmul %128, %129, %cst_73 {dimension_numbers = #tpu.dot_dimension_numbers<[1], [0], [0], [1], [0, 0, 1, 1], [], []>} : vector<8x32xbf16>, vector<32x128xbf16>, vector<8x128xf32> -> vector<8x128xf32>
    %131 = arith.extf %118 : vector<8x128xbf16> to vector<8x128xf32>
    %132 = arith.addf %131, %130 : vector<8x128xf32>
    %133 = vector.extract_strided_slice %127 {offsets = [0, 0], sizes = [8, 96], strides = [1, 1]} : vector<8x128xf32> to vector<8x96xf32>
    %134 = arith.negf %133 : vector<8x96xf32>
    %135 = math.exp %134 : vector<8x96xf32>
    %cst_74 = arith.constant 1.000000e+00 : f32
    %136 = vector.broadcast %cst_74 : f32 to vector<8x96xf32>
    %137 = arith.addf %136, %135 : vector<8x96xf32>
    %138 = arith.divf %136, %137 : vector<8x96xf32>
    %139 = vector.extract_strided_slice %127 {offsets = [0, 96], sizes = [8, 32], strides = [1, 1]} : vector<8x128xf32> to vector<8x32xf32>
    %140 = math.tanh %139 : vector<8x32xf32>
    %141 = vector.extract_strided_slice %138 {offsets = [0, 32], sizes = [8, 32], strides = [1, 1]} : vector<8x96xf32> to vector<8x32xf32>
    %142 = arith.mulf %141, %120 : vector<8x32xf32>
    %143 = vector.extract_strided_slice %138 {offsets = [0, 0], sizes = [8, 32], strides = [1, 1]} : vector<8x96xf32> to vector<8x32xf32>
    %144 = arith.mulf %143, %140 : vector<8x32xf32>
    %145 = arith.addf %142, %144 : vector<8x32xf32>
    %146 = vector.extract_strided_slice %138 {offsets = [0, 64], sizes = [8, 32], strides = [1, 1]} : vector<8x96xf32> to vector<8x32xf32>
    %147 = math.tanh %145 : vector<8x32xf32>
    %148 = arith.mulf %146, %147 : vector<8x32xf32>
    %149 = vector.extract_strided_slice %132 {offsets = [0, 0], sizes = [8, 96], strides = [1, 1]} : vector<8x128xf32> to vector<8x96xf32>
    %150 = arith.negf %149 : vector<8x96xf32>
    %151 = math.exp %150 : vector<8x96xf32>
    %cst_75 = arith.constant 1.000000e+00 : f32
    %152 = vector.broadcast %cst_75 : f32 to vector<8x96xf32>
    %153 = arith.addf %152, %151 : vector<8x96xf32>
    %154 = arith.divf %152, %153 : vector<8x96xf32>
    %155 = vector.extract_strided_slice %132 {offsets = [0, 96], sizes = [8, 32], strides = [1, 1]} : vector<8x128xf32> to vector<8x32xf32>
    %156 = math.tanh %155 : vector<8x32xf32>
    %157 = vector.extract_strided_slice %154 {offsets = [0, 32], sizes = [8, 32], strides = [1, 1]} : vector<8x96xf32> to vector<8x32xf32>
    %158 = arith.mulf %157, %122 : vector<8x32xf32>
    %159 = vector.extract_strided_slice %154 {offsets = [0, 0], sizes = [8, 32], strides = [1, 1]} : vector<8x96xf32> to vector<8x32xf32>
    %160 = arith.mulf %159, %156 : vector<8x32xf32>
    %161 = arith.addf %158, %160 : vector<8x32xf32>
    %162 = vector.extract_strided_slice %154 {offsets = [0, 64], sizes = [8, 32], strides = [1, 1]} : vector<8x96xf32> to vector<8x32xf32>
    %163 = math.tanh %161 : vector<8x32xf32>
    %164 = arith.mulf %162, %163 : vector<8x32xf32>
    %165 = vector.broadcast %c1_i32_54 : i32 to vector<8x1xi32>
    %166 = arith.cmpi sgt, %22, %165 : vector<8x1xi32>
    %167 = vector.broadcast %112 : i32 to vector<8x1xi32>
    %168 = arith.cmpi sgt, %22, %167 : vector<8x1xi32>
    %169 = vector.shape_cast %166 : vector<8x1xi1> to vector<8x1xi1>
    %170 = vector.broadcast %169 : vector<8x1xi1> to vector<8x32xi1>
    %171 = arith.select %170, %148, %119 : vector<8x32xi1>, vector<8x32xf32>
    %c0_76 = arith.constant 0 : index
    %c0_77 = arith.constant 0 : index
    %172 = vector.load %arg9[%c0_76, %c0_77] : memref<8x32xf32, #tpu.memory_space<vmem>>, vector<8x32xf32>
    tpu.vector_store %arg9[%c0_76, %c0_77], %171 {strides = array<i32>} : memref<8x32xf32, #tpu.memory_space<vmem>>, vector<8x32xf32>,
    %173 = vector.shape_cast %166 : vector<8x1xi1> to vector<8x1xi1>
    %174 = vector.broadcast %173 : vector<8x1xi1> to vector<8x32xi1>
    %175 = arith.select %174, %145, %120 : vector<8x32xi1>, vector<8x32xf32>
    %c0_78 = arith.constant 0 : index
    %c0_79 = arith.constant 0 : index
    %176 = vector.load %arg10[%c0_78, %c0_79] : memref<8x32xf32, #tpu.memory_space<vmem>>, vector<8x32xf32>
    tpu.vector_store %arg10[%c0_78, %c0_79], %175 {strides = array<i32>} : memref<8x32xf32, #tpu.memory_space<vmem>>, vector<8x32xf32>,
    %177 = vector.shape_cast %168 : vector<8x1xi1> to vector<8x1xi1>
    %178 = vector.broadcast %177 : vector<8x1xi1> to vector<8x32xi1>
    %179 = arith.select %178, %164, %121 : vector<8x32xi1>, vector<8x32xf32>
    %c0_80 = arith.constant 0 : index
    %c0_81 = arith.constant 0 : index
    %180 = vector.load %arg11[%c0_80, %c0_81] : memref<8x32xf32, #tpu.memory_space<vmem>>, vector<8x32xf32>
    tpu.vector_store %arg11[%c0_80, %c0_81], %179 {strides = array<i32>} : memref<8x32xf32, #tpu.memory_space<vmem>>, vector<8x32xf32>,
    %181 = vector.shape_cast %168 : vector<8x1xi1> to vector<8x1xi1>
    %182 = vector.broadcast %181 : vector<8x1xi1> to vector<8x32xi1>
    %183 = arith.select %182, %161, %122 : vector<8x32xi1>, vector<8x32xf32>
    %c0_82 = arith.constant 0 : index
    %c0_83 = arith.constant 0 : index
    %184 = vector.load %arg12[%c0_82, %c0_83] : memref<8x32xf32, #tpu.memory_space<vmem>>, vector<8x32xf32>
    tpu.vector_store %arg12[%c0_82, %c0_83], %183 {strides = array<i32>} : memref<8x32xf32, #tpu.memory_space<vmem>>, vector<8x32xf32>,
    %cst_84 = arith.constant 0.000000e+00 : f32
    %185 = vector.shape_cast %166 : vector<8x1xi1> to vector<8x1xi1>
    %186 = vector.broadcast %185 : vector<8x1xi1> to vector<8x32xi1>
    %187 = vector.broadcast %cst_84 : f32 to vector<8x32xf32>
    %188 = arith.select %186, %148, %187 : vector<8x32xi1>, vector<8x32xf32>
    %189 = arith.index_cast %c1_i32_54 : i32 to index
    %c0_85 = arith.constant 0 : index
    %c0_86 = arith.constant 0 : index
    %190 = vector.load %arg7[%189, %c0_85, %c0_86] : memref<8x8x64xf32, #tpu.memory_space<vmem>>, vector<1x8x32xf32>
    %191 = vector.shape_cast %190 : vector<1x8x32xf32> to vector<8x32xf32>
    %192 = vector.shape_cast %188 : vector<8x32xf32> to vector<1x8x32xf32>
    tpu.vector_store %arg7[%189, %c0_85, %c0_86], %192 {strides = array<i32>} : memref<8x8x64xf32, #tpu.memory_space<vmem>>, vector<1x8x32xf32>,
    %cst_87 = arith.constant 0.000000e+00 : f32
    %193 = vector.shape_cast %168 : vector<8x1xi1> to vector<8x1xi1>
    %194 = vector.broadcast %193 : vector<8x1xi1> to vector<8x32xi1>
    %195 = vector.broadcast %cst_87 : f32 to vector<8x32xf32>
    %196 = arith.select %194, %164, %195 : vector<8x32xi1>, vector<8x32xf32>
    %197 = arith.index_cast %112 : i32 to index
    %c0_88 = arith.constant 0 : index
    %c32_89 = arith.constant 32 : index
    %198 = vector.load %arg7[%197, %c0_88, %c32_89] : memref<8x8x64xf32, #tpu.memory_space<vmem>>, vector<1x8x32xf32>
    %199 = vector.shape_cast %198 : vector<1x8x32xf32> to vector<8x32xf32>
    %200 = vector.shape_cast %196 : vector<8x32xf32> to vector<1x8x32xf32>
    tpu.vector_store %arg7[%197, %c0_88, %c32_89], %200 {strides = array<i32>} : memref<8x8x64xf32, #tpu.memory_space<vmem>>, vector<1x8x32xf32>,
    %c2_i32 = arith.constant 2 : i32
    %c7_i32_90 = arith.constant 7 : i32
    %201 = arith.subi %c7_i32_90, %c2_i32 : i32
    %202 = arith.index_cast %c2_i32 : i32 to index
    %c0_91 = arith.constant 0 : index
    %c0_92 = arith.constant 0 : index
    %203 = vector.load %arg8[%202, %c0_91, %c0_92] : memref<8x8x256xbf16, #tpu.memory_space<vmem>>, vector<1x8x128xbf16>
    %204 = vector.shape_cast %203 : vector<1x8x128xbf16> to vector<8x128xbf16>
    %205 = arith.index_cast %201 : i32 to index
    %c0_93 = arith.constant 0 : index
    %c128_94 = arith.constant 128 : index
    %206 = vector.load %arg8[%205, %c0_93, %c128_94] : memref<8x8x256xbf16, #tpu.memory_space<vmem>>, vector<1x8x128xbf16>
    %207 = vector.shape_cast %206 : vector<1x8x128xbf16> to vector<8x128xbf16>
    %c0_95 = arith.constant 0 : index
    %c0_96 = arith.constant 0 : index
    %208 = vector.load %arg9[%c0_95, %c0_96] : memref<8x32xf32, #tpu.memory_space<vmem>>, vector<8x32xf32>
    %c0_97 = arith.constant 0 : index
    %c0_98 = arith.constant 0 : index
    %209 = vector.load %arg10[%c0_97, %c0_98] : memref<8x32xf32, #tpu.memory_space<vmem>>, vector<8x32xf32>
    %c0_99 = arith.constant 0 : index
    %c0_100 = arith.constant 0 : index
    %210 = vector.load %arg11[%c0_99, %c0_100] : memref<8x32xf32, #tpu.memory_space<vmem>>, vector<8x32xf32>
    %c0_101 = arith.constant 0 : index
    %c0_102 = arith.constant 0 : index
    %211 = vector.load %arg12[%c0_101, %c0_102] : memref<8x32xf32, #tpu.memory_space<vmem>>, vector<8x32xf32>
    %212 = arith.truncf %208 : vector<8x32xf32> to vector<8x32xbf16>
    %c0_103 = arith.constant 0 : index
    %c0_104 = arith.constant 0 : index
    %213 = vector.load %arg4[%c0_103, %c0_104] : memref<32x128xbf16, #tpu.memory_space<vmem>>, vector<32x128xbf16>
    %cst_105 = arith.constant dense<0.000000e+00> : vector<8x128xf32>
    %214 = tpu.matmul %212, %213, %cst_105 {dimension_numbers = #tpu.dot_dimension_numbers<[1], [0], [0], [1], [0, 0, 1, 1], [], []>} : vector<8x32xbf16>, vector<32x128xbf16>, vector<8x128xf32> -> vector<8x128xf32>
    %215 = arith.extf %204 : vector<8x128xbf16> to vector<8x128xf32>
    %216 = arith.addf %215, %214 : vector<8x128xf32>
    %217 = arith.truncf %210 : vector<8x32xf32> to vector<8x32xbf16>
    %c0_106 = arith.constant 0 : index
    %c0_107 = arith.constant 0 : index
    %218 = vector.load %arg5[%c0_106, %c0_107] : memref<32x128xbf16, #tpu.memory_space<vmem>>, vector<32x128xbf16>
    %cst_108 = arith.constant dense<0.000000e+00> : vector<8x128xf32>
    %219 = tpu.matmul %217, %218, %cst_108 {dimension_numbers = #tpu.dot_dimension_numbers<[1], [0], [0], [1], [0, 0, 1, 1], [], []>} : vector<8x32xbf16>, vector<32x128xbf16>, vector<8x128xf32> -> vector<8x128xf32>
    %220 = arith.extf %207 : vector<8x128xbf16> to vector<8x128xf32>
    %221 = arith.addf %220, %219 : vector<8x128xf32>
    %222 = vector.extract_strided_slice %216 {offsets = [0, 0], sizes = [8, 96], strides = [1, 1]} : vector<8x128xf32> to vector<8x96xf32>
    %223 = arith.negf %222 : vector<8x96xf32>
    %224 = math.exp %223 : vector<8x96xf32>
    %cst_109 = arith.constant 1.000000e+00 : f32
    %225 = vector.broadcast %cst_109 : f32 to vector<8x96xf32>
    %226 = arith.addf %225, %224 : vector<8x96xf32>
    %227 = arith.divf %225, %226 : vector<8x96xf32>
    %228 = vector.extract_strided_slice %216 {offsets = [0, 96], sizes = [8, 32], strides = [1, 1]} : vector<8x128xf32> to vector<8x32xf32>
    %229 = math.tanh %228 : vector<8x32xf32>
    %230 = vector.extract_strided_slice %227 {offsets = [0, 32], sizes = [8, 32], strides = [1, 1]} : vector<8x96xf32> to vector<8x32xf32>
    %231 = arith.mulf %230, %209 : vector<8x32xf32>
    %232 = vector.extract_strided_slice %227 {offsets = [0, 0], sizes = [8, 32], strides = [1, 1]} : vector<8x96xf32> to vector<8x32xf32>
    %233 = arith.mulf %232, %229 : vector<8x32xf32>
    %234 = arith.addf %231, %233 : vector<8x32xf32>
    %235 = vector.extract_strided_slice %227 {offsets = [0, 64], sizes = [8, 32], strides = [1, 1]} : vector<8x96xf32> to vector<8x32xf32>
    %236 = math.tanh %234 : vector<8x32xf32>
    %237 = arith.mulf %235, %236 : vector<8x32xf32>
    %238 = vector.extract_strided_slice %221 {offsets = [0, 0], sizes = [8, 96], strides = [1, 1]} : vector<8x128xf32> to vector<8x96xf32>
    %239 = arith.negf %238 : vector<8x96xf32>
    %240 = math.exp %239 : vector<8x96xf32>
    %cst_110 = arith.constant 1.000000e+00 : f32
    %241 = vector.broadcast %cst_110 : f32 to vector<8x96xf32>
    %242 = arith.addf %241, %240 : vector<8x96xf32>
    %243 = arith.divf %241, %242 : vector<8x96xf32>
    %244 = vector.extract_strided_slice %221 {offsets = [0, 96], sizes = [8, 32], strides = [1, 1]} : vector<8x128xf32> to vector<8x32xf32>
    %245 = math.tanh %244 : vector<8x32xf32>
    %246 = vector.extract_strided_slice %243 {offsets = [0, 32], sizes = [8, 32], strides = [1, 1]} : vector<8x96xf32> to vector<8x32xf32>
    %247 = arith.mulf %246, %211 : vector<8x32xf32>
    %248 = vector.extract_strided_slice %243 {offsets = [0, 0], sizes = [8, 32], strides = [1, 1]} : vector<8x96xf32> to vector<8x32xf32>
    %249 = arith.mulf %248, %245 : vector<8x32xf32>
    %250 = arith.addf %247, %249 : vector<8x32xf32>
    %251 = vector.extract_strided_slice %243 {offsets = [0, 64], sizes = [8, 32], strides = [1, 1]} : vector<8x96xf32> to vector<8x32xf32>
    %252 = math.tanh %250 : vector<8x32xf32>
    %253 = arith.mulf %251, %252 : vector<8x32xf32>
    %254 = vector.broadcast %c2_i32 : i32 to vector<8x1xi32>
    %255 = arith.cmpi sgt, %22, %254 : vector<8x1xi32>
    %256 = vector.broadcast %201 : i32 to vector<8x1xi32>
    %257 = arith.cmpi sgt, %22, %256 : vector<8x1xi32>
    %258 = vector.shape_cast %255 : vector<8x1xi1> to vector<8x1xi1>
    %259 = vector.broadcast %258 : vector<8x1xi1> to vector<8x32xi1>
    %260 = arith.select %259, %237, %208 : vector<8x32xi1>, vector<8x32xf32>
    %c0_111 = arith.constant 0 : index
    %c0_112 = arith.constant 0 : index
    %261 = vector.load %arg9[%c0_111, %c0_112] : memref<8x32xf32, #tpu.memory_space<vmem>>, vector<8x32xf32>
    tpu.vector_store %arg9[%c0_111, %c0_112], %260 {strides = array<i32>} : memref<8x32xf32, #tpu.memory_space<vmem>>, vector<8x32xf32>,
    %262 = vector.shape_cast %255 : vector<8x1xi1> to vector<8x1xi1>
    %263 = vector.broadcast %262 : vector<8x1xi1> to vector<8x32xi1>
    %264 = arith.select %263, %234, %209 : vector<8x32xi1>, vector<8x32xf32>
    %c0_113 = arith.constant 0 : index
    %c0_114 = arith.constant 0 : index
    %265 = vector.load %arg10[%c0_113, %c0_114] : memref<8x32xf32, #tpu.memory_space<vmem>>, vector<8x32xf32>
    tpu.vector_store %arg10[%c0_113, %c0_114], %264 {strides = array<i32>} : memref<8x32xf32, #tpu.memory_space<vmem>>, vector<8x32xf32>,
    %266 = vector.shape_cast %257 : vector<8x1xi1> to vector<8x1xi1>
    %267 = vector.broadcast %266 : vector<8x1xi1> to vector<8x32xi1>
    %268 = arith.select %267, %253, %210 : vector<8x32xi1>, vector<8x32xf32>
    %c0_115 = arith.constant 0 : index
    %c0_116 = arith.constant 0 : index
    %269 = vector.load %arg11[%c0_115, %c0_116] : memref<8x32xf32, #tpu.memory_space<vmem>>, vector<8x32xf32>
    tpu.vector_store %arg11[%c0_115, %c0_116], %268 {strides = array<i32>} : memref<8x32xf32, #tpu.memory_space<vmem>>, vector<8x32xf32>,
    %270 = vector.shape_cast %257 : vector<8x1xi1> to vector<8x1xi1>
    %271 = vector.broadcast %270 : vector<8x1xi1> to vector<8x32xi1>
    %272 = arith.select %271, %250, %211 : vector<8x32xi1>, vector<8x32xf32>
    %c0_117 = arith.constant 0 : index
    %c0_118 = arith.constant 0 : index
    %273 = vector.load %arg12[%c0_117, %c0_118] : memref<8x32xf32, #tpu.memory_space<vmem>>, vector<8x32xf32>
    tpu.vector_store %arg12[%c0_117, %c0_118], %272 {strides = array<i32>} : memref<8x32xf32, #tpu.memory_space<vmem>>, vector<8x32xf32>,
    %cst_119 = arith.constant 0.000000e+00 : f32
    %274 = vector.shape_cast %255 : vector<8x1xi1> to vector<8x1xi1>
    %275 = vector.broadcast %274 : vector<8x1xi1> to vector<8x32xi1>
    %276 = vector.broadcast %cst_119 : f32 to vector<8x32xf32>
    %277 = arith.select %275, %237, %276 : vector<8x32xi1>, vector<8x32xf32>
    %278 = arith.index_cast %c2_i32 : i32 to index
    %c0_120 = arith.constant 0 : index
    %c0_121 = arith.constant 0 : index
    %279 = vector.load %arg7[%278, %c0_120, %c0_121] : memref<8x8x64xf32, #tpu.memory_space<vmem>>, vector<1x8x32xf32>
    %280 = vector.shape_cast %279 : vector<1x8x32xf32> to vector<8x32xf32>
    %281 = vector.shape_cast %277 : vector<8x32xf32> to vector<1x8x32xf32>
    tpu.vector_store %arg7[%278, %c0_120, %c0_121], %281 {strides = array<i32>} : memref<8x8x64xf32, #tpu.memory_space<vmem>>, vector<1x8x32xf32>,
    %cst_122 = arith.constant 0.000000e+00 : f32
    %282 = vector.shape_cast %257 : vector<8x1xi1> to vector<8x1xi1>
    %283 = vector.broadcast %282 : vector<8x1xi1> to vector<8x32xi1>
    %284 = vector.broadcast %cst_122 : f32 to vector<8x32xf32>
    %285 = arith.select %283, %253, %284 : vector<8x32xi1>, vector<8x32xf32>
    %286 = arith.index_cast %201 : i32 to index
    %c0_123 = arith.constant 0 : index
    %c32_124 = arith.constant 32 : index
    %287 = vector.load %arg7[%286, %c0_123, %c32_124] : memref<8x8x64xf32, #tpu.memory_space<vmem>>, vector<1x8x32xf32>
    %288 = vector.shape_cast %287 : vector<1x8x32xf32> to vector<8x32xf32>
    %289 = vector.shape_cast %285 : vector<8x32xf32> to vector<1x8x32xf32>
    tpu.vector_store %arg7[%286, %c0_123, %c32_124], %289 {strides = array<i32>} : memref<8x8x64xf32, #tpu.memory_space<vmem>>, vector<1x8x32xf32>,
    %c3_i32 = arith.constant 3 : i32
    %c7_i32_125 = arith.constant 7 : i32
    %290 = arith.subi %c7_i32_125, %c3_i32 : i32
    %291 = arith.index_cast %c3_i32 : i32 to index
    %c0_126 = arith.constant 0 : index
    %c0_127 = arith.constant 0 : index
    %292 = vector.load %arg8[%291, %c0_126, %c0_127] : memref<8x8x256xbf16, #tpu.memory_space<vmem>>, vector<1x8x128xbf16>
    %293 = vector.shape_cast %292 : vector<1x8x128xbf16> to vector<8x128xbf16>
    %294 = arith.index_cast %290 : i32 to index
    %c0_128 = arith.constant 0 : index
    %c128_129 = arith.constant 128 : index
    %295 = vector.load %arg8[%294, %c0_128, %c128_129] : memref<8x8x256xbf16, #tpu.memory_space<vmem>>, vector<1x8x128xbf16>
    %296 = vector.shape_cast %295 : vector<1x8x128xbf16> to vector<8x128xbf16>
    %c0_130 = arith.constant 0 : index
    %c0_131 = arith.constant 0 : index
    %297 = vector.load %arg9[%c0_130, %c0_131] : memref<8x32xf32, #tpu.memory_space<vmem>>, vector<8x32xf32>
    %c0_132 = arith.constant 0 : index
    %c0_133 = arith.constant 0 : index
    %298 = vector.load %arg10[%c0_132, %c0_133] : memref<8x32xf32, #tpu.memory_space<vmem>>, vector<8x32xf32>
    %c0_134 = arith.constant 0 : index
    %c0_135 = arith.constant 0 : index
    %299 = vector.load %arg11[%c0_134, %c0_135] : memref<8x32xf32, #tpu.memory_space<vmem>>, vector<8x32xf32>
    %c0_136 = arith.constant 0 : index
    %c0_137 = arith.constant 0 : index
    %300 = vector.load %arg12[%c0_136, %c0_137] : memref<8x32xf32, #tpu.memory_space<vmem>>, vector<8x32xf32>
    %301 = arith.truncf %297 : vector<8x32xf32> to vector<8x32xbf16>
    %c0_138 = arith.constant 0 : index
    %c0_139 = arith.constant 0 : index
    %302 = vector.load %arg4[%c0_138, %c0_139] : memref<32x128xbf16, #tpu.memory_space<vmem>>, vector<32x128xbf16>
    %cst_140 = arith.constant dense<0.000000e+00> : vector<8x128xf32>
    %303 = tpu.matmul %301, %302, %cst_140 {dimension_numbers = #tpu.dot_dimension_numbers<[1], [0], [0], [1], [0, 0, 1, 1], [], []>} : vector<8x32xbf16>, vector<32x128xbf16>, vector<8x128xf32> -> vector<8x128xf32>
    %304 = arith.extf %293 : vector<8x128xbf16> to vector<8x128xf32>
    %305 = arith.addf %304, %303 : vector<8x128xf32>
    %306 = arith.truncf %299 : vector<8x32xf32> to vector<8x32xbf16>
    %c0_141 = arith.constant 0 : index
    %c0_142 = arith.constant 0 : index
    %307 = vector.load %arg5[%c0_141, %c0_142] : memref<32x128xbf16, #tpu.memory_space<vmem>>, vector<32x128xbf16>
    %cst_143 = arith.constant dense<0.000000e+00> : vector<8x128xf32>
    %308 = tpu.matmul %306, %307, %cst_143 {dimension_numbers = #tpu.dot_dimension_numbers<[1], [0], [0], [1], [0, 0, 1, 1], [], []>} : vector<8x32xbf16>, vector<32x128xbf16>, vector<8x128xf32> -> vector<8x128xf32>
    %309 = arith.extf %296 : vector<8x128xbf16> to vector<8x128xf32>
    %310 = arith.addf %309, %308 : vector<8x128xf32>
    %311 = vector.extract_strided_slice %305 {offsets = [0, 0], sizes = [8, 96], strides = [1, 1]} : vector<8x128xf32> to vector<8x96xf32>
    %312 = arith.negf %311 : vector<8x96xf32>
    %313 = math.exp %312 : vector<8x96xf32>
    %cst_144 = arith.constant 1.000000e+00 : f32
    %314 = vector.broadcast %cst_144 : f32 to vector<8x96xf32>
    %315 = arith.addf %314, %313 : vector<8x96xf32>
    %316 = arith.divf %314, %315 : vector<8x96xf32>
    %317 = vector.extract_strided_slice %305 {offsets = [0, 96], sizes = [8, 32], strides = [1, 1]} : vector<8x128xf32> to vector<8x32xf32>
    %318 = math.tanh %317 : vector<8x32xf32>
    %319 = vector.extract_strided_slice %316 {offsets = [0, 32], sizes = [8, 32], strides = [1, 1]} : vector<8x96xf32> to vector<8x32xf32>
    %320 = arith.mulf %319, %298 : vector<8x32xf32>
    %321 = vector.extract_strided_slice %316 {offsets = [0, 0], sizes = [8, 32], strides = [1, 1]} : vector<8x96xf32> to vector<8x32xf32>
    %322 = arith.mulf %321, %318 : vector<8x32xf32>
    %323 = arith.addf %320, %322 : vector<8x32xf32>
    %324 = vector.extract_strided_slice %316 {offsets = [0, 64], sizes = [8, 32], strides = [1, 1]} : vector<8x96xf32> to vector<8x32xf32>
    %325 = math.tanh %323 : vector<8x32xf32>
    %326 = arith.mulf %324, %325 : vector<8x32xf32>
    %327 = vector.extract_strided_slice %310 {offsets = [0, 0], sizes = [8, 96], strides = [1, 1]} : vector<8x128xf32> to vector<8x96xf32>
    %328 = arith.negf %327 : vector<8x96xf32>
    %329 = math.exp %328 : vector<8x96xf32>
    %cst_145 = arith.constant 1.000000e+00 : f32
    %330 = vector.broadcast %cst_145 : f32 to vector<8x96xf32>
    %331 = arith.addf %330, %329 : vector<8x96xf32>
    %332 = arith.divf %330, %331 : vector<8x96xf32>
    %333 = vector.extract_strided_slice %310 {offsets = [0, 96], sizes = [8, 32], strides = [1, 1]} : vector<8x128xf32> to vector<8x32xf32>
    %334 = math.tanh %333 : vector<8x32xf32>
    %335 = vector.extract_strided_slice %332 {offsets = [0, 32], sizes = [8, 32], strides = [1, 1]} : vector<8x96xf32> to vector<8x32xf32>
    %336 = arith.mulf %335, %300 : vector<8x32xf32>
    %337 = vector.extract_strided_slice %332 {offsets = [0, 0], sizes = [8, 32], strides = [1, 1]} : vector<8x96xf32> to vector<8x32xf32>
    %338 = arith.mulf %337, %334 : vector<8x32xf32>
    %339 = arith.addf %336, %338 : vector<8x32xf32>
    %340 = vector.extract_strided_slice %332 {offsets = [0, 64], sizes = [8, 32], strides = [1, 1]} : vector<8x96xf32> to vector<8x32xf32>
    %341 = math.tanh %339 : vector<8x32xf32>
    %342 = arith.mulf %340, %341 : vector<8x32xf32>
    %343 = vector.broadcast %c3_i32 : i32 to vector<8x1xi32>
    %344 = arith.cmpi sgt, %22, %343 : vector<8x1xi32>
    %345 = vector.broadcast %290 : i32 to vector<8x1xi32>
    %346 = arith.cmpi sgt, %22, %345 : vector<8x1xi32>
    %347 = vector.shape_cast %344 : vector<8x1xi1> to vector<8x1xi1>
    %348 = vector.broadcast %347 : vector<8x1xi1> to vector<8x32xi1>
    %349 = arith.select %348, %326, %297 : vector<8x32xi1>, vector<8x32xf32>
    %c0_146 = arith.constant 0 : index
    %c0_147 = arith.constant 0 : index
    %350 = vector.load %arg9[%c0_146, %c0_147] : memref<8x32xf32, #tpu.memory_space<vmem>>, vector<8x32xf32>
    tpu.vector_store %arg9[%c0_146, %c0_147], %349 {strides = array<i32>} : memref<8x32xf32, #tpu.memory_space<vmem>>, vector<8x32xf32>,
    %351 = vector.shape_cast %344 : vector<8x1xi1> to vector<8x1xi1>
    %352 = vector.broadcast %351 : vector<8x1xi1> to vector<8x32xi1>
    %353 = arith.select %352, %323, %298 : vector<8x32xi1>, vector<8x32xf32>
    %c0_148 = arith.constant 0 : index
    %c0_149 = arith.constant 0 : index
    %354 = vector.load %arg10[%c0_148, %c0_149] : memref<8x32xf32, #tpu.memory_space<vmem>>, vector<8x32xf32>
    tpu.vector_store %arg10[%c0_148, %c0_149], %353 {strides = array<i32>} : memref<8x32xf32, #tpu.memory_space<vmem>>, vector<8x32xf32>,
    %355 = vector.shape_cast %346 : vector<8x1xi1> to vector<8x1xi1>
    %356 = vector.broadcast %355 : vector<8x1xi1> to vector<8x32xi1>
    %357 = arith.select %356, %342, %299 : vector<8x32xi1>, vector<8x32xf32>
    %c0_150 = arith.constant 0 : index
    %c0_151 = arith.constant 0 : index
    %358 = vector.load %arg11[%c0_150, %c0_151] : memref<8x32xf32, #tpu.memory_space<vmem>>, vector<8x32xf32>
    tpu.vector_store %arg11[%c0_150, %c0_151], %357 {strides = array<i32>} : memref<8x32xf32, #tpu.memory_space<vmem>>, vector<8x32xf32>,
    %359 = vector.shape_cast %346 : vector<8x1xi1> to vector<8x1xi1>
    %360 = vector.broadcast %359 : vector<8x1xi1> to vector<8x32xi1>
    %361 = arith.select %360, %339, %300 : vector<8x32xi1>, vector<8x32xf32>
    %c0_152 = arith.constant 0 : index
    %c0_153 = arith.constant 0 : index
    %362 = vector.load %arg12[%c0_152, %c0_153] : memref<8x32xf32, #tpu.memory_space<vmem>>, vector<8x32xf32>
    tpu.vector_store %arg12[%c0_152, %c0_153], %361 {strides = array<i32>} : memref<8x32xf32, #tpu.memory_space<vmem>>, vector<8x32xf32>,
    %cst_154 = arith.constant 0.000000e+00 : f32
    %363 = vector.shape_cast %344 : vector<8x1xi1> to vector<8x1xi1>
    %364 = vector.broadcast %363 : vector<8x1xi1> to vector<8x32xi1>
    %365 = vector.broadcast %cst_154 : f32 to vector<8x32xf32>
    %366 = arith.select %364, %326, %365 : vector<8x32xi1>, vector<8x32xf32>
    %367 = arith.index_cast %c3_i32 : i32 to index
    %c0_155 = arith.constant 0 : index
    %c0_156 = arith.constant 0 : index
    %368 = vector.load %arg7[%367, %c0_155, %c0_156] : memref<8x8x64xf32, #tpu.memory_space<vmem>>, vector<1x8x32xf32>
    %369 = vector.shape_cast %368 : vector<1x8x32xf32> to vector<8x32xf32>
    %370 = vector.shape_cast %366 : vector<8x32xf32> to vector<1x8x32xf32>
    tpu.vector_store %arg7[%367, %c0_155, %c0_156], %370 {strides = array<i32>} : memref<8x8x64xf32, #tpu.memory_space<vmem>>, vector<1x8x32xf32>,
    %cst_157 = arith.constant 0.000000e+00 : f32
    %371 = vector.shape_cast %346 : vector<8x1xi1> to vector<8x1xi1>
    %372 = vector.broadcast %371 : vector<8x1xi1> to vector<8x32xi1>
    %373 = vector.broadcast %cst_157 : f32 to vector<8x32xf32>
    %374 = arith.select %372, %342, %373 : vector<8x32xi1>, vector<8x32xf32>
    %375 = arith.index_cast %290 : i32 to index
    %c0_158 = arith.constant 0 : index
    %c32_159 = arith.constant 32 : index
    %376 = vector.load %arg7[%375, %c0_158, %c32_159] : memref<8x8x64xf32, #tpu.memory_space<vmem>>, vector<1x8x32xf32>
    %377 = vector.shape_cast %376 : vector<1x8x32xf32> to vector<8x32xf32>
    %378 = vector.shape_cast %374 : vector<8x32xf32> to vector<1x8x32xf32>
    tpu.vector_store %arg7[%375, %c0_158, %c32_159], %378 {strides = array<i32>} : memref<8x8x64xf32, #tpu.memory_space<vmem>>, vector<1x8x32xf32>,
    %c4_i32 = arith.constant 4 : i32
    %c7_i32_160 = arith.constant 7 : i32
    %379 = arith.subi %c7_i32_160, %c4_i32 : i32
    %380 = arith.index_cast %c4_i32 : i32 to index
    %c0_161 = arith.constant 0 : index
    %c0_162 = arith.constant 0 : index
    %381 = vector.load %arg8[%380, %c0_161, %c0_162] : memref<8x8x256xbf16, #tpu.memory_space<vmem>>, vector<1x8x128xbf16>
    %382 = vector.shape_cast %381 : vector<1x8x128xbf16> to vector<8x128xbf16>
    %383 = arith.index_cast %379 : i32 to index
    %c0_163 = arith.constant 0 : index
    %c128_164 = arith.constant 128 : index
    %384 = vector.load %arg8[%383, %c0_163, %c128_164] : memref<8x8x256xbf16, #tpu.memory_space<vmem>>, vector<1x8x128xbf16>
    %385 = vector.shape_cast %384 : vector<1x8x128xbf16> to vector<8x128xbf16>
    %c0_165 = arith.constant 0 : index
    %c0_166 = arith.constant 0 : index
    %386 = vector.load %arg9[%c0_165, %c0_166] : memref<8x32xf32, #tpu.memory_space<vmem>>, vector<8x32xf32>
    %c0_167 = arith.constant 0 : index
    %c0_168 = arith.constant 0 : index
    %387 = vector.load %arg10[%c0_167, %c0_168] : memref<8x32xf32, #tpu.memory_space<vmem>>, vector<8x32xf32>
    %c0_169 = arith.constant 0 : index
    %c0_170 = arith.constant 0 : index
    %388 = vector.load %arg11[%c0_169, %c0_170] : memref<8x32xf32, #tpu.memory_space<vmem>>, vector<8x32xf32>
    %c0_171 = arith.constant 0 : index
    %c0_172 = arith.constant 0 : index
    %389 = vector.load %arg12[%c0_171, %c0_172] : memref<8x32xf32, #tpu.memory_space<vmem>>, vector<8x32xf32>
    %390 = arith.truncf %386 : vector<8x32xf32> to vector<8x32xbf16>
    %c0_173 = arith.constant 0 : index
    %c0_174 = arith.constant 0 : index
    %391 = vector.load %arg4[%c0_173, %c0_174] : memref<32x128xbf16, #tpu.memory_space<vmem>>, vector<32x128xbf16>
    %cst_175 = arith.constant dense<0.000000e+00> : vector<8x128xf32>
    %392 = tpu.matmul %390, %391, %cst_175 {dimension_numbers = #tpu.dot_dimension_numbers<[1], [0], [0], [1], [0, 0, 1, 1], [], []>} : vector<8x32xbf16>, vector<32x128xbf16>, vector<8x128xf32> -> vector<8x128xf32>
    %393 = arith.extf %382 : vector<8x128xbf16> to vector<8x128xf32>
    %394 = arith.addf %393, %392 : vector<8x128xf32>
    %395 = arith.truncf %388 : vector<8x32xf32> to vector<8x32xbf16>
    %c0_176 = arith.constant 0 : index
    %c0_177 = arith.constant 0 : index
    %396 = vector.load %arg5[%c0_176, %c0_177] : memref<32x128xbf16, #tpu.memory_space<vmem>>, vector<32x128xbf16>
    %cst_178 = arith.constant dense<0.000000e+00> : vector<8x128xf32>
    %397 = tpu.matmul %395, %396, %cst_178 {dimension_numbers = #tpu.dot_dimension_numbers<[1], [0], [0], [1], [0, 0, 1, 1], [], []>} : vector<8x32xbf16>, vector<32x128xbf16>, vector<8x128xf32> -> vector<8x128xf32>
    %398 = arith.extf %385 : vector<8x128xbf16> to vector<8x128xf32>
    %399 = arith.addf %398, %397 : vector<8x128xf32>
    %400 = vector.extract_strided_slice %394 {offsets = [0, 0], sizes = [8, 96], strides = [1, 1]} : vector<8x128xf32> to vector<8x96xf32>
    %401 = arith.negf %400 : vector<8x96xf32>
    %402 = math.exp %401 : vector<8x96xf32>
    %cst_179 = arith.constant 1.000000e+00 : f32
    %403 = vector.broadcast %cst_179 : f32 to vector<8x96xf32>
    %404 = arith.addf %403, %402 : vector<8x96xf32>
    %405 = arith.divf %403, %404 : vector<8x96xf32>
    %406 = vector.extract_strided_slice %394 {offsets = [0, 96], sizes = [8, 32], strides = [1, 1]} : vector<8x128xf32> to vector<8x32xf32>
    %407 = math.tanh %406 : vector<8x32xf32>
    %408 = vector.extract_strided_slice %405 {offsets = [0, 32], sizes = [8, 32], strides = [1, 1]} : vector<8x96xf32> to vector<8x32xf32>
    %409 = arith.mulf %408, %387 : vector<8x32xf32>
    %410 = vector.extract_strided_slice %405 {offsets = [0, 0], sizes = [8, 32], strides = [1, 1]} : vector<8x96xf32> to vector<8x32xf32>
    %411 = arith.mulf %410, %407 : vector<8x32xf32>
    %412 = arith.addf %409, %411 : vector<8x32xf32>
    %413 = vector.extract_strided_slice %405 {offsets = [0, 64], sizes = [8, 32], strides = [1, 1]} : vector<8x96xf32> to vector<8x32xf32>
    %414 = math.tanh %412 : vector<8x32xf32>
    %415 = arith.mulf %413, %414 : vector<8x32xf32>
    %416 = vector.extract_strided_slice %399 {offsets = [0, 0], sizes = [8, 96], strides = [1, 1]} : vector<8x128xf32> to vector<8x96xf32>
    %417 = arith.negf %416 : vector<8x96xf32>
    %418 = math.exp %417 : vector<8x96xf32>
    %cst_180 = arith.constant 1.000000e+00 : f32
    %419 = vector.broadcast %cst_180 : f32 to vector<8x96xf32>
    %420 = arith.addf %419, %418 : vector<8x96xf32>
    %421 = arith.divf %419, %420 : vector<8x96xf32>
    %422 = vector.extract_strided_slice %399 {offsets = [0, 96], sizes = [8, 32], strides = [1, 1]} : vector<8x128xf32> to vector<8x32xf32>
    %423 = math.tanh %422 : vector<8x32xf32>
    %424 = vector.extract_strided_slice %421 {offsets = [0, 32], sizes = [8, 32], strides = [1, 1]} : vector<8x96xf32> to vector<8x32xf32>
    %425 = arith.mulf %424, %389 : vector<8x32xf32>
    %426 = vector.extract_strided_slice %421 {offsets = [0, 0], sizes = [8, 32], strides = [1, 1]} : vector<8x96xf32> to vector<8x32xf32>
    %427 = arith.mulf %426, %423 : vector<8x32xf32>
    %428 = arith.addf %425, %427 : vector<8x32xf32>
    %429 = vector.extract_strided_slice %421 {offsets = [0, 64], sizes = [8, 32], strides = [1, 1]} : vector<8x96xf32> to vector<8x32xf32>
    %430 = math.tanh %428 : vector<8x32xf32>
    %431 = arith.mulf %429, %430 : vector<8x32xf32>
    %432 = vector.broadcast %c4_i32 : i32 to vector<8x1xi32>
    %433 = arith.cmpi sgt, %22, %432 : vector<8x1xi32>
    %434 = vector.broadcast %379 : i32 to vector<8x1xi32>
    %435 = arith.cmpi sgt, %22, %434 : vector<8x1xi32>
    %436 = vector.shape_cast %433 : vector<8x1xi1> to vector<8x1xi1>
    %437 = vector.broadcast %436 : vector<8x1xi1> to vector<8x32xi1>
    %438 = arith.select %437, %415, %386 : vector<8x32xi1>, vector<8x32xf32>
    %c0_181 = arith.constant 0 : index
    %c0_182 = arith.constant 0 : index
    %439 = vector.load %arg9[%c0_181, %c0_182] : memref<8x32xf32, #tpu.memory_space<vmem>>, vector<8x32xf32>
    tpu.vector_store %arg9[%c0_181, %c0_182], %438 {strides = array<i32>} : memref<8x32xf32, #tpu.memory_space<vmem>>, vector<8x32xf32>,
    %440 = vector.shape_cast %433 : vector<8x1xi1> to vector<8x1xi1>
    %441 = vector.broadcast %440 : vector<8x1xi1> to vector<8x32xi1>
    %442 = arith.select %441, %412, %387 : vector<8x32xi1>, vector<8x32xf32>
    %c0_183 = arith.constant 0 : index
    %c0_184 = arith.constant 0 : index
    %443 = vector.load %arg10[%c0_183, %c0_184] : memref<8x32xf32, #tpu.memory_space<vmem>>, vector<8x32xf32>
    tpu.vector_store %arg10[%c0_183, %c0_184], %442 {strides = array<i32>} : memref<8x32xf32, #tpu.memory_space<vmem>>, vector<8x32xf32>,
    %444 = vector.shape_cast %435 : vector<8x1xi1> to vector<8x1xi1>
    %445 = vector.broadcast %444 : vector<8x1xi1> to vector<8x32xi1>
    %446 = arith.select %445, %431, %388 : vector<8x32xi1>, vector<8x32xf32>
    %c0_185 = arith.constant 0 : index
    %c0_186 = arith.constant 0 : index
    %447 = vector.load %arg11[%c0_185, %c0_186] : memref<8x32xf32, #tpu.memory_space<vmem>>, vector<8x32xf32>
    tpu.vector_store %arg11[%c0_185, %c0_186], %446 {strides = array<i32>} : memref<8x32xf32, #tpu.memory_space<vmem>>, vector<8x32xf32>,
    %448 = vector.shape_cast %435 : vector<8x1xi1> to vector<8x1xi1>
    %449 = vector.broadcast %448 : vector<8x1xi1> to vector<8x32xi1>
    %450 = arith.select %449, %428, %389 : vector<8x32xi1>, vector<8x32xf32>
    %c0_187 = arith.constant 0 : index
    %c0_188 = arith.constant 0 : index
    %451 = vector.load %arg12[%c0_187, %c0_188] : memref<8x32xf32, #tpu.memory_space<vmem>>, vector<8x32xf32>
    tpu.vector_store %arg12[%c0_187, %c0_188], %450 {strides = array<i32>} : memref<8x32xf32, #tpu.memory_space<vmem>>, vector<8x32xf32>,
    %cst_189 = arith.constant 0.000000e+00 : f32
    %452 = vector.shape_cast %433 : vector<8x1xi1> to vector<8x1xi1>
    %453 = vector.broadcast %452 : vector<8x1xi1> to vector<8x32xi1>
    %454 = vector.broadcast %cst_189 : f32 to vector<8x32xf32>
    %455 = arith.select %453, %415, %454 : vector<8x32xi1>, vector<8x32xf32>
    %456 = arith.index_cast %c4_i32 : i32 to index
    %c0_190 = arith.constant 0 : index
    %c0_191 = arith.constant 0 : index
    %457 = vector.load %arg7[%456, %c0_190, %c0_191] : memref<8x8x64xf32, #tpu.memory_space<vmem>>, vector<1x8x32xf32>
    %458 = vector.shape_cast %457 : vector<1x8x32xf32> to vector<8x32xf32>
    %459 = vector.shape_cast %455 : vector<8x32xf32> to vector<1x8x32xf32>
    tpu.vector_store %arg7[%456, %c0_190, %c0_191], %459 {strides = array<i32>} : memref<8x8x64xf32, #tpu.memory_space<vmem>>, vector<1x8x32xf32>,
    %cst_192 = arith.constant 0.000000e+00 : f32
    %460 = vector.shape_cast %435 : vector<8x1xi1> to vector<8x1xi1>
    %461 = vector.broadcast %460 : vector<8x1xi1> to vector<8x32xi1>
    %462 = vector.broadcast %cst_192 : f32 to vector<8x32xf32>
    %463 = arith.select %461, %431, %462 : vector<8x32xi1>, vector<8x32xf32>
    %464 = arith.index_cast %379 : i32 to index
    %c0_193 = arith.constant 0 : index
    %c32_194 = arith.constant 32 : index
    %465 = vector.load %arg7[%464, %c0_193, %c32_194] : memref<8x8x64xf32, #tpu.memory_space<vmem>>, vector<1x8x32xf32>
    %466 = vector.shape_cast %465 : vector<1x8x32xf32> to vector<8x32xf32>
    %467 = vector.shape_cast %463 : vector<8x32xf32> to vector<1x8x32xf32>
    tpu.vector_store %arg7[%464, %c0_193, %c32_194], %467 {strides = array<i32>} : memref<8x8x64xf32, #tpu.memory_space<vmem>>, vector<1x8x32xf32>,
    %c5_i32 = arith.constant 5 : i32
    %c7_i32_195 = arith.constant 7 : i32
    %468 = arith.subi %c7_i32_195, %c5_i32 : i32
    %469 = arith.index_cast %c5_i32 : i32 to index
    %c0_196 = arith.constant 0 : index
    %c0_197 = arith.constant 0 : index
    %470 = vector.load %arg8[%469, %c0_196, %c0_197] : memref<8x8x256xbf16, #tpu.memory_space<vmem>>, vector<1x8x128xbf16>
    %471 = vector.shape_cast %470 : vector<1x8x128xbf16> to vector<8x128xbf16>
    %472 = arith.index_cast %468 : i32 to index
    %c0_198 = arith.constant 0 : index
    %c128_199 = arith.constant 128 : index
    %473 = vector.load %arg8[%472, %c0_198, %c128_199] : memref<8x8x256xbf16, #tpu.memory_space<vmem>>, vector<1x8x128xbf16>
    %474 = vector.shape_cast %473 : vector<1x8x128xbf16> to vector<8x128xbf16>
    %c0_200 = arith.constant 0 : index
    %c0_201 = arith.constant 0 : index
    %475 = vector.load %arg9[%c0_200, %c0_201] : memref<8x32xf32, #tpu.memory_space<vmem>>, vector<8x32xf32>
    %c0_202 = arith.constant 0 : index
    %c0_203 = arith.constant 0 : index
    %476 = vector.load %arg10[%c0_202, %c0_203] : memref<8x32xf32, #tpu.memory_space<vmem>>, vector<8x32xf32>
    %c0_204 = arith.constant 0 : index
    %c0_205 = arith.constant 0 : index
    %477 = vector.load %arg11[%c0_204, %c0_205] : memref<8x32xf32, #tpu.memory_space<vmem>>, vector<8x32xf32>
    %c0_206 = arith.constant 0 : index
    %c0_207 = arith.constant 0 : index
    %478 = vector.load %arg12[%c0_206, %c0_207] : memref<8x32xf32, #tpu.memory_space<vmem>>, vector<8x32xf32>
    %479 = arith.truncf %475 : vector<8x32xf32> to vector<8x32xbf16>
    %c0_208 = arith.constant 0 : index
    %c0_209 = arith.constant 0 : index
    %480 = vector.load %arg4[%c0_208, %c0_209] : memref<32x128xbf16, #tpu.memory_space<vmem>>, vector<32x128xbf16>
    %cst_210 = arith.constant dense<0.000000e+00> : vector<8x128xf32>
    %481 = tpu.matmul %479, %480, %cst_210 {dimension_numbers = #tpu.dot_dimension_numbers<[1], [0], [0], [1], [0, 0, 1, 1], [], []>} : vector<8x32xbf16>, vector<32x128xbf16>, vector<8x128xf32> -> vector<8x128xf32>
    %482 = arith.extf %471 : vector<8x128xbf16> to vector<8x128xf32>
    %483 = arith.addf %482, %481 : vector<8x128xf32>
    %484 = arith.truncf %477 : vector<8x32xf32> to vector<8x32xbf16>
    %c0_211 = arith.constant 0 : index
    %c0_212 = arith.constant 0 : index
    %485 = vector.load %arg5[%c0_211, %c0_212] : memref<32x128xbf16, #tpu.memory_space<vmem>>, vector<32x128xbf16>
    %cst_213 = arith.constant dense<0.000000e+00> : vector<8x128xf32>
    %486 = tpu.matmul %484, %485, %cst_213 {dimension_numbers = #tpu.dot_dimension_numbers<[1], [0], [0], [1], [0, 0, 1, 1], [], []>} : vector<8x32xbf16>, vector<32x128xbf16>, vector<8x128xf32> -> vector<8x128xf32>
    %487 = arith.extf %474 : vector<8x128xbf16> to vector<8x128xf32>
    %488 = arith.addf %487, %486 : vector<8x128xf32>
    %489 = vector.extract_strided_slice %483 {offsets = [0, 0], sizes = [8, 96], strides = [1, 1]} : vector<8x128xf32> to vector<8x96xf32>
    %490 = arith.negf %489 : vector<8x96xf32>
    %491 = math.exp %490 : vector<8x96xf32>
    %cst_214 = arith.constant 1.000000e+00 : f32
    %492 = vector.broadcast %cst_214 : f32 to vector<8x96xf32>
    %493 = arith.addf %492, %491 : vector<8x96xf32>
    %494 = arith.divf %492, %493 : vector<8x96xf32>
    %495 = vector.extract_strided_slice %483 {offsets = [0, 96], sizes = [8, 32], strides = [1, 1]} : vector<8x128xf32> to vector<8x32xf32>
    %496 = math.tanh %495 : vector<8x32xf32>
    %497 = vector.extract_strided_slice %494 {offsets = [0, 32], sizes = [8, 32], strides = [1, 1]} : vector<8x96xf32> to vector<8x32xf32>
    %498 = arith.mulf %497, %476 : vector<8x32xf32>
    %499 = vector.extract_strided_slice %494 {offsets = [0, 0], sizes = [8, 32], strides = [1, 1]} : vector<8x96xf32> to vector<8x32xf32>
    %500 = arith.mulf %499, %496 : vector<8x32xf32>
    %501 = arith.addf %498, %500 : vector<8x32xf32>
    %502 = vector.extract_strided_slice %494 {offsets = [0, 64], sizes = [8, 32], strides = [1, 1]} : vector<8x96xf32> to vector<8x32xf32>
    %503 = math.tanh %501 : vector<8x32xf32>
    %504 = arith.mulf %502, %503 : vector<8x32xf32>
    %505 = vector.extract_strided_slice %488 {offsets = [0, 0], sizes = [8, 96], strides = [1, 1]} : vector<8x128xf32> to vector<8x96xf32>
    %506 = arith.negf %505 : vector<8x96xf32>
    %507 = math.exp %506 : vector<8x96xf32>
    %cst_215 = arith.constant 1.000000e+00 : f32
    %508 = vector.broadcast %cst_215 : f32 to vector<8x96xf32>
    %509 = arith.addf %508, %507 : vector<8x96xf32>
    %510 = arith.divf %508, %509 : vector<8x96xf32>
    %511 = vector.extract_strided_slice %488 {offsets = [0, 96], sizes = [8, 32], strides = [1, 1]} : vector<8x128xf32> to vector<8x32xf32>
    %512 = math.tanh %511 : vector<8x32xf32>
    %513 = vector.extract_strided_slice %510 {offsets = [0, 32], sizes = [8, 32], strides = [1, 1]} : vector<8x96xf32> to vector<8x32xf32>
    %514 = arith.mulf %513, %478 : vector<8x32xf32>
    %515 = vector.extract_strided_slice %510 {offsets = [0, 0], sizes = [8, 32], strides = [1, 1]} : vector<8x96xf32> to vector<8x32xf32>
    %516 = arith.mulf %515, %512 : vector<8x32xf32>
    %517 = arith.addf %514, %516 : vector<8x32xf32>
    %518 = vector.extract_strided_slice %510 {offsets = [0, 64], sizes = [8, 32], strides = [1, 1]} : vector<8x96xf32> to vector<8x32xf32>
    %519 = math.tanh %517 : vector<8x32xf32>
    %520 = arith.mulf %518, %519 : vector<8x32xf32>
    %521 = vector.broadcast %c5_i32 : i32 to vector<8x1xi32>
    %522 = arith.cmpi sgt, %22, %521 : vector<8x1xi32>
    %523 = vector.broadcast %468 : i32 to vector<8x1xi32>
    %524 = arith.cmpi sgt, %22, %523 : vector<8x1xi32>
    %525 = vector.shape_cast %522 : vector<8x1xi1> to vector<8x1xi1>
    %526 = vector.broadcast %525 : vector<8x1xi1> to vector<8x32xi1>
    %527 = arith.select %526, %504, %475 : vector<8x32xi1>, vector<8x32xf32>
    %c0_216 = arith.constant 0 : index
    %c0_217 = arith.constant 0 : index
    %528 = vector.load %arg9[%c0_216, %c0_217] : memref<8x32xf32, #tpu.memory_space<vmem>>, vector<8x32xf32>
    tpu.vector_store %arg9[%c0_216, %c0_217], %527 {strides = array<i32>} : memref<8x32xf32, #tpu.memory_space<vmem>>, vector<8x32xf32>,
    %529 = vector.shape_cast %522 : vector<8x1xi1> to vector<8x1xi1>
    %530 = vector.broadcast %529 : vector<8x1xi1> to vector<8x32xi1>
    %531 = arith.select %530, %501, %476 : vector<8x32xi1>, vector<8x32xf32>
    %c0_218 = arith.constant 0 : index
    %c0_219 = arith.constant 0 : index
    %532 = vector.load %arg10[%c0_218, %c0_219] : memref<8x32xf32, #tpu.memory_space<vmem>>, vector<8x32xf32>
    tpu.vector_store %arg10[%c0_218, %c0_219], %531 {strides = array<i32>} : memref<8x32xf32, #tpu.memory_space<vmem>>, vector<8x32xf32>,
    %533 = vector.shape_cast %524 : vector<8x1xi1> to vector<8x1xi1>
    %534 = vector.broadcast %533 : vector<8x1xi1> to vector<8x32xi1>
    %535 = arith.select %534, %520, %477 : vector<8x32xi1>, vector<8x32xf32>
    %c0_220 = arith.constant 0 : index
    %c0_221 = arith.constant 0 : index
    %536 = vector.load %arg11[%c0_220, %c0_221] : memref<8x32xf32, #tpu.memory_space<vmem>>, vector<8x32xf32>
    tpu.vector_store %arg11[%c0_220, %c0_221], %535 {strides = array<i32>} : memref<8x32xf32, #tpu.memory_space<vmem>>, vector<8x32xf32>,
    %537 = vector.shape_cast %524 : vector<8x1xi1> to vector<8x1xi1>
    %538 = vector.broadcast %537 : vector<8x1xi1> to vector<8x32xi1>
    %539 = arith.select %538, %517, %478 : vector<8x32xi1>, vector<8x32xf32>
    %c0_222 = arith.constant 0 : index
    %c0_223 = arith.constant 0 : index
    %540 = vector.load %arg12[%c0_222, %c0_223] : memref<8x32xf32, #tpu.memory_space<vmem>>, vector<8x32xf32>
    tpu.vector_store %arg12[%c0_222, %c0_223], %539 {strides = array<i32>} : memref<8x32xf32, #tpu.memory_space<vmem>>, vector<8x32xf32>,
    %cst_224 = arith.constant 0.000000e+00 : f32
    %541 = vector.shape_cast %522 : vector<8x1xi1> to vector<8x1xi1>
    %542 = vector.broadcast %541 : vector<8x1xi1> to vector<8x32xi1>
    %543 = vector.broadcast %cst_224 : f32 to vector<8x32xf32>
    %544 = arith.select %542, %504, %543 : vector<8x32xi1>, vector<8x32xf32>
    %545 = arith.index_cast %c5_i32 : i32 to index
    %c0_225 = arith.constant 0 : index
    %c0_226 = arith.constant 0 : index
    %546 = vector.load %arg7[%545, %c0_225, %c0_226] : memref<8x8x64xf32, #tpu.memory_space<vmem>>, vector<1x8x32xf32>
    %547 = vector.shape_cast %546 : vector<1x8x32xf32> to vector<8x32xf32>
    %548 = vector.shape_cast %544 : vector<8x32xf32> to vector<1x8x32xf32>
    tpu.vector_store %arg7[%545, %c0_225, %c0_226], %548 {strides = array<i32>} : memref<8x8x64xf32, #tpu.memory_space<vmem>>, vector<1x8x32xf32>,
    %cst_227 = arith.constant 0.000000e+00 : f32
    %549 = vector.shape_cast %524 : vector<8x1xi1> to vector<8x1xi1>
    %550 = vector.broadcast %549 : vector<8x1xi1> to vector<8x32xi1>
    %551 = vector.broadcast %cst_227 : f32 to vector<8x32xf32>
    %552 = arith.select %550, %520, %551 : vector<8x32xi1>, vector<8x32xf32>
    %553 = arith.index_cast %468 : i32 to index
    %c0_228 = arith.constant 0 : index
    %c32_229 = arith.constant 32 : index
    %554 = vector.load %arg7[%553, %c0_228, %c32_229] : memref<8x8x64xf32, #tpu.memory_space<vmem>>, vector<1x8x32xf32>
    %555 = vector.shape_cast %554 : vector<1x8x32xf32> to vector<8x32xf32>
    %556 = vector.shape_cast %552 : vector<8x32xf32> to vector<1x8x32xf32>
    tpu.vector_store %arg7[%553, %c0_228, %c32_229], %556 {strides = array<i32>} : memref<8x8x64xf32, #tpu.memory_space<vmem>>, vector<1x8x32xf32>,
    %c6_i32 = arith.constant 6 : i32
    %c7_i32_230 = arith.constant 7 : i32
    %557 = arith.subi %c7_i32_230, %c6_i32 : i32
    %558 = arith.index_cast %c6_i32 : i32 to index
    %c0_231 = arith.constant 0 : index
    %c0_232 = arith.constant 0 : index
    %559 = vector.load %arg8[%558, %c0_231, %c0_232] : memref<8x8x256xbf16, #tpu.memory_space<vmem>>, vector<1x8x128xbf16>
    %560 = vector.shape_cast %559 : vector<1x8x128xbf16> to vector<8x128xbf16>
    %561 = arith.index_cast %557 : i32 to index
    %c0_233 = arith.constant 0 : index
    %c128_234 = arith.constant 128 : index
    %562 = vector.load %arg8[%561, %c0_233, %c128_234] : memref<8x8x256xbf16, #tpu.memory_space<vmem>>, vector<1x8x128xbf16>
    %563 = vector.shape_cast %562 : vector<1x8x128xbf16> to vector<8x128xbf16>
    %c0_235 = arith.constant 0 : index
    %c0_236 = arith.constant 0 : index
    %564 = vector.load %arg9[%c0_235, %c0_236] : memref<8x32xf32, #tpu.memory_space<vmem>>, vector<8x32xf32>
    %c0_237 = arith.constant 0 : index
    %c0_238 = arith.constant 0 : index
    %565 = vector.load %arg10[%c0_237, %c0_238] : memref<8x32xf32, #tpu.memory_space<vmem>>, vector<8x32xf32>
    %c0_239 = arith.constant 0 : index
    %c0_240 = arith.constant 0 : index
    %566 = vector.load %arg11[%c0_239, %c0_240] : memref<8x32xf32, #tpu.memory_space<vmem>>, vector<8x32xf32>
    %c0_241 = arith.constant 0 : index
    %c0_242 = arith.constant 0 : index
    %567 = vector.load %arg12[%c0_241, %c0_242] : memref<8x32xf32, #tpu.memory_space<vmem>>, vector<8x32xf32>
    %568 = arith.truncf %564 : vector<8x32xf32> to vector<8x32xbf16>
    %c0_243 = arith.constant 0 : index
    %c0_244 = arith.constant 0 : index
    %569 = vector.load %arg4[%c0_243, %c0_244] : memref<32x128xbf16, #tpu.memory_space<vmem>>, vector<32x128xbf16>
    %cst_245 = arith.constant dense<0.000000e+00> : vector<8x128xf32>
    %570 = tpu.matmul %568, %569, %cst_245 {dimension_numbers = #tpu.dot_dimension_numbers<[1], [0], [0], [1], [0, 0, 1, 1], [], []>} : vector<8x32xbf16>, vector<32x128xbf16>, vector<8x128xf32> -> vector<8x128xf32>
    %571 = arith.extf %560 : vector<8x128xbf16> to vector<8x128xf32>
    %572 = arith.addf %571, %570 : vector<8x128xf32>
    %573 = arith.truncf %566 : vector<8x32xf32> to vector<8x32xbf16>
    %c0_246 = arith.constant 0 : index
    %c0_247 = arith.constant 0 : index
    %574 = vector.load %arg5[%c0_246, %c0_247] : memref<32x128xbf16, #tpu.memory_space<vmem>>, vector<32x128xbf16>
    %cst_248 = arith.constant dense<0.000000e+00> : vector<8x128xf32>
    %575 = tpu.matmul %573, %574, %cst_248 {dimension_numbers = #tpu.dot_dimension_numbers<[1], [0], [0], [1], [0, 0, 1, 1], [], []>} : vector<8x32xbf16>, vector<32x128xbf16>, vector<8x128xf32> -> vector<8x128xf32>
    %576 = arith.extf %563 : vector<8x128xbf16> to vector<8x128xf32>
    %577 = arith.addf %576, %575 : vector<8x128xf32>
    %578 = vector.extract_strided_slice %572 {offsets = [0, 0], sizes = [8, 96], strides = [1, 1]} : vector<8x128xf32> to vector<8x96xf32>
    %579 = arith.negf %578 : vector<8x96xf32>
    %580 = math.exp %579 : vector<8x96xf32>
    %cst_249 = arith.constant 1.000000e+00 : f32
    %581 = vector.broadcast %cst_249 : f32 to vector<8x96xf32>
    %582 = arith.addf %581, %580 : vector<8x96xf32>
    %583 = arith.divf %581, %582 : vector<8x96xf32>
    %584 = vector.extract_strided_slice %572 {offsets = [0, 96], sizes = [8, 32], strides = [1, 1]} : vector<8x128xf32> to vector<8x32xf32>
    %585 = math.tanh %584 : vector<8x32xf32>
    %586 = vector.extract_strided_slice %583 {offsets = [0, 32], sizes = [8, 32], strides = [1, 1]} : vector<8x96xf32> to vector<8x32xf32>
    %587 = arith.mulf %586, %565 : vector<8x32xf32>
    %588 = vector.extract_strided_slice %583 {offsets = [0, 0], sizes = [8, 32], strides = [1, 1]} : vector<8x96xf32> to vector<8x32xf32>
    %589 = arith.mulf %588, %585 : vector<8x32xf32>
    %590 = arith.addf %587, %589 : vector<8x32xf32>
    %591 = vector.extract_strided_slice %583 {offsets = [0, 64], sizes = [8, 32], strides = [1, 1]} : vector<8x96xf32> to vector<8x32xf32>
    %592 = math.tanh %590 : vector<8x32xf32>
    %593 = arith.mulf %591, %592 : vector<8x32xf32>
    %594 = vector.extract_strided_slice %577 {offsets = [0, 0], sizes = [8, 96], strides = [1, 1]} : vector<8x128xf32> to vector<8x96xf32>
    %595 = arith.negf %594 : vector<8x96xf32>
    %596 = math.exp %595 : vector<8x96xf32>
    %cst_250 = arith.constant 1.000000e+00 : f32
    %597 = vector.broadcast %cst_250 : f32 to vector<8x96xf32>
    %598 = arith.addf %597, %596 : vector<8x96xf32>
    %599 = arith.divf %597, %598 : vector<8x96xf32>
    %600 = vector.extract_strided_slice %577 {offsets = [0, 96], sizes = [8, 32], strides = [1, 1]} : vector<8x128xf32> to vector<8x32xf32>
    %601 = math.tanh %600 : vector<8x32xf32>
    %602 = vector.extract_strided_slice %599 {offsets = [0, 32], sizes = [8, 32], strides = [1, 1]} : vector<8x96xf32> to vector<8x32xf32>
    %603 = arith.mulf %602, %567 : vector<8x32xf32>
    %604 = vector.extract_strided_slice %599 {offsets = [0, 0], sizes = [8, 32], strides = [1, 1]} : vector<8x96xf32> to vector<8x32xf32>
    %605 = arith.mulf %604, %601 : vector<8x32xf32>
    %606 = arith.addf %603, %605 : vector<8x32xf32>
    %607 = vector.extract_strided_slice %599 {offsets = [0, 64], sizes = [8, 32], strides = [1, 1]} : vector<8x96xf32> to vector<8x32xf32>
    %608 = math.tanh %606 : vector<8x32xf32>
    %609 = arith.mulf %607, %608 : vector<8x32xf32>
    %610 = vector.broadcast %c6_i32 : i32 to vector<8x1xi32>
    %611 = arith.cmpi sgt, %22, %610 : vector<8x1xi32>
    %612 = vector.broadcast %557 : i32 to vector<8x1xi32>
    %613 = arith.cmpi sgt, %22, %612 : vector<8x1xi32>
    %614 = vector.shape_cast %611 : vector<8x1xi1> to vector<8x1xi1>
    %615 = vector.broadcast %614 : vector<8x1xi1> to vector<8x32xi1>
    %616 = arith.select %615, %593, %564 : vector<8x32xi1>, vector<8x32xf32>
    %c0_251 = arith.constant 0 : index
    %c0_252 = arith.constant 0 : index
    %617 = vector.load %arg9[%c0_251, %c0_252] : memref<8x32xf32, #tpu.memory_space<vmem>>, vector<8x32xf32>
    tpu.vector_store %arg9[%c0_251, %c0_252], %616 {strides = array<i32>} : memref<8x32xf32, #tpu.memory_space<vmem>>, vector<8x32xf32>,
    %618 = vector.shape_cast %611 : vector<8x1xi1> to vector<8x1xi1>
    %619 = vector.broadcast %618 : vector<8x1xi1> to vector<8x32xi1>
    %620 = arith.select %619, %590, %565 : vector<8x32xi1>, vector<8x32xf32>
    %c0_253 = arith.constant 0 : index
    %c0_254 = arith.constant 0 : index
    %621 = vector.load %arg10[%c0_253, %c0_254] : memref<8x32xf32, #tpu.memory_space<vmem>>, vector<8x32xf32>
    tpu.vector_store %arg10[%c0_253, %c0_254], %620 {strides = array<i32>} : memref<8x32xf32, #tpu.memory_space<vmem>>, vector<8x32xf32>,
    %622 = vector.shape_cast %613 : vector<8x1xi1> to vector<8x1xi1>
    %623 = vector.broadcast %622 : vector<8x1xi1> to vector<8x32xi1>
    %624 = arith.select %623, %609, %566 : vector<8x32xi1>, vector<8x32xf32>
    %c0_255 = arith.constant 0 : index
    %c0_256 = arith.constant 0 : index
    %625 = vector.load %arg11[%c0_255, %c0_256] : memref<8x32xf32, #tpu.memory_space<vmem>>, vector<8x32xf32>
    tpu.vector_store %arg11[%c0_255, %c0_256], %624 {strides = array<i32>} : memref<8x32xf32, #tpu.memory_space<vmem>>, vector<8x32xf32>,
    %626 = vector.shape_cast %613 : vector<8x1xi1> to vector<8x1xi1>
    %627 = vector.broadcast %626 : vector<8x1xi1> to vector<8x32xi1>
    %628 = arith.select %627, %606, %567 : vector<8x32xi1>, vector<8x32xf32>
    %c0_257 = arith.constant 0 : index
    %c0_258 = arith.constant 0 : index
    %629 = vector.load %arg12[%c0_257, %c0_258] : memref<8x32xf32, #tpu.memory_space<vmem>>, vector<8x32xf32>
    tpu.vector_store %arg12[%c0_257, %c0_258], %628 {strides = array<i32>} : memref<8x32xf32, #tpu.memory_space<vmem>>, vector<8x32xf32>,
    %cst_259 = arith.constant 0.000000e+00 : f32
    %630 = vector.shape_cast %611 : vector<8x1xi1> to vector<8x1xi1>
    %631 = vector.broadcast %630 : vector<8x1xi1> to vector<8x32xi1>
    %632 = vector.broadcast %cst_259 : f32 to vector<8x32xf32>
    %633 = arith.select %631, %593, %632 : vector<8x32xi1>, vector<8x32xf32>
    %634 = arith.index_cast %c6_i32 : i32 to index
    %c0_260 = arith.constant 0 : index
    %c0_261 = arith.constant 0 : index
    %635 = vector.load %arg7[%634, %c0_260, %c0_261] : memref<8x8x64xf32, #tpu.memory_space<vmem>>, vector<1x8x32xf32>
    %636 = vector.shape_cast %635 : vector<1x8x32xf32> to vector<8x32xf32>
    %637 = vector.shape_cast %633 : vector<8x32xf32> to vector<1x8x32xf32>
    tpu.vector_store %arg7[%634, %c0_260, %c0_261], %637 {strides = array<i32>} : memref<8x8x64xf32, #tpu.memory_space<vmem>>, vector<1x8x32xf32>,
    %cst_262 = arith.constant 0.000000e+00 : f32
    %638 = vector.shape_cast %613 : vector<8x1xi1> to vector<8x1xi1>
    %639 = vector.broadcast %638 : vector<8x1xi1> to vector<8x32xi1>
    %640 = vector.broadcast %cst_262 : f32 to vector<8x32xf32>
    %641 = arith.select %639, %609, %640 : vector<8x32xi1>, vector<8x32xf32>
    %642 = arith.index_cast %557 : i32 to index
    %c0_263 = arith.constant 0 : index
    %c32_264 = arith.constant 32 : index
    %643 = vector.load %arg7[%642, %c0_263, %c32_264] : memref<8x8x64xf32, #tpu.memory_space<vmem>>, vector<1x8x32xf32>
    %644 = vector.shape_cast %643 : vector<1x8x32xf32> to vector<8x32xf32>
    %645 = vector.shape_cast %641 : vector<8x32xf32> to vector<1x8x32xf32>
    tpu.vector_store %arg7[%642, %c0_263, %c32_264], %645 {strides = array<i32>} : memref<8x8x64xf32, #tpu.memory_space<vmem>>, vector<1x8x32xf32>,
    %c7_i32_265 = arith.constant 7 : i32
    %c7_i32_266 = arith.constant 7 : i32
    %646 = arith.subi %c7_i32_266, %c7_i32_265 : i32
    %647 = arith.index_cast %c7_i32_265 : i32 to index
    %c0_267 = arith.constant 0 : index
    %c0_268 = arith.constant 0 : index
    %648 = vector.load %arg8[%647, %c0_267, %c0_268] : memref<8x8x256xbf16, #tpu.memory_space<vmem>>, vector<1x8x128xbf16>
    %649 = vector.shape_cast %648 : vector<1x8x128xbf16> to vector<8x128xbf16>
    %650 = arith.index_cast %646 : i32 to index
    %c0_269 = arith.constant 0 : index
    %c128_270 = arith.constant 128 : index
    %651 = vector.load %arg8[%650, %c0_269, %c128_270] : memref<8x8x256xbf16, #tpu.memory_space<vmem>>, vector<1x8x128xbf16>
    %652 = vector.shape_cast %651 : vector<1x8x128xbf16> to vector<8x128xbf16>
    %c0_271 = arith.constant 0 : index
    %c0_272 = arith.constant 0 : index
    %653 = vector.load %arg9[%c0_271, %c0_272] : memref<8x32xf32, #tpu.memory_space<vmem>>, vector<8x32xf32>
    %c0_273 = arith.constant 0 : index
    %c0_274 = arith.constant 0 : index
    %654 = vector.load %arg10[%c0_273, %c0_274] : memref<8x32xf32, #tpu.memory_space<vmem>>, vector<8x32xf32>
    %c0_275 = arith.constant 0 : index
    %c0_276 = arith.constant 0 : index
    %655 = vector.load %arg11[%c0_275, %c0_276] : memref<8x32xf32, #tpu.memory_space<vmem>>, vector<8x32xf32>
    %c0_277 = arith.constant 0 : index
    %c0_278 = arith.constant 0 : index
    %656 = vector.load %arg12[%c0_277, %c0_278] : memref<8x32xf32, #tpu.memory_space<vmem>>, vector<8x32xf32>
    %657 = arith.truncf %653 : vector<8x32xf32> to vector<8x32xbf16>
    %c0_279 = arith.constant 0 : index
    %c0_280 = arith.constant 0 : index
    %658 = vector.load %arg4[%c0_279, %c0_280] : memref<32x128xbf16, #tpu.memory_space<vmem>>, vector<32x128xbf16>
    %cst_281 = arith.constant dense<0.000000e+00> : vector<8x128xf32>
    %659 = tpu.matmul %657, %658, %cst_281 {dimension_numbers = #tpu.dot_dimension_numbers<[1], [0], [0], [1], [0, 0, 1, 1], [], []>} : vector<8x32xbf16>, vector<32x128xbf16>, vector<8x128xf32> -> vector<8x128xf32>
    %660 = arith.extf %649 : vector<8x128xbf16> to vector<8x128xf32>
    %661 = arith.addf %660, %659 : vector<8x128xf32>
    %662 = arith.truncf %655 : vector<8x32xf32> to vector<8x32xbf16>
    %c0_282 = arith.constant 0 : index
    %c0_283 = arith.constant 0 : index
    %663 = vector.load %arg5[%c0_282, %c0_283] : memref<32x128xbf16, #tpu.memory_space<vmem>>, vector<32x128xbf16>
    %cst_284 = arith.constant dense<0.000000e+00> : vector<8x128xf32>
    %664 = tpu.matmul %662, %663, %cst_284 {dimension_numbers = #tpu.dot_dimension_numbers<[1], [0], [0], [1], [0, 0, 1, 1], [], []>} : vector<8x32xbf16>, vector<32x128xbf16>, vector<8x128xf32> -> vector<8x128xf32>
    %665 = arith.extf %652 : vector<8x128xbf16> to vector<8x128xf32>
    %666 = arith.addf %665, %664 : vector<8x128xf32>
    %667 = vector.extract_strided_slice %661 {offsets = [0, 0], sizes = [8, 96], strides = [1, 1]} : vector<8x128xf32> to vector<8x96xf32>
    %668 = arith.negf %667 : vector<8x96xf32>
    %669 = math.exp %668 : vector<8x96xf32>
    %cst_285 = arith.constant 1.000000e+00 : f32
    %670 = vector.broadcast %cst_285 : f32 to vector<8x96xf32>
    %671 = arith.addf %670, %669 : vector<8x96xf32>
    %672 = arith.divf %670, %671 : vector<8x96xf32>
    %673 = vector.extract_strided_slice %661 {offsets = [0, 96], sizes = [8, 32], strides = [1, 1]} : vector<8x128xf32> to vector<8x32xf32>
    %674 = math.tanh %673 : vector<8x32xf32>
    %675 = vector.extract_strided_slice %672 {offsets = [0, 32], sizes = [8, 32], strides = [1, 1]} : vector<8x96xf32> to vector<8x32xf32>
    %676 = arith.mulf %675, %654 : vector<8x32xf32>
    %677 = vector.extract_strided_slice %672 {offsets = [0, 0], sizes = [8, 32], strides = [1, 1]} : vector<8x96xf32> to vector<8x32xf32>
    %678 = arith.mulf %677, %674 : vector<8x32xf32>
    %679 = arith.addf %676, %678 : vector<8x32xf32>
    %680 = vector.extract_strided_slice %672 {offsets = [0, 64], sizes = [8, 32], strides = [1, 1]} : vector<8x96xf32> to vector<8x32xf32>
    %681 = math.tanh %679 : vector<8x32xf32>
    %682 = arith.mulf %680, %681 : vector<8x32xf32>
    %683 = vector.extract_strided_slice %666 {offsets = [0, 0], sizes = [8, 96], strides = [1, 1]} : vector<8x128xf32> to vector<8x96xf32>
    %684 = arith.negf %683 : vector<8x96xf32>
    %685 = math.exp %684 : vector<8x96xf32>
    %cst_286 = arith.constant 1.000000e+00 : f32
    %686 = vector.broadcast %cst_286 : f32 to vector<8x96xf32>
    %687 = arith.addf %686, %685 : vector<8x96xf32>
    %688 = arith.divf %686, %687 : vector<8x96xf32>
    %689 = vector.extract_strided_slice %666 {offsets = [0, 96], sizes = [8, 32], strides = [1, 1]} : vector<8x128xf32> to vector<8x32xf32>
    %690 = math.tanh %689 : vector<8x32xf32>
    %691 = vector.extract_strided_slice %688 {offsets = [0, 32], sizes = [8, 32], strides = [1, 1]} : vector<8x96xf32> to vector<8x32xf32>
    %692 = arith.mulf %691, %656 : vector<8x32xf32>
    %693 = vector.extract_strided_slice %688 {offsets = [0, 0], sizes = [8, 32], strides = [1, 1]} : vector<8x96xf32> to vector<8x32xf32>
    %694 = arith.mulf %693, %690 : vector<8x32xf32>
    %695 = arith.addf %692, %694 : vector<8x32xf32>
    %696 = vector.extract_strided_slice %688 {offsets = [0, 64], sizes = [8, 32], strides = [1, 1]} : vector<8x96xf32> to vector<8x32xf32>
    %697 = math.tanh %695 : vector<8x32xf32>
    %698 = arith.mulf %696, %697 : vector<8x32xf32>
    %699 = vector.broadcast %c7_i32_265 : i32 to vector<8x1xi32>
    %700 = arith.cmpi sgt, %22, %699 : vector<8x1xi32>
    %701 = vector.broadcast %646 : i32 to vector<8x1xi32>
    %702 = arith.cmpi sgt, %22, %701 : vector<8x1xi32>
    %703 = vector.shape_cast %700 : vector<8x1xi1> to vector<8x1xi1>
    %704 = vector.broadcast %703 : vector<8x1xi1> to vector<8x32xi1>
    %705 = arith.select %704, %682, %653 : vector<8x32xi1>, vector<8x32xf32>
    %c0_287 = arith.constant 0 : index
    %c0_288 = arith.constant 0 : index
    %706 = vector.load %arg9[%c0_287, %c0_288] : memref<8x32xf32, #tpu.memory_space<vmem>>, vector<8x32xf32>
    tpu.vector_store %arg9[%c0_287, %c0_288], %705 {strides = array<i32>} : memref<8x32xf32, #tpu.memory_space<vmem>>, vector<8x32xf32>,
    %707 = vector.shape_cast %700 : vector<8x1xi1> to vector<8x1xi1>
    %708 = vector.broadcast %707 : vector<8x1xi1> to vector<8x32xi1>
    %709 = arith.select %708, %679, %654 : vector<8x32xi1>, vector<8x32xf32>
    %c0_289 = arith.constant 0 : index
    %c0_290 = arith.constant 0 : index
    %710 = vector.load %arg10[%c0_289, %c0_290] : memref<8x32xf32, #tpu.memory_space<vmem>>, vector<8x32xf32>
    tpu.vector_store %arg10[%c0_289, %c0_290], %709 {strides = array<i32>} : memref<8x32xf32, #tpu.memory_space<vmem>>, vector<8x32xf32>,
    %711 = vector.shape_cast %702 : vector<8x1xi1> to vector<8x1xi1>
    %712 = vector.broadcast %711 : vector<8x1xi1> to vector<8x32xi1>
    %713 = arith.select %712, %698, %655 : vector<8x32xi1>, vector<8x32xf32>
    %c0_291 = arith.constant 0 : index
    %c0_292 = arith.constant 0 : index
    %714 = vector.load %arg11[%c0_291, %c0_292] : memref<8x32xf32, #tpu.memory_space<vmem>>, vector<8x32xf32>
    tpu.vector_store %arg11[%c0_291, %c0_292], %713 {strides = array<i32>} : memref<8x32xf32, #tpu.memory_space<vmem>>, vector<8x32xf32>,
    %715 = vector.shape_cast %702 : vector<8x1xi1> to vector<8x1xi1>
    %716 = vector.broadcast %715 : vector<8x1xi1> to vector<8x32xi1>
    %717 = arith.select %716, %695, %656 : vector<8x32xi1>, vector<8x32xf32>
    %c0_293 = arith.constant 0 : index
    %c0_294 = arith.constant 0 : index
    %718 = vector.load %arg12[%c0_293, %c0_294] : memref<8x32xf32, #tpu.memory_space<vmem>>, vector<8x32xf32>
    tpu.vector_store %arg12[%c0_293, %c0_294], %717 {strides = array<i32>} : memref<8x32xf32, #tpu.memory_space<vmem>>, vector<8x32xf32>,
    %cst_295 = arith.constant 0.000000e+00 : f32
    %719 = vector.shape_cast %700 : vector<8x1xi1> to vector<8x1xi1>
    %720 = vector.broadcast %719 : vector<8x1xi1> to vector<8x32xi1>
    %721 = vector.broadcast %cst_295 : f32 to vector<8x32xf32>
    %722 = arith.select %720, %682, %721 : vector<8x32xi1>, vector<8x32xf32>
    %723 = arith.index_cast %c7_i32_265 : i32 to index
    %c0_296 = arith.constant 0 : index
    %c0_297 = arith.constant 0 : index
    %724 = vector.load %arg7[%723, %c0_296, %c0_297] : memref<8x8x64xf32, #tpu.memory_space<vmem>>, vector<1x8x32xf32>
    %725 = vector.shape_cast %724 : vector<1x8x32xf32> to vector<8x32xf32>
    %726 = vector.shape_cast %722 : vector<8x32xf32> to vector<1x8x32xf32>
    tpu.vector_store %arg7[%723, %c0_296, %c0_297], %726 {strides = array<i32>} : memref<8x8x64xf32, #tpu.memory_space<vmem>>, vector<1x8x32xf32>,
    %cst_298 = arith.constant 0.000000e+00 : f32
    %727 = vector.shape_cast %702 : vector<8x1xi1> to vector<8x1xi1>
    %728 = vector.broadcast %727 : vector<8x1xi1> to vector<8x32xi1>
    %729 = vector.broadcast %cst_298 : f32 to vector<8x32xf32>
    %730 = arith.select %728, %698, %729 : vector<8x32xi1>, vector<8x32xf32>
    %731 = arith.index_cast %646 : i32 to index
    %c0_299 = arith.constant 0 : index
    %c32_300 = arith.constant 32 : index
    %732 = vector.load %arg7[%731, %c0_299, %c32_300] : memref<8x8x64xf32, #tpu.memory_space<vmem>>, vector<1x8x32xf32>
    %733 = vector.shape_cast %732 : vector<1x8x32xf32> to vector<8x32xf32>
    %734 = vector.shape_cast %730 : vector<8x32xf32> to vector<1x8x32xf32>
    tpu.vector_store %arg7[%731, %c0_299, %c32_300], %734 {strides = array<i32>} : memref<8x8x64xf32, #tpu.memory_space<vmem>>, vector<1x8x32xf32>,
    %c8_i32_301 = arith.constant 8 : i32
    return
  }
  func.func @transform_0(%arg0: i32) -> (i32, i32) {
    %c0_i32 = arith.constant 0 : i32
    %c0_i32_0 = arith.constant 0 : i32
    %c0_i32_1 = arith.constant 0 : i32
    return %c0_i32, %c0_i32_0 : i32, i32
  }
  func.func @transform_1(%arg0: i32) -> (i32, i32, i32) {
    %c0_i32 = arith.constant 0 : i32
    %c0_i32_0 = arith.constant 0 : i32
    %c0_i32_1 = arith.constant 0 : i32
    %c0_i32_2 = arith.constant 0 : i32
    return %c0_i32, %c0_i32_0, %c0_i32_1 : i32, i32, i32
  }
  func.func @transform_2(%arg0: i32) -> (i32, i32) {
    %c0_i32 = arith.constant 0 : i32
    %c0_i32_0 = arith.constant 0 : i32
    %c0_i32_1 = arith.constant 0 : i32
    return %c0_i32, %c0_i32_0 : i32, i32
  }
  func.func @transform_3(%arg0: i32) -> (i32, i32) {
    %c0_i32 = arith.constant 0 : i32
    %c0_i32_0 = arith.constant 0 : i32
    %c0_i32_1 = arith.constant 0 : i32
    return %c0_i32, %c0_i32_0 : i32, i32
  }
  func.func @transform_4(%arg0: i32) -> (i32, i32) {
    %c0_i32 = arith.constant 0 : i32
    %c0_i32_0 = arith.constant 0 : i32
    %c0_i32_1 = arith.constant 0 : i32
    return %c0_i32, %c0_i32_0 : i32, i32
  }
  func.func @transform_5(%arg0: i32) -> (i32, i32) {
    %c0_i32 = arith.constant 0 : i32
    %c0_i32_0 = arith.constant 0 : i32
    %c0_i32_1 = arith.constant 0 : i32
    return %c0_i32, %c0_i32_0 : i32, i32
  }
  func.func @transform_6(%arg0: i32) -> (i32, i32, i32) {
    %c0_i32 = arith.constant 0 : i32
    %c0_i32_0 = arith.constant 0 : i32
    %c0_i32_1 = arith.constant 0 : i32
    %c0_i32_2 = arith.constant 0 : i32
    return %c0_i32, %c0_i32_0, %c0_i32_1 : i32, i32, i32
  }
}

</mosaic_0001>

<llo_original>
// kernel: lstm_forward.3
$region0: #{lstm_forward.3}
  #allocation0 [shape = 'u32[]', space=smem, size = 0x4, offset = 0x4, fixed_abs, tag = 'smem constant byte address 0x4 - core index']
  #allocation1 [shape = 'u32[144,128]{1,0:T(1,128)}', space=vmem, size = 0x12000, scoped, tag = 'internal scratch']
  #allocation2 [shape = 'bf16[8,8,256]{2,1,0:T(8,128)(2,1)}', space=vmem, size = 0x8000, scoped, tag = 'scratch operand']
  #allocation3 [shape = 'f32[8,32]{1,0:T(8,128)}', space=vmem, size = 0x1000, scoped, tag = 'scratch operand']
  #allocation4 [shape = 'f32[8,32]{1,0:T(8,128)}', space=vmem, size = 0x1000, scoped, tag = 'scratch operand']
  #allocation5 [shape = 'f32[8,32]{1,0:T(8,128)}', space=vmem, size = 0x1000, scoped, tag = 'scratch operand']
  #allocation6 [shape = 'f32[8,32]{1,0:T(8,128)}', space=vmem, size = 0x1000, scoped, tag = 'scratch operand']
  %s0 = inlined_call_operand.vmem [shape: s32[8,1], index: 0, kind: input, shape index: {}]
  %s1 = inlined_call_operand.vmem [shape: bf16[8,8,64], index: 1, kind: input, shape index: {}]
  %s2 = inlined_call_operand.vmem [shape: bf16[64,256], index: 2, kind: input, shape index: {}]
  %s3 = inlined_call_operand.vmem [shape: bf16[32,128], index: 3, kind: input, shape index: {}]
  %s4 = inlined_call_operand.vmem [shape: bf16[32,128], index: 4, kind: input, shape index: {}]
  %s5 = inlined_call_operand.vmem [shape: f32[1,256], index: 5, kind: input, shape index: {}]
  %s6 = inlined_call_operand.vmem [shape: f32[8,8,64], index: 6, kind: output, shape index: {}]
  %s7 = sld [smem:[#allocation0]]
  $region34: #{lstm_forward.3} parent=0
    _
  %s9 = ssub.s32 1, %s7
  %s10 = scalar_select 0, %s9, %s7
  // Predicated region
  $region2: #{lstm_forward.3} parent=0 // pred_check
    _
  $region3: #{lstm_forward.3} parent=0 // pred_check_branch
    %12 = sbr.rel (0) target = $region5
  $region4: #{lstm_forward.3} parent=0 // pred_region
    _
  $region5: #{lstm_forward.3} parent=0 // pred_fallthru
    _
  // Predicated region
  $region6: #{lstm_forward.3} parent=0 // pred_check
    _
  $region7: #{lstm_forward.3} parent=0 // pred_check_branch
    %14 = sbr.rel (0) target = $region9
  $region8: #{lstm_forward.3} parent=0 // pred_region
    _
  $region9: #{lstm_forward.3} parent=0 // pred_fallthru
    _
  // Predicated region
  $region10: #{lstm_forward.3} parent=0 // pred_check
    _
  $region11: #{lstm_forward.3} parent=0 // pred_check_branch
    %16 = sbr.rel (0) target = $region13
  $region12: #{lstm_forward.3} parent=0 // pred_region
    _
  $region13: #{lstm_forward.3} parent=0 // pred_fallthru
    _
  // Predicated region
  $region14: #{lstm_forward.3} parent=0 // pred_check
    _
  $region15: #{lstm_forward.3} parent=0 // pred_check_branch
    %18 = sbr.rel (0) target = $region17
  $region16: #{lstm_forward.3} parent=0 // pred_region
    _
  $region17: #{lstm_forward.3} parent=0 // pred_fallthru
    _
  // Predicated region
  $region18: #{lstm_forward.3} parent=0 // pred_check
    _
  $region19: #{lstm_forward.3} parent=0 // pred_check_branch
    %20 = sbr.rel (0) target = $region21
  $region20: #{lstm_forward.3} parent=0 // pred_region
    _
  $region21: #{lstm_forward.3} parent=0 // pred_fallthru
    _
  // Predicated region
  $region22: #{lstm_forward.3} parent=0 // pred_check
    _
  $region23: #{lstm_forward.3} parent=0 // pred_check_branch
    %22 = sbr.rel (0) target = $region25
  $region24: #{lstm_forward.3} parent=0 // pred_region
    _
  $region25: #{lstm_forward.3} parent=0 // pred_fallthru
    _
  %v24 = vld [vmem:[%s5] sm:$0x3]
  %v25 = vld [vmem:[%s1] sm:$0xf]
  %v26 = vld [vmem:[%s1 + $0x4] sm:$0xf]
  %v27 = vld [vmem:[%s1 + $0x8] sm:$0xf]
  %v28 = vld [vmem:[%s1 + $0xc] sm:$0xf]
  %v29 = vld [vmem:[%s1 + $0x10] sm:$0xf]
  %v30 = vld [vmem:[%s1 + $0x14] sm:$0xf]
  %v31 = vld [vmem:[%s1 + $0x18] sm:$0xf]
  %v32 = vld [vmem:[%s1 + $0x1c] sm:$0xf]
  %v33 = vld [vmem:[%s2] sm:$0xff]
  %v34 = vld [vmem:[%s2 + $0x8] sm:$0xff]
  %v35 = vld [vmem:[%s2 + $0x10] sm:$0xff]
  %v36 = vld [vmem:[%s2 + $0x18] sm:$0xff]
  %v37 = vld [vmem:[%s2 + $0x20] sm:$0xff]
  %v38 = vld [vmem:[%s2 + $0x28] sm:$0xff]
  %v39 = vld [vmem:[%s2 + $0x30] sm:$0xff]
  %v40 = vld [vmem:[%s2 + $0x38] sm:$0xff]
  %v42 = vlaneseq
  %v43 = vshrl.u32 %v42, 7
  %v44 = vsub.s32 0, %v43
  %v45 = vrot.slane %v24, %v44
  %v46 = vlaneseq
  %v47 = vshrl.u32 %v46, 7
  %v48 = vsub.s32 1, %v47
  %v49 = vrot.slane %v24, %v48
  %v60 = vunpack.c.l.b16 %v25
  %v61 = vunpack.c.l.b16 %v26
  %v62 = vunpack.c.l.b16 %v27
  %v63 = vunpack.c.l.b16 %v28
  %v64 = vunpack.c.l.b16 %v29
  %v65 = vunpack.c.l.b16 %v30
  %v66 = vunpack.c.l.b16 %v31
  %v67 = vunpack.c.l.b16 %v32
  %v68 = vpack.c.b16 %v61, %v60
  %v69 = vpack.c.b16 %v63, %v62
  %v70 = vpack.c.b16 %v65, %v64
  %v71 = vpack.c.b16 %v67, %v66
  %v80 = vunpack.c.l.b16 %v33
  %v81 = vunpack.c.h.b16 %v33
  %v82 = vunpack.c.l.b16 %v34
  %v83 = vunpack.c.h.b16 %v34
  %v84 = vunpack.c.l.b16 %v35
  %v85 = vunpack.c.h.b16 %v35
  %v86 = vunpack.c.l.b16 %v36
  %v87 = vunpack.c.h.b16 %v36
  %v88 = vunpack.c.l.b16 %v37
  %v89 = vunpack.c.h.b16 %v37
  %v90 = vunpack.c.l.b16 %v38
  %v91 = vunpack.c.h.b16 %v38
  %v92 = vunpack.c.l.b16 %v39
  %v93 = vunpack.c.h.b16 %v39
  %v94 = vunpack.c.l.b16 %v40
  %v95 = vunpack.c.h.b16 %v40
  %v96 = vpack.c.b16 %v82, %v80
  %v97 = vpack.c.b16 %v83, %v81
  %v98 = vpack.c.b16 %v86, %v84
  %v99 = vpack.c.b16 %v87, %v85
  %v100 = vpack.c.b16 %v90, %v88
  %v101 = vpack.c.b16 %v91, %v89
  %v102 = vpack.c.b16 %v94, %v92
  %v103 = vpack.c.b16 %v95, %v93
  %vm112 = vcmask 523264
  %v114 = vsel %vm112, %v68, 0
  %v117 = vsel %vm112, %v69, 0
  %v120 = vsel %vm112, %v70, 0
  %v123 = vsel %vm112, %v71, 0
  %125 = vmatprep.subr.bf16.mxu0 0
  %126 = vmatpush1.bf16.msra.mxu0 0
  %127 = vmatprep.subr.bf16.mxu0 0
  %128 = vmatpush1.bf16.msra.mxu0 0
  %129 = vmatprep.subr.bf16.mxu0 0
  %130 = vmatpush1.bf16.msra.mxu0 0
  %131 = vmatprep.subr.bf16.mxu0 0
  %132 = vmatpush1.bf16.msra.mxu0 0
  %133 = vmatprep.subr.bf16.mxu0 %v103
  %134 = vmatpush1.bf16.msra.mxu0 %v102
  %135 = vmatprep.subr.bf16.mxu0 %v101
  %136 = vmatpush1.bf16.msra.mxu0 %v100
  %137 = vmatprep.subr.bf16.mxu0 %v99
  %138 = vmatpush1.bf16.msra.mxu0 %v98
  %139 = vmatprep.subr.bf16.mxu0 %v97
  %140 = vmatpush1.bf16.msra.mxu0 %v96
  %141 = vmatprep.subr.bf16.mxu0 0
  %142 = vmatpush2.bf16.msra.mxu0 0
  %143 = vmatprep.subr.bf16.mxu0 0
  %144 = vmatpush2.bf16.msra.mxu0 0
  %145 = vmatprep.subr.bf16.mxu0 0
  %146 = vmatpush2.bf16.msra.mxu0 0
  %147 = vmatprep.subr.bf16.mxu0 0
  %148 = vmatpush2.bf16.msra.mxu0 0
  %149 = vmatprep.subr.bf16.mxu0 0
  %150 = vmatpush2.bf16.msra.mxu0 0
  %151 = vmatprep.subr.bf16.mxu0 0
  %152 = vmatpush2.bf16.msra.mxu0 0
  %153 = vmatprep.subr.bf16.mxu0 0
  %154 = vmatpush2.bf16.msra.mxu0 0
  %155 = vmatprep.subr.bf16.mxu0 0
  %156 = vmatpush2.bf16.msra.mxu0 0
  %157 = vmatprep.mubr.bf16.mxu0 0
  %158 = vmatmul.mubr.bf16.gmra.mxu0 %v114
  %v159 = vpop.f32.mrf.mxu0
  %v160 = vadd.f32 %v45, %v159
  %v161 = vpop.f32.mrf.mxu0
  %v162 = vadd.f32 %v49, %v161
  %v163 = vpop.f32.mrf.mxu0
  %v164 = vadd.f32 %v45, %v163
  %v165 = vpop.f32.mrf.mxu0
  %v166 = vadd.f32 %v49, %v165
  %167 = vmatprep.mubr.bf16.mxu0 0
  %168 = vmatmul.mubr.bf16.gmra.mxu0 %v117
  %v169 = vpop.f32.mrf.mxu0
  %v170 = vadd.f32 %v45, %v169
  %v171 = vpop.f32.mrf.mxu0
  %v172 = vadd.f32 %v49, %v171
  %v173 = vpop.f32.mrf.mxu0
  %v174 = vadd.f32 %v45, %v173
  %v175 = vpop.f32.mrf.mxu0
  %v176 = vadd.f32 %v49, %v175
  %177 = vmatprep.mubr.bf16.mxu0 0
  %178 = vmatmul.mubr.bf16.gmra.mxu0 %v120
  %v179 = vpop.f32.mrf.mxu0
  %v180 = vadd.f32 %v45, %v179
  %v181 = vpop.f32.mrf.mxu0
  %v182 = vadd.f32 %v49, %v181
  %v183 = vpop.f32.mrf.mxu0
  %v184 = vadd.f32 %v45, %v183
  %v185 = vpop.f32.mrf.mxu0
  %v186 = vadd.f32 %v49, %v185
  %187 = vmatprep.mubr.bf16.mxu0 0
  %188 = vmatmul.mubr.bf16.gmra.mxu0 %v123
  %v189 = vpop.f32.mrf.mxu0
  %v190 = vadd.f32 %v45, %v189
  %v191 = vpop.f32.mrf.mxu0
  %v192 = vadd.f32 %v49, %v191
  %v193 = vpop.f32.mrf.mxu0
  %v194 = vadd.f32 %v45, %v193
  %v195 = vpop.f32.mrf.mxu0
  %v196 = vadd.f32 %v49, %v195
  %197 = vdwg.mxu0
  %v198 = vpack.c.bf16 %v160, %v160
  %v199 = vpack.c.bf16 %v162, %v162
  %v200 = vpack.c.bf16 %v164, %v164
  %v201 = vpack.c.bf16 %v166, %v166
  %v202 = vpack.c.bf16 %v170, %v170
  %v203 = vpack.c.bf16 %v172, %v172
  %v204 = vpack.c.bf16 %v174, %v174
  %v205 = vpack.c.bf16 %v176, %v176
  %v206 = vpack.c.bf16 %v180, %v180
  %v207 = vpack.c.bf16 %v182, %v182
  %v208 = vpack.c.bf16 %v184, %v184
  %v209 = vpack.c.bf16 %v186, %v186
  %v210 = vpack.c.bf16 %v190, %v190
  %v211 = vpack.c.bf16 %v192, %v192
  %v212 = vpack.c.bf16 %v194, %v194
  %v213 = vpack.c.bf16 %v196, %v196
  %v230 = vunpack.c.l.b16 %v198
  %v231 = vunpack.c.l.b16 %v199
  %v232 = vunpack.c.l.b16 %v200
  %v233 = vunpack.c.l.b16 %v201
  %v234 = vunpack.c.l.b16 %v202
  %v235 = vunpack.c.l.b16 %v203
  %v236 = vunpack.c.l.b16 %v204
  %v237 = vunpack.c.l.b16 %v205
  %v238 = vunpack.c.l.b16 %v206
  %v239 = vunpack.c.l.b16 %v207
  %v240 = vunpack.c.l.b16 %v208
  %v241 = vunpack.c.l.b16 %v209
  %v242 = vunpack.c.l.b16 %v210
  %v243 = vunpack.c.l.b16 %v211
  %v244 = vunpack.c.l.b16 %v212
  %v245 = vunpack.c.l.b16 %v213
  %v246 = vpack.c.b16 %v231, %v230
  %v247 = vpack.c.b16 %v233, %v232
  %v248 = vpack.c.b16 %v235, %v234
  %v249 = vpack.c.b16 %v237, %v236
  %v250 = vpack.c.b16 %v239, %v238
  %v251 = vpack.c.b16 %v241, %v240
  %v252 = vpack.c.b16 %v243, %v242
  %v253 = vpack.c.b16 %v245, %v244
  %s262 = smul.u32 0, 2
  %s263 = smul.addr %s262, 4
  %s264 = scalar_lea.vmem [#allocation2], %s263
  %265 = vst [vmem:[%s264] sm:$0xff] %v246
  %266 = vst [vmem:[%s264 + $0x8] sm:$0xff] %v247
  %267 = vst [vmem:[%s264 + $0x10] sm:$0xff] %v248
  %268 = vst [vmem:[%s264 + $0x18] sm:$0xff] %v249
  %269 = vst [vmem:[%s264 + $0x20] sm:$0xff] %v250
  %270 = vst [vmem:[%s264 + $0x28] sm:$0xff] %v251
  %271 = vst [vmem:[%s264 + $0x30] sm:$0xff] %v252
  %272 = vst [vmem:[%s264 + $0x38] sm:$0xff] %v253
  %vm273 = vcmask 261120
  %274 = vst.msk [vmem:[#allocation3] sm:$0xff] %vm273, 0.0
  %275 = vst.msk [vmem:[#allocation4] sm:$0xff] %vm273, 0.0
  %276 = vst.msk [vmem:[#allocation5] sm:$0xff] %vm273, 0.0
  %277 = vst.msk [vmem:[#allocation6] sm:$0xff] %vm273, 0.0
  %v278 = vld [vmem:[%s0] sm:$0xff]
  %v279 = vld [vmem:[#allocation2] sm:$0xf]
  %s280 = scalar_lea.vmem [#allocation2], 56
  %v281 = vld [vmem:[%s280 + $0x4] sm:$0xf]
  %v282 = vld [vmem:[#allocation3] sm:$0xff]
  %v283 = vld [vmem:[#allocation4] sm:$0xff]
  %v284 = vld [vmem:[#allocation5] sm:$0xff]
  %v285 = vld [vmem:[#allocation6] sm:$0xff]
  %v286 = vpack.c.bf16 %v282, %v282
  %v287 = vld [vmem:[%s3] sm:$0xf]
  %v288 = vld [vmem:[%s3 + $0x4] sm:$0xf]
  %v289 = vld [vmem:[%s3 + $0x8] sm:$0xf]
  %v290 = vld [vmem:[%s3 + $0xc] sm:$0xf]
  %v295 = vunpack.c.l.b16 %v287
  %v296 = vunpack.c.l.b16 %v288
  %v297 = vunpack.c.l.b16 %v289
  %v298 = vunpack.c.l.b16 %v290
  %v299 = vpack.c.b16 %v296, %v295
  %v300 = vpack.c.b16 %v298, %v297
  %v304 = vsel %vm273, %v286, 0
  %306 = vmatprep.subr.bf16.mxu0 0
  %307 = vmatpush1.bf16.msra.mxu0 0
  %308 = vmatprep.subr.bf16.mxu0 0
  %309 = vmatpush1.bf16.msra.mxu0 0
  %310 = vmatprep.subr.bf16.mxu0 0
  %311 = vmatpush1.bf16.msra.mxu0 0
  %312 = vmatprep.subr.bf16.mxu0 0
  %313 = vmatpush1.bf16.msra.mxu0 0
  %314 = vmatprep.subr.bf16.mxu0 0
  %315 = vmatpush1.bf16.msra.mxu0 0
  %316 = vmatprep.subr.bf16.mxu0 0
  %317 = vmatpush1.bf16.msra.mxu0 0
  %318 = vmatprep.subr.bf16.mxu0 0
  %319 = vmatpush1.bf16.msra.mxu0 %v300
  %320 = vmatprep.subr.bf16.mxu0 0
  %321 = vmatpush1.bf16.msra.mxu0 %v299
  %322 = vmatprep.subr.bf16.mxu0 0
  %323 = vmatpush2.bf16.msra.mxu0 0
  %324 = vmatprep.subr.bf16.mxu0 0
  %325 = vmatpush2.bf16.msra.mxu0 0
  %326 = vmatprep.subr.bf16.mxu0 0
  %327 = vmatpush2.bf16.msra.mxu0 0
  %328 = vmatprep.subr.bf16.mxu0 0
  %329 = vmatpush2.bf16.msra.mxu0 0
  %330 = vmatprep.subr.bf16.mxu0 0
  %331 = vmatpush2.bf16.msra.mxu0 0
  %332 = vmatprep.subr.bf16.mxu0 0
  %333 = vmatpush2.bf16.msra.mxu0 0
  %334 = vmatprep.subr.bf16.mxu0 0
  %335 = vmatpush2.bf16.msra.mxu0 0
  %336 = vmatprep.subr.bf16.mxu0 0
  %337 = vmatpush2.bf16.msra.mxu0 0
  %338 = vmatprep.mubr.bf16.mxu0 0
  %339 = vmatmul.mubr.bf16.gmra.mxu0 %v304
  %v340 = vpop.f32.mrf.mxu0
  %v341 = vadd.f32 0.0, %v340
  %v342 = vpop.f32.mrf.mxu0
  %v343 = vpop.f32.mrf.mxu0
  %v344 = vpop.f32.mrf.mxu0
  %345 = vdwg.mxu0
  %v346 = vunpack.c.l.bf16 %v279
  %v347 = vadd.f32 %v346, %v341
  %v348 = vpack.c.bf16 %v284, %v284
  %v349 = vld [vmem:[%s4] sm:$0xf]
  %v350 = vld [vmem:[%s4 + $0x4] sm:$0xf]
  %v351 = vld [vmem:[%s4 + $0x8] sm:$0xf]
  %v352 = vld [vmem:[%s4 + $0xc] sm:$0xf]
  %v357 = vunpack.c.l.b16 %v349
  %v358 = vunpack.c.l.b16 %v350
  %v359 = vunpack.c.l.b16 %v351
  %v360 = vunpack.c.l.b16 %v352
  %v361 = vpack.c.b16 %v358, %v357
  %v362 = vpack.c.b16 %v360, %v359
  %v366 = vsel %vm273, %v348, 0
  %368 = vmatprep.subr.bf16.mxu0 0
  %369 = vmatpush1.bf16.msra.mxu0 0
  %370 = vmatprep.subr.bf16.mxu0 0
  %371 = vmatpush1.bf16.msra.mxu0 0
  %372 = vmatprep.subr.bf16.mxu0 0
  %373 = vmatpush1.bf16.msra.mxu0 0
  %374 = vmatprep.subr.bf16.mxu0 0
  %375 = vmatpush1.bf16.msra.mxu0 0
  %376 = vmatprep.subr.bf16.mxu0 0
  %377 = vmatpush1.bf16.msra.mxu0 0
  %378 = vmatprep.subr.bf16.mxu0 0
  %379 = vmatpush1.bf16.msra.mxu0 0
  %380 = vmatprep.subr.bf16.mxu0 0
  %381 = vmatpush1.bf16.msra.mxu0 %v362
  %382 = vmatprep.subr.bf16.mxu0 0
  %383 = vmatpush1.bf16.msra.mxu0 %v361
  %384 = vmatprep.subr.bf16.mxu0 0
  %385 = vmatpush2.bf16.msra.mxu0 0
  %386 = vmatprep.subr.bf16.mxu0 0
  %387 = vmatpush2.bf16.msra.mxu0 0
  %388 = vmatprep.subr.bf16.mxu0 0
  %389 = vmatpush2.bf16.msra.mxu0 0
  %390 = vmatprep.subr.bf16.mxu0 0
  %391 = vmatpush2.bf16.msra.mxu0 0
  %392 = vmatprep.subr.bf16.mxu0 0
  %393 = vmatpush2.bf16.msra.mxu0 0
  %394 = vmatprep.subr.bf16.mxu0 0
  %395 = vmatpush2.bf16.msra.mxu0 0
  %396 = vmatprep.subr.bf16.mxu0 0
  %397 = vmatpush2.bf16.msra.mxu0 0
  %398 = vmatprep.subr.bf16.mxu0 0
  %399 = vmatpush2.bf16.msra.mxu0 0
  %400 = vmatprep.mubr.bf16.mxu0 0
  %401 = vmatmul.mubr.bf16.gmra.mxu0 %v366
  %v402 = vpop.f32.mrf.mxu0
  %v403 = vadd.f32 0.0, %v402
  %v404 = vpop.f32.mrf.mxu0
  %v405 = vpop.f32.mrf.mxu0
  %v406 = vpop.f32.mrf.mxu0
  %407 = vdwg.mxu0
  %v408 = vunpack.c.l.bf16 %v281
  %v409 = vadd.f32 %v408, %v403
  %v410 = vxor.u32 %v347, 2147483648
  %v411 = vmul.f32 %v410, 1.442695
  %v412 = vpow.pop %v411
  %v413 = vadd.f32 %v412, 1.0
  %v414 = vrcp.pop %v413
  %v415 = vmul.f32 1.0, %v414
  %v416 = vtanh.pop %v347
  %418 = vrot.lane.b32.xlu0 %v283, 32
  %v419 = vpop.permute.xlu0 %418
  %v421 = vmul.f32 %v415, %v419
  %423 = vrot.lane.b32.xlu0 %v416, 32
  %v424 = vpop.permute.xlu0 %423
  %v426 = vmul.f32 %v415, %v424
  %428 = vrot.lane.b32.xlu0 %v426, 32
  %v429 = vpop.permute.xlu0 %428
  %v431 = vadd.f32 %v421, %v429
  %v432 = vtanh.pop %v431
  %434 = vrot.lane.b32.xlu0 %v432, 32
  %v435 = vpop.permute.xlu0 %434
  %v437 = vmul.f32 %v415, %v435
  %v438 = vxor.u32 %v409, 2147483648
  %v439 = vmul.f32 %v438, 1.442695
  %v440 = vpow.pop %v439
  %v441 = vadd.f32 %v440, 1.0
  %v442 = vrcp.pop %v441
  %v443 = vmul.f32 1.0, %v442
  %v444 = vtanh.pop %v409
  %446 = vrot.lane.b32.xlu0 %v285, 32
  %v447 = vpop.permute.xlu0 %446
  %v449 = vmul.f32 %v443, %v447
  %451 = vrot.lane.b32.xlu0 %v444, 32
  %v452 = vpop.permute.xlu0 %451
  %v454 = vmul.f32 %v443, %v452
  %456 = vrot.lane.b32.xlu0 %v454, 32
  %v457 = vpop.permute.xlu0 %456
  %v459 = vadd.f32 %v449, %v457
  %v460 = vtanh.pop %v459
  %462 = vrot.lane.b32.xlu0 %v460, 32
  %v463 = vpop.permute.xlu0 %462
  %v465 = vmul.f32 %v443, %v463
  %vm466 = vcmp.gt.s32.totalorder %v278, 0
  %vm467 = vcmp.gt.s32.totalorder %v278, 7
  %v468 = vsel %vm466, 1, 0
  %469 = vset.pattern.permute.xlu0 0
  %470 = vperm.xlu0 %469, %v468
  %v471 = vpop.permute.xlu0 %470
  %vm472 = vcmp.eq.s32.totalorder %v471, 1
  %474 = vrot.lane.b32.xlu0 %v282, 64
  %v475 = vpop.permute.xlu0 %474
  %v477 = vsel %vm472, %v437, %v475
  %479 = vrot.lane.b32.xlu0 %v477, 64
  %v480 = vpop.permute.xlu0 %479
  %482 = vst.msk [vmem:[#allocation3] sm:$0xff] %vm273, %v480
  %v483 = vsel %vm472, %v431, %v419
  %485 = vrot.lane.b32.xlu0 %v483, 96
  %v486 = vpop.permute.xlu0 %485
  %488 = vst.msk [vmem:[#allocation4] sm:$0xff] %vm273, %v486
  %v489 = vsel %vm467, 1, 0
  %490 = vset.pattern.permute.xlu0 0
  %491 = vperm.xlu0 %490, %v489
  %v492 = vpop.permute.xlu0 %491
  %vm493 = vcmp.eq.s32.totalorder %v492, 1
  %495 = vrot.lane.b32.xlu0 %v284, 64
  %v496 = vpop.permute.xlu0 %495
  %v498 = vsel %vm493, %v465, %v496
  %500 = vrot.lane.b32.xlu0 %v498, 64
  %v501 = vpop.permute.xlu0 %500
  %503 = vst.msk [vmem:[#allocation5] sm:$0xff] %vm273, %v501
  %v504 = vsel %vm493, %v459, %v447
  %506 = vrot.lane.b32.xlu0 %v504, 96
  %v507 = vpop.permute.xlu0 %506
  %509 = vst.msk [vmem:[#allocation6] sm:$0xff] %vm273, %v507
  %v510 = vsel %vm472, %v437, 0.0
  %512 = vrot.lane.b32.xlu0 %v510, 64
  %v513 = vpop.permute.xlu0 %512
  %515 = vst.msk [vmem:[%s6] sm:$0xff] %vm273, %v513
  %v516 = vsel %vm493, %v465, 0.0
  %518 = vrot.lane.b32.xlu0 %v516, 96
  %v519 = vpop.permute.xlu0 %518
  %s521 = scalar_lea.vmem %s6, 56
  %vm522 = vcmask 523520
  %523 = vst.msk [vmem:[%s521] sm:$0xff] %vm522, %v519
  %s524 = scalar_lea.vmem [#allocation2], 8
  %v525 = vld [vmem:[%s524] sm:$0xf]
  %s526 = scalar_lea.vmem [#allocation2], 48
  %v527 = vld [vmem:[%s526 + $0x4] sm:$0xf]
  %v528 = vld [vmem:[#allocation3] sm:$0xff]
  %v529 = vld [vmem:[#allocation4] sm:$0xff]
  %v530 = vld [vmem:[#allocation5] sm:$0xff]
  %v531 = vld [vmem:[#allocation6] sm:$0xff]
  %v532 = vpack.c.bf16 %v528, %v528
  %v533 = vld [vmem:[%s3] sm:$0xf]
  %v534 = vld [vmem:[%s3 + $0x4] sm:$0xf]
  %v535 = vld [vmem:[%s3 + $0x8] sm:$0xf]
  %v536 = vld [vmem:[%s3 + $0xc] sm:$0xf]
  %v541 = vunpack.c.l.b16 %v533
  %v542 = vunpack.c.l.b16 %v534
  %v543 = vunpack.c.l.b16 %v535
  %v544 = vunpack.c.l.b16 %v536
  %v545 = vpack.c.b16 %v542, %v541
  %v546 = vpack.c.b16 %v544, %v543
  %v550 = vsel %vm273, %v532, 0
  %552 = vmatprep.subr.bf16.mxu0 0
  %553 = vmatpush1.bf16.msra.mxu0 0
  %554 = vmatprep.subr.bf16.mxu0 0
  %555 = vmatpush1.bf16.msra.mxu0 0
  %556 = vmatprep.subr.bf16.mxu0 0
  %557 = vmatpush1.bf16.msra.mxu0 0
  %558 = vmatprep.subr.bf16.mxu0 0
  %559 = vmatpush1.bf16.msra.mxu0 0
  %560 = vmatprep.subr.bf16.mxu0 0
  %561 = vmatpush1.bf16.msra.mxu0 0
  %562 = vmatprep.subr.bf16.mxu0 0
  %563 = vmatpush1.bf16.msra.mxu0 0
  %564 = vmatprep.subr.bf16.mxu0 0
  %565 = vmatpush1.bf16.msra.mxu0 %v546
  %566 = vmatprep.subr.bf16.mxu0 0
  %567 = vmatpush1.bf16.msra.mxu0 %v545
  %568 = vmatprep.subr.bf16.mxu0 0
  %569 = vmatpush2.bf16.msra.mxu0 0
  %570 = vmatprep.subr.bf16.mxu0 0
  %571 = vmatpush2.bf16.msra.mxu0 0
  %572 = vmatprep.subr.bf16.mxu0 0
  %573 = vmatpush2.bf16.msra.mxu0 0
  %574 = vmatprep.subr.bf16.mxu0 0
  %575 = vmatpush2.bf16.msra.mxu0 0
  %576 = vmatprep.subr.bf16.mxu0 0
  %577 = vmatpush2.bf16.msra.mxu0 0
  %578 = vmatprep.subr.bf16.mxu0 0
  %579 = vmatpush2.bf16.msra.mxu0 0
  %580 = vmatprep.subr.bf16.mxu0 0
  %581 = vmatpush2.bf16.msra.mxu0 0
  %582 = vmatprep.subr.bf16.mxu0 0
  %583 = vmatpush2.bf16.msra.mxu0 0
  %584 = vmatprep.mubr.bf16.mxu0 0
  %585 = vmatmul.mubr.bf16.gmra.mxu0 %v550
  %v586 = vpop.f32.mrf.mxu0
  %v587 = vadd.f32 0.0, %v586
  %v588 = vpop.f32.mrf.mxu0
  %v589 = vpop.f32.mrf.mxu0
  %v590 = vpop.f32.mrf.mxu0
  %591 = vdwg.mxu0
  %v592 = vunpack.c.l.bf16 %v525
  %v593 = vadd.f32 %v592, %v587
  %v594 = vpack.c.bf16 %v530, %v530
  %v595 = vld [vmem:[%s4] sm:$0xf]
  %v596 = vld [vmem:[%s4 + $0x4] sm:$0xf]
  %v597 = vld [vmem:[%s4 + $0x8] sm:$0xf]
  %v598 = vld [vmem:[%s4 + $0xc] sm:$0xf]
  %v603 = vunpack.c.l.b16 %v595
  %v604 = vunpack.c.l.b16 %v596
  %v605 = vunpack.c.l.b16 %v597
  %v606 = vunpack.c.l.b16 %v598
  %v607 = vpack.c.b16 %v604, %v603
  %v608 = vpack.c.b16 %v606, %v605
  %v612 = vsel %vm273, %v594, 0
  %614 = vmatprep.subr.bf16.mxu0 0
  %615 = vmatpush1.bf16.msra.mxu0 0
  %616 = vmatprep.subr.bf16.mxu0 0
  %617 = vmatpush1.bf16.msra.mxu0 0
  %618 = vmatprep.subr.bf16.mxu0 0
  %619 = vmatpush1.bf16.msra.mxu0 0
  %620 = vmatprep.subr.bf16.mxu0 0
  %621 = vmatpush1.bf16.msra.mxu0 0
  %622 = vmatprep.subr.bf16.mxu0 0
  %623 = vmatpush1.bf16.msra.mxu0 0
  %624 = vmatprep.subr.bf16.mxu0 0
  %625 = vmatpush1.bf16.msra.mxu0 0
  %626 = vmatprep.subr.bf16.mxu0 0
  %627 = vmatpush1.bf16.msra.mxu0 %v608
  %628 = vmatprep.subr.bf16.mxu0 0
  %629 = vmatpush1.bf16.msra.mxu0 %v607
  %630 = vmatprep.subr.bf16.mxu0 0
  %631 = vmatpush2.bf16.msra.mxu0 0
  %632 = vmatprep.subr.bf16.mxu0 0
  %633 = vmatpush2.bf16.msra.mxu0 0
  %634 = vmatprep.subr.bf16.mxu0 0
  %635 = vmatpush2.bf16.msra.mxu0 0
  %636 = vmatprep.subr.bf16.mxu0 0
  %637 = vmatpush2.bf16.msra.mxu0 0
  %638 = vmatprep.subr.bf16.mxu0 0
  %639 = vmatpush2.bf16.msra.mxu0 0
  %640 = vmatprep.subr.bf16.mxu0 0
  %641 = vmatpush2.bf16.msra.mxu0 0
  %642 = vmatprep.subr.bf16.mxu0 0
  %643 = vmatpush2.bf16.msra.mxu0 0
  %644 = vmatprep.subr.bf16.mxu0 0
  %645 = vmatpush2.bf16.msra.mxu0 0
  %646 = vmatprep.mubr.bf16.mxu0 0
  %647 = vmatmul.mubr.bf16.gmra.mxu0 %v612
  %v648 = vpop.f32.mrf.mxu0
  %v649 = vadd.f32 0.0, %v648
  %v650 = vpop.f32.mrf.mxu0
  %v651 = vpop.f32.mrf.mxu0
  %v652 = vpop.f32.mrf.mxu0
  %653 = vdwg.mxu0
  %v654 = vunpack.c.l.bf16 %v527
  %v655 = vadd.f32 %v654, %v649
  %v656 = vxor.u32 %v593, 2147483648
  %v657 = vmul.f32 %v656, 1.442695
  %v658 = vpow.pop %v657
  %v659 = vadd.f32 %v658, 1.0
  %v660 = vrcp.pop %v659
  %v661 = vmul.f32 1.0, %v660
  %v662 = vtanh.pop %v593
  %664 = vrot.lane.b32.xlu0 %v529, 32
  %v665 = vpop.permute.xlu0 %664
  %v667 = vmul.f32 %v661, %v665
  %669 = vrot.lane.b32.xlu0 %v662, 32
  %v670 = vpop.permute.xlu0 %669
  %v672 = vmul.f32 %v661, %v670
  %674 = vrot.lane.b32.xlu0 %v672, 32
  %v675 = vpop.permute.xlu0 %674
  %v677 = vadd.f32 %v667, %v675
  %v678 = vtanh.pop %v677
  %680 = vrot.lane.b32.xlu0 %v678, 32
  %v681 = vpop.permute.xlu0 %680
  %v683 = vmul.f32 %v661, %v681
  %v684 = vxor.u32 %v655, 2147483648
  %v685 = vmul.f32 %v684, 1.442695
  %v686 = vpow.pop %v685
  %v687 = vadd.f32 %v686, 1.0
  %v688 = vrcp.pop %v687
  %v689 = vmul.f32 1.0, %v688
  %v690 = vtanh.pop %v655
  %692 = vrot.lane.b32.xlu0 %v531, 32
  %v693 = vpop.permute.xlu0 %692
  %v695 = vmul.f32 %v689, %v693
  %697 = vrot.lane.b32.xlu0 %v690, 32
  %v698 = vpop.permute.xlu0 %697
  %v700 = vmul.f32 %v689, %v698
  %702 = vrot.lane.b32.xlu0 %v700, 32
  %v703 = vpop.permute.xlu0 %702
  %v705 = vadd.f32 %v695, %v703
  %v706 = vtanh.pop %v705
  %708 = vrot.lane.b32.xlu0 %v706, 32
  %v709 = vpop.permute.xlu0 %708
  %v711 = vmul.f32 %v689, %v709
  %vm712 = vcmp.gt.s32.totalorder %v278, 1
  %vm713 = vcmp.gt.s32.totalorder %v278, 6
  %v714 = vsel %vm712, 1, 0
  %715 = vset.pattern.permute.xlu0 0
  %716 = vperm.xlu0 %715, %v714
  %v717 = vpop.permute.xlu0 %716
  %vm718 = vcmp.eq.s32.totalorder %v717, 1
  %720 = vrot.lane.b32.xlu0 %v528, 64
  %v721 = vpop.permute.xlu0 %720
  %v723 = vsel %vm718, %v683, %v721
  %725 = vrot.lane.b32.xlu0 %v723, 64
  %v726 = vpop.permute.xlu0 %725
  %728 = vst.msk [vmem:[#allocation3] sm:$0xff] %vm273, %v726
  %v729 = vsel %vm718, %v677, %v665
  %731 = vrot.lane.b32.xlu0 %v729, 96
  %v732 = vpop.permute.xlu0 %731
  %734 = vst.msk [vmem:[#allocation4] sm:$0xff] %vm273, %v732
  %v735 = vsel %vm713, 1, 0
  %736 = vset.pattern.permute.xlu0 0
  %737 = vperm.xlu0 %736, %v735
  %v738 = vpop.permute.xlu0 %737
  %vm739 = vcmp.eq.s32.totalorder %v738, 1
  %741 = vrot.lane.b32.xlu0 %v530, 64
  %v742 = vpop.permute.xlu0 %741
  %v744 = vsel %vm739, %v711, %v742
  %746 = vrot.lane.b32.xlu0 %v744, 64
  %v747 = vpop.permute.xlu0 %746
  %749 = vst.msk [vmem:[#allocation5] sm:$0xff] %vm273, %v747
  %v750 = vsel %vm739, %v705, %v693
  %752 = vrot.lane.b32.xlu0 %v750, 96
  %v753 = vpop.permute.xlu0 %752
  %755 = vst.msk [vmem:[#allocation6] sm:$0xff] %vm273, %v753
  %v756 = vsel %vm718, %v683, 0.0
  %758 = vrot.lane.b32.xlu0 %v756, 64
  %v759 = vpop.permute.xlu0 %758
  %s761 = scalar_lea.vmem %s6, 8
  %762 = vst.msk [vmem:[%s761] sm:$0xff] %vm273, %v759
  %v763 = vsel %vm739, %v711, 0.0
  %765 = vrot.lane.b32.xlu0 %v763, 96
  %v766 = vpop.permute.xlu0 %765
  %s768 = scalar_lea.vmem %s6, 48
  %769 = vst.msk [vmem:[%s768] sm:$0xff] %vm522, %v766
  %s770 = scalar_lea.vmem [#allocation2], 16
  %v771 = vld [vmem:[%s770] sm:$0xf]
  %s772 = scalar_lea.vmem [#allocation2], 40
  %v773 = vld [vmem:[%s772 + $0x4] sm:$0xf]
  %v774 = vld [vmem:[#allocation3] sm:$0xff]
  %v775 = vld [vmem:[#allocation4] sm:$0xff]
  %v776 = vld [vmem:[#allocation5] sm:$0xff]
  %v777 = vld [vmem:[#allocation6] sm:$0xff]
  %v778 = vpack.c.bf16 %v774, %v774
  %v779 = vld [vmem:[%s3] sm:$0xf]
  %v780 = vld [vmem:[%s3 + $0x4] sm:$0xf]
  %v781 = vld [vmem:[%s3 + $0x8] sm:$0xf]
  %v782 = vld [vmem:[%s3 + $0xc] sm:$0xf]
  %v787 = vunpack.c.l.b16 %v779
  %v788 = vunpack.c.l.b16 %v780
  %v789 = vunpack.c.l.b16 %v781
  %v790 = vunpack.c.l.b16 %v782
  %v791 = vpack.c.b16 %v788, %v787
  %v792 = vpack.c.b16 %v790, %v789
  %v796 = vsel %vm273, %v778, 0
  %798 = vmatprep.subr.bf16.mxu0 0
  %799 = vmatpush1.bf16.msra.mxu0 0
  %800 = vmatprep.subr.bf16.mxu0 0
  %801 = vmatpush1.bf16.msra.mxu0 0
  %802 = vmatprep.subr.bf16.mxu0 0
  %803 = vmatpush1.bf16.msra.mxu0 0
  %804 = vmatprep.subr.bf16.mxu0 0
  %805 = vmatpush1.bf16.msra.mxu0 0
  %806 = vmatprep.subr.bf16.mxu0 0
  %807 = vmatpush1.bf16.msra.mxu0 0
  %808 = vmatprep.subr.bf16.mxu0 0
  %809 = vmatpush1.bf16.msra.mxu0 0
  %810 = vmatprep.subr.bf16.mxu0 0
  %811 = vmatpush1.bf16.msra.mxu0 %v792
  %812 = vmatprep.subr.bf16.mxu0 0
  %813 = vmatpush1.bf16.msra.mxu0 %v791
  %814 = vmatprep.subr.bf16.mxu0 0
  %815 = vmatpush2.bf16.msra.mxu0 0
  %816 = vmatprep.subr.bf16.mxu0 0
  %817 = vmatpush2.bf16.msra.mxu0 0
  %818 = vmatprep.subr.bf16.mxu0 0
  %819 = vmatpush2.bf16.msra.mxu0 0
  %820 = vmatprep.subr.bf16.mxu0 0
  %821 = vmatpush2.bf16.msra.mxu0 0
  %822 = vmatprep.subr.bf16.mxu0 0
  %823 = vmatpush2.bf16.msra.mxu0 0
  %824 = vmatprep.subr.bf16.mxu0 0
  %825 = vmatpush2.bf16.msra.mxu0 0
  %826 = vmatprep.subr.bf16.mxu0 0
  %827 = vmatpush2.bf16.msra.mxu0 0
  %828 = vmatprep.subr.bf16.mxu0 0
  %829 = vmatpush2.bf16.msra.mxu0 0
  %830 = vmatprep.mubr.bf16.mxu0 0
  %831 = vmatmul.mubr.bf16.gmra.mxu0 %v796
  %v832 = vpop.f32.mrf.mxu0
  %v833 = vadd.f32 0.0, %v832
  %v834 = vpop.f32.mrf.mxu0
  %v835 = vpop.f32.mrf.mxu0
  %v836 = vpop.f32.mrf.mxu0
  %837 = vdwg.mxu0
  %v838 = vunpack.c.l.bf16 %v771
  %v839 = vadd.f32 %v838, %v833
  %v840 = vpack.c.bf16 %v776, %v776
  %v841 = vld [vmem:[%s4] sm:$0xf]
  %v842 = vld [vmem:[%s4 + $0x4] sm:$0xf]
  %v843 = vld [vmem:[%s4 + $0x8] sm:$0xf]
  %v844 = vld [vmem:[%s4 + $0xc] sm:$0xf]
  %v849 = vunpack.c.l.b16 %v841
  %v850 = vunpack.c.l.b16 %v842
  %v851 = vunpack.c.l.b16 %v843
  %v852 = vunpack.c.l.b16 %v844
  %v853 = vpack.c.b16 %v850, %v849
  %v854 = vpack.c.b16 %v852, %v851
  %v858 = vsel %vm273, %v840, 0
  %860 = vmatprep.subr.bf16.mxu0 0
  %861 = vmatpush1.bf16.msra.mxu0 0
  %862 = vmatprep.subr.bf16.mxu0 0
  %863 = vmatpush1.bf16.msra.mxu0 0
  %864 = vmatprep.subr.bf16.mxu0 0
  %865 = vmatpush1.bf16.msra.mxu0 0
  %866 = vmatprep.subr.bf16.mxu0 0
  %867 = vmatpush1.bf16.msra.mxu0 0
  %868 = vmatprep.subr.bf16.mxu0 0
  %869 = vmatpush1.bf16.msra.mxu0 0
  %870 = vmatprep.subr.bf16.mxu0 0
  %871 = vmatpush1.bf16.msra.mxu0 0
  %872 = vmatprep.subr.bf16.mxu0 0
  %873 = vmatpush1.bf16.msra.mxu0 %v854
  %874 = vmatprep.subr.bf16.mxu0 0
  %875 = vmatpush1.bf16.msra.mxu0 %v853
  %876 = vmatprep.subr.bf16.mxu0 0
  %877 = vmatpush2.bf16.msra.mxu0 0
  %878 = vmatprep.subr.bf16.mxu0 0
  %879 = vmatpush2.bf16.msra.mxu0 0
  %880 = vmatprep.subr.bf16.mxu0 0
  %881 = vmatpush2.bf16.msra.mxu0 0
  %882 = vmatprep.subr.bf16.mxu0 0
  %883 = vmatpush2.bf16.msra.mxu0 0
  %884 = vmatprep.subr.bf16.mxu0 0
  %885 = vmatpush2.bf16.msra.mxu0 0
  %886 = vmatprep.subr.bf16.mxu0 0
  %887 = vmatpush2.bf16.msra.mxu0 0
  %888 = vmatprep.subr.bf16.mxu0 0
  %889 = vmatpush2.bf16.msra.mxu0 0
  %890 = vmatprep.subr.bf16.mxu0 0
  %891 = vmatpush2.bf16.msra.mxu0 0
  %892 = vmatprep.mubr.bf16.mxu0 0
  %893 = vmatmul.mubr.bf16.gmra.mxu0 %v858
  %v894 = vpop.f32.mrf.mxu0
  %v895 = vadd.f32 0.0, %v894
  %v896 = vpop.f32.mrf.mxu0
  %v897 = vpop.f32.mrf.mxu0
  %v898 = vpop.f32.mrf.mxu0
  %899 = vdwg.mxu0
  %v900 = vunpack.c.l.bf16 %v773
  %v901 = vadd.f32 %v900, %v895
  %v902 = vxor.u32 %v839, 2147483648
  %v903 = vmul.f32 %v902, 1.442695
  %v904 = vpow.pop %v903
  %v905 = vadd.f32 %v904, 1.0
  %v906 = vrcp.pop %v905
  %v907 = vmul.f32 1.0, %v906
  %v908 = vtanh.pop %v839
  %910 = vrot.lane.b32.xlu0 %v775, 32
  %v911 = vpop.permute.xlu0 %910
  %v913 = vmul.f32 %v907, %v911
  %915 = vrot.lane.b32.xlu0 %v908, 32
  %v916 = vpop.permute.xlu0 %915
  %v918 = vmul.f32 %v907, %v916
  %920 = vrot.lane.b32.xlu0 %v918, 32
  %v921 = vpop.permute.xlu0 %920
  %v923 = vadd.f32 %v913, %v921
  %v924 = vtanh.pop %v923
  %926 = vrot.lane.b32.xlu0 %v924, 32
  %v927 = vpop.permute.xlu0 %926
  %v929 = vmul.f32 %v907, %v927
  %v930 = vxor.u32 %v901, 2147483648
  %v931 = vmul.f32 %v930, 1.442695
  %v932 = vpow.pop %v931
  %v933 = vadd.f32 %v932, 1.0
  %v934 = vrcp.pop %v933
  %v935 = vmul.f32 1.0, %v934
  %v936 = vtanh.pop %v901
  %938 = vrot.lane.b32.xlu0 %v777, 32
  %v939 = vpop.permute.xlu0 %938
  %v941 = vmul.f32 %v935, %v939
  %943 = vrot.lane.b32.xlu0 %v936, 32
  %v944 = vpop.permute.xlu0 %943
  %v946 = vmul.f32 %v935, %v944
  %948 = vrot.lane.b32.xlu0 %v946, 32
  %v949 = vpop.permute.xlu0 %948
  %v951 = vadd.f32 %v941, %v949
  %v952 = vtanh.pop %v951
  %954 = vrot.lane.b32.xlu0 %v952, 32
  %v955 = vpop.permute.xlu0 %954
  %v957 = vmul.f32 %v935, %v955
  %vm958 = vcmp.gt.s32.totalorder %v278, 2
  %vm959 = vcmp.gt.s32.totalorder %v278, 5
  %v960 = vsel %vm958, 1, 0
  %961 = vset.pattern.permute.xlu0 0
  %962 = vperm.xlu0 %961, %v960
  %v963 = vpop.permute.xlu0 %962
  %vm964 = vcmp.eq.s32.totalorder %v963, 1
  %966 = vrot.lane.b32.xlu0 %v774, 64
  %v967 = vpop.permute.xlu0 %966
  %v969 = vsel %vm964, %v929, %v967
  %971 = vrot.lane.b32.xlu0 %v969, 64
  %v972 = vpop.permute.xlu0 %971
  %974 = vst.msk [vmem:[#allocation3] sm:$0xff] %vm273, %v972
  %v975 = vsel %vm964, %v923, %v911
  %977 = vrot.lane.b32.xlu0 %v975, 96
  %v978 = vpop.permute.xlu0 %977
  %980 = vst.msk [vmem:[#allocation4] sm:$0xff] %vm273, %v978
  %v981 = vsel %vm959, 1, 0
  %982 = vset.pattern.permute.xlu0 0
  %983 = vperm.xlu0 %982, %v981
  %v984 = vpop.permute.xlu0 %983
  %vm985 = vcmp.eq.s32.totalorder %v984, 1
  %987 = vrot.lane.b32.xlu0 %v776, 64
  %v988 = vpop.permute.xlu0 %987
  %v990 = vsel %vm985, %v957, %v988
  %992 = vrot.lane.b32.xlu0 %v990, 64
  %v993 = vpop.permute.xlu0 %992
  %995 = vst.msk [vmem:[#allocation5] sm:$0xff] %vm273, %v993
  %v996 = vsel %vm985, %v951, %v939
  %998 = vrot.lane.b32.xlu0 %v996, 96
  %v999 = vpop.permute.xlu0 %998
  %1001 = vst.msk [vmem:[#allocation6] sm:$0xff] %vm273, %v999
  %v1002 = vsel %vm964, %v929, 0.0
  %1004 = vrot.lane.b32.xlu0 %v1002, 64
  %v1005 = vpop.permute.xlu0 %1004
  %s1007 = scalar_lea.vmem %s6, 16
  %1008 = vst.msk [vmem:[%s1007] sm:$0xff] %vm273, %v1005
  %v1009 = vsel %vm985, %v957, 0.0
  %1011 = vrot.lane.b32.xlu0 %v1009, 96
  %v1012 = vpop.permute.xlu0 %1011
  %s1014 = scalar_lea.vmem %s6, 40
  %1015 = vst.msk [vmem:[%s1014] sm:$0xff] %vm522, %v1012
  %s1016 = scalar_lea.vmem [#allocation2], 24
  %v1017 = vld [vmem:[%s1016] sm:$0xf]
  %s1018 = scalar_lea.vmem [#allocation2], 32
  %v1019 = vld [vmem:[%s1018 + $0x4] sm:$0xf]
  %v1020 = vld [vmem:[#allocation3] sm:$0xff]
  %v1021 = vld [vmem:[#allocation4] sm:$0xff]
  %v1022 = vld [vmem:[#allocation5] sm:$0xff]
  %v1023 = vld [vmem:[#allocation6] sm:$0xff]
  %v1024 = vpack.c.bf16 %v1020, %v1020
  %v1025 = vld [vmem:[%s3] sm:$0xf]
  %v1026 = vld [vmem:[%s3 + $0x4] sm:$0xf]
  %v1027 = vld [vmem:[%s3 + $0x8] sm:$0xf]
  %v1028 = vld [vmem:[%s3 + $0xc] sm:$0xf]
  %v1033 = vunpack.c.l.b16 %v1025
  %v1034 = vunpack.c.l.b16 %v1026
  %v1035 = vunpack.c.l.b16 %v1027
  %v1036 = vunpack.c.l.b16 %v1028
  %v1037 = vpack.c.b16 %v1034, %v1033
  %v1038 = vpack.c.b16 %v1036, %v1035
  %v1042 = vsel %vm273, %v1024, 0
  %1044 = vmatprep.subr.bf16.mxu0 0
  %1045 = vmatpush1.bf16.msra.mxu0 0
  %1046 = vmatprep.subr.bf16.mxu0 0
  %1047 = vmatpush1.bf16.msra.mxu0 0
  %1048 = vmatprep.subr.bf16.mxu0 0
  %1049 = vmatpush1.bf16.msra.mxu0 0
  %1050 = vmatprep.subr.bf16.mxu0 0
  %1051 = vmatpush1.bf16.msra.mxu0 0
  %1052 = vmatprep.subr.bf16.mxu0 0
  %1053 = vmatpush1.bf16.msra.mxu0 0
  %1054 = vmatprep.subr.bf16.mxu0 0
  %1055 = vmatpush1.bf16.msra.mxu0 0
  %1056 = vmatprep.subr.bf16.mxu0 0
  %1057 = vmatpush1.bf16.msra.mxu0 %v1038
  %1058 = vmatprep.subr.bf16.mxu0 0
  %1059 = vmatpush1.bf16.msra.mxu0 %v1037
  %1060 = vmatprep.subr.bf16.mxu0 0
  %1061 = vmatpush2.bf16.msra.mxu0 0
  %1062 = vmatprep.subr.bf16.mxu0 0
  %1063 = vmatpush2.bf16.msra.mxu0 0
  %1064 = vmatprep.subr.bf16.mxu0 0
  %1065 = vmatpush2.bf16.msra.mxu0 0
  %1066 = vmatprep.subr.bf16.mxu0 0
  %1067 = vmatpush2.bf16.msra.mxu0 0
  %1068 = vmatprep.subr.bf16.mxu0 0
  %1069 = vmatpush2.bf16.msra.mxu0 0
  %1070 = vmatprep.subr.bf16.mxu0 0
  %1071 = vmatpush2.bf16.msra.mxu0 0
  %1072 = vmatprep.subr.bf16.mxu0 0
  %1073 = vmatpush2.bf16.msra.mxu0 0
  %1074 = vmatprep.subr.bf16.mxu0 0
  %1075 = vmatpush2.bf16.msra.mxu0 0
  %1076 = vmatprep.mubr.bf16.mxu0 0
  %1077 = vmatmul.mubr.bf16.gmra.mxu0 %v1042
  %v1078 = vpop.f32.mrf.mxu0
  %v1079 = vadd.f32 0.0, %v1078
  %v1080 = vpop.f32.mrf.mxu0
  %v1081 = vpop.f32.mrf.mxu0
  %v1082 = vpop.f32.mrf.mxu0
  %1083 = vdwg.mxu0
  %v1084 = vunpack.c.l.bf16 %v1017
  %v1085 = vadd.f32 %v1084, %v1079
  %v1086 = vpack.c.bf16 %v1022, %v1022
  %v1087 = vld [vmem:[%s4] sm:$0xf]
  %v1088 = vld [vmem:[%s4 + $0x4] sm:$0xf]
  %v1089 = vld [vmem:[%s4 + $0x8] sm:$0xf]
  %v1090 = vld [vmem:[%s4 + $0xc] sm:$0xf]
  %v1095 = vunpack.c.l.b16 %v1087
  %v1096 = vunpack.c.l.b16 %v1088
  %v1097 = vunpack.c.l.b16 %v1089
  %v1098 = vunpack.c.l.b16 %v1090
  %v1099 = vpack.c.b16 %v1096, %v1095
  %v1100 = vpack.c.b16 %v1098, %v1097
  %v1104 = vsel %vm273, %v1086, 0
  %1106 = vmatprep.subr.bf16.mxu0 0
  %1107 = vmatpush1.bf16.msra.mxu0 0
  %1108 = vmatprep.subr.bf16.mxu0 0
  %1109 = vmatpush1.bf16.msra.mxu0 0
  %1110 = vmatprep.subr.bf16.mxu0 0
  %1111 = vmatpush1.bf16.msra.mxu0 0
  %1112 = vmatprep.subr.bf16.mxu0 0
  %1113 = vmatpush1.bf16.msra.mxu0 0
  %1114 = vmatprep.subr.bf16.mxu0 0
  %1115 = vmatpush1.bf16.msra.mxu0 0
  %1116 = vmatprep.subr.bf16.mxu0 0
  %1117 = vmatpush1.bf16.msra.mxu0 0
  %1118 = vmatprep.subr.bf16.mxu0 0
  %1119 = vmatpush1.bf16.msra.mxu0 %v1100
  %1120 = vmatprep.subr.bf16.mxu0 0
  %1121 = vmatpush1.bf16.msra.mxu0 %v1099
  %1122 = vmatprep.subr.bf16.mxu0 0
  %1123 = vmatpush2.bf16.msra.mxu0 0
  %1124 = vmatprep.subr.bf16.mxu0 0
  %1125 = vmatpush2.bf16.msra.mxu0 0
  %1126 = vmatprep.subr.bf16.mxu0 0
  %1127 = vmatpush2.bf16.msra.mxu0 0
  %1128 = vmatprep.subr.bf16.mxu0 0
  %1129 = vmatpush2.bf16.msra.mxu0 0
  %1130 = vmatprep.subr.bf16.mxu0 0
  %1131 = vmatpush2.bf16.msra.mxu0 0
  %1132 = vmatprep.subr.bf16.mxu0 0
  %1133 = vmatpush2.bf16.msra.mxu0 0
  %1134 = vmatprep.subr.bf16.mxu0 0
  %1135 = vmatpush2.bf16.msra.mxu0 0
  %1136 = vmatprep.subr.bf16.mxu0 0
  %1137 = vmatpush2.bf16.msra.mxu0 0
  %1138 = vmatprep.mubr.bf16.mxu0 0
  %1139 = vmatmul.mubr.bf16.gmra.mxu0 %v1104
  %v1140 = vpop.f32.mrf.mxu0
  %v1141 = vadd.f32 0.0, %v1140
  %v1142 = vpop.f32.mrf.mxu0
  %v1143 = vpop.f32.mrf.mxu0
  %v1144 = vpop.f32.mrf.mxu0
  %1145 = vdwg.mxu0
  %v1146 = vunpack.c.l.bf16 %v1019
  %v1147 = vadd.f32 %v1146, %v1141
  %v1148 = vxor.u32 %v1085, 2147483648
  %v1149 = vmul.f32 %v1148, 1.442695
  %v1150 = vpow.pop %v1149
  %v1151 = vadd.f32 %v1150, 1.0
  %v1152 = vrcp.pop %v1151
  %v1153 = vmul.f32 1.0, %v1152
  %v1154 = vtanh.pop %v1085
  %1156 = vrot.lane.b32.xlu0 %v1021, 32
  %v1157 = vpop.permute.xlu0 %1156
  %v1159 = vmul.f32 %v1153, %v1157
  %1161 = vrot.lane.b32.xlu0 %v1154, 32
  %v1162 = vpop.permute.xlu0 %1161
  %v1164 = vmul.f32 %v1153, %v1162
  %1166 = vrot.lane.b32.xlu0 %v1164, 32
  %v1167 = vpop.permute.xlu0 %1166
  %v1169 = vadd.f32 %v1159, %v1167
  %v1170 = vtanh.pop %v1169
  %1172 = vrot.lane.b32.xlu0 %v1170, 32
  %v1173 = vpop.permute.xlu0 %1172
  %v1175 = vmul.f32 %v1153, %v1173
  %v1176 = vxor.u32 %v1147, 2147483648
  %v1177 = vmul.f32 %v1176, 1.442695
  %v1178 = vpow.pop %v1177
  %v1179 = vadd.f32 %v1178, 1.0
  %v1180 = vrcp.pop %v1179
  %v1181 = vmul.f32 1.0, %v1180
  %v1182 = vtanh.pop %v1147
  %1184 = vrot.lane.b32.xlu0 %v1023, 32
  %v1185 = vpop.permute.xlu0 %1184
  %v1187 = vmul.f32 %v1181, %v1185
  %1189 = vrot.lane.b32.xlu0 %v1182, 32
  %v1190 = vpop.permute.xlu0 %1189
  %v1192 = vmul.f32 %v1181, %v1190
  %1194 = vrot.lane.b32.xlu0 %v1192, 32
  %v1195 = vpop.permute.xlu0 %1194
  %v1197 = vadd.f32 %v1187, %v1195
  %v1198 = vtanh.pop %v1197
  %1200 = vrot.lane.b32.xlu0 %v1198, 32
  %v1201 = vpop.permute.xlu0 %1200
  %v1203 = vmul.f32 %v1181, %v1201
  %vm1204 = vcmp.gt.s32.totalorder %v278, 3
  %vm1205 = vcmp.gt.s32.totalorder %v278, 4
  %v1206 = vsel %vm1204, 1, 0
  %1207 = vset.pattern.permute.xlu0 0
  %1208 = vperm.xlu0 %1207, %v1206
  %v1209 = vpop.permute.xlu0 %1208
  %vm1210 = vcmp.eq.s32.totalorder %v1209, 1
  %1212 = vrot.lane.b32.xlu0 %v1020, 64
  %v1213 = vpop.permute.xlu0 %1212
  %v1215 = vsel %vm1210, %v1175, %v1213
  %1217 = vrot.lane.b32.xlu0 %v1215, 64
  %v1218 = vpop.permute.xlu0 %1217
  %1220 = vst.msk [vmem:[#allocation3] sm:$0xff] %vm273, %v1218
  %v1221 = vsel %vm1210, %v1169, %v1157
  %1223 = vrot.lane.b32.xlu0 %v1221, 96
  %v1224 = vpop.permute.xlu0 %1223
  %1226 = vst.msk [vmem:[#allocation4] sm:$0xff] %vm273, %v1224
  %v1227 = vsel %vm1205, 1, 0
  %1228 = vset.pattern.permute.xlu0 0
  %1229 = vperm.xlu0 %1228, %v1227
  %v1230 = vpop.permute.xlu0 %1229
  %vm1231 = vcmp.eq.s32.totalorder %v1230, 1
  %1233 = vrot.lane.b32.xlu0 %v1022, 64
  %v1234 = vpop.permute.xlu0 %1233
  %v1236 = vsel %vm1231, %v1203, %v1234
  %1238 = vrot.lane.b32.xlu0 %v1236, 64
  %v1239 = vpop.permute.xlu0 %1238
  %1241 = vst.msk [vmem:[#allocation5] sm:$0xff] %vm273, %v1239
  %v1242 = vsel %vm1231, %v1197, %v1185
  %1244 = vrot.lane.b32.xlu0 %v1242, 96
  %v1245 = vpop.permute.xlu0 %1244
  %1247 = vst.msk [vmem:[#allocation6] sm:$0xff] %vm273, %v1245
  %v1248 = vsel %vm1210, %v1175, 0.0
  %1250 = vrot.lane.b32.xlu0 %v1248, 64
  %v1251 = vpop.permute.xlu0 %1250
  %s1253 = scalar_lea.vmem %s6, 24
  %1254 = vst.msk [vmem:[%s1253] sm:$0xff] %vm273, %v1251
  %v1255 = vsel %vm1231, %v1203, 0.0
  %1257 = vrot.lane.b32.xlu0 %v1255, 96
  %v1258 = vpop.permute.xlu0 %1257
  %s1260 = scalar_lea.vmem %s6, 32
  %1261 = vst.msk [vmem:[%s1260] sm:$0xff] %vm522, %v1258
  %v1262 = vld [vmem:[%s1018] sm:$0xf]
  %v1263 = vld [vmem:[%s1016 + $0x4] sm:$0xf]
  %v1264 = vld [vmem:[#allocation3] sm:$0xff]
  %v1265 = vld [vmem:[#allocation4] sm:$0xff]
  %v1266 = vld [vmem:[#allocation5] sm:$0xff]
  %v1267 = vld [vmem:[#allocation6] sm:$0xff]
  %v1268 = vpack.c.bf16 %v1264, %v1264
  %v1269 = vld [vmem:[%s3] sm:$0xf]
  %v1270 = vld [vmem:[%s3 + $0x4] sm:$0xf]
  %v1271 = vld [vmem:[%s3 + $0x8] sm:$0xf]
  %v1272 = vld [vmem:[%s3 + $0xc] sm:$0xf]
  %v1277 = vunpack.c.l.b16 %v1269
  %v1278 = vunpack.c.l.b16 %v1270
  %v1279 = vunpack.c.l.b16 %v1271
  %v1280 = vunpack.c.l.b16 %v1272
  %v1281 = vpack.c.b16 %v1278, %v1277
  %v1282 = vpack.c.b16 %v1280, %v1279
  %v1286 = vsel %vm273, %v1268, 0
  %1288 = vmatprep.subr.bf16.mxu0 0
  %1289 = vmatpush1.bf16.msra.mxu0 0
  %1290 = vmatprep.subr.bf16.mxu0 0
  %1291 = vmatpush1.bf16.msra.mxu0 0
  %1292 = vmatprep.subr.bf16.mxu0 0
  %1293 = vmatpush1.bf16.msra.mxu0 0
  %1294 = vmatprep.subr.bf16.mxu0 0
  %1295 = vmatpush1.bf16.msra.mxu0 0
  %1296 = vmatprep.subr.bf16.mxu0 0
  %1297 = vmatpush1.bf16.msra.mxu0 0
  %1298 = vmatprep.subr.bf16.mxu0 0
  %1299 = vmatpush1.bf16.msra.mxu0 0
  %1300 = vmatprep.subr.bf16.mxu0 0
  %1301 = vmatpush1.bf16.msra.mxu0 %v1282
  %1302 = vmatprep.subr.bf16.mxu0 0
  %1303 = vmatpush1.bf16.msra.mxu0 %v1281
  %1304 = vmatprep.subr.bf16.mxu0 0
  %1305 = vmatpush2.bf16.msra.mxu0 0
  %1306 = vmatprep.subr.bf16.mxu0 0
  %1307 = vmatpush2.bf16.msra.mxu0 0
  %1308 = vmatprep.subr.bf16.mxu0 0
  %1309 = vmatpush2.bf16.msra.mxu0 0
  %1310 = vmatprep.subr.bf16.mxu0 0
  %1311 = vmatpush2.bf16.msra.mxu0 0
  %1312 = vmatprep.subr.bf16.mxu0 0
  %1313 = vmatpush2.bf16.msra.mxu0 0
  %1314 = vmatprep.subr.bf16.mxu0 0
  %1315 = vmatpush2.bf16.msra.mxu0 0
  %1316 = vmatprep.subr.bf16.mxu0 0
  %1317 = vmatpush2.bf16.msra.mxu0 0
  %1318 = vmatprep.subr.bf16.mxu0 0
  %1319 = vmatpush2.bf16.msra.mxu0 0
  %1320 = vmatprep.mubr.bf16.mxu0 0
  %1321 = vmatmul.mubr.bf16.gmra.mxu0 %v1286
  %v1322 = vpop.f32.mrf.mxu0
  %v1323 = vadd.f32 0.0, %v1322
  %v1324 = vpop.f32.mrf.mxu0
  %v1325 = vpop.f32.mrf.mxu0
  %v1326 = vpop.f32.mrf.mxu0
  %1327 = vdwg.mxu0
  %v1328 = vunpack.c.l.bf16 %v1262
  %v1329 = vadd.f32 %v1328, %v1323
  %v1330 = vpack.c.bf16 %v1266, %v1266
  %v1331 = vld [vmem:[%s4] sm:$0xf]
  %v1332 = vld [vmem:[%s4 + $0x4] sm:$0xf]
  %v1333 = vld [vmem:[%s4 + $0x8] sm:$0xf]
  %v1334 = vld [vmem:[%s4 + $0xc] sm:$0xf]
  %v1339 = vunpack.c.l.b16 %v1331
  %v1340 = vunpack.c.l.b16 %v1332
  %v1341 = vunpack.c.l.b16 %v1333
  %v1342 = vunpack.c.l.b16 %v1334
  %v1343 = vpack.c.b16 %v1340, %v1339
  %v1344 = vpack.c.b16 %v1342, %v1341
  %v1348 = vsel %vm273, %v1330, 0
  %1350 = vmatprep.subr.bf16.mxu0 0
  %1351 = vmatpush1.bf16.msra.mxu0 0
  %1352 = vmatprep.subr.bf16.mxu0 0
  %1353 = vmatpush1.bf16.msra.mxu0 0
  %1354 = vmatprep.subr.bf16.mxu0 0
  %1355 = vmatpush1.bf16.msra.mxu0 0
  %1356 = vmatprep.subr.bf16.mxu0 0
  %1357 = vmatpush1.bf16.msra.mxu0 0
  %1358 = vmatprep.subr.bf16.mxu0 0
  %1359 = vmatpush1.bf16.msra.mxu0 0
  %1360 = vmatprep.subr.bf16.mxu0 0
  %1361 = vmatpush1.bf16.msra.mxu0 0
  %1362 = vmatprep.subr.bf16.mxu0 0
  %1363 = vmatpush1.bf16.msra.mxu0 %v1344
  %1364 = vmatprep.subr.bf16.mxu0 0
  %1365 = vmatpush1.bf16.msra.mxu0 %v1343
  %1366 = vmatprep.subr.bf16.mxu0 0
  %1367 = vmatpush2.bf16.msra.mxu0 0
  %1368 = vmatprep.subr.bf16.mxu0 0
  %1369 = vmatpush2.bf16.msra.mxu0 0
  %1370 = vmatprep.subr.bf16.mxu0 0
  %1371 = vmatpush2.bf16.msra.mxu0 0
  %1372 = vmatprep.subr.bf16.mxu0 0
  %1373 = vmatpush2.bf16.msra.mxu0 0
  %1374 = vmatprep.subr.bf16.mxu0 0
  %1375 = vmatpush2.bf16.msra.mxu0 0
  %1376 = vmatprep.subr.bf16.mxu0 0
  %1377 = vmatpush2.bf16.msra.mxu0 0
  %1378 = vmatprep.subr.bf16.mxu0 0
  %1379 = vmatpush2.bf16.msra.mxu0 0
  %1380 = vmatprep.subr.bf16.mxu0 0
  %1381 = vmatpush2.bf16.msra.mxu0 0
  %1382 = vmatprep.mubr.bf16.mxu0 0
  %1383 = vmatmul.mubr.bf16.gmra.mxu0 %v1348
  %v1384 = vpop.f32.mrf.mxu0
  %v1385 = vadd.f32 0.0, %v1384
  %v1386 = vpop.f32.mrf.mxu0
  %v1387 = vpop.f32.mrf.mxu0
  %v1388 = vpop.f32.mrf.mxu0
  %1389 = vdwg.mxu0
  %v1390 = vunpack.c.l.bf16 %v1263
  %v1391 = vadd.f32 %v1390, %v1385
  %v1392 = vxor.u32 %v1329, 2147483648
  %v1393 = vmul.f32 %v1392, 1.442695
  %v1394 = vpow.pop %v1393
  %v1395 = vadd.f32 %v1394, 1.0
  %v1396 = vrcp.pop %v1395
  %v1397 = vmul.f32 1.0, %v1396
  %v1398 = vtanh.pop %v1329
  %1400 = vrot.lane.b32.xlu0 %v1265, 32
  %v1401 = vpop.permute.xlu0 %1400
  %v1403 = vmul.f32 %v1397, %v1401
  %1405 = vrot.lane.b32.xlu0 %v1398, 32
  %v1406 = vpop.permute.xlu0 %1405
  %v1408 = vmul.f32 %v1397, %v1406
  %1410 = vrot.lane.b32.xlu0 %v1408, 32
  %v1411 = vpop.permute.xlu0 %1410
  %v1413 = vadd.f32 %v1403, %v1411
  %v1414 = vtanh.pop %v1413
  %1416 = vrot.lane.b32.xlu0 %v1414, 32
  %v1417 = vpop.permute.xlu0 %1416
  %v1419 = vmul.f32 %v1397, %v1417
  %v1420 = vxor.u32 %v1391, 2147483648
  %v1421 = vmul.f32 %v1420, 1.442695
  %v1422 = vpow.pop %v1421
  %v1423 = vadd.f32 %v1422, 1.0
  %v1424 = vrcp.pop %v1423
  %v1425 = vmul.f32 1.0, %v1424
  %v1426 = vtanh.pop %v1391
  %1428 = vrot.lane.b32.xlu0 %v1267, 32
  %v1429 = vpop.permute.xlu0 %1428
  %v1431 = vmul.f32 %v1425, %v1429
  %1433 = vrot.lane.b32.xlu0 %v1426, 32
  %v1434 = vpop.permute.xlu0 %1433
  %v1436 = vmul.f32 %v1425, %v1434
  %1438 = vrot.lane.b32.xlu0 %v1436, 32
  %v1439 = vpop.permute.xlu0 %1438
  %v1441 = vadd.f32 %v1431, %v1439
  %v1442 = vtanh.pop %v1441
  %1444 = vrot.lane.b32.xlu0 %v1442, 32
  %v1445 = vpop.permute.xlu0 %1444
  %v1447 = vmul.f32 %v1425, %v1445
  %1449 = vrot.lane.b32.xlu0 %v1264, 64
  %v1450 = vpop.permute.xlu0 %1449
  %v1452 = vsel %vm1231, %v1419, %v1450
  %1454 = vrot.lane.b32.xlu0 %v1452, 64
  %v1455 = vpop.permute.xlu0 %1454
  %1457 = vst.msk [vmem:[#allocation3] sm:$0xff] %vm273, %v1455
  %v1458 = vsel %vm1231, %v1413, %v1401
  %1460 = vrot.lane.b32.xlu0 %v1458, 96
  %v1461 = vpop.permute.xlu0 %1460
  %1463 = vst.msk [vmem:[#allocation4] sm:$0xff] %vm273, %v1461
  %1465 = vrot.lane.b32.xlu0 %v1266, 64
  %v1466 = vpop.permute.xlu0 %1465
  %v1468 = vsel %vm1210, %v1447, %v1466
  %1470 = vrot.lane.b32.xlu0 %v1468, 64
  %v1471 = vpop.permute.xlu0 %1470
  %1473 = vst.msk [vmem:[#allocation5] sm:$0xff] %vm273, %v1471
  %v1474 = vsel %vm1210, %v1441, %v1429
  %1476 = vrot.lane.b32.xlu0 %v1474, 96
  %v1477 = vpop.permute.xlu0 %1476
  %1479 = vst.msk [vmem:[#allocation6] sm:$0xff] %vm273, %v1477
  %v1480 = vsel %vm1231, %v1419, 0.0
  %1482 = vrot.lane.b32.xlu0 %v1480, 64
  %v1483 = vpop.permute.xlu0 %1482
  %1485 = vst.msk [vmem:[%s1260] sm:$0xff] %vm273, %v1483
  %v1486 = vsel %vm1210, %v1447, 0.0
  %1488 = vrot.lane.b32.xlu0 %v1486, 96
  %v1489 = vpop.permute.xlu0 %1488
  %1491 = vst.msk [vmem:[%s1253] sm:$0xff] %vm522, %v1489
  %v1492 = vld [vmem:[%s772] sm:$0xf]
  %v1493 = vld [vmem:[%s770 + $0x4] sm:$0xf]
  %v1494 = vld [vmem:[#allocation3] sm:$0xff]
  %v1495 = vld [vmem:[#allocation4] sm:$0xff]
  %v1496 = vld [vmem:[#allocation5] sm:$0xff]
  %v1497 = vld [vmem:[#allocation6] sm:$0xff]
  %v1498 = vpack.c.bf16 %v1494, %v1494
  %v1499 = vld [vmem:[%s3] sm:$0xf]
  %v1500 = vld [vmem:[%s3 + $0x4] sm:$0xf]
  %v1501 = vld [vmem:[%s3 + $0x8] sm:$0xf]
  %v1502 = vld [vmem:[%s3 + $0xc] sm:$0xf]
  %v1507 = vunpack.c.l.b16 %v1499
  %v1508 = vunpack.c.l.b16 %v1500
  %v1509 = vunpack.c.l.b16 %v1501
  %v1510 = vunpack.c.l.b16 %v1502
  %v1511 = vpack.c.b16 %v1508, %v1507
  %v1512 = vpack.c.b16 %v1510, %v1509
  %v1516 = vsel %vm273, %v1498, 0
  %1518 = vmatprep.subr.bf16.mxu0 0
  %1519 = vmatpush1.bf16.msra.mxu0 0
  %1520 = vmatprep.subr.bf16.mxu0 0
  %1521 = vmatpush1.bf16.msra.mxu0 0
  %1522 = vmatprep.subr.bf16.mxu0 0
  %1523 = vmatpush1.bf16.msra.mxu0 0
  %1524 = vmatprep.subr.bf16.mxu0 0
  %1525 = vmatpush1.bf16.msra.mxu0 0
  %1526 = vmatprep.subr.bf16.mxu0 0
  %1527 = vmatpush1.bf16.msra.mxu0 0
  %1528 = vmatprep.subr.bf16.mxu0 0
  %1529 = vmatpush1.bf16.msra.mxu0 0
  %1530 = vmatprep.subr.bf16.mxu0 0
  %1531 = vmatpush1.bf16.msra.mxu0 %v1512
  %1532 = vmatprep.subr.bf16.mxu0 0
  %1533 = vmatpush1.bf16.msra.mxu0 %v1511
  %1534 = vmatprep.subr.bf16.mxu0 0
  %1535 = vmatpush2.bf16.msra.mxu0 0
  %1536 = vmatprep.subr.bf16.mxu0 0
  %1537 = vmatpush2.bf16.msra.mxu0 0
  %1538 = vmatprep.subr.bf16.mxu0 0
  %1539 = vmatpush2.bf16.msra.mxu0 0
  %1540 = vmatprep.subr.bf16.mxu0 0
  %1541 = vmatpush2.bf16.msra.mxu0 0
  %1542 = vmatprep.subr.bf16.mxu0 0
  %1543 = vmatpush2.bf16.msra.mxu0 0
  %1544 = vmatprep.subr.bf16.mxu0 0
  %1545 = vmatpush2.bf16.msra.mxu0 0
  %1546 = vmatprep.subr.bf16.mxu0 0
  %1547 = vmatpush2.bf16.msra.mxu0 0
  %1548 = vmatprep.subr.bf16.mxu0 0
  %1549 = vmatpush2.bf16.msra.mxu0 0
  %1550 = vmatprep.mubr.bf16.mxu0 0
  %1551 = vmatmul.mubr.bf16.gmra.mxu0 %v1516
  %v1552 = vpop.f32.mrf.mxu0
  %v1553 = vadd.f32 0.0, %v1552
  %v1554 = vpop.f32.mrf.mxu0
  %v1555 = vpop.f32.mrf.mxu0
  %v1556 = vpop.f32.mrf.mxu0
  %1557 = vdwg.mxu0
  %v1558 = vunpack.c.l.bf16 %v1492
  %v1559 = vadd.f32 %v1558, %v1553
  %v1560 = vpack.c.bf16 %v1496, %v1496
  %v1561 = vld [vmem:[%s4] sm:$0xf]
  %v1562 = vld [vmem:[%s4 + $0x4] sm:$0xf]
  %v1563 = vld [vmem:[%s4 + $0x8] sm:$0xf]
  %v1564 = vld [vmem:[%s4 + $0xc] sm:$0xf]
  %v1569 = vunpack.c.l.b16 %v1561
  %v1570 = vunpack.c.l.b16 %v1562
  %v1571 = vunpack.c.l.b16 %v1563
  %v1572 = vunpack.c.l.b16 %v1564
  %v1573 = vpack.c.b16 %v1570, %v1569
  %v1574 = vpack.c.b16 %v1572, %v1571
  %v1578 = vsel %vm273, %v1560, 0
  %1580 = vmatprep.subr.bf16.mxu0 0
  %1581 = vmatpush1.bf16.msra.mxu0 0
  %1582 = vmatprep.subr.bf16.mxu0 0
  %1583 = vmatpush1.bf16.msra.mxu0 0
  %1584 = vmatprep.subr.bf16.mxu0 0
  %1585 = vmatpush1.bf16.msra.mxu0 0
  %1586 = vmatprep.subr.bf16.mxu0 0
  %1587 = vmatpush1.bf16.msra.mxu0 0
  %1588 = vmatprep.subr.bf16.mxu0 0
  %1589 = vmatpush1.bf16.msra.mxu0 0
  %1590 = vmatprep.subr.bf16.mxu0 0
  %1591 = vmatpush1.bf16.msra.mxu0 0
  %1592 = vmatprep.subr.bf16.mxu0 0
  %1593 = vmatpush1.bf16.msra.mxu0 %v1574
  %1594 = vmatprep.subr.bf16.mxu0 0
  %1595 = vmatpush1.bf16.msra.mxu0 %v1573
  %1596 = vmatprep.subr.bf16.mxu0 0
  %1597 = vmatpush2.bf16.msra.mxu0 0
  %1598 = vmatprep.subr.bf16.mxu0 0
  %1599 = vmatpush2.bf16.msra.mxu0 0
  %1600 = vmatprep.subr.bf16.mxu0 0
  %1601 = vmatpush2.bf16.msra.mxu0 0
  %1602 = vmatprep.subr.bf16.mxu0 0
  %1603 = vmatpush2.bf16.msra.mxu0 0
  %1604 = vmatprep.subr.bf16.mxu0 0
  %1605 = vmatpush2.bf16.msra.mxu0 0
  %1606 = vmatprep.subr.bf16.mxu0 0
  %1607 = vmatpush2.bf16.msra.mxu0 0
  %1608 = vmatprep.subr.bf16.mxu0 0
  %1609 = vmatpush2.bf16.msra.mxu0 0
  %1610 = vmatprep.subr.bf16.mxu0 0
  %1611 = vmatpush2.bf16.msra.mxu0 0
  %1612 = vmatprep.mubr.bf16.mxu0 0
  %1613 = vmatmul.mubr.bf16.gmra.mxu0 %v1578
  %v1614 = vpop.f32.mrf.mxu0
  %v1615 = vadd.f32 0.0, %v1614
  %v1616 = vpop.f32.mrf.mxu0
  %v1617 = vpop.f32.mrf.mxu0
  %v1618 = vpop.f32.mrf.mxu0
  %1619 = vdwg.mxu0
  %v1620 = vunpack.c.l.bf16 %v1493
  %v1621 = vadd.f32 %v1620, %v1615
  %v1622 = vxor.u32 %v1559, 2147483648
  %v1623 = vmul.f32 %v1622, 1.442695
  %v1624 = vpow.pop %v1623
  %v1625 = vadd.f32 %v1624, 1.0
  %v1626 = vrcp.pop %v1625
  %v1627 = vmul.f32 1.0, %v1626
  %v1628 = vtanh.pop %v1559
  %1630 = vrot.lane.b32.xlu0 %v1495, 32
  %v1631 = vpop.permute.xlu0 %1630
  %v1633 = vmul.f32 %v1627, %v1631
  %1635 = vrot.lane.b32.xlu0 %v1628, 32
  %v1636 = vpop.permute.xlu0 %1635
  %v1638 = vmul.f32 %v1627, %v1636
  %1640 = vrot.lane.b32.xlu0 %v1638, 32
  %v1641 = vpop.permute.xlu0 %1640
  %v1643 = vadd.f32 %v1633, %v1641
  %v1644 = vtanh.pop %v1643
  %1646 = vrot.lane.b32.xlu0 %v1644, 32
  %v1647 = vpop.permute.xlu0 %1646
  %v1649 = vmul.f32 %v1627, %v1647
  %v1650 = vxor.u32 %v1621, 2147483648
  %v1651 = vmul.f32 %v1650, 1.442695
  %v1652 = vpow.pop %v1651
  %v1653 = vadd.f32 %v1652, 1.0
  %v1654 = vrcp.pop %v1653
  %v1655 = vmul.f32 1.0, %v1654
  %v1656 = vtanh.pop %v1621
  %1658 = vrot.lane.b32.xlu0 %v1497, 32
  %v1659 = vpop.permute.xlu0 %1658
  %v1661 = vmul.f32 %v1655, %v1659
  %1663 = vrot.lane.b32.xlu0 %v1656, 32
  %v1664 = vpop.permute.xlu0 %1663
  %v1666 = vmul.f32 %v1655, %v1664
  %1668 = vrot.lane.b32.xlu0 %v1666, 32
  %v1669 = vpop.permute.xlu0 %1668
  %v1671 = vadd.f32 %v1661, %v1669
  %v1672 = vtanh.pop %v1671
  %1674 = vrot.lane.b32.xlu0 %v1672, 32
  %v1675 = vpop.permute.xlu0 %1674
  %v1677 = vmul.f32 %v1655, %v1675
  %1679 = vrot.lane.b32.xlu0 %v1494, 64
  %v1680 = vpop.permute.xlu0 %1679
  %v1682 = vsel %vm985, %v1649, %v1680
  %1684 = vrot.lane.b32.xlu0 %v1682, 64
  %v1685 = vpop.permute.xlu0 %1684
  %1687 = vst.msk [vmem:[#allocation3] sm:$0xff] %vm273, %v1685
  %v1688 = vsel %vm985, %v1643, %v1631
  %1690 = vrot.lane.b32.xlu0 %v1688, 96
  %v1691 = vpop.permute.xlu0 %1690
  %1693 = vst.msk [vmem:[#allocation4] sm:$0xff] %vm273, %v1691
  %1695 = vrot.lane.b32.xlu0 %v1496, 64
  %v1696 = vpop.permute.xlu0 %1695
  %v1698 = vsel %vm964, %v1677, %v1696
  %1700 = vrot.lane.b32.xlu0 %v1698, 64
  %v1701 = vpop.permute.xlu0 %1700
  %1703 = vst.msk [vmem:[#allocation5] sm:$0xff] %vm273, %v1701
  %v1704 = vsel %vm964, %v1671, %v1659
  %1706 = vrot.lane.b32.xlu0 %v1704, 96
  %v1707 = vpop.permute.xlu0 %1706
  %1709 = vst.msk [vmem:[#allocation6] sm:$0xff] %vm273, %v1707
  %v1710 = vsel %vm985, %v1649, 0.0
  %1712 = vrot.lane.b32.xlu0 %v1710, 64
  %v1713 = vpop.permute.xlu0 %1712
  %1715 = vst.msk [vmem:[%s1014] sm:$0xff] %vm273, %v1713
  %v1716 = vsel %vm964, %v1677, 0.0
  %1718 = vrot.lane.b32.xlu0 %v1716, 96
  %v1719 = vpop.permute.xlu0 %1718
  %1721 = vst.msk [vmem:[%s1007] sm:$0xff] %vm522, %v1719
  %v1722 = vld [vmem:[%s526] sm:$0xf]
  %v1723 = vld [vmem:[%s524 + $0x4] sm:$0xf]
  %v1724 = vld [vmem:[#allocation3] sm:$0xff]
  %v1725 = vld [vmem:[#allocation4] sm:$0xff]
  %v1726 = vld [vmem:[#allocation5] sm:$0xff]
  %v1727 = vld [vmem:[#allocation6] sm:$0xff]
  %v1728 = vpack.c.bf16 %v1724, %v1724
  %v1729 = vld [vmem:[%s3] sm:$0xf]
  %v1730 = vld [vmem:[%s3 + $0x4] sm:$0xf]
  %v1731 = vld [vmem:[%s3 + $0x8] sm:$0xf]
  %v1732 = vld [vmem:[%s3 + $0xc] sm:$0xf]
  %v1737 = vunpack.c.l.b16 %v1729
  %v1738 = vunpack.c.l.b16 %v1730
  %v1739 = vunpack.c.l.b16 %v1731
  %v1740 = vunpack.c.l.b16 %v1732
  %v1741 = vpack.c.b16 %v1738, %v1737
  %v1742 = vpack.c.b16 %v1740, %v1739
  %v1746 = vsel %vm273, %v1728, 0
  %1748 = vmatprep.subr.bf16.mxu0 0
  %1749 = vmatpush1.bf16.msra.mxu0 0
  %1750 = vmatprep.subr.bf16.mxu0 0
  %1751 = vmatpush1.bf16.msra.mxu0 0
  %1752 = vmatprep.subr.bf16.mxu0 0
  %1753 = vmatpush1.bf16.msra.mxu0 0
  %1754 = vmatprep.subr.bf16.mxu0 0
  %1755 = vmatpush1.bf16.msra.mxu0 0
  %1756 = vmatprep.subr.bf16.mxu0 0
  %1757 = vmatpush1.bf16.msra.mxu0 0
  %1758 = vmatprep.subr.bf16.mxu0 0
  %1759 = vmatpush1.bf16.msra.mxu0 0
  %1760 = vmatprep.subr.bf16.mxu0 0
  %1761 = vmatpush1.bf16.msra.mxu0 %v1742
  %1762 = vmatprep.subr.bf16.mxu0 0
  %1763 = vmatpush1.bf16.msra.mxu0 %v1741
  %1764 = vmatprep.subr.bf16.mxu0 0
  %1765 = vmatpush2.bf16.msra.mxu0 0
  %1766 = vmatprep.subr.bf16.mxu0 0
  %1767 = vmatpush2.bf16.msra.mxu0 0
  %1768 = vmatprep.subr.bf16.mxu0 0
  %1769 = vmatpush2.bf16.msra.mxu0 0
  %1770 = vmatprep.subr.bf16.mxu0 0
  %1771 = vmatpush2.bf16.msra.mxu0 0
  %1772 = vmatprep.subr.bf16.mxu0 0
  %1773 = vmatpush2.bf16.msra.mxu0 0
  %1774 = vmatprep.subr.bf16.mxu0 0
  %1775 = vmatpush2.bf16.msra.mxu0 0
  %1776 = vmatprep.subr.bf16.mxu0 0
  %1777 = vmatpush2.bf16.msra.mxu0 0
  %1778 = vmatprep.subr.bf16.mxu0 0
  %1779 = vmatpush2.bf16.msra.mxu0 0
  %1780 = vmatprep.mubr.bf16.mxu0 0
  %1781 = vmatmul.mubr.bf16.gmra.mxu0 %v1746
  %v1782 = vpop.f32.mrf.mxu0
  %v1783 = vadd.f32 0.0, %v1782
  %v1784 = vpop.f32.mrf.mxu0
  %v1785 = vpop.f32.mrf.mxu0
  %v1786 = vpop.f32.mrf.mxu0
  %1787 = vdwg.mxu0
  %v1788 = vunpack.c.l.bf16 %v1722
  %v1789 = vadd.f32 %v1788, %v1783
  %v1790 = vpack.c.bf16 %v1726, %v1726
  %v1791 = vld [vmem:[%s4] sm:$0xf]
  %v1792 = vld [vmem:[%s4 + $0x4] sm:$0xf]
  %v1793 = vld [vmem:[%s4 + $0x8] sm:$0xf]
  %v1794 = vld [vmem:[%s4 + $0xc] sm:$0xf]
  %v1799 = vunpack.c.l.b16 %v1791
  %v1800 = vunpack.c.l.b16 %v1792
  %v1801 = vunpack.c.l.b16 %v1793
  %v1802 = vunpack.c.l.b16 %v1794
  %v1803 = vpack.c.b16 %v1800, %v1799
  %v1804 = vpack.c.b16 %v1802, %v1801
  %v1808 = vsel %vm273, %v1790, 0
  %1810 = vmatprep.subr.bf16.mxu0 0
  %1811 = vmatpush1.bf16.msra.mxu0 0
  %1812 = vmatprep.subr.bf16.mxu0 0
  %1813 = vmatpush1.bf16.msra.mxu0 0
  %1814 = vmatprep.subr.bf16.mxu0 0
  %1815 = vmatpush1.bf16.msra.mxu0 0
  %1816 = vmatprep.subr.bf16.mxu0 0
  %1817 = vmatpush1.bf16.msra.mxu0 0
  %1818 = vmatprep.subr.bf16.mxu0 0
  %1819 = vmatpush1.bf16.msra.mxu0 0
  %1820 = vmatprep.subr.bf16.mxu0 0
  %1821 = vmatpush1.bf16.msra.mxu0 0
  %1822 = vmatprep.subr.bf16.mxu0 0
  %1823 = vmatpush1.bf16.msra.mxu0 %v1804
  %1824 = vmatprep.subr.bf16.mxu0 0
  %1825 = vmatpush1.bf16.msra.mxu0 %v1803
  %1826 = vmatprep.subr.bf16.mxu0 0
  %1827 = vmatpush2.bf16.msra.mxu0 0
  %1828 = vmatprep.subr.bf16.mxu0 0
  %1829 = vmatpush2.bf16.msra.mxu0 0
  %1830 = vmatprep.subr.bf16.mxu0 0
  %1831 = vmatpush2.bf16.msra.mxu0 0
  %1832 = vmatprep.subr.bf16.mxu0 0
  %1833 = vmatpush2.bf16.msra.mxu0 0
  %1834 = vmatprep.subr.bf16.mxu0 0
  %1835 = vmatpush2.bf16.msra.mxu0 0
  %1836 = vmatprep.subr.bf16.mxu0 0
  %1837 = vmatpush2.bf16.msra.mxu0 0
  %1838 = vmatprep.subr.bf16.mxu0 0
  %1839 = vmatpush2.bf16.msra.mxu0 0
  %1840 = vmatprep.subr.bf16.mxu0 0
  %1841 = vmatpush2.bf16.msra.mxu0 0
  %1842 = vmatprep.mubr.bf16.mxu0 0
  %1843 = vmatmul.mubr.bf16.gmra.mxu0 %v1808
  %v1844 = vpop.f32.mrf.mxu0
  %v1845 = vadd.f32 0.0, %v1844
  %v1846 = vpop.f32.mrf.mxu0
  %v1847 = vpop.f32.mrf.mxu0
  %v1848 = vpop.f32.mrf.mxu0
  %1849 = vdwg.mxu0
  %v1850 = vunpack.c.l.bf16 %v1723
  %v1851 = vadd.f32 %v1850, %v1845
  %v1852 = vxor.u32 %v1789, 2147483648
  %v1853 = vmul.f32 %v1852, 1.442695
  %v1854 = vpow.pop %v1853
  %v1855 = vadd.f32 %v1854, 1.0
  %v1856 = vrcp.pop %v1855
  %v1857 = vmul.f32 1.0, %v1856
  %v1858 = vtanh.pop %v1789
  %1860 = vrot.lane.b32.xlu0 %v1725, 32
  %v1861 = vpop.permute.xlu0 %1860
  %v1863 = vmul.f32 %v1857, %v1861
  %1865 = vrot.lane.b32.xlu0 %v1858, 32
  %v1866 = vpop.permute.xlu0 %1865
  %v1868 = vmul.f32 %v1857, %v1866
  %1870 = vrot.lane.b32.xlu0 %v1868, 32
  %v1871 = vpop.permute.xlu0 %1870
  %v1873 = vadd.f32 %v1863, %v1871
  %v1874 = vtanh.pop %v1873
  %1876 = vrot.lane.b32.xlu0 %v1874, 32
  %v1877 = vpop.permute.xlu0 %1876
  %v1879 = vmul.f32 %v1857, %v1877
  %v1880 = vxor.u32 %v1851, 2147483648
  %v1881 = vmul.f32 %v1880, 1.442695
  %v1882 = vpow.pop %v1881
  %v1883 = vadd.f32 %v1882, 1.0
  %v1884 = vrcp.pop %v1883
  %v1885 = vmul.f32 1.0, %v1884
  %v1886 = vtanh.pop %v1851
  %1888 = vrot.lane.b32.xlu0 %v1727, 32
  %v1889 = vpop.permute.xlu0 %1888
  %v1891 = vmul.f32 %v1885, %v1889
  %1893 = vrot.lane.b32.xlu0 %v1886, 32
  %v1894 = vpop.permute.xlu0 %1893
  %v1896 = vmul.f32 %v1885, %v1894
  %1898 = vrot.lane.b32.xlu0 %v1896, 32
  %v1899 = vpop.permute.xlu0 %1898
  %v1901 = vadd.f32 %v1891, %v1899
  %v1902 = vtanh.pop %v1901
  %1904 = vrot.lane.b32.xlu0 %v1902, 32
  %v1905 = vpop.permute.xlu0 %1904
  %v1907 = vmul.f32 %v1885, %v1905
  %1909 = vrot.lane.b32.xlu0 %v1724, 64
  %v1910 = vpop.permute.xlu0 %1909
  %v1912 = vsel %vm739, %v1879, %v1910
  %1914 = vrot.lane.b32.xlu0 %v1912, 64
  %v1915 = vpop.permute.xlu0 %1914
  %1917 = vst.msk [vmem:[#allocation3] sm:$0xff] %vm273, %v1915
  %v1918 = vsel %vm739, %v1873, %v1861
  %1920 = vrot.lane.b32.xlu0 %v1918, 96
  %v1921 = vpop.permute.xlu0 %1920
  %1923 = vst.msk [vmem:[#allocation4] sm:$0xff] %vm273, %v1921
  %1925 = vrot.lane.b32.xlu0 %v1726, 64
  %v1926 = vpop.permute.xlu0 %1925
  %v1928 = vsel %vm718, %v1907, %v1926
  %1930 = vrot.lane.b32.xlu0 %v1928, 64
  %v1931 = vpop.permute.xlu0 %1930
  %1933 = vst.msk [vmem:[#allocation5] sm:$0xff] %vm273, %v1931
  %v1934 = vsel %vm718, %v1901, %v1889
  %1936 = vrot.lane.b32.xlu0 %v1934, 96
  %v1937 = vpop.permute.xlu0 %1936
  %1939 = vst.msk [vmem:[#allocation6] sm:$0xff] %vm273, %v1937
  %v1940 = vsel %vm739, %v1879, 0.0
  %1942 = vrot.lane.b32.xlu0 %v1940, 64
  %v1943 = vpop.permute.xlu0 %1942
  %1945 = vst.msk [vmem:[%s768] sm:$0xff] %vm273, %v1943
  %v1946 = vsel %vm718, %v1907, 0.0
  %1948 = vrot.lane.b32.xlu0 %v1946, 96
  %v1949 = vpop.permute.xlu0 %1948
  %1951 = vst.msk [vmem:[%s761] sm:$0xff] %vm522, %v1949
  %v1952 = vld [vmem:[%s280] sm:$0xf]
  %v1953 = vld [vmem:[#allocation2 + $0x4] sm:$0xf]
  %v1954 = vld [vmem:[#allocation3] sm:$0xff]
  %v1955 = vld [vmem:[#allocation4] sm:$0xff]
  %v1956 = vld [vmem:[#allocation5] sm:$0xff]
  %v1957 = vld [vmem:[#allocation6] sm:$0xff]
  %v1958 = vpack.c.bf16 %v1954, %v1954
  %v1959 = vld [vmem:[%s3] sm:$0xf]
  %v1960 = vld [vmem:[%s3 + $0x4] sm:$0xf]
  %v1961 = vld [vmem:[%s3 + $0x8] sm:$0xf]
  %v1962 = vld [vmem:[%s3 + $0xc] sm:$0xf]
  %v1967 = vunpack.c.l.b16 %v1959
  %v1968 = vunpack.c.l.b16 %v1960
  %v1969 = vunpack.c.l.b16 %v1961
  %v1970 = vunpack.c.l.b16 %v1962
  %v1971 = vpack.c.b16 %v1968, %v1967
  %v1972 = vpack.c.b16 %v1970, %v1969
  %v1976 = vsel %vm273, %v1958, 0
  %1978 = vmatprep.subr.bf16.mxu0 0
  %1979 = vmatpush1.bf16.msra.mxu0 0
  %1980 = vmatprep.subr.bf16.mxu0 0
  %1981 = vmatpush1.bf16.msra.mxu0 0
  %1982 = vmatprep.subr.bf16.mxu0 0
  %1983 = vmatpush1.bf16.msra.mxu0 0
  %1984 = vmatprep.subr.bf16.mxu0 0
  %1985 = vmatpush1.bf16.msra.mxu0 0
  %1986 = vmatprep.subr.bf16.mxu0 0
  %1987 = vmatpush1.bf16.msra.mxu0 0
  %1988 = vmatprep.subr.bf16.mxu0 0
  %1989 = vmatpush1.bf16.msra.mxu0 0
  %1990 = vmatprep.subr.bf16.mxu0 0
  %1991 = vmatpush1.bf16.msra.mxu0 %v1972
  %1992 = vmatprep.subr.bf16.mxu0 0
  %1993 = vmatpush1.bf16.msra.mxu0 %v1971
  %1994 = vmatprep.subr.bf16.mxu0 0
  %1995 = vmatpush2.bf16.msra.mxu0 0
  %1996 = vmatprep.subr.bf16.mxu0 0
  %1997 = vmatpush2.bf16.msra.mxu0 0
  %1998 = vmatprep.subr.bf16.mxu0 0
  %1999 = vmatpush2.bf16.msra.mxu0 0
  %2000 = vmatprep.subr.bf16.mxu0 0
  %2001 = vmatpush2.bf16.msra.mxu0 0
  %2002 = vmatprep.subr.bf16.mxu0 0
  %2003 = vmatpush2.bf16.msra.mxu0 0
  %2004 = vmatprep.subr.bf16.mxu0 0
  %2005 = vmatpush2.bf16.msra.mxu0 0
  %2006 = vmatprep.subr.bf16.mxu0 0
  %2007 = vmatpush2.bf16.msra.mxu0 0
  %2008 = vmatprep.subr.bf16.mxu0 0
  %2009 = vmatpush2.bf16.msra.mxu0 0
  %2010 = vmatprep.mubr.bf16.mxu0 0
  %2011 = vmatmul.mubr.bf16.gmra.mxu0 %v1976
  %v2012 = vpop.f32.mrf.mxu0
  %v2013 = vadd.f32 0.0, %v2012
  %v2014 = vpop.f32.mrf.mxu0
  %v2015 = vpop.f32.mrf.mxu0
  %v2016 = vpop.f32.mrf.mxu0
  %2017 = vdwg.mxu0
  %v2018 = vunpack.c.l.bf16 %v1952
  %v2019 = vadd.f32 %v2018, %v2013
  %v2020 = vpack.c.bf16 %v1956, %v1956
  %v2021 = vld [vmem:[%s4] sm:$0xf]
  %v2022 = vld [vmem:[%s4 + $0x4] sm:$0xf]
  %v2023 = vld [vmem:[%s4 + $0x8] sm:$0xf]
  %v2024 = vld [vmem:[%s4 + $0xc] sm:$0xf]
  %v2029 = vunpack.c.l.b16 %v2021
  %v2030 = vunpack.c.l.b16 %v2022
  %v2031 = vunpack.c.l.b16 %v2023
  %v2032 = vunpack.c.l.b16 %v2024
  %v2033 = vpack.c.b16 %v2030, %v2029
  %v2034 = vpack.c.b16 %v2032, %v2031
  %v2038 = vsel %vm273, %v2020, 0
  %2040 = vmatprep.subr.bf16.mxu0 0
  %2041 = vmatpush1.bf16.msra.mxu0 0
  %2042 = vmatprep.subr.bf16.mxu0 0
  %2043 = vmatpush1.bf16.msra.mxu0 0
  %2044 = vmatprep.subr.bf16.mxu0 0
  %2045 = vmatpush1.bf16.msra.mxu0 0
  %2046 = vmatprep.subr.bf16.mxu0 0
  %2047 = vmatpush1.bf16.msra.mxu0 0
  %2048 = vmatprep.subr.bf16.mxu0 0
  %2049 = vmatpush1.bf16.msra.mxu0 0
  %2050 = vmatprep.subr.bf16.mxu0 0
  %2051 = vmatpush1.bf16.msra.mxu0 0
  %2052 = vmatprep.subr.bf16.mxu0 0
  %2053 = vmatpush1.bf16.msra.mxu0 %v2034
  %2054 = vmatprep.subr.bf16.mxu0 0
  %2055 = vmatpush1.bf16.msra.mxu0 %v2033
  %2056 = vmatprep.subr.bf16.mxu0 0
  %2057 = vmatpush2.bf16.msra.mxu0 0
  %2058 = vmatprep.subr.bf16.mxu0 0
  %2059 = vmatpush2.bf16.msra.mxu0 0
  %2060 = vmatprep.subr.bf16.mxu0 0
  %2061 = vmatpush2.bf16.msra.mxu0 0
  %2062 = vmatprep.subr.bf16.mxu0 0
  %2063 = vmatpush2.bf16.msra.mxu0 0
  %2064 = vmatprep.subr.bf16.mxu0 0
  %2065 = vmatpush2.bf16.msra.mxu0 0
  %2066 = vmatprep.subr.bf16.mxu0 0
  %2067 = vmatpush2.bf16.msra.mxu0 0
  %2068 = vmatprep.subr.bf16.mxu0 0
  %2069 = vmatpush2.bf16.msra.mxu0 0
  %2070 = vmatprep.subr.bf16.mxu0 0
  %2071 = vmatpush2.bf16.msra.mxu0 0
  %2072 = vmatprep.mubr.bf16.mxu0 0
  %2073 = vmatmul.mubr.bf16.gmra.mxu0 %v2038
  %v2074 = vpop.f32.mrf.mxu0
  %v2075 = vadd.f32 0.0, %v2074
  %v2076 = vpop.f32.mrf.mxu0
  %v2077 = vpop.f32.mrf.mxu0
  %v2078 = vpop.f32.mrf.mxu0
  %2079 = vdwg.mxu0
  %v2080 = vunpack.c.l.bf16 %v1953
  %v2081 = vadd.f32 %v2080, %v2075
  %v2082 = vxor.u32 %v2019, 2147483648
  %v2083 = vmul.f32 %v2082, 1.442695
  %v2084 = vpow.pop %v2083
  %v2085 = vadd.f32 %v2084, 1.0
  %v2086 = vrcp.pop %v2085
  %v2087 = vmul.f32 1.0, %v2086
  %v2088 = vtanh.pop %v2019
  %2090 = vrot.lane.b32.xlu0 %v1955, 32
  %v2091 = vpop.permute.xlu0 %2090
  %v2093 = vmul.f32 %v2087, %v2091
  %2095 = vrot.lane.b32.xlu0 %v2088, 32
  %v2096 = vpop.permute.xlu0 %2095
  %v2098 = vmul.f32 %v2087, %v2096
  %2100 = vrot.lane.b32.xlu0 %v2098, 32
  %v2101 = vpop.permute.xlu0 %2100
  %v2103 = vadd.f32 %v2093, %v2101
  %v2104 = vtanh.pop %v2103
  %2106 = vrot.lane.b32.xlu0 %v2104, 32
  %v2107 = vpop.permute.xlu0 %2106
  %v2109 = vmul.f32 %v2087, %v2107
  %v2110 = vxor.u32 %v2081, 2147483648
  %v2111 = vmul.f32 %v2110, 1.442695
  %v2112 = vpow.pop %v2111
  %v2113 = vadd.f32 %v2112, 1.0
  %v2114 = vrcp.pop %v2113
  %v2115 = vmul.f32 1.0, %v2114
  %v2116 = vtanh.pop %v2081
  %2118 = vrot.lane.b32.xlu0 %v1957, 32
  %v2119 = vpop.permute.xlu0 %2118
  %v2121 = vmul.f32 %v2115, %v2119
  %2123 = vrot.lane.b32.xlu0 %v2116, 32
  %v2124 = vpop.permute.xlu0 %2123
  %v2126 = vmul.f32 %v2115, %v2124
  %2128 = vrot.lane.b32.xlu0 %v2126, 32
  %v2129 = vpop.permute.xlu0 %2128
  %v2131 = vadd.f32 %v2121, %v2129
  %v2132 = vtanh.pop %v2131
  %2134 = vrot.lane.b32.xlu0 %v2132, 32
  %v2135 = vpop.permute.xlu0 %2134
  %v2137 = vmul.f32 %v2115, %v2135
  %2139 = vrot.lane.b32.xlu0 %v1954, 64
  %v2140 = vpop.permute.xlu0 %2139
  %v2142 = vsel %vm493, %v2109, %v2140
  %2144 = vrot.lane.b32.xlu0 %v2142, 64
  %v2145 = vpop.permute.xlu0 %2144
  %2147 = vst.msk [vmem:[#allocation3] sm:$0xff] %vm273, %v2145
  %v2148 = vsel %vm493, %v2103, %v2091
  %2150 = vrot.lane.b32.xlu0 %v2148, 96
  %v2151 = vpop.permute.xlu0 %2150
  %2153 = vst.msk [vmem:[#allocation4] sm:$0xff] %vm273, %v2151
  %2155 = vrot.lane.b32.xlu0 %v1956, 64
  %v2156 = vpop.permute.xlu0 %2155
  %v2158 = vsel %vm472, %v2137, %v2156
  %2160 = vrot.lane.b32.xlu0 %v2158, 64
  %v2161 = vpop.permute.xlu0 %2160
  %2163 = vst.msk [vmem:[#allocation5] sm:$0xff] %vm273, %v2161
  %v2164 = vsel %vm472, %v2131, %v2119
  %2166 = vrot.lane.b32.xlu0 %v2164, 96
  %v2167 = vpop.permute.xlu0 %2166
  %2169 = vst.msk [vmem:[#allocation6] sm:$0xff] %vm273, %v2167
  %v2170 = vsel %vm493, %v2109, 0.0
  %2172 = vrot.lane.b32.xlu0 %v2170, 64
  %v2173 = vpop.permute.xlu0 %2172
  %2175 = vst.msk [vmem:[%s521] sm:$0xff] %vm273, %v2173
  %v2176 = vsel %vm472, %v2137, 0.0
  %2178 = vrot.lane.b32.xlu0 %v2176, 96
  %v2179 = vpop.permute.xlu0 %2178
  %2181 = vst.msk [vmem:[%s6] sm:$0xff] %vm522, %v2179
  // Predicated region
  $region26: #{lstm_forward.3} parent=0 // pred_check
    _
  $region27: #{lstm_forward.3} parent=0 // pred_check_branch
    %2183 = sbr.rel (0) target = $region29
  $region28: #{lstm_forward.3} parent=0 // pred_region
    _
  $region29: #{lstm_forward.3} parent=0 // pred_fallthru
    _
  // Predicated region
  $region30: #{lstm_forward.3} parent=0 // pred_check
    _
  $region31: #{lstm_forward.3} parent=0 // pred_check_branch
    %2185 = sbr.rel (0) target = $region33
  $region32: #{lstm_forward.3} parent=0 // pred_region
    _
  $region33: #{lstm_forward.3} parent=0 // pred_fallthru
    _

// kernel: lstm_forward.2
$region0: #{lstm_forward.2}
  #allocation0 [shape = 'u32[]', space=smem, size = 0x4, offset = 0x4, fixed_abs, tag = 'smem constant byte address 0x4 - core index']
  #allocation1 [shape = 'u32[144,128]{1,0:T(1,128)}', space=vmem, size = 0x12000, scoped, tag = 'internal scratch']
  #allocation2 [shape = 'bf16[8,8,256]{2,1,0:T(8,128)(2,1)}', space=vmem, size = 0x8000, scoped, tag = 'scratch operand']
  #allocation3 [shape = 'f32[8,32]{1,0:T(8,128)}', space=vmem, size = 0x1000, scoped, tag = 'scratch operand']
  #allocation4 [shape = 'f32[8,32]{1,0:T(8,128)}', space=vmem, size = 0x1000, scoped, tag = 'scratch operand']
  #allocation5 [shape = 'f32[8,32]{1,0:T(8,128)}', space=vmem, size = 0x1000, scoped, tag = 'scratch operand']
  #allocation6 [shape = 'f32[8,32]{1,0:T(8,128)}', space=vmem, size = 0x1000, scoped, tag = 'scratch operand']
  %s0 = inlined_call_operand.vmem [shape: s32[8,1], index: 0, kind: input, shape index: {}]
  %s1 = inlined_call_operand.vmem [shape: bf16[8,8,4], index: 1, kind: input, shape index: {}]
  %s2 = inlined_call_operand.vmem [shape: bf16[4,256], index: 2, kind: input, shape index: {}]
  %s3 = inlined_call_operand.vmem [shape: bf16[32,128], index: 3, kind: input, shape index: {}]
  %s4 = inlined_call_operand.vmem [shape: bf16[32,128], index: 4, kind: input, shape index: {}]
  %s5 = inlined_call_operand.vmem [shape: f32[1,256], index: 5, kind: input, shape index: {}]
  %s6 = inlined_call_operand.vmem [shape: bf16[8,8,64], index: 6, kind: output, shape index: {}]
  %s7 = sld [smem:[#allocation0]]
  $region34: #{lstm_forward.2} parent=0
    _
  %s9 = ssub.s32 1, %s7
  %s10 = scalar_select 0, %s9, %s7
  // Predicated region
  $region2: #{lstm_forward.2} parent=0 // pred_check
    _
  $region3: #{lstm_forward.2} parent=0 // pred_check_branch
    %12 = sbr.rel (0) target = $region5
  $region4: #{lstm_forward.2} parent=0 // pred_region
    _
  $region5: #{lstm_forward.2} parent=0 // pred_fallthru
    _
  // Predicated region
  $region6: #{lstm_forward.2} parent=0 // pred_check
    _
  $region7: #{lstm_forward.2} parent=0 // pred_check_branch
    %14 = sbr.rel (0) target = $region9
  $region8: #{lstm_forward.2} parent=0 // pred_region
    _
  $region9: #{lstm_forward.2} parent=0 // pred_fallthru
    _
  // Predicated region
  $region10: #{lstm_forward.2} parent=0 // pred_check
    _
  $region11: #{lstm_forward.2} parent=0 // pred_check_branch
    %16 = sbr.rel (0) target = $region13
  $region12: #{lstm_forward.2} parent=0 // pred_region
    _
  $region13: #{lstm_forward.2} parent=0 // pred_fallthru
    _
  // Predicated region
  $region14: #{lstm_forward.2} parent=0 // pred_check
    _
  $region15: #{lstm_forward.2} parent=0 // pred_check_branch
    %18 = sbr.rel (0) target = $region17
  $region16: #{lstm_forward.2} parent=0 // pred_region
    _
  $region17: #{lstm_forward.2} parent=0 // pred_fallthru
    _
  // Predicated region
  $region18: #{lstm_forward.2} parent=0 // pred_check
    _
  $region19: #{lstm_forward.2} parent=0 // pred_check_branch
    %20 = sbr.rel (0) target = $region21
  $region20: #{lstm_forward.2} parent=0 // pred_region
    _
  $region21: #{lstm_forward.2} parent=0 // pred_fallthru
    _
  // Predicated region
  $region22: #{lstm_forward.2} parent=0 // pred_check
    _
  $region23: #{lstm_forward.2} parent=0 // pred_check_branch
    %22 = sbr.rel (0) target = $region25
  $region24: #{lstm_forward.2} parent=0 // pred_region
    _
  $region25: #{lstm_forward.2} parent=0 // pred_fallthru
    _
  %v24 = vld [vmem:[%s5] sm:$0x3]
  %v25 = vld [vmem:[%s1] sm:$0xf]
  %v26 = vld [vmem:[%s1 + $0x4] sm:$0xf]
  %v27 = vld [vmem:[%s1 + $0x8] sm:$0xf]
  %v28 = vld [vmem:[%s1 + $0xc] sm:$0xf]
  %v29 = vld [vmem:[%s1 + $0x10] sm:$0xf]
  %v30 = vld [vmem:[%s1 + $0x14] sm:$0xf]
  %v31 = vld [vmem:[%s1 + $0x18] sm:$0xf]
  %v32 = vld [vmem:[%s1 + $0x1c] sm:$0xf]
  %v33 = vld [vmem:[%s2] sm:$0xf]
  %v35 = vlaneseq
  %v36 = vshrl.u32 %v35, 7
  %v37 = vsub.s32 0, %v36
  %v38 = vrot.slane %v24, %v37
  %v39 = vlaneseq
  %v40 = vshrl.u32 %v39, 7
  %v41 = vsub.s32 1, %v40
  %v42 = vrot.slane %v24, %v41
  %v53 = vunpack.c.l.b16 %v25
  %v54 = vunpack.c.l.b16 %v26
  %v55 = vunpack.c.l.b16 %v27
  %v56 = vunpack.c.l.b16 %v28
  %v57 = vunpack.c.l.b16 %v29
  %v58 = vunpack.c.l.b16 %v30
  %v59 = vunpack.c.l.b16 %v31
  %v60 = vunpack.c.l.b16 %v32
  %v61 = vpack.c.b16 %v54, %v53
  %v62 = vpack.c.b16 %v56, %v55
  %v63 = vpack.c.b16 %v58, %v57
  %v64 = vpack.c.b16 %v60, %v59
  %v67 = vunpack.c.l.s4 1983009808
  %v68 = vunpack.c.0.s8 %v67
  %v69 = vlaneseq
  %v70 = vshrl.u32 %v69, 7
  %v71 = vsub.s32 %v68, %v70
  %v72 = vrot.slane %v33, %v71
  %v73 = vcombine.high %v72, %v72
  %vm74 = vcmask 31744
  %v76 = vsel %vm74, %v61, 0
  %v79 = vsel %vm74, %v62, 0
  %v82 = vsel %vm74, %v63, 0
  %v85 = vsel %vm74, %v64, 0
  %vm87 = vcmask 1041408
  %v89 = vsel %vm87, %v72, 0
  %v92 = vsel %vm87, %v73, 0
  %94 = vmatprep.subr.bf16.mxu0 0
  %95 = vmatpush1.bf16.msra.mxu0 0
  %96 = vmatprep.subr.bf16.mxu0 0
  %97 = vmatpush1.bf16.msra.mxu0 0
  %98 = vmatprep.subr.bf16.mxu0 0
  %99 = vmatpush1.bf16.msra.mxu0 0
  %100 = vmatprep.subr.bf16.mxu0 0
  %101 = vmatpush1.bf16.msra.mxu0 0
  %102 = vmatprep.subr.bf16.mxu0 0
  %103 = vmatpush1.bf16.msra.mxu0 0
  %104 = vmatprep.subr.bf16.mxu0 0
  %105 = vmatpush1.bf16.msra.mxu0 0
  %106 = vmatprep.subr.bf16.mxu0 0
  %107 = vmatpush1.bf16.msra.mxu0 0
  %108 = vmatprep.subr.bf16.mxu0 %v92
  %109 = vmatpush1.bf16.msra.mxu0 %v89
  %110 = vmatprep.subr.bf16.mxu0 0
  %111 = vmatpush2.bf16.msra.mxu0 0
  %112 = vmatprep.subr.bf16.mxu0 0
  %113 = vmatpush2.bf16.msra.mxu0 0
  %114 = vmatprep.subr.bf16.mxu0 0
  %115 = vmatpush2.bf16.msra.mxu0 0
  %116 = vmatprep.subr.bf16.mxu0 0
  %117 = vmatpush2.bf16.msra.mxu0 0
  %118 = vmatprep.subr.bf16.mxu0 0
  %119 = vmatpush2.bf16.msra.mxu0 0
  %120 = vmatprep.subr.bf16.mxu0 0
  %121 = vmatpush2.bf16.msra.mxu0 0
  %122 = vmatprep.subr.bf16.mxu0 0
  %123 = vmatpush2.bf16.msra.mxu0 0
  %124 = vmatprep.subr.bf16.mxu0 0
  %125 = vmatpush2.bf16.msra.mxu0 0
  %126 = vmatprep.mubr.bf16.mxu0 0
  %127 = vmatmul.mubr.bf16.gmra.mxu0 %v76
  %v128 = vpop.f32.mrf.mxu0
  %v129 = vadd.f32 %v38, %v128
  %v130 = vpop.f32.mrf.mxu0
  %v131 = vadd.f32 %v42, %v130
  %v132 = vpop.f32.mrf.mxu0
  %v133 = vadd.f32 %v38, %v132
  %v134 = vpop.f32.mrf.mxu0
  %v135 = vadd.f32 %v42, %v134
  %136 = vmatprep.mubr.bf16.mxu0 0
  %137 = vmatmul.mubr.bf16.gmra.mxu0 %v79
  %v138 = vpop.f32.mrf.mxu0
  %v139 = vadd.f32 %v38, %v138
  %v140 = vpop.f32.mrf.mxu0
  %v141 = vadd.f32 %v42, %v140
  %v142 = vpop.f32.mrf.mxu0
  %v143 = vadd.f32 %v38, %v142
  %v144 = vpop.f32.mrf.mxu0
  %v145 = vadd.f32 %v42, %v144
  %146 = vmatprep.mubr.bf16.mxu0 0
  %147 = vmatmul.mubr.bf16.gmra.mxu0 %v82
  %v148 = vpop.f32.mrf.mxu0
  %v149 = vadd.f32 %v38, %v148
  %v150 = vpop.f32.mrf.mxu0
  %v151 = vadd.f32 %v42, %v150
  %v152 = vpop.f32.mrf.mxu0
  %v153 = vadd.f32 %v38, %v152
  %v154 = vpop.f32.mrf.mxu0
  %v155 = vadd.f32 %v42, %v154
  %156 = vmatprep.mubr.bf16.mxu0 0
  %157 = vmatmul.mubr.bf16.gmra.mxu0 %v85
  %v158 = vpop.f32.mrf.mxu0
  %v159 = vadd.f32 %v38, %v158
  %v160 = vpop.f32.mrf.mxu0
  %v161 = vadd.f32 %v42, %v160
  %v162 = vpop.f32.mrf.mxu0
  %v163 = vadd.f32 %v38, %v162
  %v164 = vpop.f32.mrf.mxu0
  %v165 = vadd.f32 %v42, %v164
  %166 = vdwg.mxu0
  %v167 = vpack.c.bf16 %v129, %v129
  %v168 = vpack.c.bf16 %v131, %v131
  %v169 = vpack.c.bf16 %v133, %v133
  %v170 = vpack.c.bf16 %v135, %v135
  %v171 = vpack.c.bf16 %v139, %v139
  %v172 = vpack.c.bf16 %v141, %v141
  %v173 = vpack.c.bf16 %v143, %v143
  %v174 = vpack.c.bf16 %v145, %v145
  %v175 = vpack.c.bf16 %v149, %v149
  %v176 = vpack.c.bf16 %v151, %v151
  %v177 = vpack.c.bf16 %v153, %v153
  %v178 = vpack.c.bf16 %v155, %v155
  %v179 = vpack.c.bf16 %v159, %v159
  %v180 = vpack.c.bf16 %v161, %v161
  %v181 = vpack.c.bf16 %v163, %v163
  %v182 = vpack.c.bf16 %v165, %v165
  %v199 = vunpack.c.l.b16 %v167
  %v200 = vunpack.c.l.b16 %v168
  %v201 = vunpack.c.l.b16 %v169
  %v202 = vunpack.c.l.b16 %v170
  %v203 = vunpack.c.l.b16 %v171
  %v204 = vunpack.c.l.b16 %v172
  %v205 = vunpack.c.l.b16 %v173
  %v206 = vunpack.c.l.b16 %v174
  %v207 = vunpack.c.l.b16 %v175
  %v208 = vunpack.c.l.b16 %v176
  %v209 = vunpack.c.l.b16 %v177
  %v210 = vunpack.c.l.b16 %v178
  %v211 = vunpack.c.l.b16 %v179
  %v212 = vunpack.c.l.b16 %v180
  %v213 = vunpack.c.l.b16 %v181
  %v214 = vunpack.c.l.b16 %v182
  %v215 = vpack.c.b16 %v200, %v199
  %v216 = vpack.c.b16 %v202, %v201
  %v217 = vpack.c.b16 %v204, %v203
  %v218 = vpack.c.b16 %v206, %v205
  %v219 = vpack.c.b16 %v208, %v207
  %v220 = vpack.c.b16 %v210, %v209
  %v221 = vpack.c.b16 %v212, %v211
  %v222 = vpack.c.b16 %v214, %v213
  %s231 = smul.u32 0, 2
  %s232 = smul.addr %s231, 4
  %s233 = scalar_lea.vmem [#allocation2], %s232
  %234 = vst [vmem:[%s233] sm:$0xff] %v215
  %235 = vst [vmem:[%s233 + $0x8] sm:$0xff] %v216
  %236 = vst [vmem:[%s233 + $0x10] sm:$0xff] %v217
  %237 = vst [vmem:[%s233 + $0x18] sm:$0xff] %v218
  %238 = vst [vmem:[%s233 + $0x20] sm:$0xff] %v219
  %239 = vst [vmem:[%s233 + $0x28] sm:$0xff] %v220
  %240 = vst [vmem:[%s233 + $0x30] sm:$0xff] %v221
  %241 = vst [vmem:[%s233 + $0x38] sm:$0xff] %v222
  %vm242 = vcmask 261120
  %243 = vst.msk [vmem:[#allocation3] sm:$0xff] %vm242, 0.0
  %244 = vst.msk [vmem:[#allocation4] sm:$0xff] %vm242, 0.0
  %245 = vst.msk [vmem:[#allocation5] sm:$0xff] %vm242, 0.0
  %246 = vst.msk [vmem:[#allocation6] sm:$0xff] %vm242, 0.0
  %v247 = vld [vmem:[%s0] sm:$0xff]
  %v248 = vld [vmem:[#allocation2] sm:$0xf]
  %s249 = scalar_lea.vmem [#allocation2], 56
  %v250 = vld [vmem:[%s249 + $0x4] sm:$0xf]
  %v251 = vld [vmem:[#allocation3] sm:$0xff]
  %v252 = vld [vmem:[#allocation4] sm:$0xff]
  %v253 = vld [vmem:[#allocation5] sm:$0xff]
  %v254 = vld [vmem:[#allocation6] sm:$0xff]
  %v255 = vpack.c.bf16 %v251, %v251
  %v256 = vld [vmem:[%s3] sm:$0xf]
  %v257 = vld [vmem:[%s3 + $0x4] sm:$0xf]
  %v258 = vld [vmem:[%s3 + $0x8] sm:$0xf]
  %v259 = vld [vmem:[%s3 + $0xc] sm:$0xf]
  %v264 = vunpack.c.l.b16 %v256
  %v265 = vunpack.c.l.b16 %v257
  %v266 = vunpack.c.l.b16 %v258
  %v267 = vunpack.c.l.b16 %v259
  %v268 = vpack.c.b16 %v265, %v264
  %v269 = vpack.c.b16 %v267, %v266
  %v273 = vsel %vm242, %v255, 0
  %275 = vmatprep.subr.bf16.mxu0 0
  %276 = vmatpush1.bf16.msra.mxu0 0
  %277 = vmatprep.subr.bf16.mxu0 0
  %278 = vmatpush1.bf16.msra.mxu0 0
  %279 = vmatprep.subr.bf16.mxu0 0
  %280 = vmatpush1.bf16.msra.mxu0 0
  %281 = vmatprep.subr.bf16.mxu0 0
  %282 = vmatpush1.bf16.msra.mxu0 0
  %283 = vmatprep.subr.bf16.mxu0 0
  %284 = vmatpush1.bf16.msra.mxu0 0
  %285 = vmatprep.subr.bf16.mxu0 0
  %286 = vmatpush1.bf16.msra.mxu0 0
  %287 = vmatprep.subr.bf16.mxu0 0
  %288 = vmatpush1.bf16.msra.mxu0 %v269
  %289 = vmatprep.subr.bf16.mxu0 0
  %290 = vmatpush1.bf16.msra.mxu0 %v268
  %291 = vmatprep.subr.bf16.mxu0 0
  %292 = vmatpush2.bf16.msra.mxu0 0
  %293 = vmatprep.subr.bf16.mxu0 0
  %294 = vmatpush2.bf16.msra.mxu0 0
  %295 = vmatprep.subr.bf16.mxu0 0
  %296 = vmatpush2.bf16.msra.mxu0 0
  %297 = vmatprep.subr.bf16.mxu0 0
  %298 = vmatpush2.bf16.msra.mxu0 0
  %299 = vmatprep.subr.bf16.mxu0 0
  %300 = vmatpush2.bf16.msra.mxu0 0
  %301 = vmatprep.subr.bf16.mxu0 0
  %302 = vmatpush2.bf16.msra.mxu0 0
  %303 = vmatprep.subr.bf16.mxu0 0
  %304 = vmatpush2.bf16.msra.mxu0 0
  %305 = vmatprep.subr.bf16.mxu0 0
  %306 = vmatpush2.bf16.msra.mxu0 0
  %307 = vmatprep.mubr.bf16.mxu0 0
  %308 = vmatmul.mubr.bf16.gmra.mxu0 %v273
  %v309 = vpop.f32.mrf.mxu0
  %v310 = vadd.f32 0.0, %v309
  %v311 = vpop.f32.mrf.mxu0
  %v312 = vpop.f32.mrf.mxu0
  %v313 = vpop.f32.mrf.mxu0
  %314 = vdwg.mxu0
  %v315 = vunpack.c.l.bf16 %v248
  %v316 = vadd.f32 %v315, %v310
  %v317 = vpack.c.bf16 %v253, %v253
  %v318 = vld [vmem:[%s4] sm:$0xf]
  %v319 = vld [vmem:[%s4 + $0x4] sm:$0xf]
  %v320 = vld [vmem:[%s4 + $0x8] sm:$0xf]
  %v321 = vld [vmem:[%s4 + $0xc] sm:$0xf]
  %v326 = vunpack.c.l.b16 %v318
  %v327 = vunpack.c.l.b16 %v319
  %v328 = vunpack.c.l.b16 %v320
  %v329 = vunpack.c.l.b16 %v321
  %v330 = vpack.c.b16 %v327, %v326
  %v331 = vpack.c.b16 %v329, %v328
  %v335 = vsel %vm242, %v317, 0
  %337 = vmatprep.subr.bf16.mxu0 0
  %338 = vmatpush1.bf16.msra.mxu0 0
  %339 = vmatprep.subr.bf16.mxu0 0
  %340 = vmatpush1.bf16.msra.mxu0 0
  %341 = vmatprep.subr.bf16.mxu0 0
  %342 = vmatpush1.bf16.msra.mxu0 0
  %343 = vmatprep.subr.bf16.mxu0 0
  %344 = vmatpush1.bf16.msra.mxu0 0
  %345 = vmatprep.subr.bf16.mxu0 0
  %346 = vmatpush1.bf16.msra.mxu0 0
  %347 = vmatprep.subr.bf16.mxu0 0
  %348 = vmatpush1.bf16.msra.mxu0 0
  %349 = vmatprep.subr.bf16.mxu0 0
  %350 = vmatpush1.bf16.msra.mxu0 %v331
  %351 = vmatprep.subr.bf16.mxu0 0
  %352 = vmatpush1.bf16.msra.mxu0 %v330
  %353 = vmatprep.subr.bf16.mxu0 0
  %354 = vmatpush2.bf16.msra.mxu0 0
  %355 = vmatprep.subr.bf16.mxu0 0
  %356 = vmatpush2.bf16.msra.mxu0 0
  %357 = vmatprep.subr.bf16.mxu0 0
  %358 = vmatpush2.bf16.msra.mxu0 0
  %359 = vmatprep.subr.bf16.mxu0 0
  %360 = vmatpush2.bf16.msra.mxu0 0
  %361 = vmatprep.subr.bf16.mxu0 0
  %362 = vmatpush2.bf16.msra.mxu0 0
  %363 = vmatprep.subr.bf16.mxu0 0
  %364 = vmatpush2.bf16.msra.mxu0 0
  %365 = vmatprep.subr.bf16.mxu0 0
  %366 = vmatpush2.bf16.msra.mxu0 0
  %367 = vmatprep.subr.bf16.mxu0 0
  %368 = vmatpush2.bf16.msra.mxu0 0
  %369 = vmatprep.mubr.bf16.mxu0 0
  %370 = vmatmul.mubr.bf16.gmra.mxu0 %v335
  %v371 = vpop.f32.mrf.mxu0
  %v372 = vadd.f32 0.0, %v371
  %v373 = vpop.f32.mrf.mxu0
  %v374 = vpop.f32.mrf.mxu0
  %v375 = vpop.f32.mrf.mxu0
  %376 = vdwg.mxu0
  %v377 = vunpack.c.l.bf16 %v250
  %v378 = vadd.f32 %v377, %v372
  %v379 = vxor.u32 %v316, 2147483648
  %v380 = vmul.f32 %v379, 1.442695
  %v381 = vpow.pop %v380
  %v382 = vadd.f32 %v381, 1.0
  %v383 = vrcp.pop %v382
  %v384 = vmul.f32 1.0, %v383
  %v385 = vtanh.pop %v316
  %387 = vrot.lane.b32.xlu0 %v252, 32
  %v388 = vpop.permute.xlu0 %387
  %v390 = vmul.f32 %v384, %v388
  %392 = vrot.lane.b32.xlu0 %v385, 32
  %v393 = vpop.permute.xlu0 %392
  %v395 = vmul.f32 %v384, %v393
  %397 = vrot.lane.b32.xlu0 %v395, 32
  %v398 = vpop.permute.xlu0 %397
  %v400 = vadd.f32 %v390, %v398
  %v401 = vtanh.pop %v400
  %403 = vrot.lane.b32.xlu0 %v401, 32
  %v404 = vpop.permute.xlu0 %403
  %v406 = vmul.f32 %v384, %v404
  %v407 = vxor.u32 %v378, 2147483648
  %v408 = vmul.f32 %v407, 1.442695
  %v409 = vpow.pop %v408
  %v410 = vadd.f32 %v409, 1.0
  %v411 = vrcp.pop %v410
  %v412 = vmul.f32 1.0, %v411
  %v413 = vtanh.pop %v378
  %415 = vrot.lane.b32.xlu0 %v254, 32
  %v416 = vpop.permute.xlu0 %415
  %v418 = vmul.f32 %v412, %v416
  %420 = vrot.lane.b32.xlu0 %v413, 32
  %v421 = vpop.permute.xlu0 %420
  %v423 = vmul.f32 %v412, %v421
  %425 = vrot.lane.b32.xlu0 %v423, 32
  %v426 = vpop.permute.xlu0 %425
  %v428 = vadd.f32 %v418, %v426
  %v429 = vtanh.pop %v428
  %431 = vrot.lane.b32.xlu0 %v429, 32
  %v432 = vpop.permute.xlu0 %431
  %v434 = vmul.f32 %v412, %v432
  %vm435 = vcmp.gt.s32.totalorder %v247, 0
  %vm436 = vcmp.gt.s32.totalorder %v247, 7
  %v437 = vsel %vm435, 1, 0
  %438 = vset.pattern.permute.xlu0 0
  %439 = vperm.xlu0 %438, %v437
  %v440 = vpop.permute.xlu0 %439
  %vm441 = vcmp.eq.s32.totalorder %v440, 1
  %443 = vrot.lane.b32.xlu0 %v251, 64
  %v444 = vpop.permute.xlu0 %443
  %v446 = vsel %vm441, %v406, %v444
  %448 = vrot.lane.b32.xlu0 %v446, 64
  %v449 = vpop.permute.xlu0 %448
  %451 = vst.msk [vmem:[#allocation3] sm:$0xff] %vm242, %v449
  %v452 = vsel %vm441, %v400, %v388
  %454 = vrot.lane.b32.xlu0 %v452, 96
  %v455 = vpop.permute.xlu0 %454
  %457 = vst.msk [vmem:[#allocation4] sm:$0xff] %vm242, %v455
  %v458 = vsel %vm436, 1, 0
  %459 = vset.pattern.permute.xlu0 0
  %460 = vperm.xlu0 %459, %v458
  %v461 = vpop.permute.xlu0 %460
  %vm462 = vcmp.eq.s32.totalorder %v461, 1
  %464 = vrot.lane.b32.xlu0 %v253, 64
  %v465 = vpop.permute.xlu0 %464
  %v467 = vsel %vm462, %v434, %v465
  %469 = vrot.lane.b32.xlu0 %v467, 64
  %v470 = vpop.permute.xlu0 %469
  %472 = vst.msk [vmem:[#allocation5] sm:$0xff] %vm242, %v470
  %v473 = vsel %vm462, %v428, %v416
  %475 = vrot.lane.b32.xlu0 %v473, 96
  %v476 = vpop.permute.xlu0 %475
  %478 = vst.msk [vmem:[#allocation6] sm:$0xff] %vm242, %v476
  %v479 = vsel %vm441, %v406, 0.0
  %v480 = vpack.c.bf16 %v479, %v479
  %v482 = vunpack.c.l.b16 %v480
  %v483 = vpack.c.b16 %v482, %v482
  %484 = vrot.lane.b32.xlu0 %v483, 64
  %v485 = vpop.permute.xlu0 %484
  %vm487 = vcmask 257024
  %488 = vst.msk [vmem:[%s6] sm:$0xf] %vm487, %v485
  %v489 = vsel %vm462, %v434, 0.0
  %v490 = vpack.c.bf16 %v489, %v489
  %v492 = vunpack.c.l.b16 %v490
  %v493 = vpack.c.b16 %v492, %v492
  %494 = vrot.lane.b32.xlu0 %v493, 96
  %v495 = vpop.permute.xlu0 %494
  %s497 = scalar_lea.vmem %s6, 28
  %vm498 = vcmask 519424
  %499 = vst.msk [vmem:[%s497] sm:$0xf] %vm498, %v495
  %s500 = scalar_lea.vmem [#allocation2], 8
  %v501 = vld [vmem:[%s500] sm:$0xf]
  %s502 = scalar_lea.vmem [#allocation2], 48
  %v503 = vld [vmem:[%s502 + $0x4] sm:$0xf]
  %v504 = vld [vmem:[#allocation3] sm:$0xff]
  %v505 = vld [vmem:[#allocation4] sm:$0xff]
  %v506 = vld [vmem:[#allocation5] sm:$0xff]
  %v507 = vld [vmem:[#allocation6] sm:$0xff]
  %v508 = vpack.c.bf16 %v504, %v504
  %v509 = vld [vmem:[%s3] sm:$0xf]
  %v510 = vld [vmem:[%s3 + $0x4] sm:$0xf]
  %v511 = vld [vmem:[%s3 + $0x8] sm:$0xf]
  %v512 = vld [vmem:[%s3 + $0xc] sm:$0xf]
  %v517 = vunpack.c.l.b16 %v509
  %v518 = vunpack.c.l.b16 %v510
  %v519 = vunpack.c.l.b16 %v511
  %v520 = vunpack.c.l.b16 %v512
  %v521 = vpack.c.b16 %v518, %v517
  %v522 = vpack.c.b16 %v520, %v519
  %v526 = vsel %vm242, %v508, 0
  %528 = vmatprep.subr.bf16.mxu0 0
  %529 = vmatpush1.bf16.msra.mxu0 0
  %530 = vmatprep.subr.bf16.mxu0 0
  %531 = vmatpush1.bf16.msra.mxu0 0
  %532 = vmatprep.subr.bf16.mxu0 0
  %533 = vmatpush1.bf16.msra.mxu0 0
  %534 = vmatprep.subr.bf16.mxu0 0
  %535 = vmatpush1.bf16.msra.mxu0 0
  %536 = vmatprep.subr.bf16.mxu0 0
  %537 = vmatpush1.bf16.msra.mxu0 0
  %538 = vmatprep.subr.bf16.mxu0 0
  %539 = vmatpush1.bf16.msra.mxu0 0
  %540 = vmatprep.subr.bf16.mxu0 0
  %541 = vmatpush1.bf16.msra.mxu0 %v522
  %542 = vmatprep.subr.bf16.mxu0 0
  %543 = vmatpush1.bf16.msra.mxu0 %v521
  %544 = vmatprep.subr.bf16.mxu0 0
  %545 = vmatpush2.bf16.msra.mxu0 0
  %546 = vmatprep.subr.bf16.mxu0 0
  %547 = vmatpush2.bf16.msra.mxu0 0
  %548 = vmatprep.subr.bf16.mxu0 0
  %549 = vmatpush2.bf16.msra.mxu0 0
  %550 = vmatprep.subr.bf16.mxu0 0
  %551 = vmatpush2.bf16.msra.mxu0 0
  %552 = vmatprep.subr.bf16.mxu0 0
  %553 = vmatpush2.bf16.msra.mxu0 0
  %554 = vmatprep.subr.bf16.mxu0 0
  %555 = vmatpush2.bf16.msra.mxu0 0
  %556 = vmatprep.subr.bf16.mxu0 0
  %557 = vmatpush2.bf16.msra.mxu0 0
  %558 = vmatprep.subr.bf16.mxu0 0
  %559 = vmatpush2.bf16.msra.mxu0 0
  %560 = vmatprep.mubr.bf16.mxu0 0
  %561 = vmatmul.mubr.bf16.gmra.mxu0 %v526
  %v562 = vpop.f32.mrf.mxu0
  %v563 = vadd.f32 0.0, %v562
  %v564 = vpop.f32.mrf.mxu0
  %v565 = vpop.f32.mrf.mxu0
  %v566 = vpop.f32.mrf.mxu0
  %567 = vdwg.mxu0
  %v568 = vunpack.c.l.bf16 %v501
  %v569 = vadd.f32 %v568, %v563
  %v570 = vpack.c.bf16 %v506, %v506
  %v571 = vld [vmem:[%s4] sm:$0xf]
  %v572 = vld [vmem:[%s4 + $0x4] sm:$0xf]
  %v573 = vld [vmem:[%s4 + $0x8] sm:$0xf]
  %v574 = vld [vmem:[%s4 + $0xc] sm:$0xf]
  %v579 = vunpack.c.l.b16 %v571
  %v580 = vunpack.c.l.b16 %v572
  %v581 = vunpack.c.l.b16 %v573
  %v582 = vunpack.c.l.b16 %v574
  %v583 = vpack.c.b16 %v580, %v579
  %v584 = vpack.c.b16 %v582, %v581
  %v588 = vsel %vm242, %v570, 0
  %590 = vmatprep.subr.bf16.mxu0 0
  %591 = vmatpush1.bf16.msra.mxu0 0
  %592 = vmatprep.subr.bf16.mxu0 0
  %593 = vmatpush1.bf16.msra.mxu0 0
  %594 = vmatprep.subr.bf16.mxu0 0
  %595 = vmatpush1.bf16.msra.mxu0 0
  %596 = vmatprep.subr.bf16.mxu0 0
  %597 = vmatpush1.bf16.msra.mxu0 0
  %598 = vmatprep.subr.bf16.mxu0 0
  %599 = vmatpush1.bf16.msra.mxu0 0
  %600 = vmatprep.subr.bf16.mxu0 0
  %601 = vmatpush1.bf16.msra.mxu0 0
  %602 = vmatprep.subr.bf16.mxu0 0
  %603 = vmatpush1.bf16.msra.mxu0 %v584
  %604 = vmatprep.subr.bf16.mxu0 0
  %605 = vmatpush1.bf16.msra.mxu0 %v583
  %606 = vmatprep.subr.bf16.mxu0 0
  %607 = vmatpush2.bf16.msra.mxu0 0
  %608 = vmatprep.subr.bf16.mxu0 0
  %609 = vmatpush2.bf16.msra.mxu0 0
  %610 = vmatprep.subr.bf16.mxu0 0
  %611 = vmatpush2.bf16.msra.mxu0 0
  %612 = vmatprep.subr.bf16.mxu0 0
  %613 = vmatpush2.bf16.msra.mxu0 0
  %614 = vmatprep.subr.bf16.mxu0 0
  %615 = vmatpush2.bf16.msra.mxu0 0
  %616 = vmatprep.subr.bf16.mxu0 0
  %617 = vmatpush2.bf16.msra.mxu0 0
  %618 = vmatprep.subr.bf16.mxu0 0
  %619 = vmatpush2.bf16.msra.mxu0 0
  %620 = vmatprep.subr.bf16.mxu0 0
  %621 = vmatpush2.bf16.msra.mxu0 0
  %622 = vmatprep.mubr.bf16.mxu0 0
  %623 = vmatmul.mubr.bf16.gmra.mxu0 %v588
  %v624 = vpop.f32.mrf.mxu0
  %v625 = vadd.f32 0.0, %v624
  %v626 = vpop.f32.mrf.mxu0
  %v627 = vpop.f32.mrf.mxu0
  %v628 = vpop.f32.mrf.mxu0
  %629 = vdwg.mxu0
  %v630 = vunpack.c.l.bf16 %v503
  %v631 = vadd.f32 %v630, %v625
  %v632 = vxor.u32 %v569, 2147483648
  %v633 = vmul.f32 %v632, 1.442695
  %v634 = vpow.pop %v633
  %v635 = vadd.f32 %v634, 1.0
  %v636 = vrcp.pop %v635
  %v637 = vmul.f32 1.0, %v636
  %v638 = vtanh.pop %v569
  %640 = vrot.lane.b32.xlu0 %v505, 32
  %v641 = vpop.permute.xlu0 %640
  %v643 = vmul.f32 %v637, %v641
  %645 = vrot.lane.b32.xlu0 %v638, 32
  %v646 = vpop.permute.xlu0 %645
  %v648 = vmul.f32 %v637, %v646
  %650 = vrot.lane.b32.xlu0 %v648, 32
  %v651 = vpop.permute.xlu0 %650
  %v653 = vadd.f32 %v643, %v651
  %v654 = vtanh.pop %v653
  %656 = vrot.lane.b32.xlu0 %v654, 32
  %v657 = vpop.permute.xlu0 %656
  %v659 = vmul.f32 %v637, %v657
  %v660 = vxor.u32 %v631, 2147483648
  %v661 = vmul.f32 %v660, 1.442695
  %v662 = vpow.pop %v661
  %v663 = vadd.f32 %v662, 1.0
  %v664 = vrcp.pop %v663
  %v665 = vmul.f32 1.0, %v664
  %v666 = vtanh.pop %v631
  %668 = vrot.lane.b32.xlu0 %v507, 32
  %v669 = vpop.permute.xlu0 %668
  %v671 = vmul.f32 %v665, %v669
  %673 = vrot.lane.b32.xlu0 %v666, 32
  %v674 = vpop.permute.xlu0 %673
  %v676 = vmul.f32 %v665, %v674
  %678 = vrot.lane.b32.xlu0 %v676, 32
  %v679 = vpop.permute.xlu0 %678
  %v681 = vadd.f32 %v671, %v679
  %v682 = vtanh.pop %v681
  %684 = vrot.lane.b32.xlu0 %v682, 32
  %v685 = vpop.permute.xlu0 %684
  %v687 = vmul.f32 %v665, %v685
  %vm688 = vcmp.gt.s32.totalorder %v247, 1
  %vm689 = vcmp.gt.s32.totalorder %v247, 6
  %v690 = vsel %vm688, 1, 0
  %691 = vset.pattern.permute.xlu0 0
  %692 = vperm.xlu0 %691, %v690
  %v693 = vpop.permute.xlu0 %692
  %vm694 = vcmp.eq.s32.totalorder %v693, 1
  %696 = vrot.lane.b32.xlu0 %v504, 64
  %v697 = vpop.permute.xlu0 %696
  %v699 = vsel %vm694, %v659, %v697
  %701 = vrot.lane.b32.xlu0 %v699, 64
  %v702 = vpop.permute.xlu0 %701
  %704 = vst.msk [vmem:[#allocation3] sm:$0xff] %vm242, %v702
  %v705 = vsel %vm694, %v653, %v641
  %707 = vrot.lane.b32.xlu0 %v705, 96
  %v708 = vpop.permute.xlu0 %707
  %710 = vst.msk [vmem:[#allocation4] sm:$0xff] %vm242, %v708
  %v711 = vsel %vm689, 1, 0
  %712 = vset.pattern.permute.xlu0 0
  %713 = vperm.xlu0 %712, %v711
  %v714 = vpop.permute.xlu0 %713
  %vm715 = vcmp.eq.s32.totalorder %v714, 1
  %717 = vrot.lane.b32.xlu0 %v506, 64
  %v718 = vpop.permute.xlu0 %717
  %v720 = vsel %vm715, %v687, %v718
  %722 = vrot.lane.b32.xlu0 %v720, 64
  %v723 = vpop.permute.xlu0 %722
  %725 = vst.msk [vmem:[#allocation5] sm:$0xff] %vm242, %v723
  %v726 = vsel %vm715, %v681, %v669
  %728 = vrot.lane.b32.xlu0 %v726, 96
  %v729 = vpop.permute.xlu0 %728
  %731 = vst.msk [vmem:[#allocation6] sm:$0xff] %vm242, %v729
  %v732 = vsel %vm694, %v659, 0.0
  %v733 = vpack.c.bf16 %v732, %v732
  %v735 = vunpack.c.l.b16 %v733
  %v736 = vpack.c.b16 %v735, %v735
  %737 = vrot.lane.b32.xlu0 %v736, 64
  %v738 = vpop.permute.xlu0 %737
  %s740 = scalar_lea.vmem %s6, 4
  %741 = vst.msk [vmem:[%s740] sm:$0xf] %vm487, %v738
  %v742 = vsel %vm715, %v687, 0.0
  %v743 = vpack.c.bf16 %v742, %v742
  %v745 = vunpack.c.l.b16 %v743
  %v746 = vpack.c.b16 %v745, %v745
  %747 = vrot.lane.b32.xlu0 %v746, 96
  %v748 = vpop.permute.xlu0 %747
  %s750 = scalar_lea.vmem %s6, 24
  %751 = vst.msk [vmem:[%s750] sm:$0xf] %vm498, %v748
  %s752 = scalar_lea.vmem [#allocation2], 16
  %v753 = vld [vmem:[%s752] sm:$0xf]
  %s754 = scalar_lea.vmem [#allocation2], 40
  %v755 = vld [vmem:[%s754 + $0x4] sm:$0xf]
  %v756 = vld [vmem:[#allocation3] sm:$0xff]
  %v757 = vld [vmem:[#allocation4] sm:$0xff]
  %v758 = vld [vmem:[#allocation5] sm:$0xff]
  %v759 = vld [vmem:[#allocation6] sm:$0xff]
  %v760 = vpack.c.bf16 %v756, %v756
  %v761 = vld [vmem:[%s3] sm:$0xf]
  %v762 = vld [vmem:[%s3 + $0x4] sm:$0xf]
  %v763 = vld [vmem:[%s3 + $0x8] sm:$0xf]
  %v764 = vld [vmem:[%s3 + $0xc] sm:$0xf]
  %v769 = vunpack.c.l.b16 %v761
  %v770 = vunpack.c.l.b16 %v762
  %v771 = vunpack.c.l.b16 %v763
  %v772 = vunpack.c.l.b16 %v764
  %v773 = vpack.c.b16 %v770, %v769
  %v774 = vpack.c.b16 %v772, %v771
  %v778 = vsel %vm242, %v760, 0
  %780 = vmatprep.subr.bf16.mxu0 0
  %781 = vmatpush1.bf16.msra.mxu0 0
  %782 = vmatprep.subr.bf16.mxu0 0
  %783 = vmatpush1.bf16.msra.mxu0 0
  %784 = vmatprep.subr.bf16.mxu0 0
  %785 = vmatpush1.bf16.msra.mxu0 0
  %786 = vmatprep.subr.bf16.mxu0 0
  %787 = vmatpush1.bf16.msra.mxu0 0
  %788 = vmatprep.subr.bf16.mxu0 0
  %789 = vmatpush1.bf16.msra.mxu0 0
  %790 = vmatprep.subr.bf16.mxu0 0
  %791 = vmatpush1.bf16.msra.mxu0 0
  %792 = vmatprep.subr.bf16.mxu0 0
  %793 = vmatpush1.bf16.msra.mxu0 %v774
  %794 = vmatprep.subr.bf16.mxu0 0
  %795 = vmatpush1.bf16.msra.mxu0 %v773
  %796 = vmatprep.subr.bf16.mxu0 0
  %797 = vmatpush2.bf16.msra.mxu0 0
  %798 = vmatprep.subr.bf16.mxu0 0
  %799 = vmatpush2.bf16.msra.mxu0 0
  %800 = vmatprep.subr.bf16.mxu0 0
  %801 = vmatpush2.bf16.msra.mxu0 0
  %802 = vmatprep.subr.bf16.mxu0 0
  %803 = vmatpush2.bf16.msra.mxu0 0
  %804 = vmatprep.subr.bf16.mxu0 0
  %805 = vmatpush2.bf16.msra.mxu0 0
  %806 = vmatprep.subr.bf16.mxu0 0
  %807 = vmatpush2.bf16.msra.mxu0 0
  %808 = vmatprep.subr.bf16.mxu0 0
  %809 = vmatpush2.bf16.msra.mxu0 0
  %810 = vmatprep.subr.bf16.mxu0 0
  %811 = vmatpush2.bf16.msra.mxu0 0
  %812 = vmatprep.mubr.bf16.mxu0 0
  %813 = vmatmul.mubr.bf16.gmra.mxu0 %v778
  %v814 = vpop.f32.mrf.mxu0
  %v815 = vadd.f32 0.0, %v814
  %v816 = vpop.f32.mrf.mxu0
  %v817 = vpop.f32.mrf.mxu0
  %v818 = vpop.f32.mrf.mxu0
  %819 = vdwg.mxu0
  %v820 = vunpack.c.l.bf16 %v753
  %v821 = vadd.f32 %v820, %v815
  %v822 = vpack.c.bf16 %v758, %v758
  %v823 = vld [vmem:[%s4] sm:$0xf]
  %v824 = vld [vmem:[%s4 + $0x4] sm:$0xf]
  %v825 = vld [vmem:[%s4 + $0x8] sm:$0xf]
  %v826 = vld [vmem:[%s4 + $0xc] sm:$0xf]
  %v831 = vunpack.c.l.b16 %v823
  %v832 = vunpack.c.l.b16 %v824
  %v833 = vunpack.c.l.b16 %v825
  %v834 = vunpack.c.l.b16 %v826
  %v835 = vpack.c.b16 %v832, %v831
  %v836 = vpack.c.b16 %v834, %v833
  %v840 = vsel %vm242, %v822, 0
  %842 = vmatprep.subr.bf16.mxu0 0
  %843 = vmatpush1.bf16.msra.mxu0 0
  %844 = vmatprep.subr.bf16.mxu0 0
  %845 = vmatpush1.bf16.msra.mxu0 0
  %846 = vmatprep.subr.bf16.mxu0 0
  %847 = vmatpush1.bf16.msra.mxu0 0
  %848 = vmatprep.subr.bf16.mxu0 0
  %849 = vmatpush1.bf16.msra.mxu0 0
  %850 = vmatprep.subr.bf16.mxu0 0
  %851 = vmatpush1.bf16.msra.mxu0 0
  %852 = vmatprep.subr.bf16.mxu0 0
  %853 = vmatpush1.bf16.msra.mxu0 0
  %854 = vmatprep.subr.bf16.mxu0 0
  %855 = vmatpush1.bf16.msra.mxu0 %v836
  %856 = vmatprep.subr.bf16.mxu0 0
  %857 = vmatpush1.bf16.msra.mxu0 %v835
  %858 = vmatprep.subr.bf16.mxu0 0
  %859 = vmatpush2.bf16.msra.mxu0 0
  %860 = vmatprep.subr.bf16.mxu0 0
  %861 = vmatpush2.bf16.msra.mxu0 0
  %862 = vmatprep.subr.bf16.mxu0 0
  %863 = vmatpush2.bf16.msra.mxu0 0
  %864 = vmatprep.subr.bf16.mxu0 0
  %865 = vmatpush2.bf16.msra.mxu0 0
  %866 = vmatprep.subr.bf16.mxu0 0
  %867 = vmatpush2.bf16.msra.mxu0 0
  %868 = vmatprep.subr.bf16.mxu0 0
  %869 = vmatpush2.bf16.msra.mxu0 0
  %870 = vmatprep.subr.bf16.mxu0 0
  %871 = vmatpush2.bf16.msra.mxu0 0
  %872 = vmatprep.subr.bf16.mxu0 0
  %873 = vmatpush2.bf16.msra.mxu0 0
  %874 = vmatprep.mubr.bf16.mxu0 0
  %875 = vmatmul.mubr.bf16.gmra.mxu0 %v840
  %v876 = vpop.f32.mrf.mxu0
  %v877 = vadd.f32 0.0, %v876
  %v878 = vpop.f32.mrf.mxu0
  %v879 = vpop.f32.mrf.mxu0
  %v880 = vpop.f32.mrf.mxu0
  %881 = vdwg.mxu0
  %v882 = vunpack.c.l.bf16 %v755
  %v883 = vadd.f32 %v882, %v877
  %v884 = vxor.u32 %v821, 2147483648
  %v885 = vmul.f32 %v884, 1.442695
  %v886 = vpow.pop %v885
  %v887 = vadd.f32 %v886, 1.0
  %v888 = vrcp.pop %v887
  %v889 = vmul.f32 1.0, %v888
  %v890 = vtanh.pop %v821
  %892 = vrot.lane.b32.xlu0 %v757, 32
  %v893 = vpop.permute.xlu0 %892
  %v895 = vmul.f32 %v889, %v893
  %897 = vrot.lane.b32.xlu0 %v890, 32
  %v898 = vpop.permute.xlu0 %897
  %v900 = vmul.f32 %v889, %v898
  %902 = vrot.lane.b32.xlu0 %v900, 32
  %v903 = vpop.permute.xlu0 %902
  %v905 = vadd.f32 %v895, %v903
  %v906 = vtanh.pop %v905
  %908 = vrot.lane.b32.xlu0 %v906, 32
  %v909 = vpop.permute.xlu0 %908
  %v911 = vmul.f32 %v889, %v909
  %v912 = vxor.u32 %v883, 2147483648
  %v913 = vmul.f32 %v912, 1.442695
  %v914 = vpow.pop %v913
  %v915 = vadd.f32 %v914, 1.0
  %v916 = vrcp.pop %v915
  %v917 = vmul.f32 1.0, %v916
  %v918 = vtanh.pop %v883
  %920 = vrot.lane.b32.xlu0 %v759, 32
  %v921 = vpop.permute.xlu0 %920
  %v923 = vmul.f32 %v917, %v921
  %925 = vrot.lane.b32.xlu0 %v918, 32
  %v926 = vpop.permute.xlu0 %925
  %v928 = vmul.f32 %v917, %v926
  %930 = vrot.lane.b32.xlu0 %v928, 32
  %v931 = vpop.permute.xlu0 %930
  %v933 = vadd.f32 %v923, %v931
  %v934 = vtanh.pop %v933
  %936 = vrot.lane.b32.xlu0 %v934, 32
  %v937 = vpop.permute.xlu0 %936
  %v939 = vmul.f32 %v917, %v937
  %vm940 = vcmp.gt.s32.totalorder %v247, 2
  %vm941 = vcmp.gt.s32.totalorder %v247, 5
  %v942 = vsel %vm940, 1, 0
  %943 = vset.pattern.permute.xlu0 0
  %944 = vperm.xlu0 %943, %v942
  %v945 = vpop.permute.xlu0 %944
  %vm946 = vcmp.eq.s32.totalorder %v945, 1
  %948 = vrot.lane.b32.xlu0 %v756, 64
  %v949 = vpop.permute.xlu0 %948
  %v951 = vsel %vm946, %v911, %v949
  %953 = vrot.lane.b32.xlu0 %v951, 64
  %v954 = vpop.permute.xlu0 %953
  %956 = vst.msk [vmem:[#allocation3] sm:$0xff] %vm242, %v954
  %v957 = vsel %vm946, %v905, %v893
  %959 = vrot.lane.b32.xlu0 %v957, 96
  %v960 = vpop.permute.xlu0 %959
  %962 = vst.msk [vmem:[#allocation4] sm:$0xff] %vm242, %v960
  %v963 = vsel %vm941, 1, 0
  %964 = vset.pattern.permute.xlu0 0
  %965 = vperm.xlu0 %964, %v963
  %v966 = vpop.permute.xlu0 %965
  %vm967 = vcmp.eq.s32.totalorder %v966, 1
  %969 = vrot.lane.b32.xlu0 %v758, 64
  %v970 = vpop.permute.xlu0 %969
  %v972 = vsel %vm967, %v939, %v970
  %974 = vrot.lane.b32.xlu0 %v972, 64
  %v975 = vpop.permute.xlu0 %974
  %977 = vst.msk [vmem:[#allocation5] sm:$0xff] %vm242, %v975
  %v978 = vsel %vm967, %v933, %v921
  %980 = vrot.lane.b32.xlu0 %v978, 96
  %v981 = vpop.permute.xlu0 %980
  %983 = vst.msk [vmem:[#allocation6] sm:$0xff] %vm242, %v981
  %v984 = vsel %vm946, %v911, 0.0
  %v985 = vpack.c.bf16 %v984, %v984
  %v987 = vunpack.c.l.b16 %v985
  %v988 = vpack.c.b16 %v987, %v987
  %989 = vrot.lane.b32.xlu0 %v988, 64
  %v990 = vpop.permute.xlu0 %989
  %s992 = scalar_lea.vmem %s6, 8
  %993 = vst.msk [vmem:[%s992] sm:$0xf] %vm487, %v990
  %v994 = vsel %vm967, %v939, 0.0
  %v995 = vpack.c.bf16 %v994, %v994
  %v997 = vunpack.c.l.b16 %v995
  %v998 = vpack.c.b16 %v997, %v997
  %999 = vrot.lane.b32.xlu0 %v998, 96
  %v1000 = vpop.permute.xlu0 %999
  %s1002 = scalar_lea.vmem %s6, 20
  %1003 = vst.msk [vmem:[%s1002] sm:$0xf] %vm498, %v1000
  %s1004 = scalar_lea.vmem [#allocation2], 24
  %v1005 = vld [vmem:[%s1004] sm:$0xf]
  %s1006 = scalar_lea.vmem [#allocation2], 32
  %v1007 = vld [vmem:[%s1006 + $0x4] sm:$0xf]
  %v1008 = vld [vmem:[#allocation3] sm:$0xff]
  %v1009 = vld [vmem:[#allocation4] sm:$0xff]
  %v1010 = vld [vmem:[#allocation5] sm:$0xff]
  %v1011 = vld [vmem:[#allocation6] sm:$0xff]
  %v1012 = vpack.c.bf16 %v1008, %v1008
  %v1013 = vld [vmem:[%s3] sm:$0xf]
  %v1014 = vld [vmem:[%s3 + $0x4] sm:$0xf]
  %v1015 = vld [vmem:[%s3 + $0x8] sm:$0xf]
  %v1016 = vld [vmem:[%s3 + $0xc] sm:$0xf]
  %v1021 = vunpack.c.l.b16 %v1013
  %v1022 = vunpack.c.l.b16 %v1014
  %v1023 = vunpack.c.l.b16 %v1015
  %v1024 = vunpack.c.l.b16 %v1016
  %v1025 = vpack.c.b16 %v1022, %v1021
  %v1026 = vpack.c.b16 %v1024, %v1023
  %v1030 = vsel %vm242, %v1012, 0
  %1032 = vmatprep.subr.bf16.mxu0 0
  %1033 = vmatpush1.bf16.msra.mxu0 0
  %1034 = vmatprep.subr.bf16.mxu0 0
  %1035 = vmatpush1.bf16.msra.mxu0 0
  %1036 = vmatprep.subr.bf16.mxu0 0
  %1037 = vmatpush1.bf16.msra.mxu0 0
  %1038 = vmatprep.subr.bf16.mxu0 0
  %1039 = vmatpush1.bf16.msra.mxu0 0
  %1040 = vmatprep.subr.bf16.mxu0 0
  %1041 = vmatpush1.bf16.msra.mxu0 0
  %1042 = vmatprep.subr.bf16.mxu0 0
  %1043 = vmatpush1.bf16.msra.mxu0 0
  %1044 = vmatprep.subr.bf16.mxu0 0
  %1045 = vmatpush1.bf16.msra.mxu0 %v1026
  %1046 = vmatprep.subr.bf16.mxu0 0
  %1047 = vmatpush1.bf16.msra.mxu0 %v1025
  %1048 = vmatprep.subr.bf16.mxu0 0
  %1049 = vmatpush2.bf16.msra.mxu0 0
  %1050 = vmatprep.subr.bf16.mxu0 0
  %1051 = vmatpush2.bf16.msra.mxu0 0
  %1052 = vmatprep.subr.bf16.mxu0 0
  %1053 = vmatpush2.bf16.msra.mxu0 0
  %1054 = vmatprep.subr.bf16.mxu0 0
  %1055 = vmatpush2.bf16.msra.mxu0 0
  %1056 = vmatprep.subr.bf16.mxu0 0
  %1057 = vmatpush2.bf16.msra.mxu0 0
  %1058 = vmatprep.subr.bf16.mxu0 0
  %1059 = vmatpush2.bf16.msra.mxu0 0
  %1060 = vmatprep.subr.bf16.mxu0 0
  %1061 = vmatpush2.bf16.msra.mxu0 0
  %1062 = vmatprep.subr.bf16.mxu0 0
  %1063 = vmatpush2.bf16.msra.mxu0 0
  %1064 = vmatprep.mubr.bf16.mxu0 0
  %1065 = vmatmul.mubr.bf16.gmra.mxu0 %v1030
  %v1066 = vpop.f32.mrf.mxu0
  %v1067 = vadd.f32 0.0, %v1066
  %v1068 = vpop.f32.mrf.mxu0
  %v1069 = vpop.f32.mrf.mxu0
  %v1070 = vpop.f32.mrf.mxu0
  %1071 = vdwg.mxu0
  %v1072 = vunpack.c.l.bf16 %v1005
  %v1073 = vadd.f32 %v1072, %v1067
  %v1074 = vpack.c.bf16 %v1010, %v1010
  %v1075 = vld [vmem:[%s4] sm:$0xf]
  %v1076 = vld [vmem:[%s4 + $0x4] sm:$0xf]
  %v1077 = vld [vmem:[%s4 + $0x8] sm:$0xf]
  %v1078 = vld [vmem:[%s4 + $0xc] sm:$0xf]
  %v1083 = vunpack.c.l.b16 %v1075
  %v1084 = vunpack.c.l.b16 %v1076
  %v1085 = vunpack.c.l.b16 %v1077
  %v1086 = vunpack.c.l.b16 %v1078
  %v1087 = vpack.c.b16 %v1084, %v1083
  %v1088 = vpack.c.b16 %v1086, %v1085
  %v1092 = vsel %vm242, %v1074, 0
  %1094 = vmatprep.subr.bf16.mxu0 0
  %1095 = vmatpush1.bf16.msra.mxu0 0
  %1096 = vmatprep.subr.bf16.mxu0 0
  %1097 = vmatpush1.bf16.msra.mxu0 0
  %1098 = vmatprep.subr.bf16.mxu0 0
  %1099 = vmatpush1.bf16.msra.mxu0 0
  %1100 = vmatprep.subr.bf16.mxu0 0
  %1101 = vmatpush1.bf16.msra.mxu0 0
  %1102 = vmatprep.subr.bf16.mxu0 0
  %1103 = vmatpush1.bf16.msra.mxu0 0
  %1104 = vmatprep.subr.bf16.mxu0 0
  %1105 = vmatpush1.bf16.msra.mxu0 0
  %1106 = vmatprep.subr.bf16.mxu0 0
  %1107 = vmatpush1.bf16.msra.mxu0 %v1088
  %1108 = vmatprep.subr.bf16.mxu0 0
  %1109 = vmatpush1.bf16.msra.mxu0 %v1087
  %1110 = vmatprep.subr.bf16.mxu0 0
  %1111 = vmatpush2.bf16.msra.mxu0 0
  %1112 = vmatprep.subr.bf16.mxu0 0
  %1113 = vmatpush2.bf16.msra.mxu0 0
  %1114 = vmatprep.subr.bf16.mxu0 0
  %1115 = vmatpush2.bf16.msra.mxu0 0
  %1116 = vmatprep.subr.bf16.mxu0 0
  %1117 = vmatpush2.bf16.msra.mxu0 0
  %1118 = vmatprep.subr.bf16.mxu0 0
  %1119 = vmatpush2.bf16.msra.mxu0 0
  %1120 = vmatprep.subr.bf16.mxu0 0
  %1121 = vmatpush2.bf16.msra.mxu0 0
  %1122 = vmatprep.subr.bf16.mxu0 0
  %1123 = vmatpush2.bf16.msra.mxu0 0
  %1124 = vmatprep.subr.bf16.mxu0 0
  %1125 = vmatpush2.bf16.msra.mxu0 0
  %1126 = vmatprep.mubr.bf16.mxu0 0
  %1127 = vmatmul.mubr.bf16.gmra.mxu0 %v1092
  %v1128 = vpop.f32.mrf.mxu0
  %v1129 = vadd.f32 0.0, %v1128
  %v1130 = vpop.f32.mrf.mxu0
  %v1131 = vpop.f32.mrf.mxu0
  %v1132 = vpop.f32.mrf.mxu0
  %1133 = vdwg.mxu0
  %v1134 = vunpack.c.l.bf16 %v1007
  %v1135 = vadd.f32 %v1134, %v1129
  %v1136 = vxor.u32 %v1073, 2147483648
  %v1137 = vmul.f32 %v1136, 1.442695
  %v1138 = vpow.pop %v1137
  %v1139 = vadd.f32 %v1138, 1.0
  %v1140 = vrcp.pop %v1139
  %v1141 = vmul.f32 1.0, %v1140
  %v1142 = vtanh.pop %v1073
  %1144 = vrot.lane.b32.xlu0 %v1009, 32
  %v1145 = vpop.permute.xlu0 %1144
  %v1147 = vmul.f32 %v1141, %v1145
  %1149 = vrot.lane.b32.xlu0 %v1142, 32
  %v1150 = vpop.permute.xlu0 %1149
  %v1152 = vmul.f32 %v1141, %v1150
  %1154 = vrot.lane.b32.xlu0 %v1152, 32
  %v1155 = vpop.permute.xlu0 %1154
  %v1157 = vadd.f32 %v1147, %v1155
  %v1158 = vtanh.pop %v1157
  %1160 = vrot.lane.b32.xlu0 %v1158, 32
  %v1161 = vpop.permute.xlu0 %1160
  %v1163 = vmul.f32 %v1141, %v1161
  %v1164 = vxor.u32 %v1135, 2147483648
  %v1165 = vmul.f32 %v1164, 1.442695
  %v1166 = vpow.pop %v1165
  %v1167 = vadd.f32 %v1166, 1.0
  %v1168 = vrcp.pop %v1167
  %v1169 = vmul.f32 1.0, %v1168
  %v1170 = vtanh.pop %v1135
  %1172 = vrot.lane.b32.xlu0 %v1011, 32
  %v1173 = vpop.permute.xlu0 %1172
  %v1175 = vmul.f32 %v1169, %v1173
  %1177 = vrot.lane.b32.xlu0 %v1170, 32
  %v1178 = vpop.permute.xlu0 %1177
  %v1180 = vmul.f32 %v1169, %v1178
  %1182 = vrot.lane.b32.xlu0 %v1180, 32
  %v1183 = vpop.permute.xlu0 %1182
  %v1185 = vadd.f32 %v1175, %v1183
  %v1186 = vtanh.pop %v1185
  %1188 = vrot.lane.b32.xlu0 %v1186, 32
  %v1189 = vpop.permute.xlu0 %1188
  %v1191 = vmul.f32 %v1169, %v1189
  %vm1192 = vcmp.gt.s32.totalorder %v247, 3
  %vm1193 = vcmp.gt.s32.totalorder %v247, 4
  %v1194 = vsel %vm1192, 1, 0
  %1195 = vset.pattern.permute.xlu0 0
  %1196 = vperm.xlu0 %1195, %v1194
  %v1197 = vpop.permute.xlu0 %1196
  %vm1198 = vcmp.eq.s32.totalorder %v1197, 1
  %1200 = vrot.lane.b32.xlu0 %v1008, 64
  %v1201 = vpop.permute.xlu0 %1200
  %v1203 = vsel %vm1198, %v1163, %v1201
  %1205 = vrot.lane.b32.xlu0 %v1203, 64
  %v1206 = vpop.permute.xlu0 %1205
  %1208 = vst.msk [vmem:[#allocation3] sm:$0xff] %vm242, %v1206
  %v1209 = vsel %vm1198, %v1157, %v1145
  %1211 = vrot.lane.b32.xlu0 %v1209, 96
  %v1212 = vpop.permute.xlu0 %1211
  %1214 = vst.msk [vmem:[#allocation4] sm:$0xff] %vm242, %v1212
  %v1215 = vsel %vm1193, 1, 0
  %1216 = vset.pattern.permute.xlu0 0
  %1217 = vperm.xlu0 %1216, %v1215
  %v1218 = vpop.permute.xlu0 %1217
  %vm1219 = vcmp.eq.s32.totalorder %v1218, 1
  %1221 = vrot.lane.b32.xlu0 %v1010, 64
  %v1222 = vpop.permute.xlu0 %1221
  %v1224 = vsel %vm1219, %v1191, %v1222
  %1226 = vrot.lane.b32.xlu0 %v1224, 64
  %v1227 = vpop.permute.xlu0 %1226
  %1229 = vst.msk [vmem:[#allocation5] sm:$0xff] %vm242, %v1227
  %v1230 = vsel %vm1219, %v1185, %v1173
  %1232 = vrot.lane.b32.xlu0 %v1230, 96
  %v1233 = vpop.permute.xlu0 %1232
  %1235 = vst.msk [vmem:[#allocation6] sm:$0xff] %vm242, %v1233
  %v1236 = vsel %vm1198, %v1163, 0.0
  %v1237 = vpack.c.bf16 %v1236, %v1236
  %v1239 = vunpack.c.l.b16 %v1237
  %v1240 = vpack.c.b16 %v1239, %v1239
  %1241 = vrot.lane.b32.xlu0 %v1240, 64
  %v1242 = vpop.permute.xlu0 %1241
  %s1244 = scalar_lea.vmem %s6, 12
  %1245 = vst.msk [vmem:[%s1244] sm:$0xf] %vm487, %v1242
  %v1246 = vsel %vm1219, %v1191, 0.0
  %v1247 = vpack.c.bf16 %v1246, %v1246
  %v1249 = vunpack.c.l.b16 %v1247
  %v1250 = vpack.c.b16 %v1249, %v1249
  %1251 = vrot.lane.b32.xlu0 %v1250, 96
  %v1252 = vpop.permute.xlu0 %1251
  %s1254 = scalar_lea.vmem %s6, 16
  %1255 = vst.msk [vmem:[%s1254] sm:$0xf] %vm498, %v1252
  %v1256 = vld [vmem:[%s1006] sm:$0xf]
  %v1257 = vld [vmem:[%s1004 + $0x4] sm:$0xf]
  %v1258 = vld [vmem:[#allocation3] sm:$0xff]
  %v1259 = vld [vmem:[#allocation4] sm:$0xff]
  %v1260 = vld [vmem:[#allocation5] sm:$0xff]
  %v1261 = vld [vmem:[#allocation6] sm:$0xff]
  %v1262 = vpack.c.bf16 %v1258, %v1258
  %v1263 = vld [vmem:[%s3] sm:$0xf]
  %v1264 = vld [vmem:[%s3 + $0x4] sm:$0xf]
  %v1265 = vld [vmem:[%s3 + $0x8] sm:$0xf]
  %v1266 = vld [vmem:[%s3 + $0xc] sm:$0xf]
  %v1271 = vunpack.c.l.b16 %v1263
  %v1272 = vunpack.c.l.b16 %v1264
  %v1273 = vunpack.c.l.b16 %v1265
  %v1274 = vunpack.c.l.b16 %v1266
  %v1275 = vpack.c.b16 %v1272, %v1271
  %v1276 = vpack.c.b16 %v1274, %v1273
  %v1280 = vsel %vm242, %v1262, 0
  %1282 = vmatprep.subr.bf16.mxu0 0
  %1283 = vmatpush1.bf16.msra.mxu0 0
  %1284 = vmatprep.subr.bf16.mxu0 0
  %1285 = vmatpush1.bf16.msra.mxu0 0
  %1286 = vmatprep.subr.bf16.mxu0 0
  %1287 = vmatpush1.bf16.msra.mxu0 0
  %1288 = vmatprep.subr.bf16.mxu0 0
  %1289 = vmatpush1.bf16.msra.mxu0 0
  %1290 = vmatprep.subr.bf16.mxu0 0
  %1291 = vmatpush1.bf16.msra.mxu0 0
  %1292 = vmatprep.subr.bf16.mxu0 0
  %1293 = vmatpush1.bf16.msra.mxu0 0
  %1294 = vmatprep.subr.bf16.mxu0 0
  %1295 = vmatpush1.bf16.msra.mxu0 %v1276
  %1296 = vmatprep.subr.bf16.mxu0 0
  %1297 = vmatpush1.bf16.msra.mxu0 %v1275
  %1298 = vmatprep.subr.bf16.mxu0 0
  %1299 = vmatpush2.bf16.msra.mxu0 0
  %1300 = vmatprep.subr.bf16.mxu0 0
  %1301 = vmatpush2.bf16.msra.mxu0 0
  %1302 = vmatprep.subr.bf16.mxu0 0
  %1303 = vmatpush2.bf16.msra.mxu0 0
  %1304 = vmatprep.subr.bf16.mxu0 0
  %1305 = vmatpush2.bf16.msra.mxu0 0
  %1306 = vmatprep.subr.bf16.mxu0 0
  %1307 = vmatpush2.bf16.msra.mxu0 0
  %1308 = vmatprep.subr.bf16.mxu0 0
  %1309 = vmatpush2.bf16.msra.mxu0 0
  %1310 = vmatprep.subr.bf16.mxu0 0
  %1311 = vmatpush2.bf16.msra.mxu0 0
  %1312 = vmatprep.subr.bf16.mxu0 0
  %1313 = vmatpush2.bf16.msra.mxu0 0
  %1314 = vmatprep.mubr.bf16.mxu0 0
  %1315 = vmatmul.mubr.bf16.gmra.mxu0 %v1280
  %v1316 = vpop.f32.mrf.mxu0
  %v1317 = vadd.f32 0.0, %v1316
  %v1318 = vpop.f32.mrf.mxu0
  %v1319 = vpop.f32.mrf.mxu0
  %v1320 = vpop.f32.mrf.mxu0
  %1321 = vdwg.mxu0
  %v1322 = vunpack.c.l.bf16 %v1256
  %v1323 = vadd.f32 %v1322, %v1317
  %v1324 = vpack.c.bf16 %v1260, %v1260
  %v1325 = vld [vmem:[%s4] sm:$0xf]
  %v1326 = vld [vmem:[%s4 + $0x4] sm:$0xf]
  %v1327 = vld [vmem:[%s4 + $0x8] sm:$0xf]
  %v1328 = vld [vmem:[%s4 + $0xc] sm:$0xf]
  %v1333 = vunpack.c.l.b16 %v1325
  %v1334 = vunpack.c.l.b16 %v1326
  %v1335 = vunpack.c.l.b16 %v1327
  %v1336 = vunpack.c.l.b16 %v1328
  %v1337 = vpack.c.b16 %v1334, %v1333
  %v1338 = vpack.c.b16 %v1336, %v1335
  %v1342 = vsel %vm242, %v1324, 0
  %1344 = vmatprep.subr.bf16.mxu0 0
  %1345 = vmatpush1.bf16.msra.mxu0 0
  %1346 = vmatprep.subr.bf16.mxu0 0
  %1347 = vmatpush1.bf16.msra.mxu0 0
  %1348 = vmatprep.subr.bf16.mxu0 0
  %1349 = vmatpush1.bf16.msra.mxu0 0
  %1350 = vmatprep.subr.bf16.mxu0 0
  %1351 = vmatpush1.bf16.msra.mxu0 0
  %1352 = vmatprep.subr.bf16.mxu0 0
  %1353 = vmatpush1.bf16.msra.mxu0 0
  %1354 = vmatprep.subr.bf16.mxu0 0
  %1355 = vmatpush1.bf16.msra.mxu0 0
  %1356 = vmatprep.subr.bf16.mxu0 0
  %1357 = vmatpush1.bf16.msra.mxu0 %v1338
  %1358 = vmatprep.subr.bf16.mxu0 0
  %1359 = vmatpush1.bf16.msra.mxu0 %v1337
  %1360 = vmatprep.subr.bf16.mxu0 0
  %1361 = vmatpush2.bf16.msra.mxu0 0
  %1362 = vmatprep.subr.bf16.mxu0 0
  %1363 = vmatpush2.bf16.msra.mxu0 0
  %1364 = vmatprep.subr.bf16.mxu0 0
  %1365 = vmatpush2.bf16.msra.mxu0 0
  %1366 = vmatprep.subr.bf16.mxu0 0
  %1367 = vmatpush2.bf16.msra.mxu0 0
  %1368 = vmatprep.subr.bf16.mxu0 0
  %1369 = vmatpush2.bf16.msra.mxu0 0
  %1370 = vmatprep.subr.bf16.mxu0 0
  %1371 = vmatpush2.bf16.msra.mxu0 0
  %1372 = vmatprep.subr.bf16.mxu0 0
  %1373 = vmatpush2.bf16.msra.mxu0 0
  %1374 = vmatprep.subr.bf16.mxu0 0
  %1375 = vmatpush2.bf16.msra.mxu0 0
  %1376 = vmatprep.mubr.bf16.mxu0 0
  %1377 = vmatmul.mubr.bf16.gmra.mxu0 %v1342
  %v1378 = vpop.f32.mrf.mxu0
  %v1379 = vadd.f32 0.0, %v1378
  %v1380 = vpop.f32.mrf.mxu0
  %v1381 = vpop.f32.mrf.mxu0
  %v1382 = vpop.f32.mrf.mxu0
  %1383 = vdwg.mxu0
  %v1384 = vunpack.c.l.bf16 %v1257
  %v1385 = vadd.f32 %v1384, %v1379
  %v1386 = vxor.u32 %v1323, 2147483648
  %v1387 = vmul.f32 %v1386, 1.442695
  %v1388 = vpow.pop %v1387
  %v1389 = vadd.f32 %v1388, 1.0
  %v1390 = vrcp.pop %v1389
  %v1391 = vmul.f32 1.0, %v1390
  %v1392 = vtanh.pop %v1323
  %1394 = vrot.lane.b32.xlu0 %v1259, 32
  %v1395 = vpop.permute.xlu0 %1394
  %v1397 = vmul.f32 %v1391, %v1395
  %1399 = vrot.lane.b32.xlu0 %v1392, 32
  %v1400 = vpop.permute.xlu0 %1399
  %v1402 = vmul.f32 %v1391, %v1400
  %1404 = vrot.lane.b32.xlu0 %v1402, 32
  %v1405 = vpop.permute.xlu0 %1404
  %v1407 = vadd.f32 %v1397, %v1405
  %v1408 = vtanh.pop %v1407
  %1410 = vrot.lane.b32.xlu0 %v1408, 32
  %v1411 = vpop.permute.xlu0 %1410
  %v1413 = vmul.f32 %v1391, %v1411
  %v1414 = vxor.u32 %v1385, 2147483648
  %v1415 = vmul.f32 %v1414, 1.442695
  %v1416 = vpow.pop %v1415
  %v1417 = vadd.f32 %v1416, 1.0
  %v1418 = vrcp.pop %v1417
  %v1419 = vmul.f32 1.0, %v1418
  %v1420 = vtanh.pop %v1385
  %1422 = vrot.lane.b32.xlu0 %v1261, 32
  %v1423 = vpop.permute.xlu0 %1422
  %v1425 = vmul.f32 %v1419, %v1423
  %1427 = vrot.lane.b32.xlu0 %v1420, 32
  %v1428 = vpop.permute.xlu0 %1427
  %v1430 = vmul.f32 %v1419, %v1428
  %1432 = vrot.lane.b32.xlu0 %v1430, 32
  %v1433 = vpop.permute.xlu0 %1432
  %v1435 = vadd.f32 %v1425, %v1433
  %v1436 = vtanh.pop %v1435
  %1438 = vrot.lane.b32.xlu0 %v1436, 32
  %v1439 = vpop.permute.xlu0 %1438
  %v1441 = vmul.f32 %v1419, %v1439
  %1443 = vrot.lane.b32.xlu0 %v1258, 64
  %v1444 = vpop.permute.xlu0 %1443
  %v1446 = vsel %vm1219, %v1413, %v1444
  %1448 = vrot.lane.b32.xlu0 %v1446, 64
  %v1449 = vpop.permute.xlu0 %1448
  %1451 = vst.msk [vmem:[#allocation3] sm:$0xff] %vm242, %v1449
  %v1452 = vsel %vm1219, %v1407, %v1395
  %1454 = vrot.lane.b32.xlu0 %v1452, 96
  %v1455 = vpop.permute.xlu0 %1454
  %1457 = vst.msk [vmem:[#allocation4] sm:$0xff] %vm242, %v1455
  %1459 = vrot.lane.b32.xlu0 %v1260, 64
  %v1460 = vpop.permute.xlu0 %1459
  %v1462 = vsel %vm1198, %v1441, %v1460
  %1464 = vrot.lane.b32.xlu0 %v1462, 64
  %v1465 = vpop.permute.xlu0 %1464
  %1467 = vst.msk [vmem:[#allocation5] sm:$0xff] %vm242, %v1465
  %v1468 = vsel %vm1198, %v1435, %v1423
  %1470 = vrot.lane.b32.xlu0 %v1468, 96
  %v1471 = vpop.permute.xlu0 %1470
  %1473 = vst.msk [vmem:[#allocation6] sm:$0xff] %vm242, %v1471
  %v1474 = vsel %vm1219, %v1413, 0.0
  %v1475 = vpack.c.bf16 %v1474, %v1474
  %v1477 = vunpack.c.l.b16 %v1475
  %v1478 = vpack.c.b16 %v1477, %v1477
  %1479 = vrot.lane.b32.xlu0 %v1478, 64
  %v1480 = vpop.permute.xlu0 %1479
  %1482 = vst.msk [vmem:[%s1254] sm:$0xf] %vm487, %v1480
  %v1483 = vsel %vm1198, %v1441, 0.0
  %v1484 = vpack.c.bf16 %v1483, %v1483
  %v1486 = vunpack.c.l.b16 %v1484
  %v1487 = vpack.c.b16 %v1486, %v1486
  %1488 = vrot.lane.b32.xlu0 %v1487, 96
  %v1489 = vpop.permute.xlu0 %1488
  %1491 = vst.msk [vmem:[%s1244] sm:$0xf] %vm498, %v1489
  %v1492 = vld [vmem:[%s754] sm:$0xf]
  %v1493 = vld [vmem:[%s752 + $0x4] sm:$0xf]
  %v1494 = vld [vmem:[#allocation3] sm:$0xff]
  %v1495 = vld [vmem:[#allocation4] sm:$0xff]
  %v1496 = vld [vmem:[#allocation5] sm:$0xff]
  %v1497 = vld [vmem:[#allocation6] sm:$0xff]
  %v1498 = vpack.c.bf16 %v1494, %v1494
  %v1499 = vld [vmem:[%s3] sm:$0xf]
  %v1500 = vld [vmem:[%s3 + $0x4] sm:$0xf]
  %v1501 = vld [vmem:[%s3 + $0x8] sm:$0xf]
  %v1502 = vld [vmem:[%s3 + $0xc] sm:$0xf]
  %v1507 = vunpack.c.l.b16 %v1499
  %v1508 = vunpack.c.l.b16 %v1500
  %v1509 = vunpack.c.l.b16 %v1501
  %v1510 = vunpack.c.l.b16 %v1502
  %v1511 = vpack.c.b16 %v1508, %v1507
  %v1512 = vpack.c.b16 %v1510, %v1509
  %v1516 = vsel %vm242, %v1498, 0
  %1518 = vmatprep.subr.bf16.mxu0 0
  %1519 = vmatpush1.bf16.msra.mxu0 0
  %1520 = vmatprep.subr.bf16.mxu0 0
  %1521 = vmatpush1.bf16.msra.mxu0 0
  %1522 = vmatprep.subr.bf16.mxu0 0
  %1523 = vmatpush1.bf16.msra.mxu0 0
  %1524 = vmatprep.subr.bf16.mxu0 0
  %1525 = vmatpush1.bf16.msra.mxu0 0
  %1526 = vmatprep.subr.bf16.mxu0 0
  %1527 = vmatpush1.bf16.msra.mxu0 0
  %1528 = vmatprep.subr.bf16.mxu0 0
  %1529 = vmatpush1.bf16.msra.mxu0 0
  %1530 = vmatprep.subr.bf16.mxu0 0
  %1531 = vmatpush1.bf16.msra.mxu0 %v1512
  %1532 = vmatprep.subr.bf16.mxu0 0
  %1533 = vmatpush1.bf16.msra.mxu0 %v1511
  %1534 = vmatprep.subr.bf16.mxu0 0
  %1535 = vmatpush2.bf16.msra.mxu0 0
  %1536 = vmatprep.subr.bf16.mxu0 0
  %1537 = vmatpush2.bf16.msra.mxu0 0
  %1538 = vmatprep.subr.bf16.mxu0 0
  %1539 = vmatpush2.bf16.msra.mxu0 0
  %1540 = vmatprep.subr.bf16.mxu0 0
  %1541 = vmatpush2.bf16.msra.mxu0 0
  %1542 = vmatprep.subr.bf16.mxu0 0
  %1543 = vmatpush2.bf16.msra.mxu0 0
  %1544 = vmatprep.subr.bf16.mxu0 0
  %1545 = vmatpush2.bf16.msra.mxu0 0
  %1546 = vmatprep.subr.bf16.mxu0 0
  %1547 = vmatpush2.bf16.msra.mxu0 0
  %1548 = vmatprep.subr.bf16.mxu0 0
  %1549 = vmatpush2.bf16.msra.mxu0 0
  %1550 = vmatprep.mubr.bf16.mxu0 0
  %1551 = vmatmul.mubr.bf16.gmra.mxu0 %v1516
  %v1552 = vpop.f32.mrf.mxu0
  %v1553 = vadd.f32 0.0, %v1552
  %v1554 = vpop.f32.mrf.mxu0
  %v1555 = vpop.f32.mrf.mxu0
  %v1556 = vpop.f32.mrf.mxu0
  %1557 = vdwg.mxu0
  %v1558 = vunpack.c.l.bf16 %v1492
  %v1559 = vadd.f32 %v1558, %v1553
  %v1560 = vpack.c.bf16 %v1496, %v1496
  %v1561 = vld [vmem:[%s4] sm:$0xf]
  %v1562 = vld [vmem:[%s4 + $0x4] sm:$0xf]
  %v1563 = vld [vmem:[%s4 + $0x8] sm:$0xf]
  %v1564 = vld [vmem:[%s4 + $0xc] sm:$0xf]
  %v1569 = vunpack.c.l.b16 %v1561
  %v1570 = vunpack.c.l.b16 %v1562
  %v1571 = vunpack.c.l.b16 %v1563
  %v1572 = vunpack.c.l.b16 %v1564
  %v1573 = vpack.c.b16 %v1570, %v1569
  %v1574 = vpack.c.b16 %v1572, %v1571
  %v1578 = vsel %vm242, %v1560, 0
  %1580 = vmatprep.subr.bf16.mxu0 0
  %1581 = vmatpush1.bf16.msra.mxu0 0
  %1582 = vmatprep.subr.bf16.mxu0 0
  %1583 = vmatpush1.bf16.msra.mxu0 0
  %1584 = vmatprep.subr.bf16.mxu0 0
  %1585 = vmatpush1.bf16.msra.mxu0 0
  %1586 = vmatprep.subr.bf16.mxu0 0
  %1587 = vmatpush1.bf16.msra.mxu0 0
  %1588 = vmatprep.subr.bf16.mxu0 0
  %1589 = vmatpush1.bf16.msra.mxu0 0
  %1590 = vmatprep.subr.bf16.mxu0 0
  %1591 = vmatpush1.bf16.msra.mxu0 0
  %1592 = vmatprep.subr.bf16.mxu0 0
  %1593 = vmatpush1.bf16.msra.mxu0 %v1574
  %1594 = vmatprep.subr.bf16.mxu0 0
  %1595 = vmatpush1.bf16.msra.mxu0 %v1573
  %1596 = vmatprep.subr.bf16.mxu0 0
  %1597 = vmatpush2.bf16.msra.mxu0 0
  %1598 = vmatprep.subr.bf16.mxu0 0
  %1599 = vmatpush2.bf16.msra.mxu0 0
  %1600 = vmatprep.subr.bf16.mxu0 0
  %1601 = vmatpush2.bf16.msra.mxu0 0
  %1602 = vmatprep.subr.bf16.mxu0 0
  %1603 = vmatpush2.bf16.msra.mxu0 0
  %1604 = vmatprep.subr.bf16.mxu0 0
  %1605 = vmatpush2.bf16.msra.mxu0 0
  %1606 = vmatprep.subr.bf16.mxu0 0
  %1607 = vmatpush2.bf16.msra.mxu0 0
  %1608 = vmatprep.subr.bf16.mxu0 0
  %1609 = vmatpush2.bf16.msra.mxu0 0
  %1610 = vmatprep.subr.bf16.mxu0 0
  %1611 = vmatpush2.bf16.msra.mxu0 0
  %1612 = vmatprep.mubr.bf16.mxu0 0
  %1613 = vmatmul.mubr.bf16.gmra.mxu0 %v1578
  %v1614 = vpop.f32.mrf.mxu0
  %v1615 = vadd.f32 0.0, %v1614
  %v1616 = vpop.f32.mrf.mxu0
  %v1617 = vpop.f32.mrf.mxu0
  %v1618 = vpop.f32.mrf.mxu0
  %1619 = vdwg.mxu0
  %v1620 = vunpack.c.l.bf16 %v1493
  %v1621 = vadd.f32 %v1620, %v1615
  %v1622 = vxor.u32 %v1559, 2147483648
  %v1623 = vmul.f32 %v1622, 1.442695
  %v1624 = vpow.pop %v1623
  %v1625 = vadd.f32 %v1624, 1.0
  %v1626 = vrcp.pop %v1625
  %v1627 = vmul.f32 1.0, %v1626
  %v1628 = vtanh.pop %v1559
  %1630 = vrot.lane.b32.xlu0 %v1495, 32
  %v1631 = vpop.permute.xlu0 %1630
  %v1633 = vmul.f32 %v1627, %v1631
  %1635 = vrot.lane.b32.xlu0 %v1628, 32
  %v1636 = vpop.permute.xlu0 %1635
  %v1638 = vmul.f32 %v1627, %v1636
  %1640 = vrot.lane.b32.xlu0 %v1638, 32
  %v1641 = vpop.permute.xlu0 %1640
  %v1643 = vadd.f32 %v1633, %v1641
  %v1644 = vtanh.pop %v1643
  %1646 = vrot.lane.b32.xlu0 %v1644, 32
  %v1647 = vpop.permute.xlu0 %1646
  %v1649 = vmul.f32 %v1627, %v1647
  %v1650 = vxor.u32 %v1621, 2147483648
  %v1651 = vmul.f32 %v1650, 1.442695
  %v1652 = vpow.pop %v1651
  %v1653 = vadd.f32 %v1652, 1.0
  %v1654 = vrcp.pop %v1653
  %v1655 = vmul.f32 1.0, %v1654
  %v1656 = vtanh.pop %v1621
  %1658 = vrot.lane.b32.xlu0 %v1497, 32
  %v1659 = vpop.permute.xlu0 %1658
  %v1661 = vmul.f32 %v1655, %v1659
  %1663 = vrot.lane.b32.xlu0 %v1656, 32
  %v1664 = vpop.permute.xlu0 %1663
  %v1666 = vmul.f32 %v1655, %v1664
  %1668 = vrot.lane.b32.xlu0 %v1666, 32
  %v1669 = vpop.permute.xlu0 %1668
  %v1671 = vadd.f32 %v1661, %v1669
  %v1672 = vtanh.pop %v1671
  %1674 = vrot.lane.b32.xlu0 %v1672, 32
  %v1675 = vpop.permute.xlu0 %1674
  %v1677 = vmul.f32 %v1655, %v1675
  %1679 = vrot.lane.b32.xlu0 %v1494, 64
  %v1680 = vpop.permute.xlu0 %1679
  %v1682 = vsel %vm967, %v1649, %v1680
  %1684 = vrot.lane.b32.xlu0 %v1682, 64
  %v1685 = vpop.permute.xlu0 %1684
  %1687 = vst.msk [vmem:[#allocation3] sm:$0xff] %vm242, %v1685
  %v1688 = vsel %vm967, %v1643, %v1631
  %1690 = vrot.lane.b32.xlu0 %v1688, 96
  %v1691 = vpop.permute.xlu0 %1690
  %1693 = vst.msk [vmem:[#allocation4] sm:$0xff] %vm242, %v1691
  %1695 = vrot.lane.b32.xlu0 %v1496, 64
  %v1696 = vpop.permute.xlu0 %1695
  %v1698 = vsel %vm946, %v1677, %v1696
  %1700 = vrot.lane.b32.xlu0 %v1698, 64
  %v1701 = vpop.permute.xlu0 %1700
  %1703 = vst.msk [vmem:[#allocation5] sm:$0xff] %vm242, %v1701
  %v1704 = vsel %vm946, %v1671, %v1659
  %1706 = vrot.lane.b32.xlu0 %v1704, 96
  %v1707 = vpop.permute.xlu0 %1706
  %1709 = vst.msk [vmem:[#allocation6] sm:$0xff] %vm242, %v1707
  %v1710 = vsel %vm967, %v1649, 0.0
  %v1711 = vpack.c.bf16 %v1710, %v1710
  %v1713 = vunpack.c.l.b16 %v1711
  %v1714 = vpack.c.b16 %v1713, %v1713
  %1715 = vrot.lane.b32.xlu0 %v1714, 64
  %v1716 = vpop.permute.xlu0 %1715
  %1718 = vst.msk [vmem:[%s1002] sm:$0xf] %vm487, %v1716
  %v1719 = vsel %vm946, %v1677, 0.0
  %v1720 = vpack.c.bf16 %v1719, %v1719
  %v1722 = vunpack.c.l.b16 %v1720
  %v1723 = vpack.c.b16 %v1722, %v1722
  %1724 = vrot.lane.b32.xlu0 %v1723, 96
  %v1725 = vpop.permute.xlu0 %1724
  %1727 = vst.msk [vmem:[%s992] sm:$0xf] %vm498, %v1725
  %v1728 = vld [vmem:[%s502] sm:$0xf]
  %v1729 = vld [vmem:[%s500 + $0x4] sm:$0xf]
  %v1730 = vld [vmem:[#allocation3] sm:$0xff]
  %v1731 = vld [vmem:[#allocation4] sm:$0xff]
  %v1732 = vld [vmem:[#allocation5] sm:$0xff]
  %v1733 = vld [vmem:[#allocation6] sm:$0xff]
  %v1734 = vpack.c.bf16 %v1730, %v1730
  %v1735 = vld [vmem:[%s3] sm:$0xf]
  %v1736 = vld [vmem:[%s3 + $0x4] sm:$0xf]
  %v1737 = vld [vmem:[%s3 + $0x8] sm:$0xf]
  %v1738 = vld [vmem:[%s3 + $0xc] sm:$0xf]
  %v1743 = vunpack.c.l.b16 %v1735
  %v1744 = vunpack.c.l.b16 %v1736
  %v1745 = vunpack.c.l.b16 %v1737
  %v1746 = vunpack.c.l.b16 %v1738
  %v1747 = vpack.c.b16 %v1744, %v1743
  %v1748 = vpack.c.b16 %v1746, %v1745
  %v1752 = vsel %vm242, %v1734, 0
  %1754 = vmatprep.subr.bf16.mxu0 0
  %1755 = vmatpush1.bf16.msra.mxu0 0
  %1756 = vmatprep.subr.bf16.mxu0 0
  %1757 = vmatpush1.bf16.msra.mxu0 0
  %1758 = vmatprep.subr.bf16.mxu0 0
  %1759 = vmatpush1.bf16.msra.mxu0 0
  %1760 = vmatprep.subr.bf16.mxu0 0
  %1761 = vmatpush1.bf16.msra.mxu0 0
  %1762 = vmatprep.subr.bf16.mxu0 0
  %1763 = vmatpush1.bf16.msra.mxu0 0
  %1764 = vmatprep.subr.bf16.mxu0 0
  %1765 = vmatpush1.bf16.msra.mxu0 0
  %1766 = vmatprep.subr.bf16.mxu0 0
  %1767 = vmatpush1.bf16.msra.mxu0 %v1748
  %1768 = vmatprep.subr.bf16.mxu0 0
  %1769 = vmatpush1.bf16.msra.mxu0 %v1747
  %1770 = vmatprep.subr.bf16.mxu0 0
  %1771 = vmatpush2.bf16.msra.mxu0 0
  %1772 = vmatprep.subr.bf16.mxu0 0
  %1773 = vmatpush2.bf16.msra.mxu0 0
  %1774 = vmatprep.subr.bf16.mxu0 0
  %1775 = vmatpush2.bf16.msra.mxu0 0
  %1776 = vmatprep.subr.bf16.mxu0 0
  %1777 = vmatpush2.bf16.msra.mxu0 0
  %1778 = vmatprep.subr.bf16.mxu0 0
  %1779 = vmatpush2.bf16.msra.mxu0 0
  %1780 = vmatprep.subr.bf16.mxu0 0
  %1781 = vmatpush2.bf16.msra.mxu0 0
  %1782 = vmatprep.subr.bf16.mxu0 0
  %1783 = vmatpush2.bf16.msra.mxu0 0
  %1784 = vmatprep.subr.bf16.mxu0 0
  %1785 = vmatpush2.bf16.msra.mxu0 0
  %1786 = vmatprep.mubr.bf16.mxu0 0
  %1787 = vmatmul.mubr.bf16.gmra.mxu0 %v1752
  %v1788 = vpop.f32.mrf.mxu0
  %v1789 = vadd.f32 0.0, %v1788
  %v1790 = vpop.f32.mrf.mxu0
  %v1791 = vpop.f32.mrf.mxu0
  %v1792 = vpop.f32.mrf.mxu0
  %1793 = vdwg.mxu0
  %v1794 = vunpack.c.l.bf16 %v1728
  %v1795 = vadd.f32 %v1794, %v1789
  %v1796 = vpack.c.bf16 %v1732, %v1732
  %v1797 = vld [vmem:[%s4] sm:$0xf]
  %v1798 = vld [vmem:[%s4 + $0x4] sm:$0xf]
  %v1799 = vld [vmem:[%s4 + $0x8] sm:$0xf]
  %v1800 = vld [vmem:[%s4 + $0xc] sm:$0xf]
  %v1805 = vunpack.c.l.b16 %v1797
  %v1806 = vunpack.c.l.b16 %v1798
  %v1807 = vunpack.c.l.b16 %v1799
  %v1808 = vunpack.c.l.b16 %v1800
  %v1809 = vpack.c.b16 %v1806, %v1805
  %v1810 = vpack.c.b16 %v1808, %v1807
  %v1814 = vsel %vm242, %v1796, 0
  %1816 = vmatprep.subr.bf16.mxu0 0
  %1817 = vmatpush1.bf16.msra.mxu0 0
  %1818 = vmatprep.subr.bf16.mxu0 0
  %1819 = vmatpush1.bf16.msra.mxu0 0
  %1820 = vmatprep.subr.bf16.mxu0 0
  %1821 = vmatpush1.bf16.msra.mxu0 0
  %1822 = vmatprep.subr.bf16.mxu0 0
  %1823 = vmatpush1.bf16.msra.mxu0 0
  %1824 = vmatprep.subr.bf16.mxu0 0
  %1825 = vmatpush1.bf16.msra.mxu0 0
  %1826 = vmatprep.subr.bf16.mxu0 0
  %1827 = vmatpush1.bf16.msra.mxu0 0
  %1828 = vmatprep.subr.bf16.mxu0 0
  %1829 = vmatpush1.bf16.msra.mxu0 %v1810
  %1830 = vmatprep.subr.bf16.mxu0 0
  %1831 = vmatpush1.bf16.msra.mxu0 %v1809
  %1832 = vmatprep.subr.bf16.mxu0 0
  %1833 = vmatpush2.bf16.msra.mxu0 0
  %1834 = vmatprep.subr.bf16.mxu0 0
  %1835 = vmatpush2.bf16.msra.mxu0 0
  %1836 = vmatprep.subr.bf16.mxu0 0
  %1837 = vmatpush2.bf16.msra.mxu0 0
  %1838 = vmatprep.subr.bf16.mxu0 0
  %1839 = vmatpush2.bf16.msra.mxu0 0
  %1840 = vmatprep.subr.bf16.mxu0 0
  %1841 = vmatpush2.bf16.msra.mxu0 0
  %1842 = vmatprep.subr.bf16.mxu0 0
  %1843 = vmatpush2.bf16.msra.mxu0 0
  %1844 = vmatprep.subr.bf16.mxu0 0
  %1845 = vmatpush2.bf16.msra.mxu0 0
  %1846 = vmatprep.subr.bf16.mxu0 0
  %1847 = vmatpush2.bf16.msra.mxu0 0
  %1848 = vmatprep.mubr.bf16.mxu0 0
  %1849 = vmatmul.mubr.bf16.gmra.mxu0 %v1814
  %v1850 = vpop.f32.mrf.mxu0
  %v1851 = vadd.f32 0.0, %v1850
  %v1852 = vpop.f32.mrf.mxu0
  %v1853 = vpop.f32.mrf.mxu0
  %v1854 = vpop.f32.mrf.mxu0
  %1855 = vdwg.mxu0
  %v1856 = vunpack.c.l.bf16 %v1729
  %v1857 = vadd.f32 %v1856, %v1851
  %v1858 = vxor.u32 %v1795, 2147483648
  %v1859 = vmul.f32 %v1858, 1.442695
  %v1860 = vpow.pop %v1859
  %v1861 = vadd.f32 %v1860, 1.0
  %v1862 = vrcp.pop %v1861
  %v1863 = vmul.f32 1.0, %v1862
  %v1864 = vtanh.pop %v1795
  %1866 = vrot.lane.b32.xlu0 %v1731, 32
  %v1867 = vpop.permute.xlu0 %1866
  %v1869 = vmul.f32 %v1863, %v1867
  %1871 = vrot.lane.b32.xlu0 %v1864, 32
  %v1872 = vpop.permute.xlu0 %1871
  %v1874 = vmul.f32 %v1863, %v1872
  %1876 = vrot.lane.b32.xlu0 %v1874, 32
  %v1877 = vpop.permute.xlu0 %1876
  %v1879 = vadd.f32 %v1869, %v1877
  %v1880 = vtanh.pop %v1879
  %1882 = vrot.lane.b32.xlu0 %v1880, 32
  %v1883 = vpop.permute.xlu0 %1882
  %v1885 = vmul.f32 %v1863, %v1883
  %v1886 = vxor.u32 %v1857, 2147483648
  %v1887 = vmul.f32 %v1886, 1.442695
  %v1888 = vpow.pop %v1887
  %v1889 = vadd.f32 %v1888, 1.0
  %v1890 = vrcp.pop %v1889
  %v1891 = vmul.f32 1.0, %v1890
  %v1892 = vtanh.pop %v1857
  %1894 = vrot.lane.b32.xlu0 %v1733, 32
  %v1895 = vpop.permute.xlu0 %1894
  %v1897 = vmul.f32 %v1891, %v1895
  %1899 = vrot.lane.b32.xlu0 %v1892, 32
  %v1900 = vpop.permute.xlu0 %1899
  %v1902 = vmul.f32 %v1891, %v1900
  %1904 = vrot.lane.b32.xlu0 %v1902, 32
  %v1905 = vpop.permute.xlu0 %1904
  %v1907 = vadd.f32 %v1897, %v1905
  %v1908 = vtanh.pop %v1907
  %1910 = vrot.lane.b32.xlu0 %v1908, 32
  %v1911 = vpop.permute.xlu0 %1910
  %v1913 = vmul.f32 %v1891, %v1911
  %1915 = vrot.lane.b32.xlu0 %v1730, 64
  %v1916 = vpop.permute.xlu0 %1915
  %v1918 = vsel %vm715, %v1885, %v1916
  %1920 = vrot.lane.b32.xlu0 %v1918, 64
  %v1921 = vpop.permute.xlu0 %1920
  %1923 = vst.msk [vmem:[#allocation3] sm:$0xff] %vm242, %v1921
  %v1924 = vsel %vm715, %v1879, %v1867
  %1926 = vrot.lane.b32.xlu0 %v1924, 96
  %v1927 = vpop.permute.xlu0 %1926
  %1929 = vst.msk [vmem:[#allocation4] sm:$0xff] %vm242, %v1927
  %1931 = vrot.lane.b32.xlu0 %v1732, 64
  %v1932 = vpop.permute.xlu0 %1931
  %v1934 = vsel %vm694, %v1913, %v1932
  %1936 = vrot.lane.b32.xlu0 %v1934, 64
  %v1937 = vpop.permute.xlu0 %1936
  %1939 = vst.msk [vmem:[#allocation5] sm:$0xff] %vm242, %v1937
  %v1940 = vsel %vm694, %v1907, %v1895
  %1942 = vrot.lane.b32.xlu0 %v1940, 96
  %v1943 = vpop.permute.xlu0 %1942
  %1945 = vst.msk [vmem:[#allocation6] sm:$0xff] %vm242, %v1943
  %v1946 = vsel %vm715, %v1885, 0.0
  %v1947 = vpack.c.bf16 %v1946, %v1946
  %v1949 = vunpack.c.l.b16 %v1947
  %v1950 = vpack.c.b16 %v1949, %v1949
  %1951 = vrot.lane.b32.xlu0 %v1950, 64
  %v1952 = vpop.permute.xlu0 %1951
  %1954 = vst.msk [vmem:[%s750] sm:$0xf] %vm487, %v1952
  %v1955 = vsel %vm694, %v1913, 0.0
  %v1956 = vpack.c.bf16 %v1955, %v1955
  %v1958 = vunpack.c.l.b16 %v1956
  %v1959 = vpack.c.b16 %v1958, %v1958
  %1960 = vrot.lane.b32.xlu0 %v1959, 96
  %v1961 = vpop.permute.xlu0 %1960
  %1963 = vst.msk [vmem:[%s740] sm:$0xf] %vm498, %v1961
  %v1964 = vld [vmem:[%s249] sm:$0xf]
  %v1965 = vld [vmem:[#allocation2 + $0x4] sm:$0xf]
  %v1966 = vld [vmem:[#allocation3] sm:$0xff]
  %v1967 = vld [vmem:[#allocation4] sm:$0xff]
  %v1968 = vld [vmem:[#allocation5] sm:$0xff]
  %v1969 = vld [vmem:[#allocation6] sm:$0xff]
  %v1970 = vpack.c.bf16 %v1966, %v1966
  %v1971 = vld [vmem:[%s3] sm:$0xf]
  %v1972 = vld [vmem:[%s3 + $0x4] sm:$0xf]
  %v1973 = vld [vmem:[%s3 + $0x8] sm:$0xf]
  %v1974 = vld [vmem:[%s3 + $0xc] sm:$0xf]
  %v1979 = vunpack.c.l.b16 %v1971
  %v1980 = vunpack.c.l.b16 %v1972
  %v1981 = vunpack.c.l.b16 %v1973
  %v1982 = vunpack.c.l.b16 %v1974
  %v1983 = vpack.c.b16 %v1980, %v1979
  %v1984 = vpack.c.b16 %v1982, %v1981
  %v1988 = vsel %vm242, %v1970, 0
  %1990 = vmatprep.subr.bf16.mxu0 0
  %1991 = vmatpush1.bf16.msra.mxu0 0
  %1992 = vmatprep.subr.bf16.mxu0 0
  %1993 = vmatpush1.bf16.msra.mxu0 0
  %1994 = vmatprep.subr.bf16.mxu0 0
  %1995 = vmatpush1.bf16.msra.mxu0 0
  %1996 = vmatprep.subr.bf16.mxu0 0
  %1997 = vmatpush1.bf16.msra.mxu0 0
  %1998 = vmatprep.subr.bf16.mxu0 0
  %1999 = vmatpush1.bf16.msra.mxu0 0
  %2000 = vmatprep.subr.bf16.mxu0 0
  %2001 = vmatpush1.bf16.msra.mxu0 0
  %2002 = vmatprep.subr.bf16.mxu0 0
  %2003 = vmatpush1.bf16.msra.mxu0 %v1984
  %2004 = vmatprep.subr.bf16.mxu0 0
  %2005 = vmatpush1.bf16.msra.mxu0 %v1983
  %2006 = vmatprep.subr.bf16.mxu0 0
  %2007 = vmatpush2.bf16.msra.mxu0 0
  %2008 = vmatprep.subr.bf16.mxu0 0
  %2009 = vmatpush2.bf16.msra.mxu0 0
  %2010 = vmatprep.subr.bf16.mxu0 0
  %2011 = vmatpush2.bf16.msra.mxu0 0
  %2012 = vmatprep.subr.bf16.mxu0 0
  %2013 = vmatpush2.bf16.msra.mxu0 0
  %2014 = vmatprep.subr.bf16.mxu0 0
  %2015 = vmatpush2.bf16.msra.mxu0 0
  %2016 = vmatprep.subr.bf16.mxu0 0
  %2017 = vmatpush2.bf16.msra.mxu0 0
  %2018 = vmatprep.subr.bf16.mxu0 0
  %2019 = vmatpush2.bf16.msra.mxu0 0
  %2020 = vmatprep.subr.bf16.mxu0 0
  %2021 = vmatpush2.bf16.msra.mxu0 0
  %2022 = vmatprep.mubr.bf16.mxu0 0
  %2023 = vmatmul.mubr.bf16.gmra.mxu0 %v1988
  %v2024 = vpop.f32.mrf.mxu0
  %v2025 = vadd.f32 0.0, %v2024
  %v2026 = vpop.f32.mrf.mxu0
  %v2027 = vpop.f32.mrf.mxu0
  %v2028 = vpop.f32.mrf.mxu0
  %2029 = vdwg.mxu0
  %v2030 = vunpack.c.l.bf16 %v1964
  %v2031 = vadd.f32 %v2030, %v2025
  %v2032 = vpack.c.bf16 %v1968, %v1968
  %v2033 = vld [vmem:[%s4] sm:$0xf]
  %v2034 = vld [vmem:[%s4 + $0x4] sm:$0xf]
  %v2035 = vld [vmem:[%s4 + $0x8] sm:$0xf]
  %v2036 = vld [vmem:[%s4 + $0xc] sm:$0xf]
  %v2041 = vunpack.c.l.b16 %v2033
  %v2042 = vunpack.c.l.b16 %v2034
  %v2043 = vunpack.c.l.b16 %v2035
  %v2044 = vunpack.c.l.b16 %v2036
  %v2045 = vpack.c.b16 %v2042, %v2041
  %v2046 = vpack.c.b16 %v2044, %v2043
  %v2050 = vsel %vm242, %v2032, 0
  %2052 = vmatprep.subr.bf16.mxu0 0
  %2053 = vmatpush1.bf16.msra.mxu0 0
  %2054 = vmatprep.subr.bf16.mxu0 0
  %2055 = vmatpush1.bf16.msra.mxu0 0
  %2056 = vmatprep.subr.bf16.mxu0 0
  %2057 = vmatpush1.bf16.msra.mxu0 0
  %2058 = vmatprep.subr.bf16.mxu0 0
  %2059 = vmatpush1.bf16.msra.mxu0 0
  %2060 = vmatprep.subr.bf16.mxu0 0
  %2061 = vmatpush1.bf16.msra.mxu0 0
  %2062 = vmatprep.subr.bf16.mxu0 0
  %2063 = vmatpush1.bf16.msra.mxu0 0
  %2064 = vmatprep.subr.bf16.mxu0 0
  %2065 = vmatpush1.bf16.msra.mxu0 %v2046
  %2066 = vmatprep.subr.bf16.mxu0 0
  %2067 = vmatpush1.bf16.msra.mxu0 %v2045
  %2068 = vmatprep.subr.bf16.mxu0 0
  %2069 = vmatpush2.bf16.msra.mxu0 0
  %2070 = vmatprep.subr.bf16.mxu0 0
  %2071 = vmatpush2.bf16.msra.mxu0 0
  %2072 = vmatprep.subr.bf16.mxu0 0
  %2073 = vmatpush2.bf16.msra.mxu0 0
  %2074 = vmatprep.subr.bf16.mxu0 0
  %2075 = vmatpush2.bf16.msra.mxu0 0
  %2076 = vmatprep.subr.bf16.mxu0 0
  %2077 = vmatpush2.bf16.msra.mxu0 0
  %2078 = vmatprep.subr.bf16.mxu0 0
  %2079 = vmatpush2.bf16.msra.mxu0 0
  %2080 = vmatprep.subr.bf16.mxu0 0
  %2081 = vmatpush2.bf16.msra.mxu0 0
  %2082 = vmatprep.subr.bf16.mxu0 0
  %2083 = vmatpush2.bf16.msra.mxu0 0
  %2084 = vmatprep.mubr.bf16.mxu0 0
  %2085 = vmatmul.mubr.bf16.gmra.mxu0 %v2050
  %v2086 = vpop.f32.mrf.mxu0
  %v2087 = vadd.f32 0.0, %v2086
  %v2088 = vpop.f32.mrf.mxu0
  %v2089 = vpop.f32.mrf.mxu0
  %v2090 = vpop.f32.mrf.mxu0
  %2091 = vdwg.mxu0
  %v2092 = vunpack.c.l.bf16 %v1965
  %v2093 = vadd.f32 %v2092, %v2087
  %v2094 = vxor.u32 %v2031, 2147483648
  %v2095 = vmul.f32 %v2094, 1.442695
  %v2096 = vpow.pop %v2095
  %v2097 = vadd.f32 %v2096, 1.0
  %v2098 = vrcp.pop %v2097
  %v2099 = vmul.f32 1.0, %v2098
  %v2100 = vtanh.pop %v2031
  %2102 = vrot.lane.b32.xlu0 %v1967, 32
  %v2103 = vpop.permute.xlu0 %2102
  %v2105 = vmul.f32 %v2099, %v2103
  %2107 = vrot.lane.b32.xlu0 %v2100, 32
  %v2108 = vpop.permute.xlu0 %2107
  %v2110 = vmul.f32 %v2099, %v2108
  %2112 = vrot.lane.b32.xlu0 %v2110, 32
  %v2113 = vpop.permute.xlu0 %2112
  %v2115 = vadd.f32 %v2105, %v2113
  %v2116 = vtanh.pop %v2115
  %2118 = vrot.lane.b32.xlu0 %v2116, 32
  %v2119 = vpop.permute.xlu0 %2118
  %v2121 = vmul.f32 %v2099, %v2119
  %v2122 = vxor.u32 %v2093, 2147483648
  %v2123 = vmul.f32 %v2122, 1.442695
  %v2124 = vpow.pop %v2123
  %v2125 = vadd.f32 %v2124, 1.0
  %v2126 = vrcp.pop %v2125
  %v2127 = vmul.f32 1.0, %v2126
  %v2128 = vtanh.pop %v2093
  %2130 = vrot.lane.b32.xlu0 %v1969, 32
  %v2131 = vpop.permute.xlu0 %2130
  %v2133 = vmul.f32 %v2127, %v2131
  %2135 = vrot.lane.b32.xlu0 %v2128, 32
  %v2136 = vpop.permute.xlu0 %2135
  %v2138 = vmul.f32 %v2127, %v2136
  %2140 = vrot.lane.b32.xlu0 %v2138, 32
  %v2141 = vpop.permute.xlu0 %2140
  %v2143 = vadd.f32 %v2133, %v2141
  %v2144 = vtanh.pop %v2143
  %2146 = vrot.lane.b32.xlu0 %v2144, 32
  %v2147 = vpop.permute.xlu0 %2146
  %v2149 = vmul.f32 %v2127, %v2147
  %2151 = vrot.lane.b32.xlu0 %v1966, 64
  %v2152 = vpop.permute.xlu0 %2151
  %v2154 = vsel %vm462, %v2121, %v2152
  %2156 = vrot.lane.b32.xlu0 %v2154, 64
  %v2157 = vpop.permute.xlu0 %2156
  %2159 = vst.msk [vmem:[#allocation3] sm:$0xff] %vm242, %v2157
  %v2160 = vsel %vm462, %v2115, %v2103
  %2162 = vrot.lane.b32.xlu0 %v2160, 96
  %v2163 = vpop.permute.xlu0 %2162
  %2165 = vst.msk [vmem:[#allocation4] sm:$0xff] %vm242, %v2163
  %2167 = vrot.lane.b32.xlu0 %v1968, 64
  %v2168 = vpop.permute.xlu0 %2167
  %v2170 = vsel %vm441, %v2149, %v2168
  %2172 = vrot.lane.b32.xlu0 %v2170, 64
  %v2173 = vpop.permute.xlu0 %2172
  %2175 = vst.msk [vmem:[#allocation5] sm:$0xff] %vm242, %v2173
  %v2176 = vsel %vm441, %v2143, %v2131
  %2178 = vrot.lane.b32.xlu0 %v2176, 96
  %v2179 = vpop.permute.xlu0 %2178
  %2181 = vst.msk [vmem:[#allocation6] sm:$0xff] %vm242, %v2179
  %v2182 = vsel %vm462, %v2121, 0.0
  %v2183 = vpack.c.bf16 %v2182, %v2182
  %v2185 = vunpack.c.l.b16 %v2183
  %v2186 = vpack.c.b16 %v2185, %v2185
  %2187 = vrot.lane.b32.xlu0 %v2186, 64
  %v2188 = vpop.permute.xlu0 %2187
  %2190 = vst.msk [vmem:[%s497] sm:$0xf] %vm487, %v2188
  %v2191 = vsel %vm441, %v2149, 0.0
  %v2192 = vpack.c.bf16 %v2191, %v2191
  %v2194 = vunpack.c.l.b16 %v2192
  %v2195 = vpack.c.b16 %v2194, %v2194
  %2196 = vrot.lane.b32.xlu0 %v2195, 96
  %v2197 = vpop.permute.xlu0 %2196
  %2199 = vst.msk [vmem:[%s6] sm:$0xf] %vm498, %v2197
  // Predicated region
  $region26: #{lstm_forward.2} parent=0 // pred_check
    _
  $region27: #{lstm_forward.2} parent=0 // pred_check_branch
    %2201 = sbr.rel (0) target = $region29
  $region28: #{lstm_forward.2} parent=0 // pred_region
    _
  $region29: #{lstm_forward.2} parent=0 // pred_fallthru
    _
  // Predicated region
  $region30: #{lstm_forward.2} parent=0 // pred_check
    _
  $region31: #{lstm_forward.2} parent=0 // pred_check_branch
    %2203 = sbr.rel (0) target = $region33
  $region32: #{lstm_forward.2} parent=0 // pred_region
    _
  $region33: #{lstm_forward.2} parent=0 // pred_fallthru
    _

</llo_original>
